<compile_context>
chip_gen: v6e
topology: v6e:2x2x1
jax: 0.10.0
libtpu: 0.0.40
codegen_flags: <defaults>
</compile_context>

<pallas_src>
import math

import numpy as np
import jax
import jax.numpy as jnp
from jax.experimental import pallas as pl
from jax.experimental.pallas import tpu as pltpu


# ----------------------------------------------------------------------------
# Constant geometry for the flat-padded (channels, spatial-on-lanes) layout
# ----------------------------------------------------------------------------
N1 = 33                    # full-res spatial size (after nearest 32 -> 33)
WP1 = N1 + 2               # padded row pitch (35)
NPIX1 = WP1 * WP1          # 1225 padded pixels per image
NV1 = N1 * WP1             # 1155 lanes that carry real conv outputs
B1 = 1280                  # per-image lane buffer (10 aligned vregs, >= NPIX1 + slack)
LC1 = B1 - 2 * WP1 - 2     # 1208: 33-level conv output length
LM1 = B1 - WP1 - 1         # 1244: pooled-corner-max buffer length

N2 = 16                    # bottleneck spatial size (33 // 2)
WP2 = N2 + 2               # 18
NV2 = N2 * WP2             # 288
B2 = WP2 * WP2 + 2         # 326: padded-flat-16 + 2 slack lanes
LC2 = B2 - 2 * WP2 - 2     # 288: 16-level conv output length

BASE = 4                   # U-Net base channel count


def _build_constants():
    """Constant 0/1 matrices (numpy, built once)."""
    # Interior mask of a length-B1 flat-padded image: 1 at lane (i+1)*35+(j+1).
    mask = np.zeros((1, B1), np.float32)
    for i in range(N1):
        for j in range(N1):
            mask[0, (i + 1) * WP1 + (j + 1)] = 1.0
    # 2x2-pool corner selector: lane 70a+2b+36 of the corner-max buffer ->
    # padded-flat-16 lane (a+1)*18+(b+1) (border / slack lanes stay zero).
    sel = np.zeros((LM1, B2), np.float32)
    for a in range(N2):
        for b in range(N2):
            sel[70 * a + 2 * b + 36, (a + 1) * WP2 + (b + 1)] = 1.0
    # Nearest 16->33 upsample (torch floor(i*16/33) rule) fused with re-padding
    # back to the flat-padded-33 layout.
    up = np.zeros((NV2, B1), np.float32)
    for i in range(N1):
        si = (i * N2) // N1
        for j in range(N1):
            sj = (j * N2) // N1
            up[si * WP2 + sj, (i + 1) * WP1 + (j + 1)] = 1.0
    return mask, sel, up


_MASK_NP, _SEL_NP, _UP_NP = _build_constants()


# ----------------------------------------------------------------------------
# Fused Pallas kernel: the whole single_forward (UNet1 -> concat -> UNet2)
# for one image per grid step; everything stays in VMEM.
# ----------------------------------------------------------------------------
def _conv3x3(wstack, bias, xp, cout, pitch):
    """3x3 / stride-1 / pad-1 conv in (C, flat-padded-spatial) layout.

    One MXU matmul (9*cout, cin) @ (cin, L), then the 9 taps are summed as
    lane-shifted slices of the result.  Output lane r holds the conv value of
    flat output pixel r (lanes past the real image / junk columns hold finite
    garbage that callers mask or ignore).
    """
    f32 = jnp.float32
    L = xp.shape[1]
    n = L - 2 * pitch - 2
    y = jnp.dot(wstack, xp, preferred_element_type=f32)      # (9*cout, L)
    acc = None
    for dy in range(3):
        for dx in range(3):
            t = dy * 3 + dx
            off = dy * pitch + dx
            term = y[t * cout:(t + 1) * cout, off:off + n]
            acc = term if acc is None else acc + term
    return acc + bias                                        # (cout, n)


def _unet(P, xp, cin, mask, sel, upm):
    """One synthesized 2-level U-Net on a (cin, B1) flat-padded image."""
    f32 = jnp.float32
    base = BASE
    # Packed parameter slices (see _pack_unet for the layout).
    w1 = P[0:9 * base, 16:16 + cin]            # (36, cin)
    w2 = P[0:9 * 2 * base, 0:base]             # (72, 4)
    w3 = P[0:9 * base, 4:4 + 3 * base]         # (36, 12)
    w4 = P[0:1, 20:20 + base]                  # (1, 4)   1x1 head
    b1 = P[0:base, 24:25]
    b2 = P[0:2 * base, 25:26]
    b3 = P[0:base, 26:27]
    b4 = P[0:1, 27:28]

    # Encoder conv + ReLU, re-embedded as a zero-bordered padded image.
    e1 = jnp.maximum(_conv3x3(w1, b1, xp, base, WP1), 0.0)         # (4, LC1)
    z = jnp.zeros((base, WP1 + 1), f32)
    e1_p = jnp.concatenate([z, e1, z], axis=1) * mask              # (4, B1)

    # 2x2 max-pool: max of the 4 window corners (lane-shifted slices) ...
    m4 = jnp.maximum(
        jnp.maximum(e1_p[:, 0:LM1], e1_p[:, 1:1 + LM1]),
        jnp.maximum(e1_p[:, WP1:WP1 + LM1], e1_p[:, WP1 + 1:WP1 + 1 + LM1]))
    # ... then a 0/1 selector gathers the stride-2 corners straight into the
    # padded-flat-16 layout (also supplies its zero border).
    dn_p = jnp.dot(m4, sel, preferred_element_type=f32)            # (4, B2)

    # Bottleneck conv + ReLU.
    bo = jnp.maximum(_conv3x3(w2, b2, dn_p, 2 * base, WP2), 0.0)   # (8, LC2)

    # Nearest 16->33 upsample fused with re-padding (0/1 matmul).
    up_p = jnp.dot(bo, upm, preferred_element_type=f32)            # (8, B1)

    # Skip concat (sublane axis) + decoder conv + ReLU + 1x1 head.
    cat = jnp.concatenate([e1_p, up_p], axis=0)                    # (12, B1)
    d1 = jnp.maximum(_conv3x3(w3, b3, cat, base, WP1), 0.0)        # (4, LC1)
    return jnp.dot(w4, d1, preferred_element_type=f32) + b4        # (1, LC1)


def _decoder_kernel(x_ref, p1_ref, p2_ref, mask_ref, sel_ref, up_ref, o_ref):
    f32 = jnp.float32
    xp = x_ref[0]                    # (2, B1)   flat-padded input image
    mask = mask_ref[...]             # (1, B1)
    sel = sel_ref[...]               # (LM1, B2)
    upm = up_ref[...]                # (NV2, B1)

    out1 = _unet(p1_ref[...], xp, 2, mask, sel, upm)               # (1, LC1)
    z1 = jnp.zeros((1, WP1 + 1), f32)
    out1_p = jnp.concatenate([z1, out1, z1], axis=1) * mask        # (1, B1)
    x2 = jnp.concatenate([xp, out1_p], axis=0)                     # (3, B1)
    out2 = _unet(p2_ref[...], x2, 3, mask, sel, upm)               # (1, LC1)
    o_ref[0] = out2.astype(o_ref.dtype)


# ----------------------------------------------------------------------------
# Parameters (deterministic, synthetic -- same architecture as before)
# ----------------------------------------------------------------------------
def _init_conv(key, k, cin, cout):
    kw, kb = jax.random.split(key)
    scale = 1.0 / math.sqrt(k * k * cin)
    w = jax.random.uniform(kw, (k, k, cin, cout), jnp.float32, -scale, scale)
    b = jax.random.uniform(kb, (cout,), jnp.float32, -scale, scale)
    return w, b


def init_unet_params(key, c_in, base=BASE):
    k1, k2, k3, k4 = jax.random.split(key, 4)
    w1, b1 = _init_conv(k1, 3, c_in, base)          # encoder
    w2, b2 = _init_conv(k2, 3, base, 2 * base)      # bottleneck
    w3, b3 = _init_conv(k3, 3, 3 * base, base)      # decoder (skip concat)
    w4, b4 = _init_conv(k4, 1, base, 1)             # 1x1 head -> 1 channel
    return {"w1": w1, "b1": b1, "w2": w2, "b2": b2,
            "w3": w3, "b3": b3, "w4": w4, "b4": b4}


def init_image_decoder(key):
    k1, k2 = jax.random.split(key)
    return {"net1": init_unet_params(k1, 2), "net2": init_unet_params(k2, 3)}


def _pack_unet(p):
    """Pack one U-Net's weights/biases into a single (72, 32) f32 matrix.

    cols  0: 4   W2 stack (9*2*base rows, base cols)   (tap-major, transposed)
    cols  4:16   W3 stack (9*base rows, 3*base cols)
    cols 16:19   W1 stack (9*base rows, cin cols)
    cols 20:24   W4       (1 row, base cols)
    col  24..27  b1, b2, b3, b4 (down the sublanes)
    """
    base = BASE
    cin = p["w1"].shape[2]

    def stack(w):   # HWIO (k,k,ci,co) -> (k*k*co, ci), tap-major
        k, _, ci, co = w.shape
        return jnp.transpose(w, (0, 1, 3, 2)).reshape(k * k * co, ci)

    P = jnp.zeros((72, 32), jnp.float32)
    P = P.at[0:9 * 2 * base, 0:base].set(stack(p["w2"]))
    P = P.at[0:9 * base, 4:4 + 3 * base].set(stack(p["w3"]))
    P = P.at[0:9 * base, 16:16 + cin].set(stack(p["w1"]))
    P = P.at[0:1, 20:20 + base].set(stack(p["w4"]))
    P = P.at[0:base, 24].set(p["b1"])
    P = P.at[0:2 * base, 25].set(p["b2"])
    P = P.at[0:base, 26].set(p["b3"])
    P = P.at[0:1, 27].set(p["b4"])
    return P


# ----------------------------------------------------------------------------
# Wrapper: one jitted launch for the whole stacked batch
# ----------------------------------------------------------------------------
@jax.jit
def _decode_batch(params, x_nchw):
    bt = x_nchw.shape[0]

    # Input prep on the tiny raw input (cheap XLA): nearest 32 -> 33
    # (torch F.interpolate rule), zero-pad, flatten to lane-major layout.
    idx = (jnp.arange(N1) * 32) // N1
    x = jnp.take(x_nchw, idx, axis=2)
    x = jnp.take(x, idx, axis=3)                          # (bt, 2, 33, 33)
    x = jnp.pad(x, ((0, 0), (0, 0), (1, 1), (1, 1)))      # (bt, 2, 35, 35)
    x = x.reshape(bt, 2, NPIX1)
    x = jnp.pad(x, ((0, 0), (0, 0), (0, B1 - NPIX1)))     # (bt, 2, B1)

    args = (x,
            _pack_unet(params["net1"]), _pack_unet(params["net2"]),
            jnp.asarray(_MASK_NP), jnp.asarray(_SEL_NP), jnp.asarray(_UP_NP))

    out = pl.pallas_call(
        _decoder_kernel,
        out_shape=jax.ShapeDtypeStruct((bt, 1, LC1), jnp.float32),
        grid=(bt,),
        in_specs=[
            pl.BlockSpec((1, 2, B1), lambda i: (i, 0, 0)),   # per-image input
            pl.BlockSpec((72, 32), lambda i: (0, 0)),        # packed UNet1 params
            pl.BlockSpec((72, 32), lambda i: (0, 0)),        # packed UNet2 params
            pl.BlockSpec((1, B1), lambda i: (0, 0)),         # interior mask
            pl.BlockSpec((LM1, B2), lambda i: (0, 0)),       # pool selector
            pl.BlockSpec((NV2, B1), lambda i: (0, 0)),       # upsample selector
        ],
        out_specs=pl.BlockSpec((1, 1, LC1), lambda i: (i, 0, 0)),
        compiler_params=pltpu.CompilerParams(
            dimension_semantics=("parallel",),
            vmem_limit_bytes=32 * 1024 * 1024,
        ),
    )(*args)

    # Drop slack lanes and the 2 junk columns of the 35-pitch rows.
    out = out[:, :, :NV1].reshape(bt, 1, N1, WP1)[:, :, :, :N1]
    return out                                            # (bt, 1, 33, 33) NCHW


def image_decoder_forward(params, x_set):
    i_shape = x_set[0].shape
    batch_size = i_shape[0] if len(i_shape) > 1 else 1
    n_set = len(x_set)
    # One jit dispatch / one pallas_call for the whole set.
    xs = jnp.concatenate(
        [x.reshape(batch_size, 2, 32, 32) for x in x_set], axis=0)
    out = _decode_batch(params, xs)                       # (n_set*B, 1, 33, 33)
    return [out[k * batch_size:(k + 1) * batch_size] for k in range(n_set)]


# ----------------------------------------------------------------------------
# Pure-JAX reference (same synthesized architecture) for numerical checking
# ----------------------------------------------------------------------------
def _ref_conv(x, w, b, relu, padding):
    out = jax.lax.conv_general_dilated(
        x, w, window_strides=(1, 1),
        padding=((padding, padding), (padding, padding)),
        dimension_numbers=("NHWC", "HWIO", "NHWC"),
        precision=jax.lax.Precision.HIGHEST)
    out = out + b
    return jnp.maximum(out, 0.0) if relu else out


def _ref_unet(p, x):
    e1 = _ref_conv(x, p["w1"], p["b1"], True, 1)
    bsz, h, w, c = e1.shape
    dn = e1[:, :2 * (h // 2), :2 * (w // 2), :].reshape(
        bsz, h // 2, 2, w // 2, 2, c).max(axis=(2, 4))
    bo = _ref_conv(dn, p["w2"], p["b2"], True, 1)
    ih = (jnp.arange(h) * (h // 2)) // h
    up = bo[:, ih, :, :][:, :, ih, :]
    d1 = _ref_conv(jnp.concatenate([e1, up], axis=-1), p["w3"], p["b3"], True, 1)
    return _ref_conv(d1, p["w4"], p["b4"], False, 0)


@jax.jit
def _ref_decode(params, x_nchw):
    idx = (jnp.arange(N1) * 32) // N1
    x = jnp.take(jnp.take(x_nchw, idx, axis=2), idx, axis=3)
    x = jnp.transpose(x, (0, 2, 3, 1))
    o1 = _ref_unet(params["net1"], x)
    o2 = _ref_unet(params["net2"], jnp.concatenate([x, o1], axis=-1))
    return jnp.transpose(o2, (0, 3, 1, 2))


if __name__ == "__main__":
    key = jax.random.PRNGKey(0)
    k_in1, k_in2, k_par = jax.random.split(key, 3)

    batch = 2
    x_set = [
        jax.random.normal(k_in1, (batch, 2 * 32 * 32), jnp.float32),
        jax.random.normal(k_in2, (batch, 2 * 32 * 32), jnp.float32),
    ]
    params = init_image_decoder(k_par)

    outs = image_decoder_forward(params, x_set)
    outs = [jax.block_until_ready(o) for o in outs]

    assert len(outs) == len(x_set)
    for x, o in zip(x_set, outs):
        assert o.shape == (batch, 1, 33, 33), o.shape
        assert o.dtype == jnp.float32
        assert bool(jnp.all(jnp.isfinite(o)))
        ref = _ref_decode(params, x.reshape(batch, 2, 32, 32))
        err = float(jnp.max(jnp.abs(o - ref)))
        assert err < 2e-3, f"mismatch vs reference: {err}"

    print("KERNEL_OK")
</pallas_src>

<mosaic_0001>
module attributes {stable_mosaic.version = 11 : i64} {
  func.func @_decoder_kernel(%arg0: i32, %arg1: memref<1x2x1280xf32, #tpu.memory_space<vmem>>, %arg2: memref<72x32xf32, #tpu.memory_space<vmem>>, %arg3: memref<72x32xf32, #tpu.memory_space<vmem>>, %arg4: memref<1x1280xf32, #tpu.memory_space<vmem>>, %arg5: memref<1244x326xf32, #tpu.memory_space<vmem>>, %arg6: memref<288x1280xf32, #tpu.memory_space<vmem>>, %arg7: memref<1x1x1208xf32, #tpu.memory_space<vmem>>) attributes {dimension_semantics = [#tpu.dimension_semantics<parallel>], iteration_bounds = array<i64: 4>, scalar_prefetch = 0 : i64, scratch_operands = 0 : i64, tpu.core_type = #tpu.core_type<tc>, window_params = [{transform_indices = @transform_0, window_bounds = array<i64: 1, 2, 1280>}, {pipeline_mode = #tpu.pipeline_mode<synchronous>, transform_indices = @transform_1, window_bounds = array<i64: 72, 32>}, {pipeline_mode = #tpu.pipeline_mode<synchronous>, transform_indices = @transform_2, window_bounds = array<i64: 72, 32>}, {pipeline_mode = #tpu.pipeline_mode<synchronous>, transform_indices = @transform_3, window_bounds = array<i64: 1, 1280>}, {pipeline_mode = #tpu.pipeline_mode<synchronous>, transform_indices = @transform_4, window_bounds = array<i64: 1244, 326>}, {pipeline_mode = #tpu.pipeline_mode<synchronous>, transform_indices = @transform_5, window_bounds = array<i64: 288, 1280>}, {transform_indices = @transform_6, window_bounds = array<i64: 1, 1, 1208>}]} {
    %c0 = arith.constant 0 : index
    %c0_0 = arith.constant 0 : index
    %c0_1 = arith.constant 0 : index
    %0 = vector.load %arg1[%c0, %c0_0, %c0_1] : memref<1x2x1280xf32, #tpu.memory_space<vmem>>, vector<1x2x1280xf32>
    %1 = vector.shape_cast %0 : vector<1x2x1280xf32> to vector<2x1280xf32>
    %c0_2 = arith.constant 0 : index
    %c0_3 = arith.constant 0 : index
    %2 = vector.load %arg4[%c0_2, %c0_3] : memref<1x1280xf32, #tpu.memory_space<vmem>>, vector<1x1280xf32>
    %c0_4 = arith.constant 0 : index
    %c0_5 = arith.constant 0 : index
    %3 = vector.load %arg5[%c0_4, %c0_5] : memref<1244x326xf32, #tpu.memory_space<vmem>>, vector<1244x326xf32>
    %c0_6 = arith.constant 0 : index
    %c0_7 = arith.constant 0 : index
    %4 = vector.load %arg6[%c0_6, %c0_7] : memref<288x1280xf32, #tpu.memory_space<vmem>>, vector<288x1280xf32>
    %c0_8 = arith.constant 0 : index
    %c0_9 = arith.constant 0 : index
    %5 = vector.load %arg2[%c0_8, %c0_9] : memref<72x32xf32, #tpu.memory_space<vmem>>, vector<72x32xf32>
    %6 = vector.extract_strided_slice %5 {offsets = [0, 16], sizes = [36, 2], strides = [1, 1]} : vector<72x32xf32> to vector<36x2xf32>
    %7 = vector.extract_strided_slice %5 {offsets = [0, 0], sizes = [72, 4], strides = [1, 1]} : vector<72x32xf32> to vector<72x4xf32>
    %8 = vector.extract_strided_slice %5 {offsets = [0, 4], sizes = [36, 12], strides = [1, 1]} : vector<72x32xf32> to vector<36x12xf32>
    %9 = vector.extract_strided_slice %5 {offsets = [0, 20], sizes = [1, 4], strides = [1, 1]} : vector<72x32xf32> to vector<1x4xf32>
    %10 = vector.extract_strided_slice %5 {offsets = [0, 24], sizes = [4, 1], strides = [1, 1]} : vector<72x32xf32> to vector<4x1xf32>
    %11 = vector.extract_strided_slice %5 {offsets = [0, 25], sizes = [8, 1], strides = [1, 1]} : vector<72x32xf32> to vector<8x1xf32>
    %12 = vector.extract_strided_slice %5 {offsets = [0, 26], sizes = [4, 1], strides = [1, 1]} : vector<72x32xf32> to vector<4x1xf32>
    %13 = vector.extract_strided_slice %5 {offsets = [0, 27], sizes = [1, 1], strides = [1, 1]} : vector<72x32xf32> to vector<1x1xf32>
    %cst = arith.constant dense<0.000000e+00> : vector<36x1280xf32>
    %14 = tpu.matmul %6, %1, %cst {dimension_numbers = #tpu.dot_dimension_numbers<[1], [0], [0], [1], [0, 0, 1, 1], [], []>} : vector<36x2xf32>, vector<2x1280xf32>, vector<36x1280xf32> -> vector<36x1280xf32>
    %15 = vector.extract_strided_slice %14 {offsets = [0, 0], sizes = [4, 1208], strides = [1, 1]} : vector<36x1280xf32> to vector<4x1208xf32>
    %16 = vector.extract_strided_slice %14 {offsets = [4, 1], sizes = [4, 1208], strides = [1, 1]} : vector<36x1280xf32> to vector<4x1208xf32>
    %17 = arith.addf %15, %16 : vector<4x1208xf32>
    %18 = vector.extract_strided_slice %14 {offsets = [8, 2], sizes = [4, 1208], strides = [1, 1]} : vector<36x1280xf32> to vector<4x1208xf32>
    %19 = arith.addf %17, %18 : vector<4x1208xf32>
    %20 = vector.extract_strided_slice %14 {offsets = [12, 35], sizes = [4, 1208], strides = [1, 1]} : vector<36x1280xf32> to vector<4x1208xf32>
    %21 = arith.addf %19, %20 : vector<4x1208xf32>
    %22 = vector.extract_strided_slice %14 {offsets = [16, 36], sizes = [4, 1208], strides = [1, 1]} : vector<36x1280xf32> to vector<4x1208xf32>
    %23 = arith.addf %21, %22 : vector<4x1208xf32>
    %24 = vector.extract_strided_slice %14 {offsets = [20, 37], sizes = [4, 1208], strides = [1, 1]} : vector<36x1280xf32> to vector<4x1208xf32>
    %25 = arith.addf %23, %24 : vector<4x1208xf32>
    %26 = vector.extract_strided_slice %14 {offsets = [24, 70], sizes = [4, 1208], strides = [1, 1]} : vector<36x1280xf32> to vector<4x1208xf32>
    %27 = arith.addf %25, %26 : vector<4x1208xf32>
    %28 = vector.extract_strided_slice %14 {offsets = [28, 71], sizes = [4, 1208], strides = [1, 1]} : vector<36x1280xf32> to vector<4x1208xf32>
    %29 = arith.addf %27, %28 : vector<4x1208xf32>
    %30 = vector.extract_strided_slice %14 {offsets = [32, 72], sizes = [4, 1208], strides = [1, 1]} : vector<36x1280xf32> to vector<4x1208xf32>
    %31 = arith.addf %29, %30 : vector<4x1208xf32>
    %32 = vector.broadcast %10 : vector<4x1xf32> to vector<4x1208xf32>
    %33 = arith.addf %31, %32 : vector<4x1208xf32>
    %cst_10 = arith.constant 0.000000e+00 : f32
    %34 = vector.broadcast %cst_10 : f32 to vector<4x1208xf32>
    %35 = arith.maximumf %33, %34 : vector<4x1208xf32>
    %cst_11 = arith.constant 0.000000e+00 : f32
    %36 = vector.broadcast %cst_11 : f32 to vector<4x36xf32>
    %37 = tpu.concatenate %36, %35, %36 in 1 : vector<4x36xf32>, vector<4x1208xf32>, vector<4x36xf32> -> vector<4x1280xf32>
    %38 = vector.broadcast %2 : vector<1x1280xf32> to vector<4x1280xf32>
    %39 = arith.mulf %37, %38 : vector<4x1280xf32>
    %40 = vector.extract_strided_slice %39 {offsets = [0, 0], sizes = [4, 1244], strides = [1, 1]} : vector<4x1280xf32> to vector<4x1244xf32>
    %41 = vector.extract_strided_slice %39 {offsets = [0, 1], sizes = [4, 1244], strides = [1, 1]} : vector<4x1280xf32> to vector<4x1244xf32>
    %42 = arith.maximumf %40, %41 : vector<4x1244xf32>
    %43 = vector.extract_strided_slice %39 {offsets = [0, 35], sizes = [4, 1244], strides = [1, 1]} : vector<4x1280xf32> to vector<4x1244xf32>
    %44 = vector.extract_strided_slice %39 {offsets = [0, 36], sizes = [4, 1244], strides = [1, 1]} : vector<4x1280xf32> to vector<4x1244xf32>
    %45 = arith.maximumf %43, %44 : vector<4x1244xf32>
    %46 = arith.maximumf %42, %45 : vector<4x1244xf32>
    %cst_12 = arith.constant dense<0.000000e+00> : vector<4x326xf32>
    %47 = tpu.matmul %46, %3, %cst_12 {dimension_numbers = #tpu.dot_dimension_numbers<[1], [0], [0], [1], [0, 0, 1, 1], [], []>} : vector<4x1244xf32>, vector<1244x326xf32>, vector<4x326xf32> -> vector<4x326xf32>
    %cst_13 = arith.constant dense<0.000000e+00> : vector<72x326xf32>
    %48 = tpu.matmul %7, %47, %cst_13 {dimension_numbers = #tpu.dot_dimension_numbers<[1], [0], [0], [1], [0, 0, 1, 1], [], []>} : vector<72x4xf32>, vector<4x326xf32>, vector<72x326xf32> -> vector<72x326xf32>
    %49 = vector.extract_strided_slice %48 {offsets = [0, 0], sizes = [8, 288], strides = [1, 1]} : vector<72x326xf32> to vector<8x288xf32>
    %50 = vector.extract_strided_slice %48 {offsets = [8, 1], sizes = [8, 288], strides = [1, 1]} : vector<72x326xf32> to vector<8x288xf32>
    %51 = arith.addf %49, %50 : vector<8x288xf32>
    %52 = vector.extract_strided_slice %48 {offsets = [16, 2], sizes = [8, 288], strides = [1, 1]} : vector<72x326xf32> to vector<8x288xf32>
    %53 = arith.addf %51, %52 : vector<8x288xf32>
    %54 = vector.extract_strided_slice %48 {offsets = [24, 18], sizes = [8, 288], strides = [1, 1]} : vector<72x326xf32> to vector<8x288xf32>
    %55 = arith.addf %53, %54 : vector<8x288xf32>
    %56 = vector.extract_strided_slice %48 {offsets = [32, 19], sizes = [8, 288], strides = [1, 1]} : vector<72x326xf32> to vector<8x288xf32>
    %57 = arith.addf %55, %56 : vector<8x288xf32>
    %58 = vector.extract_strided_slice %48 {offsets = [40, 20], sizes = [8, 288], strides = [1, 1]} : vector<72x326xf32> to vector<8x288xf32>
    %59 = arith.addf %57, %58 : vector<8x288xf32>
    %60 = vector.extract_strided_slice %48 {offsets = [48, 36], sizes = [8, 288], strides = [1, 1]} : vector<72x326xf32> to vector<8x288xf32>
    %61 = arith.addf %59, %60 : vector<8x288xf32>
    %62 = vector.extract_strided_slice %48 {offsets = [56, 37], sizes = [8, 288], strides = [1, 1]} : vector<72x326xf32> to vector<8x288xf32>
    %63 = arith.addf %61, %62 : vector<8x288xf32>
    %64 = vector.extract_strided_slice %48 {offsets = [64, 38], sizes = [8, 288], strides = [1, 1]} : vector<72x326xf32> to vector<8x288xf32>
    %65 = arith.addf %63, %64 : vector<8x288xf32>
    %66 = vector.broadcast %11 : vector<8x1xf32> to vector<8x288xf32>
    %67 = arith.addf %65, %66 : vector<8x288xf32>
    %cst_14 = arith.constant 0.000000e+00 : f32
    %68 = vector.broadcast %cst_14 : f32 to vector<8x288xf32>
    %69 = arith.maximumf %67, %68 : vector<8x288xf32>
    %cst_15 = arith.constant dense<0.000000e+00> : vector<8x1280xf32>
    %70 = tpu.matmul %69, %4, %cst_15 {dimension_numbers = #tpu.dot_dimension_numbers<[1], [0], [0], [1], [0, 0, 1, 1], [], []>} : vector<8x288xf32>, vector<288x1280xf32>, vector<8x1280xf32> -> vector<8x1280xf32>
    %71 = tpu.concatenate %39, %70 in 0 : vector<4x1280xf32>, vector<8x1280xf32> -> vector<12x1280xf32>
    %cst_16 = arith.constant dense<0.000000e+00> : vector<36x1280xf32>
    %72 = tpu.matmul %8, %71, %cst_16 {dimension_numbers = #tpu.dot_dimension_numbers<[1], [0], [0], [1], [0, 0, 1, 1], [], []>} : vector<36x12xf32>, vector<12x1280xf32>, vector<36x1280xf32> -> vector<36x1280xf32>
    %73 = vector.extract_strided_slice %72 {offsets = [0, 0], sizes = [4, 1208], strides = [1, 1]} : vector<36x1280xf32> to vector<4x1208xf32>
    %74 = vector.extract_strided_slice %72 {offsets = [4, 1], sizes = [4, 1208], strides = [1, 1]} : vector<36x1280xf32> to vector<4x1208xf32>
    %75 = arith.addf %73, %74 : vector<4x1208xf32>
    %76 = vector.extract_strided_slice %72 {offsets = [8, 2], sizes = [4, 1208], strides = [1, 1]} : vector<36x1280xf32> to vector<4x1208xf32>
    %77 = arith.addf %75, %76 : vector<4x1208xf32>
    %78 = vector.extract_strided_slice %72 {offsets = [12, 35], sizes = [4, 1208], strides = [1, 1]} : vector<36x1280xf32> to vector<4x1208xf32>
    %79 = arith.addf %77, %78 : vector<4x1208xf32>
    %80 = vector.extract_strided_slice %72 {offsets = [16, 36], sizes = [4, 1208], strides = [1, 1]} : vector<36x1280xf32> to vector<4x1208xf32>
    %81 = arith.addf %79, %80 : vector<4x1208xf32>
    %82 = vector.extract_strided_slice %72 {offsets = [20, 37], sizes = [4, 1208], strides = [1, 1]} : vector<36x1280xf32> to vector<4x1208xf32>
    %83 = arith.addf %81, %82 : vector<4x1208xf32>
    %84 = vector.extract_strided_slice %72 {offsets = [24, 70], sizes = [4, 1208], strides = [1, 1]} : vector<36x1280xf32> to vector<4x1208xf32>
    %85 = arith.addf %83, %84 : vector<4x1208xf32>
    %86 = vector.extract_strided_slice %72 {offsets = [28, 71], sizes = [4, 1208], strides = [1, 1]} : vector<36x1280xf32> to vector<4x1208xf32>
    %87 = arith.addf %85, %86 : vector<4x1208xf32>
    %88 = vector.extract_strided_slice %72 {offsets = [32, 72], sizes = [4, 1208], strides = [1, 1]} : vector<36x1280xf32> to vector<4x1208xf32>
    %89 = arith.addf %87, %88 : vector<4x1208xf32>
    %90 = vector.broadcast %12 : vector<4x1xf32> to vector<4x1208xf32>
    %91 = arith.addf %89, %90 : vector<4x1208xf32>
    %cst_17 = arith.constant 0.000000e+00 : f32
    %92 = vector.broadcast %cst_17 : f32 to vector<4x1208xf32>
    %93 = arith.maximumf %91, %92 : vector<4x1208xf32>
    %cst_18 = arith.constant dense<0.000000e+00> : vector<1x1208xf32>
    %94 = tpu.matmul %9, %93, %cst_18 {dimension_numbers = #tpu.dot_dimension_numbers<[1], [0], [0], [1], [0, 0, 1, 1], [], []>} : vector<1x4xf32>, vector<4x1208xf32>, vector<1x1208xf32> -> vector<1x1208xf32>
    %95 = vector.broadcast %13 : vector<1x1xf32> to vector<1x1208xf32>
    %96 = arith.addf %94, %95 : vector<1x1208xf32>
    %cst_19 = arith.constant 0.000000e+00 : f32
    %97 = vector.broadcast %cst_19 : f32 to vector<1x36xf32>
    %98 = tpu.concatenate %97, %96, %97 in 1 : vector<1x36xf32>, vector<1x1208xf32>, vector<1x36xf32> -> vector<1x1280xf32>
    %99 = arith.mulf %98, %2 : vector<1x1280xf32>
    %100 = tpu.concatenate %1, %99 in 0 : vector<2x1280xf32>, vector<1x1280xf32> -> vector<3x1280xf32>
    %c0_20 = arith.constant 0 : index
    %c0_21 = arith.constant 0 : index
    %101 = vector.load %arg3[%c0_20, %c0_21] : memref<72x32xf32, #tpu.memory_space<vmem>>, vector<72x32xf32>
    %102 = vector.extract_strided_slice %101 {offsets = [0, 16], sizes = [36, 3], strides = [1, 1]} : vector<72x32xf32> to vector<36x3xf32>
    %103 = vector.extract_strided_slice %101 {offsets = [0, 0], sizes = [72, 4], strides = [1, 1]} : vector<72x32xf32> to vector<72x4xf32>
    %104 = vector.extract_strided_slice %101 {offsets = [0, 4], sizes = [36, 12], strides = [1, 1]} : vector<72x32xf32> to vector<36x12xf32>
    %105 = vector.extract_strided_slice %101 {offsets = [0, 20], sizes = [1, 4], strides = [1, 1]} : vector<72x32xf32> to vector<1x4xf32>
    %106 = vector.extract_strided_slice %101 {offsets = [0, 24], sizes = [4, 1], strides = [1, 1]} : vector<72x32xf32> to vector<4x1xf32>
    %107 = vector.extract_strided_slice %101 {offsets = [0, 25], sizes = [8, 1], strides = [1, 1]} : vector<72x32xf32> to vector<8x1xf32>
    %108 = vector.extract_strided_slice %101 {offsets = [0, 26], sizes = [4, 1], strides = [1, 1]} : vector<72x32xf32> to vector<4x1xf32>
    %109 = vector.extract_strided_slice %101 {offsets = [0, 27], sizes = [1, 1], strides = [1, 1]} : vector<72x32xf32> to vector<1x1xf32>
    %cst_22 = arith.constant dense<0.000000e+00> : vector<36x1280xf32>
    %110 = tpu.matmul %102, %100, %cst_22 {dimension_numbers = #tpu.dot_dimension_numbers<[1], [0], [0], [1], [0, 0, 1, 1], [], []>} : vector<36x3xf32>, vector<3x1280xf32>, vector<36x1280xf32> -> vector<36x1280xf32>
    %111 = vector.extract_strided_slice %110 {offsets = [0, 0], sizes = [4, 1208], strides = [1, 1]} : vector<36x1280xf32> to vector<4x1208xf32>
    %112 = vector.extract_strided_slice %110 {offsets = [4, 1], sizes = [4, 1208], strides = [1, 1]} : vector<36x1280xf32> to vector<4x1208xf32>
    %113 = arith.addf %111, %112 : vector<4x1208xf32>
    %114 = vector.extract_strided_slice %110 {offsets = [8, 2], sizes = [4, 1208], strides = [1, 1]} : vector<36x1280xf32> to vector<4x1208xf32>
    %115 = arith.addf %113, %114 : vector<4x1208xf32>
    %116 = vector.extract_strided_slice %110 {offsets = [12, 35], sizes = [4, 1208], strides = [1, 1]} : vector<36x1280xf32> to vector<4x1208xf32>
    %117 = arith.addf %115, %116 : vector<4x1208xf32>
    %118 = vector.extract_strided_slice %110 {offsets = [16, 36], sizes = [4, 1208], strides = [1, 1]} : vector<36x1280xf32> to vector<4x1208xf32>
    %119 = arith.addf %117, %118 : vector<4x1208xf32>
    %120 = vector.extract_strided_slice %110 {offsets = [20, 37], sizes = [4, 1208], strides = [1, 1]} : vector<36x1280xf32> to vector<4x1208xf32>
    %121 = arith.addf %119, %120 : vector<4x1208xf32>
    %122 = vector.extract_strided_slice %110 {offsets = [24, 70], sizes = [4, 1208], strides = [1, 1]} : vector<36x1280xf32> to vector<4x1208xf32>
    %123 = arith.addf %121, %122 : vector<4x1208xf32>
    %124 = vector.extract_strided_slice %110 {offsets = [28, 71], sizes = [4, 1208], strides = [1, 1]} : vector<36x1280xf32> to vector<4x1208xf32>
    %125 = arith.addf %123, %124 : vector<4x1208xf32>
    %126 = vector.extract_strided_slice %110 {offsets = [32, 72], sizes = [4, 1208], strides = [1, 1]} : vector<36x1280xf32> to vector<4x1208xf32>
    %127 = arith.addf %125, %126 : vector<4x1208xf32>
    %128 = vector.broadcast %106 : vector<4x1xf32> to vector<4x1208xf32>
    %129 = arith.addf %127, %128 : vector<4x1208xf32>
    %cst_23 = arith.constant 0.000000e+00 : f32
    %130 = vector.broadcast %cst_23 : f32 to vector<4x1208xf32>
    %131 = arith.maximumf %129, %130 : vector<4x1208xf32>
    %cst_24 = arith.constant 0.000000e+00 : f32
    %132 = vector.broadcast %cst_24 : f32 to vector<4x36xf32>
    %133 = tpu.concatenate %132, %131, %132 in 1 : vector<4x36xf32>, vector<4x1208xf32>, vector<4x36xf32> -> vector<4x1280xf32>
    %134 = vector.broadcast %2 : vector<1x1280xf32> to vector<4x1280xf32>
    %135 = arith.mulf %133, %134 : vector<4x1280xf32>
    %136 = vector.extract_strided_slice %135 {offsets = [0, 0], sizes = [4, 1244], strides = [1, 1]} : vector<4x1280xf32> to vector<4x1244xf32>
    %137 = vector.extract_strided_slice %135 {offsets = [0, 1], sizes = [4, 1244], strides = [1, 1]} : vector<4x1280xf32> to vector<4x1244xf32>
    %138 = arith.maximumf %136, %137 : vector<4x1244xf32>
    %139 = vector.extract_strided_slice %135 {offsets = [0, 35], sizes = [4, 1244], strides = [1, 1]} : vector<4x1280xf32> to vector<4x1244xf32>
    %140 = vector.extract_strided_slice %135 {offsets = [0, 36], sizes = [4, 1244], strides = [1, 1]} : vector<4x1280xf32> to vector<4x1244xf32>
    %141 = arith.maximumf %139, %140 : vector<4x1244xf32>
    %142 = arith.maximumf %138, %141 : vector<4x1244xf32>
    %cst_25 = arith.constant dense<0.000000e+00> : vector<4x326xf32>
    %143 = tpu.matmul %142, %3, %cst_25 {dimension_numbers = #tpu.dot_dimension_numbers<[1], [0], [0], [1], [0, 0, 1, 1], [], []>} : vector<4x1244xf32>, vector<1244x326xf32>, vector<4x326xf32> -> vector<4x326xf32>
    %cst_26 = arith.constant dense<0.000000e+00> : vector<72x326xf32>
    %144 = tpu.matmul %103, %143, %cst_26 {dimension_numbers = #tpu.dot_dimension_numbers<[1], [0], [0], [1], [0, 0, 1, 1], [], []>} : vector<72x4xf32>, vector<4x326xf32>, vector<72x326xf32> -> vector<72x326xf32>
    %145 = vector.extract_strided_slice %144 {offsets = [0, 0], sizes = [8, 288], strides = [1, 1]} : vector<72x326xf32> to vector<8x288xf32>
    %146 = vector.extract_strided_slice %144 {offsets = [8, 1], sizes = [8, 288], strides = [1, 1]} : vector<72x326xf32> to vector<8x288xf32>
    %147 = arith.addf %145, %146 : vector<8x288xf32>
    %148 = vector.extract_strided_slice %144 {offsets = [16, 2], sizes = [8, 288], strides = [1, 1]} : vector<72x326xf32> to vector<8x288xf32>
    %149 = arith.addf %147, %148 : vector<8x288xf32>
    %150 = vector.extract_strided_slice %144 {offsets = [24, 18], sizes = [8, 288], strides = [1, 1]} : vector<72x326xf32> to vector<8x288xf32>
    %151 = arith.addf %149, %150 : vector<8x288xf32>
    %152 = vector.extract_strided_slice %144 {offsets = [32, 19], sizes = [8, 288], strides = [1, 1]} : vector<72x326xf32> to vector<8x288xf32>
    %153 = arith.addf %151, %152 : vector<8x288xf32>
    %154 = vector.extract_strided_slice %144 {offsets = [40, 20], sizes = [8, 288], strides = [1, 1]} : vector<72x326xf32> to vector<8x288xf32>
    %155 = arith.addf %153, %154 : vector<8x288xf32>
    %156 = vector.extract_strided_slice %144 {offsets = [48, 36], sizes = [8, 288], strides = [1, 1]} : vector<72x326xf32> to vector<8x288xf32>
    %157 = arith.addf %155, %156 : vector<8x288xf32>
    %158 = vector.extract_strided_slice %144 {offsets = [56, 37], sizes = [8, 288], strides = [1, 1]} : vector<72x326xf32> to vector<8x288xf32>
    %159 = arith.addf %157, %158 : vector<8x288xf32>
    %160 = vector.extract_strided_slice %144 {offsets = [64, 38], sizes = [8, 288], strides = [1, 1]} : vector<72x326xf32> to vector<8x288xf32>
    %161 = arith.addf %159, %160 : vector<8x288xf32>
    %162 = vector.broadcast %107 : vector<8x1xf32> to vector<8x288xf32>
    %163 = arith.addf %161, %162 : vector<8x288xf32>
    %cst_27 = arith.constant 0.000000e+00 : f32
    %164 = vector.broadcast %cst_27 : f32 to vector<8x288xf32>
    %165 = arith.maximumf %163, %164 : vector<8x288xf32>
    %cst_28 = arith.constant dense<0.000000e+00> : vector<8x1280xf32>
    %166 = tpu.matmul %165, %4, %cst_28 {dimension_numbers = #tpu.dot_dimension_numbers<[1], [0], [0], [1], [0, 0, 1, 1], [], []>} : vector<8x288xf32>, vector<288x1280xf32>, vector<8x1280xf32> -> vector<8x1280xf32>
    %167 = tpu.concatenate %135, %166 in 0 : vector<4x1280xf32>, vector<8x1280xf32> -> vector<12x1280xf32>
    %cst_29 = arith.constant dense<0.000000e+00> : vector<36x1280xf32>
    %168 = tpu.matmul %104, %167, %cst_29 {dimension_numbers = #tpu.dot_dimension_numbers<[1], [0], [0], [1], [0, 0, 1, 1], [], []>} : vector<36x12xf32>, vector<12x1280xf32>, vector<36x1280xf32> -> vector<36x1280xf32>
    %169 = vector.extract_strided_slice %168 {offsets = [0, 0], sizes = [4, 1208], strides = [1, 1]} : vector<36x1280xf32> to vector<4x1208xf32>
    %170 = vector.extract_strided_slice %168 {offsets = [4, 1], sizes = [4, 1208], strides = [1, 1]} : vector<36x1280xf32> to vector<4x1208xf32>
    %171 = arith.addf %169, %170 : vector<4x1208xf32>
    %172 = vector.extract_strided_slice %168 {offsets = [8, 2], sizes = [4, 1208], strides = [1, 1]} : vector<36x1280xf32> to vector<4x1208xf32>
    %173 = arith.addf %171, %172 : vector<4x1208xf32>
    %174 = vector.extract_strided_slice %168 {offsets = [12, 35], sizes = [4, 1208], strides = [1, 1]} : vector<36x1280xf32> to vector<4x1208xf32>
    %175 = arith.addf %173, %174 : vector<4x1208xf32>
    %176 = vector.extract_strided_slice %168 {offsets = [16, 36], sizes = [4, 1208], strides = [1, 1]} : vector<36x1280xf32> to vector<4x1208xf32>
    %177 = arith.addf %175, %176 : vector<4x1208xf32>
    %178 = vector.extract_strided_slice %168 {offsets = [20, 37], sizes = [4, 1208], strides = [1, 1]} : vector<36x1280xf32> to vector<4x1208xf32>
    %179 = arith.addf %177, %178 : vector<4x1208xf32>
    %180 = vector.extract_strided_slice %168 {offsets = [24, 70], sizes = [4, 1208], strides = [1, 1]} : vector<36x1280xf32> to vector<4x1208xf32>
    %181 = arith.addf %179, %180 : vector<4x1208xf32>
    %182 = vector.extract_strided_slice %168 {offsets = [28, 71], sizes = [4, 1208], strides = [1, 1]} : vector<36x1280xf32> to vector<4x1208xf32>
    %183 = arith.addf %181, %182 : vector<4x1208xf32>
    %184 = vector.extract_strided_slice %168 {offsets = [32, 72], sizes = [4, 1208], strides = [1, 1]} : vector<36x1280xf32> to vector<4x1208xf32>
    %185 = arith.addf %183, %184 : vector<4x1208xf32>
    %186 = vector.broadcast %108 : vector<4x1xf32> to vector<4x1208xf32>
    %187 = arith.addf %185, %186 : vector<4x1208xf32>
    %cst_30 = arith.constant 0.000000e+00 : f32
    %188 = vector.broadcast %cst_30 : f32 to vector<4x1208xf32>
    %189 = arith.maximumf %187, %188 : vector<4x1208xf32>
    %cst_31 = arith.constant dense<0.000000e+00> : vector<1x1208xf32>
    %190 = tpu.matmul %105, %189, %cst_31 {dimension_numbers = #tpu.dot_dimension_numbers<[1], [0], [0], [1], [0, 0, 1, 1], [], []>} : vector<1x4xf32>, vector<4x1208xf32>, vector<1x1208xf32> -> vector<1x1208xf32>
    %191 = vector.broadcast %109 : vector<1x1xf32> to vector<1x1208xf32>
    %192 = arith.addf %190, %191 : vector<1x1208xf32>
    %c0_32 = arith.constant 0 : index
    %c0_33 = arith.constant 0 : index
    %c0_34 = arith.constant 0 : index
    %193 = vector.load %arg7[%c0_32, %c0_33, %c0_34] : memref<1x1x1208xf32, #tpu.memory_space<vmem>>, vector<1x1x1208xf32>
    %194 = vector.shape_cast %193 : vector<1x1x1208xf32> to vector<1x1208xf32>
    %195 = vector.shape_cast %192 : vector<1x1208xf32> to vector<1x1x1208xf32>
    tpu.vector_store %arg7[%c0_32, %c0_33, %c0_34], %195 {strides = array<i32>} : memref<1x1x1208xf32, #tpu.memory_space<vmem>>, vector<1x1x1208xf32>,
    return
  }
  func.func @transform_0(%arg0: i32) -> (i32, i32, i32) {
    %c0_i32 = arith.constant 0 : i32
    %c0_i32_0 = arith.constant 0 : i32
    %c0_i32_1 = arith.constant 0 : i32
    return %arg0, %c0_i32, %c0_i32_0 : i32, i32, i32
  }
  func.func @transform_1(%arg0: i32) -> (i32, i32) {
    %c0_i32 = arith.constant 0 : i32
    %c0_i32_0 = arith.constant 0 : i32
    %c0_i32_1 = arith.constant 0 : i32
    return %c0_i32, %c0_i32_0 : i32, i32
  }
  func.func @transform_2(%arg0: i32) -> (i32, i32) {
    %c0_i32 = arith.constant 0 : i32
    %c0_i32_0 = arith.constant 0 : i32
    %c0_i32_1 = arith.constant 0 : i32
    return %c0_i32, %c0_i32_0 : i32, i32
  }
  func.func @transform_3(%arg0: i32) -> (i32, i32) {
    %c0_i32 = arith.constant 0 : i32
    %c0_i32_0 = arith.constant 0 : i32
    %c0_i32_1 = arith.constant 0 : i32
    return %c0_i32, %c0_i32_0 : i32, i32
  }
  func.func @transform_4(%arg0: i32) -> (i32, i32) {
    %c0_i32 = arith.constant 0 : i32
    %c0_i32_0 = arith.constant 0 : i32
    %c0_i32_1 = arith.constant 0 : i32
    return %c0_i32, %c0_i32_0 : i32, i32
  }
  func.func @transform_5(%arg0: i32) -> (i32, i32) {
    %c0_i32 = arith.constant 0 : i32
    %c0_i32_0 = arith.constant 0 : i32
    %c0_i32_1 = arith.constant 0 : i32
    return %c0_i32, %c0_i32_0 : i32, i32
  }
  func.func @transform_6(%arg0: i32) -> (i32, i32, i32) {
    %c0_i32 = arith.constant 0 : i32
    %c0_i32_0 = arith.constant 0 : i32
    %c0_i32_1 = arith.constant 0 : i32
    return %arg0, %c0_i32, %c0_i32_0 : i32, i32, i32
  }
}

</mosaic_0001>

<llo_original>
// kernel: _decode_batch.1
$region0: #{_decode_batch.1}
  #allocation0 [shape = 'u32[]', space=smem, size = 0x4, offset = 0x4, fixed_abs, tag = 'smem constant byte address 0x4 - core index']
  #allocation1 [shape = 'u32[144,128]{1,0:T(1,128)}', space=vmem, size = 0x12000, scoped, tag = 'internal scratch']
  %s0 = inlined_call_operand.vmem [shape: f32[4,2,1280], index: 0, kind: input, shape index: {}]
  %s1 = inlined_call_operand.vmem [shape: f32[72,32], index: 1, kind: input, shape index: {}]
  %s2 = inlined_call_operand.vmem [shape: f32[72,32], index: 2, kind: input, shape index: {}]
  %s3 = inlined_call_operand.vmem [shape: f32[1,1280], index: 3, kind: input, shape index: {}]
  %s4 = inlined_call_operand.vmem [shape: f32[1244,326], index: 4, kind: input, shape index: {}]
  %s5 = inlined_call_operand.vmem [shape: f32[288,1280], index: 5, kind: input, shape index: {}]
  %s6 = inlined_call_operand.vmem [shape: f32[4,1,1208], index: 6, kind: output, shape index: {}]
  %s7 = sld [smem:[#allocation0]]
  $region57: #{_decode_batch.1} parent=0
    _
  %s9 = ssub.s32 1, %s7
  %s10 = scalar_select 0, %s9, %s7
  loop: start=0, step=1, limit=6
  $region2: #{_decode_batch.1} parent=0 // loop_pre_header
    _
  $region3: #{_decode_batch.1} parent=0 // loop_header
    %s12 = sphi 0, %s16
    %p13 = scmp.ge.s32.totalorder %s12, 6
    %s22 = sphi 0, %s24
    %s25 = sphi 0, %s22
    %s26 = sphi 0, %s25
    %s42 = sphi 0, %s26
    %s46 = sphi 0, %s46
    %s48 = sphi 0, %s46
    %s49 = sphi 0, %s48
    %s63 = sphi 0, %s49
    %s67 = sphi 0, %s67
    %s69 = sphi 0, %s67
    %s70 = sphi 0, %s69
    %s84 = sphi 0, %s70
    %s88 = sphi 0, %s88
    %s90 = sphi 0, %s88
    %s91 = sphi 0, %s90
    %s105 = sphi 0, %s91
    %s109 = sphi 0, %s109
    %s111 = sphi 0, %s109
    %s112 = sphi 0, %s111
    %s126 = sphi 0, %s112
    %s130 = sphi 0, %s130
    %s132 = sphi 0, %s130
    %s133 = sphi 0, %s132
    %s147 = sphi 0, %s133
    %s153 = sphi 0, %s155
    %s156 = sphi 0, %s153
    %s157 = sphi 0, %s156
    %s173 = sphi 0, %s157
  $region4: #{_decode_batch.1} parent=0 // loop_header_branch
    %15 = sbr.rel (%p13) target = $region8
  $region5: #{_decode_batch.1} parent=0 // loop_body
    %s17 = ssub.s32 %s12, 1
    %s18 = ssub.s32 %s12, 2
    %s19 = sadd.s32 %s12, 1
    %s20 = ssub.s32 %s12, %s19
    %p21 = scmp.eq.s32.totalorder %s20, 0
    %s23 = sadd.s32 %s22, 1
    %s24 = scalar_select %p21, %s22, %s23
    %p27 = pneg %p21
    %p28 = scmp.eq.s32.totalorder %s12, 3
    %p29 = por %p27, %p28
    %p30 = scmp.ne.s32.totalorder %s22, %s25
    %p31 = scmp.eq.s32.totalorder %s12, 0
    %p32 = por %p30, %p31
    %p33 = scmp.ne.s32.totalorder %s22, %s25
    %p34 = scmp.eq.s32.totalorder %s17, 3
    %p35 = por %p33, %p34
    %p36 = scmp.ne.s32.totalorder %s25, %s26
    %p37 = scmp.eq.s32.totalorder %s17, 0
    %p38 = por %p36, %p37
    %p39 = scmp.ne.s32.totalorder %s25, %s26
    %p40 = scmp.eq.s32.totalorder %s18, 3
    %p41 = por %p39, %p40
    %p43 = scmp.ne.s32.totalorder %s26, %s42
    %p44 = scmp.eq.s32.totalorder %s18, 0
    %p45 = por %p43, %p44
    %s47 = sadd.s32 %s46, 1
    %p50 = scmp.eq.s32.totalorder %s12, 3
    %p51 = scmp.ne.s32.totalorder %s46, %s48
    %p52 = scmp.eq.s32.totalorder %s12, 0
    %p53 = por %p51, %p52
    %p54 = scmp.ne.s32.totalorder %s46, %s48
    %p55 = scmp.eq.s32.totalorder %s17, 3
    %p56 = por %p54, %p55
    %p57 = scmp.ne.s32.totalorder %s48, %s49
    %p58 = scmp.eq.s32.totalorder %s17, 0
    %p59 = por %p57, %p58
    %p60 = scmp.ne.s32.totalorder %s48, %s49
    %p61 = scmp.eq.s32.totalorder %s18, 3
    %p62 = por %p60, %p61
    %p64 = scmp.ne.s32.totalorder %s49, %s63
    %p65 = scmp.eq.s32.totalorder %s18, 0
    %p66 = por %p64, %p65
    %s68 = sadd.s32 %s67, 1
    %p71 = scmp.eq.s32.totalorder %s12, 3
    %p72 = scmp.ne.s32.totalorder %s67, %s69
    %p73 = scmp.eq.s32.totalorder %s12, 0
    %p74 = por %p72, %p73
    %p75 = scmp.ne.s32.totalorder %s67, %s69
    %p76 = scmp.eq.s32.totalorder %s17, 3
    %p77 = por %p75, %p76
    %p78 = scmp.ne.s32.totalorder %s69, %s70
    %p79 = scmp.eq.s32.totalorder %s17, 0
    %p80 = por %p78, %p79
    %p81 = scmp.ne.s32.totalorder %s69, %s70
    %p82 = scmp.eq.s32.totalorder %s18, 3
    %p83 = por %p81, %p82
    %p85 = scmp.ne.s32.totalorder %s70, %s84
    %p86 = scmp.eq.s32.totalorder %s18, 0
    %p87 = por %p85, %p86
    %s89 = sadd.s32 %s88, 1
    %p92 = scmp.eq.s32.totalorder %s12, 3
    %p93 = scmp.ne.s32.totalorder %s88, %s90
    %p94 = scmp.eq.s32.totalorder %s12, 0
    %p95 = por %p93, %p94
    %p96 = scmp.ne.s32.totalorder %s88, %s90
    %p97 = scmp.eq.s32.totalorder %s17, 3
    %p98 = por %p96, %p97
    %p99 = scmp.ne.s32.totalorder %s90, %s91
    %p100 = scmp.eq.s32.totalorder %s17, 0
    %p101 = por %p99, %p100
    %p102 = scmp.ne.s32.totalorder %s90, %s91
    %p103 = scmp.eq.s32.totalorder %s18, 3
    %p104 = por %p102, %p103
    %p106 = scmp.ne.s32.totalorder %s91, %s105
    %p107 = scmp.eq.s32.totalorder %s18, 0
    %p108 = por %p106, %p107
    %s110 = sadd.s32 %s109, 1
    %p113 = scmp.eq.s32.totalorder %s12, 3
    %p114 = scmp.ne.s32.totalorder %s109, %s111
    %p115 = scmp.eq.s32.totalorder %s12, 0
    %p116 = por %p114, %p115
    %p117 = scmp.ne.s32.totalorder %s109, %s111
    %p118 = scmp.eq.s32.totalorder %s17, 3
    %p119 = por %p117, %p118
    %p120 = scmp.ne.s32.totalorder %s111, %s112
    %p121 = scmp.eq.s32.totalorder %s17, 0
    %p122 = por %p120, %p121
    %p123 = scmp.ne.s32.totalorder %s111, %s112
    %p124 = scmp.eq.s32.totalorder %s18, 3
    %p125 = por %p123, %p124
    %p127 = scmp.ne.s32.totalorder %s112, %s126
    %p128 = scmp.eq.s32.totalorder %s18, 0
    %p129 = por %p127, %p128
    %s131 = sadd.s32 %s130, 1
    %p134 = scmp.eq.s32.totalorder %s12, 3
    %p135 = scmp.ne.s32.totalorder %s130, %s132
    %p136 = scmp.eq.s32.totalorder %s12, 0
    %p137 = por %p135, %p136
    %p138 = scmp.ne.s32.totalorder %s130, %s132
    %p139 = scmp.eq.s32.totalorder %s17, 3
    %p140 = por %p138, %p139
    %p141 = scmp.ne.s32.totalorder %s132, %s133
    %p142 = scmp.eq.s32.totalorder %s17, 0
    %p143 = por %p141, %p142
    %p144 = scmp.ne.s32.totalorder %s132, %s133
    %p145 = scmp.eq.s32.totalorder %s18, 3
    %p146 = por %p144, %p145
    %p148 = scmp.ne.s32.totalorder %s133, %s147
    %p149 = scmp.eq.s32.totalorder %s18, 0
    %p150 = por %p148, %p149
    %s151 = ssub.s32 %s12, %s19
    %p152 = scmp.eq.s32.totalorder %s151, 0
    %s154 = sadd.s32 %s153, 1
    %s155 = scalar_select %p152, %s153, %s154
    %p158 = pneg %p152
    %p159 = scmp.eq.s32.totalorder %s12, 3
    %p160 = por %p158, %p159
    %p161 = scmp.ne.s32.totalorder %s153, %s156
    %p162 = scmp.eq.s32.totalorder %s12, 0
    %p163 = por %p161, %p162
    %p164 = scmp.ne.s32.totalorder %s153, %s156
    %p165 = scmp.eq.s32.totalorder %s17, 3
    %p166 = por %p164, %p165
    %p167 = scmp.ne.s32.totalorder %s156, %s157
    %p168 = scmp.eq.s32.totalorder %s17, 0
    %p169 = por %p167, %p168
    %p170 = scmp.ne.s32.totalorder %s156, %s157
    %p171 = scmp.eq.s32.totalorder %s18, 3
    %p172 = por %p170, %p171
    %p174 = scmp.ne.s32.totalorder %s157, %s173
    %p175 = scmp.eq.s32.totalorder %s18, 0
    %p176 = por %p174, %p175
    %p177 = scmp.le.s32.totalorder 1, %s12
    %p178 = scmp.lt.s32.totalorder %s12, 5
    %p179 = pnand %p177, %p178
    %p180 = pneg %p179
    // Predicated region
    $region9: #{_decode_batch.1} parent=5 // pred_check
      _
    $region10: #{_decode_batch.1} parent=5 // pred_check_branch
      %182 = sbr.rel (%p179) target = $region12
    $region11: #{_decode_batch.1} parent=5 // pred_region
      %s183 = ssub.s32 %s12, 1
      // Predicated region
      $region13: #{_decode_batch.1} parent=11 // pred_check
        %p184 = pneg %p59
      $region14: #{_decode_batch.1} parent=11 // pred_check_branch
        %186 = sbr.rel (%p184) target = $region16
      $region15: #{_decode_batch.1} parent=11 // pred_region
        _
      $region16: #{_decode_batch.1} parent=11 // pred_fallthru
        _
      // Predicated region
      $region17: #{_decode_batch.1} parent=11 // pred_check
        %p187 = pneg %p80
      $region18: #{_decode_batch.1} parent=11 // pred_check_branch
        %189 = sbr.rel (%p187) target = $region20
      $region19: #{_decode_batch.1} parent=11 // pred_region
        _
      $region20: #{_decode_batch.1} parent=11 // pred_fallthru
        _
      // Predicated region
      $region21: #{_decode_batch.1} parent=11 // pred_check
        %p190 = pneg %p101
      $region22: #{_decode_batch.1} parent=11 // pred_check_branch
        %192 = sbr.rel (%p190) target = $region24
      $region23: #{_decode_batch.1} parent=11 // pred_region
        _
      $region24: #{_decode_batch.1} parent=11 // pred_fallthru
        _
      // Predicated region
      $region25: #{_decode_batch.1} parent=11 // pred_check
        %p193 = pneg %p122
      $region26: #{_decode_batch.1} parent=11 // pred_check_branch
        %195 = sbr.rel (%p193) target = $region28
      $region27: #{_decode_batch.1} parent=11 // pred_region
        _
      $region28: #{_decode_batch.1} parent=11 // pred_fallthru
        _
      // Predicated region
      $region29: #{_decode_batch.1} parent=11 // pred_check
        %p196 = pneg %p143
      $region30: #{_decode_batch.1} parent=11 // pred_check_branch
        %198 = sbr.rel (%p196) target = $region32
      $region31: #{_decode_batch.1} parent=11 // pred_region
        _
      $region32: #{_decode_batch.1} parent=11 // pred_fallthru
        _
    $region12: #{_decode_batch.1} parent=5 // pred_fallthru
      _
    %p199 = scmp.lt.s32.totalorder %s12, 4
    // Predicated region
    $region33: #{_decode_batch.1} parent=5 // pred_check
      %p200 = pneg %p199
    $region34: #{_decode_batch.1} parent=5 // pred_check_branch
      %202 = sbr.rel (%p200) target = $region36
    $region35: #{_decode_batch.1} parent=5 // pred_region
      // Predicated region
      $region37: #{_decode_batch.1} parent=35 // pred_check
        %p203 = pneg %p32
      $region38: #{_decode_batch.1} parent=35 // pred_check_branch
        %205 = sbr.rel (%p203) target = $region40
      $region39: #{_decode_batch.1} parent=35 // pred_region
        %p206 = scmp.lt.s32.totalorder %s12, 3
        %s207 = scalar_select %p206, %s12, 3
        %s208 = smul.addr %s207, 10
        %s209 = smul.addr %s208, 2
        %s210 = scalar_lea.vmem %s0, %s209
      $region40: #{_decode_batch.1} parent=35 // pred_fallthru
        _
    $region36: #{_decode_batch.1} parent=5 // pred_fallthru
      _
    %p211 = scmp.le.s32.totalorder 1, %s12
    %p212 = scmp.lt.s32.totalorder %s12, 5
    %p213 = pnand %p211, %p212
    %p214 = pneg %p213
    // Predicated region
    $region41: #{_decode_batch.1} parent=5 // pred_check
      _
    $region42: #{_decode_batch.1} parent=5 // pred_check_branch
      %216 = sbr.rel (%p213) target = $region44
    $region43: #{_decode_batch.1} parent=5 // pred_region
      %s217 = ssub.s32 %s12, 1
      %p218 = scmp.lt.s32.totalorder %s17, 3
      %s219 = scalar_select %p218, %s17, 3
      %s220 = smul.addr %s219, 10
      %s221 = smul.addr %s220, 2
      %s222 = scalar_lea.vmem %s0, %s221
      %p223 = pneg %p38
      %p224 = pneg %p35
      %p225 = pneg %p59
      %p226 = pneg %p56
      %p227 = pneg %p80
      %p228 = pneg %p77
      %p229 = pneg %p101
      %p230 = pneg %p98
      %p231 = pneg %p122
      %p232 = pneg %p119
      %p233 = pneg %p143
      %p234 = pneg %p140
      %p235 = pneg %p169
      %p236 = pneg %p166
      %p237 = scmp.lt.s32.totalorder %s17, 3
      %s238 = scalar_select %p237, %s17, 3
      %s239 = smul.addr %s238, 10
      %s240 = scalar_lea.vmem %s6, %s239
      %p241 = scmp.lt.s32.totalorder %s17, 3
      %s242 = scalar_select %p241, %s17, 3
      %s243 = smul.addr %s242, 10
      %s244 = smul.addr %s243, 2
      %s245 = scalar_lea.vmem %s0, %s244
      %p246 = scmp.lt.s32.totalorder %s17, 3
      %s247 = scalar_select %p246, %s17, 3
      %s248 = smul.addr %s247, 10
      %s249 = scalar_lea.vmem %s6, %s248
      %v250 = vld [vmem:[%s245] sm:$0xff]
      %v251 = vld [vmem:[%s245 + $0x8] sm:$0xff]
      %v252 = vld [vmem:[%s245 + $0x10] sm:$0xf]
      %v253 = vld [vmem:[%s3] sm:$0xff]
      %v254 = vld [vmem:[%s3 + $0x8] sm:$0x3]
      %v255 = vld [vmem:[%s4] sm:$0xff]
      %v256 = vld [vmem:[%s4 + $0x8] sm:$0xff]
      %v257 = vld [vmem:[%s4 + $0x10] sm:$0xff]
      %v258 = vld [vmem:[%s4 + $0x18] sm:$0xff]
      %v259 = vld [vmem:[%s4 + $0x20] sm:$0xff]
      %v260 = vld [vmem:[%s4 + $0x28] sm:$0xff]
      %v261 = vld [vmem:[%s4 + $0x30] sm:$0xff]
      %v262 = vld [vmem:[%s4 + $0x38] sm:$0xff]
      %v263 = vld [vmem:[%s4 + $0x40] sm:$0xff]
      %v264 = vld [vmem:[%s4 + $0x48] sm:$0xff]
      %v265 = vld [vmem:[%s4 + $0x50] sm:$0xff]
      %v266 = vld [vmem:[%s4 + $0x58] sm:$0xff]
      %v267 = vld [vmem:[%s4 + $0x60] sm:$0xff]
      %v268 = vld [vmem:[%s4 + $0x68] sm:$0xff]
      %v269 = vld [vmem:[%s4 + $0x70] sm:$0xff]
      %v270 = vld [vmem:[%s4 + $0x78] sm:$0xff]
      %v271 = vld [vmem:[%s4 + $0x80] sm:$0xff]
      %v272 = vld [vmem:[%s4 + $0x88] sm:$0xff]
      %v273 = vld [vmem:[%s4 + $0x90] sm:$0xff]
      %v274 = vld [vmem:[%s4 + $0x98] sm:$0xff]
      %v275 = vld [vmem:[%s4 + $0xa0] sm:$0xff]
      %v276 = vld [vmem:[%s4 + $0xa8] sm:$0xff]
      %v277 = vld [vmem:[%s4 + $0xb0] sm:$0xff]
      %v278 = vld [vmem:[%s4 + $0xb8] sm:$0xff]
      %v279 = vld [vmem:[%s4 + $0xc0] sm:$0xff]
      %v280 = vld [vmem:[%s4 + $0xc8] sm:$0xff]
      %v281 = vld [vmem:[%s4 + $0xd0] sm:$0xff]
      %v282 = vld [vmem:[%s4 + $0xd8] sm:$0xff]
      %v283 = vld [vmem:[%s4 + $0xe0] sm:$0xff]
      %v284 = vld [vmem:[%s4 + $0xe8] sm:$0xff]
      %v285 = vld [vmem:[%s4 + $0xf0] sm:$0xff]
      %v286 = vld [vmem:[%s4 + $0xf8] sm:$0xff]
      %v287 = vld [vmem:[%s4 + $0x100] sm:$0xff]
      %v288 = vld [vmem:[%s4 + $0x108] sm:$0xff]
      %v289 = vld [vmem:[%s4 + $0x110] sm:$0xff]
      %v290 = vld [vmem:[%s4 + $0x118] sm:$0xff]
      %v291 = vld [vmem:[%s4 + $0x120] sm:$0xff]
      %v292 = vld [vmem:[%s4 + $0x128] sm:$0xff]
      %v293 = vld [vmem:[%s4 + $0x130] sm:$0xff]
      %v294 = vld [vmem:[%s4 + $0x138] sm:$0xff]
      %v295 = vld [vmem:[%s4 + $0x140] sm:$0xff]
      %v296 = vld [vmem:[%s4 + $0x148] sm:$0xff]
      %v297 = vld [vmem:[%s4 + $0x150] sm:$0xff]
      %v298 = vld [vmem:[%s4 + $0x158] sm:$0xff]
      %v299 = vld [vmem:[%s4 + $0x160] sm:$0xff]
      %v300 = vld [vmem:[%s4 + $0x168] sm:$0xff]
      %v301 = vld [vmem:[%s4 + $0x170] sm:$0xff]
      %v302 = vld [vmem:[%s4 + $0x178] sm:$0xff]
      %v303 = vld [vmem:[%s4 + $0x180] sm:$0xff]
      %v304 = vld [vmem:[%s4 + $0x188] sm:$0xff]
      %v305 = vld [vmem:[%s4 + $0x190] sm:$0xff]
      %v306 = vld [vmem:[%s4 + $0x198] sm:$0xff]
      %v307 = vld [vmem:[%s4 + $0x1a0] sm:$0xff]
      %v308 = vld [vmem:[%s4 + $0x1a8] sm:$0xff]
      %v309 = vld [vmem:[%s4 + $0x1b0] sm:$0xff]
      %v310 = vld [vmem:[%s4 + $0x1b8] sm:$0xff]
      %v311 = vld [vmem:[%s4 + $0x1c0] sm:$0xff]
      %v312 = vld [vmem:[%s4 + $0x1c8] sm:$0xff]
      %v313 = vld [vmem:[%s4 + $0x1d0] sm:$0xff]
      %v314 = vld [vmem:[%s4 + $0x1d8] sm:$0xff]
      %v315 = vld [vmem:[%s4 + $0x1e0] sm:$0xff]
      %v316 = vld [vmem:[%s4 + $0x1e8] sm:$0xff]
      %v317 = vld [vmem:[%s4 + $0x1f0] sm:$0xff]
      %v318 = vld [vmem:[%s4 + $0x1f8] sm:$0xff]
      %v319 = vld [vmem:[%s4 + $0x200] sm:$0xff]
      %v320 = vld [vmem:[%s4 + $0x208] sm:$0xff]
      %v321 = vld [vmem:[%s4 + $0x210] sm:$0xff]
      %v322 = vld [vmem:[%s4 + $0x218] sm:$0xff]
      %v323 = vld [vmem:[%s4 + $0x220] sm:$0xff]
      %v324 = vld [vmem:[%s4 + $0x228] sm:$0xff]
      %v325 = vld [vmem:[%s4 + $0x230] sm:$0xff]
      %v326 = vld [vmem:[%s4 + $0x238] sm:$0xff]
      %v327 = vld [vmem:[%s4 + $0x240] sm:$0xff]
      %v328 = vld [vmem:[%s4 + $0x248] sm:$0xff]
      %v329 = vld [vmem:[%s4 + $0x250] sm:$0xff]
      %v330 = vld [vmem:[%s4 + $0x258] sm:$0xff]
      %v331 = vld [vmem:[%s4 + $0x260] sm:$0xff]
      %v332 = vld [vmem:[%s4 + $0x268] sm:$0xff]
      %v333 = vld [vmem:[%s4 + $0x270] sm:$0xff]
      %v334 = vld [vmem:[%s4 + $0x278] sm:$0xff]
      %v335 = vld [vmem:[%s4 + $0x280] sm:$0xff]
      %v336 = vld [vmem:[%s4 + $0x288] sm:$0xff]
      %v337 = vld [vmem:[%s4 + $0x290] sm:$0xff]
      %v338 = vld [vmem:[%s4 + $0x298] sm:$0xff]
      %v339 = vld [vmem:[%s4 + $0x2a0] sm:$0xff]
      %v340 = vld [vmem:[%s4 + $0x2a8] sm:$0xff]
      %v341 = vld [vmem:[%s4 + $0x2b0] sm:$0xff]
      %v342 = vld [vmem:[%s4 + $0x2b8] sm:$0xff]
      %v343 = vld [vmem:[%s4 + $0x2c0] sm:$0xff]
      %v344 = vld [vmem:[%s4 + $0x2c8] sm:$0xff]
      %v345 = vld [vmem:[%s4 + $0x2d0] sm:$0xff]
      %v346 = vld [vmem:[%s4 + $0x2d8] sm:$0xff]
      %v347 = vld [vmem:[%s4 + $0x2e0] sm:$0xff]
      %v348 = vld [vmem:[%s4 + $0x2e8] sm:$0xff]
      %v349 = vld [vmem:[%s4 + $0x2f0] sm:$0xff]
      %v350 = vld [vmem:[%s4 + $0x2f8] sm:$0xff]
      %v351 = vld [vmem:[%s4 + $0x300] sm:$0xff]
      %v352 = vld [vmem:[%s4 + $0x308] sm:$0xff]
      %v353 = vld [vmem:[%s4 + $0x310] sm:$0xff]
      %v354 = vld [vmem:[%s4 + $0x318] sm:$0xff]
      %v355 = vld [vmem:[%s4 + $0x320] sm:$0xff]
      %v356 = vld [vmem:[%s4 + $0x328] sm:$0xff]
      %v357 = vld [vmem:[%s4 + $0x330] sm:$0xff]
      %v358 = vld [vmem:[%s4 + $0x338] sm:$0xff]
      %v359 = vld [vmem:[%s4 + $0x340] sm:$0xff]
      %v360 = vld [vmem:[%s4 + $0x348] sm:$0xff]
      %v361 = vld [vmem:[%s4 + $0x350] sm:$0xff]
      %v362 = vld [vmem:[%s4 + $0x358] sm:$0xff]
      %v363 = vld [vmem:[%s4 + $0x360] sm:$0xff]
      %v364 = vld [vmem:[%s4 + $0x368] sm:$0xff]
      %v365 = vld [vmem:[%s4 + $0x370] sm:$0xff]
      %v366 = vld [vmem:[%s4 + $0x378] sm:$0xff]
      %v367 = vld [vmem:[%s4 + $0x380] sm:$0xff]
      %v368 = vld [vmem:[%s4 + $0x388] sm:$0xff]
      %v369 = vld [vmem:[%s4 + $0x390] sm:$0xff]
      %v370 = vld [vmem:[%s4 + $0x398] sm:$0xff]
      %v371 = vld [vmem:[%s4 + $0x3a0] sm:$0xff]
      %v372 = vld [vmem:[%s4 + $0x3a8] sm:$0xff]
      %v373 = vld [vmem:[%s4 + $0x3b0] sm:$0xff]
      %v374 = vld [vmem:[%s4 + $0x3b8] sm:$0xff]
      %v375 = vld [vmem:[%s4 + $0x3c0] sm:$0xff]
      %v376 = vld [vmem:[%s4 + $0x3c8] sm:$0xff]
      %v377 = vld [vmem:[%s4 + $0x3d0] sm:$0xff]
      %v378 = vld [vmem:[%s4 + $0x3d8] sm:$0xff]
      %v379 = vld [vmem:[%s4 + $0x3e0] sm:$0xff]
      %v380 = vld [vmem:[%s4 + $0x3e8] sm:$0xff]
      %v381 = vld [vmem:[%s4 + $0x3f0] sm:$0xff]
      %v382 = vld [vmem:[%s4 + $0x3f8] sm:$0xff]
      %v383 = vld [vmem:[%s4 + $0x400] sm:$0xff]
      %v384 = vld [vmem:[%s4 + $0x408] sm:$0xff]
      %v385 = vld [vmem:[%s4 + $0x410] sm:$0xff]
      %v386 = vld [vmem:[%s4 + $0x418] sm:$0xff]
      %v387 = vld [vmem:[%s4 + $0x420] sm:$0xff]
      %v388 = vld [vmem:[%s4 + $0x428] sm:$0xff]
      %v389 = vld [vmem:[%s4 + $0x430] sm:$0xff]
      %v390 = vld [vmem:[%s4 + $0x438] sm:$0xff]
      %v391 = vld [vmem:[%s4 + $0x440] sm:$0xff]
      %v392 = vld [vmem:[%s4 + $0x448] sm:$0xff]
      %v393 = vld [vmem:[%s4 + $0x450] sm:$0xff]
      %v394 = vld [vmem:[%s4 + $0x458] sm:$0xff]
      %v395 = vld [vmem:[%s4 + $0x460] sm:$0xff]
      %v396 = vld [vmem:[%s4 + $0x468] sm:$0xff]
      %v397 = vld [vmem:[%s4 + $0x470] sm:$0xff]
      %v398 = vld [vmem:[%s4 + $0x478] sm:$0xff]
      %v399 = vld [vmem:[%s4 + $0x480] sm:$0xff]
      %v400 = vld [vmem:[%s4 + $0x488] sm:$0xff]
      %v401 = vld [vmem:[%s4 + $0x490] sm:$0xff]
      %v402 = vld [vmem:[%s4 + $0x498] sm:$0xff]
      %v403 = vld [vmem:[%s4 + $0x4a0] sm:$0xff]
      %v404 = vld [vmem:[%s4 + $0x4a8] sm:$0xff]
      %v405 = vld [vmem:[%s4 + $0x4b0] sm:$0xff]
      %v406 = vld [vmem:[%s4 + $0x4b8] sm:$0xff]
      %v407 = vld [vmem:[%s4 + $0x4c0] sm:$0xff]
      %v408 = vld [vmem:[%s4 + $0x4c8] sm:$0xff]
      %v409 = vld [vmem:[%s4 + $0x4d0] sm:$0xff]
      %v410 = vld [vmem:[%s4 + $0x4d8] sm:$0xff]
      %v411 = vld [vmem:[%s4 + $0x4e0] sm:$0xff]
      %v412 = vld [vmem:[%s4 + $0x4e8] sm:$0xff]
      %v413 = vld [vmem:[%s4 + $0x4f0] sm:$0xff]
      %v414 = vld [vmem:[%s4 + $0x4f8] sm:$0xff]
      %v415 = vld [vmem:[%s4 + $0x500] sm:$0xff]
      %v416 = vld [vmem:[%s4 + $0x508] sm:$0xff]
      %v417 = vld [vmem:[%s4 + $0x510] sm:$0xff]
      %v418 = vld [vmem:[%s4 + $0x518] sm:$0xff]
      %v419 = vld [vmem:[%s4 + $0x520] sm:$0xff]
      %v420 = vld [vmem:[%s4 + $0x528] sm:$0xff]
      %v421 = vld [vmem:[%s4 + $0x530] sm:$0xff]
      %v422 = vld [vmem:[%s4 + $0x538] sm:$0xff]
      %v423 = vld [vmem:[%s4 + $0x540] sm:$0xff]
      %v424 = vld [vmem:[%s4 + $0x548] sm:$0xff]
      %v425 = vld [vmem:[%s4 + $0x550] sm:$0xff]
      %v426 = vld [vmem:[%s4 + $0x558] sm:$0xff]
      %v427 = vld [vmem:[%s4 + $0x560] sm:$0xff]
      %v428 = vld [vmem:[%s4 + $0x568] sm:$0xff]
      %v429 = vld [vmem:[%s4 + $0x570] sm:$0xff]
      %v430 = vld [vmem:[%s4 + $0x578] sm:$0xff]
      %v431 = vld [vmem:[%s4 + $0x580] sm:$0xff]
      %v432 = vld [vmem:[%s4 + $0x588] sm:$0xff]
      %v433 = vld [vmem:[%s4 + $0x590] sm:$0xff]
      %v434 = vld [vmem:[%s4 + $0x598] sm:$0xff]
      %v435 = vld [vmem:[%s4 + $0x5a0] sm:$0xff]
      %v436 = vld [vmem:[%s4 + $0x5a8] sm:$0xff]
      %v437 = vld [vmem:[%s4 + $0x5b0] sm:$0xff]
      %v438 = vld [vmem:[%s4 + $0x5b8] sm:$0xff]
      %v439 = vld [vmem:[%s4 + $0x5c0] sm:$0xff]
      %v440 = vld [vmem:[%s4 + $0x5c8] sm:$0xff]
      %v441 = vld [vmem:[%s4 + $0x5d0] sm:$0xff]
      %v442 = vld [vmem:[%s4 + $0x5d8] sm:$0xff]
      %v443 = vld [vmem:[%s4 + $0x5e0] sm:$0xff]
      %v444 = vld [vmem:[%s4 + $0x5e8] sm:$0xff]
      %v445 = vld [vmem:[%s4 + $0x5f0] sm:$0xff]
      %v446 = vld [vmem:[%s4 + $0x5f8] sm:$0xff]
      %v447 = vld [vmem:[%s4 + $0x600] sm:$0xff]
      %v448 = vld [vmem:[%s4 + $0x608] sm:$0xff]
      %v449 = vld [vmem:[%s4 + $0x610] sm:$0xff]
      %v450 = vld [vmem:[%s4 + $0x618] sm:$0xff]
      %v451 = vld [vmem:[%s4 + $0x620] sm:$0xff]
      %v452 = vld [vmem:[%s4 + $0x628] sm:$0xff]
      %v453 = vld [vmem:[%s4 + $0x630] sm:$0xff]
      %v454 = vld [vmem:[%s4 + $0x638] sm:$0xff]
      %v455 = vld [vmem:[%s4 + $0x640] sm:$0xff]
      %v456 = vld [vmem:[%s4 + $0x648] sm:$0xff]
      %v457 = vld [vmem:[%s4 + $0x650] sm:$0xff]
      %v458 = vld [vmem:[%s4 + $0x658] sm:$0xff]
      %v459 = vld [vmem:[%s4 + $0x660] sm:$0xff]
      %v460 = vld [vmem:[%s4 + $0x668] sm:$0xff]
      %v461 = vld [vmem:[%s4 + $0x670] sm:$0xff]
      %v462 = vld [vmem:[%s4 + $0x678] sm:$0xff]
      %v463 = vld [vmem:[%s4 + $0x680] sm:$0xff]
      %v464 = vld [vmem:[%s4 + $0x688] sm:$0xff]
      %v465 = vld [vmem:[%s4 + $0x690] sm:$0xff]
      %v466 = vld [vmem:[%s4 + $0x698] sm:$0xff]
      %v467 = vld [vmem:[%s4 + $0x6a0] sm:$0xff]
      %v468 = vld [vmem:[%s4 + $0x6a8] sm:$0xff]
      %v469 = vld [vmem:[%s4 + $0x6b0] sm:$0xff]
      %v470 = vld [vmem:[%s4 + $0x6b8] sm:$0xff]
      %v471 = vld [vmem:[%s4 + $0x6c0] sm:$0xff]
      %v472 = vld [vmem:[%s4 + $0x6c8] sm:$0xff]
      %v473 = vld [vmem:[%s4 + $0x6d0] sm:$0xff]
      %v474 = vld [vmem:[%s4 + $0x6d8] sm:$0xff]
      %v475 = vld [vmem:[%s4 + $0x6e0] sm:$0xff]
      %v476 = vld [vmem:[%s4 + $0x6e8] sm:$0xff]
      %v477 = vld [vmem:[%s4 + $0x6f0] sm:$0xff]
      %v478 = vld [vmem:[%s4 + $0x6f8] sm:$0xff]
      %v479 = vld [vmem:[%s4 + $0x700] sm:$0xff]
      %v480 = vld [vmem:[%s4 + $0x708] sm:$0xff]
      %v481 = vld [vmem:[%s4 + $0x710] sm:$0xff]
      %v482 = vld [vmem:[%s4 + $0x718] sm:$0xff]
      %v483 = vld [vmem:[%s4 + $0x720] sm:$0xff]
      %v484 = vld [vmem:[%s4 + $0x728] sm:$0xff]
      %v485 = vld [vmem:[%s4 + $0x730] sm:$0xff]
      %v486 = vld [vmem:[%s4 + $0x738] sm:$0xff]
      %v487 = vld [vmem:[%s4 + $0x740] sm:$0xff]
      %v488 = vld [vmem:[%s4 + $0x748] sm:$0xff]
      %v489 = vld [vmem:[%s4 + $0x750] sm:$0xff]
      %v490 = vld [vmem:[%s4 + $0x758] sm:$0xff]
      %v491 = vld [vmem:[%s4 + $0x760] sm:$0xff]
      %v492 = vld [vmem:[%s4 + $0x768] sm:$0xff]
      %v493 = vld [vmem:[%s4 + $0x770] sm:$0xff]
      %v494 = vld [vmem:[%s4 + $0x778] sm:$0xff]
      %v495 = vld [vmem:[%s4 + $0x780] sm:$0xff]
      %v496 = vld [vmem:[%s4 + $0x788] sm:$0xff]
      %v497 = vld [vmem:[%s4 + $0x790] sm:$0xff]
      %v498 = vld [vmem:[%s4 + $0x798] sm:$0xff]
      %v499 = vld [vmem:[%s4 + $0x7a0] sm:$0xff]
      %v500 = vld [vmem:[%s4 + $0x7a8] sm:$0xff]
      %v501 = vld [vmem:[%s4 + $0x7b0] sm:$0xff]
      %v502 = vld [vmem:[%s4 + $0x7b8] sm:$0xff]
      %v503 = vld [vmem:[%s4 + $0x7c0] sm:$0xff]
      %v504 = vld [vmem:[%s4 + $0x7c8] sm:$0xff]
      %v505 = vld [vmem:[%s4 + $0x7d0] sm:$0xff]
      %v506 = vld [vmem:[%s4 + $0x7d8] sm:$0xff]
      %v507 = vld [vmem:[%s4 + $0x7e0] sm:$0xff]
      %v508 = vld [vmem:[%s4 + $0x7e8] sm:$0xff]
      %v509 = vld [vmem:[%s4 + $0x7f0] sm:$0xff]
      %v510 = vld [vmem:[%s4 + $0x7f8] sm:$0xff]
      %v511 = vld [vmem:[%s4 + $0x800] sm:$0xff]
      %v512 = vld [vmem:[%s4 + $0x808] sm:$0xff]
      %v513 = vld [vmem:[%s4 + $0x810] sm:$0xff]
      %v514 = vld [vmem:[%s4 + $0x818] sm:$0xff]
      %v515 = vld [vmem:[%s4 + $0x820] sm:$0xff]
      %v516 = vld [vmem:[%s4 + $0x828] sm:$0xff]
      %v517 = vld [vmem:[%s4 + $0x830] sm:$0xff]
      %v518 = vld [vmem:[%s4 + $0x838] sm:$0xff]
      %v519 = vld [vmem:[%s4 + $0x840] sm:$0xff]
      %v520 = vld [vmem:[%s4 + $0x848] sm:$0xff]
      %v521 = vld [vmem:[%s4 + $0x850] sm:$0xff]
      %v522 = vld [vmem:[%s4 + $0x858] sm:$0xff]
      %v523 = vld [vmem:[%s4 + $0x860] sm:$0xff]
      %v524 = vld [vmem:[%s4 + $0x868] sm:$0xff]
      %v525 = vld [vmem:[%s4 + $0x870] sm:$0xff]
      %v526 = vld [vmem:[%s4 + $0x878] sm:$0xff]
      %v527 = vld [vmem:[%s4 + $0x880] sm:$0xff]
      %v528 = vld [vmem:[%s4 + $0x888] sm:$0xff]
      %v529 = vld [vmem:[%s4 + $0x890] sm:$0xff]
      %v530 = vld [vmem:[%s4 + $0x898] sm:$0xff]
      %v531 = vld [vmem:[%s4 + $0x8a0] sm:$0xff]
      %v532 = vld [vmem:[%s4 + $0x8a8] sm:$0xff]
      %v533 = vld [vmem:[%s4 + $0x8b0] sm:$0xff]
      %v534 = vld [vmem:[%s4 + $0x8b8] sm:$0xff]
      %v535 = vld [vmem:[%s4 + $0x8c0] sm:$0xff]
      %v536 = vld [vmem:[%s4 + $0x8c8] sm:$0xff]
      %v537 = vld [vmem:[%s4 + $0x8d0] sm:$0xff]
      %v538 = vld [vmem:[%s4 + $0x8d8] sm:$0xff]
      %v539 = vld [vmem:[%s4 + $0x8e0] sm:$0xff]
      %v540 = vld [vmem:[%s4 + $0x8e8] sm:$0xff]
      %v541 = vld [vmem:[%s4 + $0x8f0] sm:$0xff]
      %v542 = vld [vmem:[%s4 + $0x8f8] sm:$0xff]
      %v543 = vld [vmem:[%s4 + $0x900] sm:$0xff]
      %v544 = vld [vmem:[%s4 + $0x908] sm:$0xff]
      %v545 = vld [vmem:[%s4 + $0x910] sm:$0xff]
      %v546 = vld [vmem:[%s4 + $0x918] sm:$0xff]
      %v547 = vld [vmem:[%s4 + $0x920] sm:$0xff]
      %v548 = vld [vmem:[%s4 + $0x928] sm:$0xff]
      %v549 = vld [vmem:[%s4 + $0x930] sm:$0xff]
      %v550 = vld [vmem:[%s4 + $0x938] sm:$0xff]
      %v551 = vld [vmem:[%s4 + $0x940] sm:$0xff]
      %v552 = vld [vmem:[%s4 + $0x948] sm:$0xff]
      %v553 = vld [vmem:[%s4 + $0x950] sm:$0xff]
      %v554 = vld [vmem:[%s4 + $0x958] sm:$0xff]
      %v555 = vld [vmem:[%s4 + $0x960] sm:$0xff]
      %v556 = vld [vmem:[%s4 + $0x968] sm:$0xff]
      %v557 = vld [vmem:[%s4 + $0x970] sm:$0xff]
      %v558 = vld [vmem:[%s4 + $0x978] sm:$0xff]
      %v559 = vld [vmem:[%s4 + $0x980] sm:$0xff]
      %v560 = vld [vmem:[%s4 + $0x988] sm:$0xff]
      %v561 = vld [vmem:[%s4 + $0x990] sm:$0xff]
      %v562 = vld [vmem:[%s4 + $0x998] sm:$0xff]
      %v563 = vld [vmem:[%s4 + $0x9a0] sm:$0xff]
      %v564 = vld [vmem:[%s4 + $0x9a8] sm:$0xff]
      %v565 = vld [vmem:[%s4 + $0x9b0] sm:$0xff]
      %v566 = vld [vmem:[%s4 + $0x9b8] sm:$0xff]
      %v567 = vld [vmem:[%s4 + $0x9c0] sm:$0xff]
      %v568 = vld [vmem:[%s4 + $0x9c8] sm:$0xff]
      %v569 = vld [vmem:[%s4 + $0x9d0] sm:$0xff]
      %v570 = vld [vmem:[%s4 + $0x9d8] sm:$0xff]
      %v571 = vld [vmem:[%s4 + $0x9e0] sm:$0xff]
      %v572 = vld [vmem:[%s4 + $0x9e8] sm:$0xff]
      %v573 = vld [vmem:[%s4 + $0x9f0] sm:$0xff]
      %v574 = vld [vmem:[%s4 + $0x9f8] sm:$0xff]
      %v575 = vld [vmem:[%s4 + $0xa00] sm:$0xff]
      %v576 = vld [vmem:[%s4 + $0xa08] sm:$0xff]
      %v577 = vld [vmem:[%s4 + $0xa10] sm:$0xff]
      %v578 = vld [vmem:[%s4 + $0xa18] sm:$0xff]
      %v579 = vld [vmem:[%s4 + $0xa20] sm:$0xff]
      %v580 = vld [vmem:[%s4 + $0xa28] sm:$0xff]
      %v581 = vld [vmem:[%s4 + $0xa30] sm:$0xff]
      %v582 = vld [vmem:[%s4 + $0xa38] sm:$0xff]
      %v583 = vld [vmem:[%s4 + $0xa40] sm:$0xff]
      %v584 = vld [vmem:[%s4 + $0xa48] sm:$0xff]
      %v585 = vld [vmem:[%s4 + $0xa50] sm:$0xff]
      %v586 = vld [vmem:[%s4 + $0xa58] sm:$0xff]
      %v587 = vld [vmem:[%s4 + $0xa60] sm:$0xff]
      %v588 = vld [vmem:[%s4 + $0xa68] sm:$0xff]
      %v589 = vld [vmem:[%s4 + $0xa70] sm:$0xff]
      %v590 = vld [vmem:[%s4 + $0xa78] sm:$0xff]
      %v591 = vld [vmem:[%s4 + $0xa80] sm:$0xff]
      %v592 = vld [vmem:[%s4 + $0xa88] sm:$0xff]
      %v593 = vld [vmem:[%s4 + $0xa90] sm:$0xff]
      %v594 = vld [vmem:[%s4 + $0xa98] sm:$0xff]
      %v595 = vld [vmem:[%s4 + $0xaa0] sm:$0xff]
      %v596 = vld [vmem:[%s4 + $0xaa8] sm:$0xff]
      %v597 = vld [vmem:[%s4 + $0xab0] sm:$0xff]
      %v598 = vld [vmem:[%s4 + $0xab8] sm:$0xff]
      %v599 = vld [vmem:[%s4 + $0xac0] sm:$0xff]
      %v600 = vld [vmem:[%s4 + $0xac8] sm:$0xff]
      %v601 = vld [vmem:[%s4 + $0xad0] sm:$0xff]
      %v602 = vld [vmem:[%s4 + $0xad8] sm:$0xff]
      %v603 = vld [vmem:[%s4 + $0xae0] sm:$0xff]
      %v604 = vld [vmem:[%s4 + $0xae8] sm:$0xff]
      %v605 = vld [vmem:[%s4 + $0xaf0] sm:$0xff]
      %v606 = vld [vmem:[%s4 + $0xaf8] sm:$0xff]
      %v607 = vld [vmem:[%s4 + $0xb00] sm:$0xff]
      %v608 = vld [vmem:[%s4 + $0xb08] sm:$0xff]
      %v609 = vld [vmem:[%s4 + $0xb10] sm:$0xff]
      %v610 = vld [vmem:[%s4 + $0xb18] sm:$0xff]
      %v611 = vld [vmem:[%s4 + $0xb20] sm:$0xff]
      %v612 = vld [vmem:[%s4 + $0xb28] sm:$0xff]
      %v613 = vld [vmem:[%s4 + $0xb30] sm:$0xff]
      %v614 = vld [vmem:[%s4 + $0xb38] sm:$0xff]
      %v615 = vld [vmem:[%s4 + $0xb40] sm:$0xff]
      %v616 = vld [vmem:[%s4 + $0xb48] sm:$0xff]
      %v617 = vld [vmem:[%s4 + $0xb50] sm:$0xff]
      %v618 = vld [vmem:[%s4 + $0xb58] sm:$0xff]
      %v619 = vld [vmem:[%s4 + $0xb60] sm:$0xff]
      %v620 = vld [vmem:[%s4 + $0xb68] sm:$0xff]
      %v621 = vld [vmem:[%s4 + $0xb70] sm:$0xff]
      %v622 = vld [vmem:[%s4 + $0xb78] sm:$0xff]
      %v623 = vld [vmem:[%s4 + $0xb80] sm:$0xff]
      %v624 = vld [vmem:[%s4 + $0xb88] sm:$0xff]
      %v625 = vld [vmem:[%s4 + $0xb90] sm:$0xff]
      %v626 = vld [vmem:[%s4 + $0xb98] sm:$0xff]
      %v627 = vld [vmem:[%s4 + $0xba0] sm:$0xff]
      %v628 = vld [vmem:[%s4 + $0xba8] sm:$0xff]
      %v629 = vld [vmem:[%s4 + $0xbb0] sm:$0xff]
      %v630 = vld [vmem:[%s4 + $0xbb8] sm:$0xff]
      %v631 = vld [vmem:[%s4 + $0xbc0] sm:$0xff]
      %v632 = vld [vmem:[%s4 + $0xbc8] sm:$0xff]
      %v633 = vld [vmem:[%s4 + $0xbd0] sm:$0xff]
      %v634 = vld [vmem:[%s4 + $0xbd8] sm:$0xff]
      %v635 = vld [vmem:[%s4 + $0xbe0] sm:$0xff]
      %v636 = vld [vmem:[%s4 + $0xbe8] sm:$0xff]
      %v637 = vld [vmem:[%s4 + $0xbf0] sm:$0xff]
      %v638 = vld [vmem:[%s4 + $0xbf8] sm:$0xff]
      %v639 = vld [vmem:[%s4 + $0xc00] sm:$0xff]
      %v640 = vld [vmem:[%s4 + $0xc08] sm:$0xff]
      %v641 = vld [vmem:[%s4 + $0xc10] sm:$0xff]
      %v642 = vld [vmem:[%s4 + $0xc18] sm:$0xff]
      %v643 = vld [vmem:[%s4 + $0xc20] sm:$0xff]
      %v644 = vld [vmem:[%s4 + $0xc28] sm:$0xff]
      %v645 = vld [vmem:[%s4 + $0xc30] sm:$0xff]
      %v646 = vld [vmem:[%s4 + $0xc38] sm:$0xff]
      %v647 = vld [vmem:[%s4 + $0xc40] sm:$0xff]
      %v648 = vld [vmem:[%s4 + $0xc48] sm:$0xff]
      %v649 = vld [vmem:[%s4 + $0xc50] sm:$0xff]
      %v650 = vld [vmem:[%s4 + $0xc58] sm:$0xff]
      %v651 = vld [vmem:[%s4 + $0xc60] sm:$0xff]
      %v652 = vld [vmem:[%s4 + $0xc68] sm:$0xff]
      %v653 = vld [vmem:[%s4 + $0xc70] sm:$0xff]
      %v654 = vld [vmem:[%s4 + $0xc78] sm:$0xff]
      %v655 = vld [vmem:[%s4 + $0xc80] sm:$0xff]
      %v656 = vld [vmem:[%s4 + $0xc88] sm:$0xff]
      %v657 = vld [vmem:[%s4 + $0xc90] sm:$0xff]
      %v658 = vld [vmem:[%s4 + $0xc98] sm:$0xff]
      %v659 = vld [vmem:[%s4 + $0xca0] sm:$0xff]
      %v660 = vld [vmem:[%s4 + $0xca8] sm:$0xff]
      %v661 = vld [vmem:[%s4 + $0xcb0] sm:$0xff]
      %v662 = vld [vmem:[%s4 + $0xcb8] sm:$0xff]
      %v663 = vld [vmem:[%s4 + $0xcc0] sm:$0xff]
      %v664 = vld [vmem:[%s4 + $0xcc8] sm:$0xff]
      %v665 = vld [vmem:[%s4 + $0xcd0] sm:$0xff]
      %v666 = vld [vmem:[%s4 + $0xcd8] sm:$0xff]
      %v667 = vld [vmem:[%s4 + $0xce0] sm:$0xff]
      %v668 = vld [vmem:[%s4 + $0xce8] sm:$0xff]
      %v669 = vld [vmem:[%s4 + $0xcf0] sm:$0xff]
      %v670 = vld [vmem:[%s4 + $0xcf8] sm:$0xff]
      %v671 = vld [vmem:[%s4 + $0xd00] sm:$0xff]
      %v672 = vld [vmem:[%s4 + $0xd08] sm:$0xff]
      %v673 = vld [vmem:[%s4 + $0xd10] sm:$0xff]
      %v674 = vld [vmem:[%s4 + $0xd18] sm:$0xff]
      %v675 = vld [vmem:[%s4 + $0xd20] sm:$0xff]
      %v676 = vld [vmem:[%s4 + $0xd28] sm:$0xff]
      %v677 = vld [vmem:[%s4 + $0xd30] sm:$0xff]
      %v678 = vld [vmem:[%s4 + $0xd38] sm:$0xff]
      %v679 = vld [vmem:[%s4 + $0xd40] sm:$0xff]
      %v680 = vld [vmem:[%s4 + $0xd48] sm:$0xff]
      %v681 = vld [vmem:[%s4 + $0xd50] sm:$0xff]
      %v682 = vld [vmem:[%s4 + $0xd58] sm:$0xff]
      %v683 = vld [vmem:[%s4 + $0xd60] sm:$0xff]
      %v684 = vld [vmem:[%s4 + $0xd68] sm:$0xff]
      %v685 = vld [vmem:[%s4 + $0xd70] sm:$0xff]
      %v686 = vld [vmem:[%s4 + $0xd78] sm:$0xff]
      %v687 = vld [vmem:[%s4 + $0xd80] sm:$0xff]
      %v688 = vld [vmem:[%s4 + $0xd88] sm:$0xff]
      %v689 = vld [vmem:[%s4 + $0xd90] sm:$0xff]
      %v690 = vld [vmem:[%s4 + $0xd98] sm:$0xff]
      %v691 = vld [vmem:[%s4 + $0xda0] sm:$0xff]
      %v692 = vld [vmem:[%s4 + $0xda8] sm:$0xff]
      %v693 = vld [vmem:[%s4 + $0xdb0] sm:$0xff]
      %v694 = vld [vmem:[%s4 + $0xdb8] sm:$0xff]
      %v695 = vld [vmem:[%s4 + $0xdc0] sm:$0xff]
      %v696 = vld [vmem:[%s4 + $0xdc8] sm:$0xff]
      %v697 = vld [vmem:[%s4 + $0xdd0] sm:$0xff]
      %v698 = vld [vmem:[%s4 + $0xdd8] sm:$0xff]
      %v699 = vld [vmem:[%s4 + $0xde0] sm:$0xff]
      %v700 = vld [vmem:[%s4 + $0xde8] sm:$0xff]
      %v701 = vld [vmem:[%s4 + $0xdf0] sm:$0xff]
      %v702 = vld [vmem:[%s4 + $0xdf8] sm:$0xff]
      %v703 = vld [vmem:[%s4 + $0xe00] sm:$0xff]
      %v704 = vld [vmem:[%s4 + $0xe08] sm:$0xff]
      %v705 = vld [vmem:[%s4 + $0xe10] sm:$0xff]
      %v706 = vld [vmem:[%s4 + $0xe18] sm:$0xff]
      %v707 = vld [vmem:[%s4 + $0xe20] sm:$0xff]
      %v708 = vld [vmem:[%s4 + $0xe28] sm:$0xff]
      %v709 = vld [vmem:[%s4 + $0xe30] sm:$0xff]
      %v710 = vld [vmem:[%s4 + $0xe38] sm:$0xff]
      %v711 = vld [vmem:[%s4 + $0xe40] sm:$0xff]
      %v712 = vld [vmem:[%s4 + $0xe48] sm:$0xff]
      %v713 = vld [vmem:[%s4 + $0xe50] sm:$0xff]
      %v714 = vld [vmem:[%s4 + $0xe58] sm:$0xff]
      %v715 = vld [vmem:[%s4 + $0xe60] sm:$0xff]
      %v716 = vld [vmem:[%s4 + $0xe68] sm:$0xff]
      %v717 = vld [vmem:[%s4 + $0xe70] sm:$0xff]
      %v718 = vld [vmem:[%s4 + $0xe78] sm:$0xff]
      %v719 = vld [vmem:[%s4 + $0xe80] sm:$0xff]
      %v720 = vld [vmem:[%s4 + $0xe88] sm:$0xf]
      %v721 = vld [vmem:[%s4 + $0xe90] sm:$0xf]
      %v722 = vld [vmem:[%s4 + $0xe98] sm:$0xf]
      %v723 = vld [vmem:[%s5] sm:$0xff]
      %v724 = vld [vmem:[%s5 + $0x8] sm:$0xff]
      %v725 = vld [vmem:[%s5 + $0x10] sm:$0xff]
      %v726 = vld [vmem:[%s5 + $0x18] sm:$0xff]
      %v727 = vld [vmem:[%s5 + $0x20] sm:$0xff]
      %v728 = vld [vmem:[%s5 + $0x28] sm:$0xff]
      %v729 = vld [vmem:[%s5 + $0x30] sm:$0xff]
      %v730 = vld [vmem:[%s5 + $0x38] sm:$0xff]
      %v731 = vld [vmem:[%s5 + $0x40] sm:$0xff]
      %v732 = vld [vmem:[%s5 + $0x48] sm:$0xff]
      %v733 = vld [vmem:[%s5 + $0x50] sm:$0xff]
      %v734 = vld [vmem:[%s5 + $0x58] sm:$0xff]
      %v735 = vld [vmem:[%s5 + $0x60] sm:$0xff]
      %v736 = vld [vmem:[%s5 + $0x68] sm:$0xff]
      %v737 = vld [vmem:[%s5 + $0x70] sm:$0xff]
      %v738 = vld [vmem:[%s5 + $0x78] sm:$0xff]
      %v739 = vld [vmem:[%s5 + $0x80] sm:$0xff]
      %v740 = vld [vmem:[%s5 + $0x88] sm:$0xff]
      %v741 = vld [vmem:[%s5 + $0x90] sm:$0xff]
      %v742 = vld [vmem:[%s5 + $0x98] sm:$0xff]
      %v743 = vld [vmem:[%s5 + $0xa0] sm:$0xff]
      %v744 = vld [vmem:[%s5 + $0xa8] sm:$0xff]
      %v745 = vld [vmem:[%s5 + $0xb0] sm:$0xff]
      %v746 = vld [vmem:[%s5 + $0xb8] sm:$0xff]
      %v747 = vld [vmem:[%s5 + $0xc0] sm:$0xff]
      %v748 = vld [vmem:[%s5 + $0xc8] sm:$0xff]
      %v749 = vld [vmem:[%s5 + $0xd0] sm:$0xff]
      %v750 = vld [vmem:[%s5 + $0xd8] sm:$0xff]
      %v751 = vld [vmem:[%s5 + $0xe0] sm:$0xff]
      %v752 = vld [vmem:[%s5 + $0xe8] sm:$0xff]
      %v753 = vld [vmem:[%s5 + $0xf0] sm:$0xff]
      %v754 = vld [vmem:[%s5 + $0xf8] sm:$0xff]
      %v755 = vld [vmem:[%s5 + $0x100] sm:$0xff]
      %v756 = vld [vmem:[%s5 + $0x108] sm:$0xff]
      %v757 = vld [vmem:[%s5 + $0x110] sm:$0xff]
      %v758 = vld [vmem:[%s5 + $0x118] sm:$0xff]
      %v759 = vld [vmem:[%s5 + $0x120] sm:$0xff]
      %v760 = vld [vmem:[%s5 + $0x128] sm:$0xff]
      %v761 = vld [vmem:[%s5 + $0x130] sm:$0xff]
      %v762 = vld [vmem:[%s5 + $0x138] sm:$0xff]
      %v763 = vld [vmem:[%s5 + $0x140] sm:$0xff]
      %v764 = vld [vmem:[%s5 + $0x148] sm:$0xff]
      %v765 = vld [vmem:[%s5 + $0x150] sm:$0xff]
      %v766 = vld [vmem:[%s5 + $0x158] sm:$0xff]
      %v767 = vld [vmem:[%s5 + $0x160] sm:$0xff]
      %v768 = vld [vmem:[%s5 + $0x168] sm:$0xff]
      %v769 = vld [vmem:[%s5 + $0x170] sm:$0xff]
      %v770 = vld [vmem:[%s5 + $0x178] sm:$0xff]
      %v771 = vld [vmem:[%s5 + $0x180] sm:$0xff]
      %v772 = vld [vmem:[%s5 + $0x188] sm:$0xff]
      %v773 = vld [vmem:[%s5 + $0x190] sm:$0xff]
      %v774 = vld [vmem:[%s5 + $0x198] sm:$0xff]
      %v775 = vld [vmem:[%s5 + $0x1a0] sm:$0xff]
      %v776 = vld [vmem:[%s5 + $0x1a8] sm:$0xff]
      %v777 = vld [vmem:[%s5 + $0x1b0] sm:$0xff]
      %v778 = vld [vmem:[%s5 + $0x1b8] sm:$0xff]
      %v779 = vld [vmem:[%s5 + $0x1c0] sm:$0xff]
      %v780 = vld [vmem:[%s5 + $0x1c8] sm:$0xff]
      %v781 = vld [vmem:[%s5 + $0x1d0] sm:$0xff]
      %v782 = vld [vmem:[%s5 + $0x1d8] sm:$0xff]
      %v783 = vld [vmem:[%s5 + $0x1e0] sm:$0xff]
      %v784 = vld [vmem:[%s5 + $0x1e8] sm:$0xff]
      %v785 = vld [vmem:[%s5 + $0x1f0] sm:$0xff]
      %v786 = vld [vmem:[%s5 + $0x1f8] sm:$0xff]
      %v787 = vld [vmem:[%s5 + $0x200] sm:$0xff]
      %v788 = vld [vmem:[%s5 + $0x208] sm:$0xff]
      %v789 = vld [vmem:[%s5 + $0x210] sm:$0xff]
      %v790 = vld [vmem:[%s5 + $0x218] sm:$0xff]
      %v791 = vld [vmem:[%s5 + $0x220] sm:$0xff]
      %v792 = vld [vmem:[%s5 + $0x228] sm:$0xff]
      %v793 = vld [vmem:[%s5 + $0x230] sm:$0xff]
      %v794 = vld [vmem:[%s5 + $0x238] sm:$0xff]
      %v795 = vld [vmem:[%s5 + $0x240] sm:$0xff]
      %v796 = vld [vmem:[%s5 + $0x248] sm:$0xff]
      %v797 = vld [vmem:[%s5 + $0x250] sm:$0xff]
      %v798 = vld [vmem:[%s5 + $0x258] sm:$0xff]
      %v799 = vld [vmem:[%s5 + $0x260] sm:$0xff]
      %v800 = vld [vmem:[%s5 + $0x268] sm:$0xff]
      %v801 = vld [vmem:[%s5 + $0x270] sm:$0xff]
      %v802 = vld [vmem:[%s5 + $0x278] sm:$0xff]
      %v803 = vld [vmem:[%s5 + $0x280] sm:$0xff]
      %v804 = vld [vmem:[%s5 + $0x288] sm:$0xff]
      %v805 = vld [vmem:[%s5 + $0x290] sm:$0xff]
      %v806 = vld [vmem:[%s5 + $0x298] sm:$0xff]
      %v807 = vld [vmem:[%s5 + $0x2a0] sm:$0xff]
      %v808 = vld [vmem:[%s5 + $0x2a8] sm:$0xff]
      %v809 = vld [vmem:[%s5 + $0x2b0] sm:$0xff]
      %v810 = vld [vmem:[%s5 + $0x2b8] sm:$0xff]
      %v811 = vld [vmem:[%s5 + $0x2c0] sm:$0xff]
      %v812 = vld [vmem:[%s5 + $0x2c8] sm:$0xff]
      %v813 = vld [vmem:[%s5 + $0x2d0] sm:$0xff]
      %v814 = vld [vmem:[%s5 + $0x2d8] sm:$0xff]
      %v815 = vld [vmem:[%s5 + $0x2e0] sm:$0xff]
      %v816 = vld [vmem:[%s5 + $0x2e8] sm:$0xff]
      %v817 = vld [vmem:[%s5 + $0x2f0] sm:$0xff]
      %v818 = vld [vmem:[%s5 + $0x2f8] sm:$0xff]
      %v819 = vld [vmem:[%s5 + $0x300] sm:$0xff]
      %v820 = vld [vmem:[%s5 + $0x308] sm:$0xff]
      %v821 = vld [vmem:[%s5 + $0x310] sm:$0xff]
      %v822 = vld [vmem:[%s5 + $0x318] sm:$0xff]
      %v823 = vld [vmem:[%s5 + $0x320] sm:$0xff]
      %v824 = vld [vmem:[%s5 + $0x328] sm:$0xff]
      %v825 = vld [vmem:[%s5 + $0x330] sm:$0xff]
      %v826 = vld [vmem:[%s5 + $0x338] sm:$0xff]
      %v827 = vld [vmem:[%s5 + $0x340] sm:$0xff]
      %v828 = vld [vmem:[%s5 + $0x348] sm:$0xff]
      %v829 = vld [vmem:[%s5 + $0x350] sm:$0xff]
      %v830 = vld [vmem:[%s5 + $0x358] sm:$0xff]
      %v831 = vld [vmem:[%s5 + $0x360] sm:$0xff]
      %v832 = vld [vmem:[%s5 + $0x368] sm:$0xff]
      %v833 = vld [vmem:[%s5 + $0x370] sm:$0xff]
      %v834 = vld [vmem:[%s5 + $0x378] sm:$0xff]
      %v835 = vld [vmem:[%s5 + $0x380] sm:$0xff]
      %v836 = vld [vmem:[%s5 + $0x388] sm:$0xff]
      %v837 = vld [vmem:[%s5 + $0x390] sm:$0xff]
      %v838 = vld [vmem:[%s5 + $0x398] sm:$0xff]
      %v839 = vld [vmem:[%s5 + $0x3a0] sm:$0xff]
      %v840 = vld [vmem:[%s5 + $0x3a8] sm:$0xff]
      %v841 = vld [vmem:[%s5 + $0x3b0] sm:$0xff]
      %v842 = vld [vmem:[%s5 + $0x3b8] sm:$0xff]
      %v843 = vld [vmem:[%s5 + $0x3c0] sm:$0xff]
      %v844 = vld [vmem:[%s5 + $0x3c8] sm:$0xff]
      %v845 = vld [vmem:[%s5 + $0x3d0] sm:$0xff]
      %v846 = vld [vmem:[%s5 + $0x3d8] sm:$0xff]
      %v847 = vld [vmem:[%s5 + $0x3e0] sm:$0xff]
      %v848 = vld [vmem:[%s5 + $0x3e8] sm:$0xff]
      %v849 = vld [vmem:[%s5 + $0x3f0] sm:$0xff]
      %v850 = vld [vmem:[%s5 + $0x3f8] sm:$0xff]
      %v851 = vld [vmem:[%s5 + $0x400] sm:$0xff]
      %v852 = vld [vmem:[%s5 + $0x408] sm:$0xff]
      %v853 = vld [vmem:[%s5 + $0x410] sm:$0xff]
      %v854 = vld [vmem:[%s5 + $0x418] sm:$0xff]
      %v855 = vld [vmem:[%s5 + $0x420] sm:$0xff]
      %v856 = vld [vmem:[%s5 + $0x428] sm:$0xff]
      %v857 = vld [vmem:[%s5 + $0x430] sm:$0xff]
      %v858 = vld [vmem:[%s5 + $0x438] sm:$0xff]
      %v859 = vld [vmem:[%s5 + $0x440] sm:$0xff]
      %v860 = vld [vmem:[%s5 + $0x448] sm:$0xff]
      %v861 = vld [vmem:[%s5 + $0x450] sm:$0xff]
      %v862 = vld [vmem:[%s5 + $0x458] sm:$0xff]
      %v863 = vld [vmem:[%s5 + $0x460] sm:$0xff]
      %v864 = vld [vmem:[%s5 + $0x468] sm:$0xff]
      %v865 = vld [vmem:[%s5 + $0x470] sm:$0xff]
      %v866 = vld [vmem:[%s5 + $0x478] sm:$0xff]
      %v867 = vld [vmem:[%s5 + $0x480] sm:$0xff]
      %v868 = vld [vmem:[%s5 + $0x488] sm:$0xff]
      %v869 = vld [vmem:[%s5 + $0x490] sm:$0xff]
      %v870 = vld [vmem:[%s5 + $0x498] sm:$0xff]
      %v871 = vld [vmem:[%s5 + $0x4a0] sm:$0xff]
      %v872 = vld [vmem:[%s5 + $0x4a8] sm:$0xff]
      %v873 = vld [vmem:[%s5 + $0x4b0] sm:$0xff]
      %v874 = vld [vmem:[%s5 + $0x4b8] sm:$0xff]
      %v875 = vld [vmem:[%s5 + $0x4c0] sm:$0xff]
      %v876 = vld [vmem:[%s5 + $0x4c8] sm:$0xff]
      %v877 = vld [vmem:[%s5 + $0x4d0] sm:$0xff]
      %v878 = vld [vmem:[%s5 + $0x4d8] sm:$0xff]
      %v879 = vld [vmem:[%s5 + $0x4e0] sm:$0xff]
      %v880 = vld [vmem:[%s5 + $0x4e8] sm:$0xff]
      %v881 = vld [vmem:[%s5 + $0x4f0] sm:$0xff]
      %v882 = vld [vmem:[%s5 + $0x4f8] sm:$0xff]
      %v883 = vld [vmem:[%s5 + $0x500] sm:$0xff]
      %v884 = vld [vmem:[%s5 + $0x508] sm:$0xff]
      %v885 = vld [vmem:[%s5 + $0x510] sm:$0xff]
      %v886 = vld [vmem:[%s5 + $0x518] sm:$0xff]
      %v887 = vld [vmem:[%s5 + $0x520] sm:$0xff]
      %v888 = vld [vmem:[%s5 + $0x528] sm:$0xff]
      %v889 = vld [vmem:[%s5 + $0x530] sm:$0xff]
      %v890 = vld [vmem:[%s5 + $0x538] sm:$0xff]
      %v891 = vld [vmem:[%s5 + $0x540] sm:$0xff]
      %v892 = vld [vmem:[%s5 + $0x548] sm:$0xff]
      %v893 = vld [vmem:[%s5 + $0x550] sm:$0xff]
      %v894 = vld [vmem:[%s5 + $0x558] sm:$0xff]
      %v895 = vld [vmem:[%s5 + $0x560] sm:$0xff]
      %v896 = vld [vmem:[%s5 + $0x568] sm:$0xff]
      %v897 = vld [vmem:[%s5 + $0x570] sm:$0xff]
      %v898 = vld [vmem:[%s5 + $0x578] sm:$0xff]
      %v899 = vld [vmem:[%s5 + $0x580] sm:$0xff]
      %v900 = vld [vmem:[%s5 + $0x588] sm:$0xff]
      %v901 = vld [vmem:[%s5 + $0x590] sm:$0xff]
      %v902 = vld [vmem:[%s5 + $0x598] sm:$0xff]
      %v903 = vld [vmem:[%s5 + $0x5a0] sm:$0xff]
      %v904 = vld [vmem:[%s5 + $0x5a8] sm:$0xff]
      %v905 = vld [vmem:[%s5 + $0x5b0] sm:$0xff]
      %v906 = vld [vmem:[%s5 + $0x5b8] sm:$0xff]
      %v907 = vld [vmem:[%s5 + $0x5c0] sm:$0xff]
      %v908 = vld [vmem:[%s5 + $0x5c8] sm:$0xff]
      %v909 = vld [vmem:[%s5 + $0x5d0] sm:$0xff]
      %v910 = vld [vmem:[%s5 + $0x5d8] sm:$0xff]
      %v911 = vld [vmem:[%s5 + $0x5e0] sm:$0xff]
      %v912 = vld [vmem:[%s5 + $0x5e8] sm:$0xff]
      %v913 = vld [vmem:[%s5 + $0x5f0] sm:$0xff]
      %v914 = vld [vmem:[%s5 + $0x5f8] sm:$0xff]
      %v915 = vld [vmem:[%s5 + $0x600] sm:$0xff]
      %v916 = vld [vmem:[%s5 + $0x608] sm:$0xff]
      %v917 = vld [vmem:[%s5 + $0x610] sm:$0xff]
      %v918 = vld [vmem:[%s5 + $0x618] sm:$0xff]
      %v919 = vld [vmem:[%s5 + $0x620] sm:$0xff]
      %v920 = vld [vmem:[%s5 + $0x628] sm:$0xff]
      %v921 = vld [vmem:[%s5 + $0x630] sm:$0xff]
      %v922 = vld [vmem:[%s5 + $0x638] sm:$0xff]
      %v923 = vld [vmem:[%s5 + $0x640] sm:$0xff]
      %v924 = vld [vmem:[%s5 + $0x648] sm:$0xff]
      %v925 = vld [vmem:[%s5 + $0x650] sm:$0xff]
      %v926 = vld [vmem:[%s5 + $0x658] sm:$0xff]
      %v927 = vld [vmem:[%s5 + $0x660] sm:$0xff]
      %v928 = vld [vmem:[%s5 + $0x668] sm:$0xff]
      %v929 = vld [vmem:[%s5 + $0x670] sm:$0xff]
      %v930 = vld [vmem:[%s5 + $0x678] sm:$0xff]
      %v931 = vld [vmem:[%s5 + $0x680] sm:$0xff]
      %v932 = vld [vmem:[%s5 + $0x688] sm:$0xff]
      %v933 = vld [vmem:[%s5 + $0x690] sm:$0xff]
      %v934 = vld [vmem:[%s5 + $0x698] sm:$0xff]
      %v935 = vld [vmem:[%s5 + $0x6a0] sm:$0xff]
      %v936 = vld [vmem:[%s5 + $0x6a8] sm:$0xff]
      %v937 = vld [vmem:[%s5 + $0x6b0] sm:$0xff]
      %v938 = vld [vmem:[%s5 + $0x6b8] sm:$0xff]
      %v939 = vld [vmem:[%s5 + $0x6c0] sm:$0xff]
      %v940 = vld [vmem:[%s5 + $0x6c8] sm:$0xff]
      %v941 = vld [vmem:[%s5 + $0x6d0] sm:$0xff]
      %v942 = vld [vmem:[%s5 + $0x6d8] sm:$0xff]
      %v943 = vld [vmem:[%s5 + $0x6e0] sm:$0xff]
      %v944 = vld [vmem:[%s5 + $0x6e8] sm:$0xff]
      %v945 = vld [vmem:[%s5 + $0x6f0] sm:$0xff]
      %v946 = vld [vmem:[%s5 + $0x6f8] sm:$0xff]
      %v947 = vld [vmem:[%s5 + $0x700] sm:$0xff]
      %v948 = vld [vmem:[%s5 + $0x708] sm:$0xff]
      %v949 = vld [vmem:[%s5 + $0x710] sm:$0xff]
      %v950 = vld [vmem:[%s5 + $0x718] sm:$0xff]
      %v951 = vld [vmem:[%s5 + $0x720] sm:$0xff]
      %v952 = vld [vmem:[%s5 + $0x728] sm:$0xff]
      %v953 = vld [vmem:[%s5 + $0x730] sm:$0xff]
      %v954 = vld [vmem:[%s5 + $0x738] sm:$0xff]
      %v955 = vld [vmem:[%s5 + $0x740] sm:$0xff]
      %v956 = vld [vmem:[%s5 + $0x748] sm:$0xff]
      %v957 = vld [vmem:[%s5 + $0x750] sm:$0xff]
      %v958 = vld [vmem:[%s5 + $0x758] sm:$0xff]
      %v959 = vld [vmem:[%s5 + $0x760] sm:$0xff]
      %v960 = vld [vmem:[%s5 + $0x768] sm:$0xff]
      %v961 = vld [vmem:[%s5 + $0x770] sm:$0xff]
      %v962 = vld [vmem:[%s5 + $0x778] sm:$0xff]
      %v963 = vld [vmem:[%s5 + $0x780] sm:$0xff]
      %v964 = vld [vmem:[%s5 + $0x788] sm:$0xff]
      %v965 = vld [vmem:[%s5 + $0x790] sm:$0xff]
      %v966 = vld [vmem:[%s5 + $0x798] sm:$0xff]
      %v967 = vld [vmem:[%s5 + $0x7a0] sm:$0xff]
      %v968 = vld [vmem:[%s5 + $0x7a8] sm:$0xff]
      %v969 = vld [vmem:[%s5 + $0x7b0] sm:$0xff]
      %v970 = vld [vmem:[%s5 + $0x7b8] sm:$0xff]
      %v971 = vld [vmem:[%s5 + $0x7c0] sm:$0xff]
      %v972 = vld [vmem:[%s5 + $0x7c8] sm:$0xff]
      %v973 = vld [vmem:[%s5 + $0x7d0] sm:$0xff]
      %v974 = vld [vmem:[%s5 + $0x7d8] sm:$0xff]
      %v975 = vld [vmem:[%s5 + $0x7e0] sm:$0xff]
      %v976 = vld [vmem:[%s5 + $0x7e8] sm:$0xff]
      %v977 = vld [vmem:[%s5 + $0x7f0] sm:$0xff]
      %v978 = vld [vmem:[%s5 + $0x7f8] sm:$0xff]
      %v979 = vld [vmem:[%s5 + $0x800] sm:$0xff]
      %v980 = vld [vmem:[%s5 + $0x808] sm:$0xff]
      %v981 = vld [vmem:[%s5 + $0x810] sm:$0xff]
      %v982 = vld [vmem:[%s5 + $0x818] sm:$0xff]
      %v983 = vld [vmem:[%s5 + $0x820] sm:$0xff]
      %v984 = vld [vmem:[%s5 + $0x828] sm:$0xff]
      %v985 = vld [vmem:[%s5 + $0x830] sm:$0xff]
      %v986 = vld [vmem:[%s5 + $0x838] sm:$0xff]
      %v987 = vld [vmem:[%s5 + $0x840] sm:$0xff]
      %v988 = vld [vmem:[%s5 + $0x848] sm:$0xff]
      %v989 = vld [vmem:[%s5 + $0x850] sm:$0xff]
      %v990 = vld [vmem:[%s5 + $0x858] sm:$0xff]
      %v991 = vld [vmem:[%s5 + $0x860] sm:$0xff]
      %v992 = vld [vmem:[%s5 + $0x868] sm:$0xff]
      %v993 = vld [vmem:[%s5 + $0x870] sm:$0xff]
      %v994 = vld [vmem:[%s5 + $0x878] sm:$0xff]
      %v995 = vld [vmem:[%s5 + $0x880] sm:$0xff]
      %v996 = vld [vmem:[%s5 + $0x888] sm:$0xff]
      %v997 = vld [vmem:[%s5 + $0x890] sm:$0xff]
      %v998 = vld [vmem:[%s5 + $0x898] sm:$0xff]
      %v999 = vld [vmem:[%s5 + $0x8a0] sm:$0xff]
      %v1000 = vld [vmem:[%s5 + $0x8a8] sm:$0xff]
      %v1001 = vld [vmem:[%s5 + $0x8b0] sm:$0xff]
      %v1002 = vld [vmem:[%s5 + $0x8b8] sm:$0xff]
      %v1003 = vld [vmem:[%s5 + $0x8c0] sm:$0xff]
      %v1004 = vld [vmem:[%s5 + $0x8c8] sm:$0xff]
      %v1005 = vld [vmem:[%s5 + $0x8d0] sm:$0xff]
      %v1006 = vld [vmem:[%s5 + $0x8d8] sm:$0xff]
      %v1007 = vld [vmem:[%s5 + $0x8e0] sm:$0xff]
      %v1008 = vld [vmem:[%s5 + $0x8e8] sm:$0xff]
      %v1009 = vld [vmem:[%s5 + $0x8f0] sm:$0xff]
      %v1010 = vld [vmem:[%s5 + $0x8f8] sm:$0xff]
      %v1011 = vld [vmem:[%s5 + $0x900] sm:$0xff]
      %v1012 = vld [vmem:[%s5 + $0x908] sm:$0xff]
      %v1013 = vld [vmem:[%s5 + $0x910] sm:$0xff]
      %v1014 = vld [vmem:[%s5 + $0x918] sm:$0xff]
      %v1015 = vld [vmem:[%s5 + $0x920] sm:$0xff]
      %v1016 = vld [vmem:[%s5 + $0x928] sm:$0xff]
      %v1017 = vld [vmem:[%s5 + $0x930] sm:$0xff]
      %v1018 = vld [vmem:[%s5 + $0x938] sm:$0xff]
      %v1019 = vld [vmem:[%s5 + $0x940] sm:$0xff]
      %v1020 = vld [vmem:[%s5 + $0x948] sm:$0xff]
      %v1021 = vld [vmem:[%s5 + $0x950] sm:$0xff]
      %v1022 = vld [vmem:[%s5 + $0x958] sm:$0xff]
      %v1023 = vld [vmem:[%s5 + $0x960] sm:$0xff]
      %v1024 = vld [vmem:[%s5 + $0x968] sm:$0xff]
      %v1025 = vld [vmem:[%s5 + $0x970] sm:$0xff]
      %v1026 = vld [vmem:[%s5 + $0x978] sm:$0xff]
      %v1027 = vld [vmem:[%s5 + $0x980] sm:$0xff]
      %v1028 = vld [vmem:[%s5 + $0x988] sm:$0xff]
      %v1029 = vld [vmem:[%s5 + $0x990] sm:$0xff]
      %v1030 = vld [vmem:[%s5 + $0x998] sm:$0xff]
      %v1031 = vld [vmem:[%s5 + $0x9a0] sm:$0xff]
      %v1032 = vld [vmem:[%s5 + $0x9a8] sm:$0xff]
      %v1033 = vld [vmem:[%s5 + $0x9b0] sm:$0xff]
      %v1034 = vld [vmem:[%s5 + $0x9b8] sm:$0xff]
      %v1035 = vld [vmem:[%s5 + $0x9c0] sm:$0xff]
      %v1036 = vld [vmem:[%s5 + $0x9c8] sm:$0xff]
      %v1037 = vld [vmem:[%s5 + $0x9d0] sm:$0xff]
      %v1038 = vld [vmem:[%s5 + $0x9d8] sm:$0xff]
      %v1039 = vld [vmem:[%s5 + $0x9e0] sm:$0xff]
      %v1040 = vld [vmem:[%s5 + $0x9e8] sm:$0xff]
      %v1041 = vld [vmem:[%s5 + $0x9f0] sm:$0xff]
      %v1042 = vld [vmem:[%s5 + $0x9f8] sm:$0xff]
      %v1043 = vld [vmem:[%s5 + $0xa00] sm:$0xff]
      %v1044 = vld [vmem:[%s5 + $0xa08] sm:$0xff]
      %v1045 = vld [vmem:[%s5 + $0xa10] sm:$0xff]
      %v1046 = vld [vmem:[%s5 + $0xa18] sm:$0xff]
      %v1047 = vld [vmem:[%s5 + $0xa20] sm:$0xff]
      %v1048 = vld [vmem:[%s5 + $0xa28] sm:$0xff]
      %v1049 = vld [vmem:[%s5 + $0xa30] sm:$0xff]
      %v1050 = vld [vmem:[%s5 + $0xa38] sm:$0xff]
      %v1051 = vld [vmem:[%s5 + $0xa40] sm:$0xff]
      %v1052 = vld [vmem:[%s5 + $0xa48] sm:$0xff]
      %v1053 = vld [vmem:[%s5 + $0xa50] sm:$0xff]
      %v1054 = vld [vmem:[%s5 + $0xa58] sm:$0xff]
      %v1055 = vld [vmem:[%s5 + $0xa60] sm:$0xff]
      %v1056 = vld [vmem:[%s5 + $0xa68] sm:$0xff]
      %v1057 = vld [vmem:[%s5 + $0xa70] sm:$0xff]
      %v1058 = vld [vmem:[%s5 + $0xa78] sm:$0xff]
      %v1059 = vld [vmem:[%s5 + $0xa80] sm:$0xff]
      %v1060 = vld [vmem:[%s5 + $0xa88] sm:$0xff]
      %v1061 = vld [vmem:[%s5 + $0xa90] sm:$0xff]
      %v1062 = vld [vmem:[%s5 + $0xa98] sm:$0xff]
      %v1063 = vld [vmem:[%s5 + $0xaa0] sm:$0xff]
      %v1064 = vld [vmem:[%s5 + $0xaa8] sm:$0xff]
      %v1065 = vld [vmem:[%s5 + $0xab0] sm:$0xff]
      %v1066 = vld [vmem:[%s5 + $0xab8] sm:$0xff]
      %v1067 = vld [vmem:[%s5 + $0xac0] sm:$0xff]
      %v1068 = vld [vmem:[%s5 + $0xac8] sm:$0xff]
      %v1069 = vld [vmem:[%s5 + $0xad0] sm:$0xff]
      %v1070 = vld [vmem:[%s5 + $0xad8] sm:$0xff]
      %v1071 = vld [vmem:[%s5 + $0xae0] sm:$0xff]
      %v1072 = vld [vmem:[%s5 + $0xae8] sm:$0xff]
      %v1073 = vld [vmem:[%s5 + $0xaf0] sm:$0xff]
      %v1074 = vld [vmem:[%s5 + $0xaf8] sm:$0xff]
      %v1075 = vld [vmem:[%s5 + $0xb00] sm:$0xff]
      %v1076 = vld [vmem:[%s5 + $0xb08] sm:$0xff]
      %v1077 = vld [vmem:[%s5 + $0xb10] sm:$0xff]
      %v1078 = vld [vmem:[%s5 + $0xb18] sm:$0xff]
      %v1079 = vld [vmem:[%s5 + $0xb20] sm:$0xff]
      %v1080 = vld [vmem:[%s5 + $0xb28] sm:$0xff]
      %v1081 = vld [vmem:[%s5 + $0xb30] sm:$0xff]
      %v1082 = vld [vmem:[%s5 + $0xb38] sm:$0xff]
      %v1083 = vld [vmem:[%s1] sm:$0xff]
      %v1084 = vld [vmem:[%s1 + $0x8] sm:$0xff]
      %v1085 = vld [vmem:[%s1 + $0x10] sm:$0xff]
      %v1086 = vld [vmem:[%s1 + $0x18] sm:$0xff]
      %v1087 = vld [vmem:[%s1 + $0x20] sm:$0xff]
      %v1088 = vld [vmem:[%s1 + $0x28] sm:$0xff]
      %v1089 = vld [vmem:[%s1 + $0x30] sm:$0xff]
      %v1090 = vld [vmem:[%s1 + $0x38] sm:$0xff]
      %v1091 = vld [vmem:[%s1 + $0x40] sm:$0xff]
      %1097 = vrot.lane.b32.xlu0 %v1083, 112
      %v1098 = vpop.permute.xlu0 %1097
      %1099 = vrot.lane.b32.xlu0 %v1084, 112
      %v1100 = vpop.permute.xlu0 %1099
      %1101 = vrot.lane.b32.xlu0 %v1085, 112
      %v1102 = vpop.permute.xlu0 %1101
      %1103 = vrot.lane.b32.xlu0 %v1086, 112
      %v1104 = vpop.permute.xlu0 %1103
      %1105 = vrot.lane.b32.xlu0 %v1087, 112
      %v1106 = vpop.permute.xlu0 %1105
      %v1110 = vcombine.high %v250, %v250
      %v1112 = vunpack.c.l.s4 1983009808
      %v1113 = vunpack.c.0.s8 %v1112
      %v1114 = vlaneseq
      %v1115 = vshrl.u32 %v1114, 7
      %v1116 = vsub.s32 %v1113, %v1115
      %v1117 = vrot.slane %v250, %v1116
      %v1119 = vunpack.c.l.s4 1983009808
      %v1120 = vunpack.c.0.s8 %v1119
      %v1121 = vlaneseq
      %v1122 = vshrl.u32 %v1121, 7
      %v1123 = vsub.s32 %v1120, %v1122
      %v1124 = vrot.slane %v1110, %v1123
      %v1125 = vcombine.high %v1117, %v1117
      %v1126 = vcombine.high %v1124, %v1124
      %v1127 = vcombine.high %v251, %v251
      %v1129 = vunpack.c.l.s4 1983009808
      %v1130 = vunpack.c.0.s8 %v1129
      %v1131 = vlaneseq
      %v1132 = vshrl.u32 %v1131, 7
      %v1133 = vsub.s32 %v1130, %v1132
      %v1134 = vrot.slane %v251, %v1133
      %v1136 = vunpack.c.l.s4 1983009808
      %v1137 = vunpack.c.0.s8 %v1136
      %v1138 = vlaneseq
      %v1139 = vshrl.u32 %v1138, 7
      %v1140 = vsub.s32 %v1137, %v1139
      %v1141 = vrot.slane %v1127, %v1140
      %v1142 = vcombine.high %v1134, %v1134
      %v1143 = vcombine.high %v1141, %v1141
      %v1145 = vunpack.c.l.s4 1983009808
      %v1146 = vunpack.c.0.s8 %v1145
      %v1147 = vlaneseq
      %v1148 = vshrl.u32 %v1147, 7
      %v1149 = vsub.s32 %v1146, %v1148
      %v1150 = vrot.slane %v252, %v1149
      %v1151 = vcombine.high %v1150, %v1150
      %vm1152 = vcmask 15360
      %v1153 = vsel %vm1152, %v1098, 0
      %v1155 = vsel %vm1152, %v1100, 0
      %v1157 = vsel %vm1152, %v1102, 0
      %v1159 = vsel %vm1152, %v1104, 0
      %v1161 = vsel %vm1152, %v1106, 0
      %vm1163 = vcmask 1041408
      %v1164 = vsel %vm1163, %v1117, 0
      %v1166 = vsel %vm1163, %v1125, 0
      %v1168 = vsel %vm1163, %v1124, 0
      %v1170 = vsel %vm1163, %v1126, 0
      %v1172 = vsel %vm1163, %v1134, 0
      %v1174 = vsel %vm1163, %v1142, 0
      %v1176 = vsel %vm1163, %v1141, 0
      %v1178 = vsel %vm1163, %v1143, 0
      %v1180 = vsel %vm1163, %v1150, 0
      %v1182 = vsel %vm1163, %v1151, 0
      %1184 = vmatprep.subr.mxu0 0.0
      %1185 = vmatpush1.msra.mxu0 0.0
      %1186 = vmatprep.subr.mxu0 0.0
      %1187 = vmatpush1.msra.mxu0 0.0
      %1188 = vmatprep.subr.mxu0 0.0
      %1189 = vmatpush1.msra.mxu0 0.0
      %1190 = vmatprep.subr.mxu0 0.0
      %1191 = vmatpush1.msra.mxu0 0.0
      %1192 = vmatprep.subr.mxu0 0.0
      %1193 = vmatpush1.msra.mxu0 0.0
      %1194 = vmatprep.subr.mxu0 0.0
      %1195 = vmatpush1.msra.mxu0 0.0
      %1196 = vmatprep.subr.mxu0 0.0
      %1197 = vmatpush1.msra.mxu0 0.0
      %1198 = vmatprep.subr.mxu0 0.0
      %1199 = vmatpush1.msra.mxu0 0.0
      %1200 = vmatprep.subr.mxu0 0.0
      %1201 = vmatpush1.msra.mxu0 0.0
      %1202 = vmatprep.subr.mxu0 0.0
      %1203 = vmatpush1.msra.mxu0 0.0
      %1204 = vmatprep.subr.mxu0 0.0
      %1205 = vmatpush1.msra.mxu0 0.0
      %1206 = vmatprep.subr.mxu0 0.0
      %1207 = vmatpush1.msra.mxu0 0.0
      %1208 = vmatprep.subr.mxu0 0.0
      %1209 = vmatpush1.msra.mxu0 0.0
      %1210 = vmatprep.subr.mxu0 0.0
      %1211 = vmatpush1.msra.mxu0 0.0
      %1212 = vmatprep.subr.mxu0 0.0
      %1213 = vmatpush1.msra.mxu0 0.0
      %1214 = vmatprep.subr.mxu0 %v1166
      %1215 = vmatpush1.msra.mxu0 %v1164
      %1216 = vmatprep.subr.mxu0 0.0
      %1217 = vmatpush2.msra.mxu0 0.0
      %1218 = vmatprep.subr.mxu0 0.0
      %1219 = vmatpush2.msra.mxu0 0.0
      %1220 = vmatprep.subr.mxu0 0.0
      %1221 = vmatpush2.msra.mxu0 0.0
      %1222 = vmatprep.subr.mxu0 0.0
      %1223 = vmatpush2.msra.mxu0 0.0
      %1224 = vmatprep.subr.mxu0 0.0
      %1225 = vmatpush2.msra.mxu0 0.0
      %1226 = vmatprep.subr.mxu0 0.0
      %1227 = vmatpush2.msra.mxu0 0.0
      %1228 = vmatprep.subr.mxu0 0.0
      %1229 = vmatpush2.msra.mxu0 0.0
      %1230 = vmatprep.subr.mxu0 0.0
      %1231 = vmatpush2.msra.mxu0 0.0
      %1232 = vmatprep.subr.mxu0 0.0
      %1233 = vmatpush2.msra.mxu0 0.0
      %1234 = vmatprep.subr.mxu0 0.0
      %1235 = vmatpush2.msra.mxu0 0.0
      %1236 = vmatprep.subr.mxu0 0.0
      %1237 = vmatpush2.msra.mxu0 0.0
      %1238 = vmatprep.subr.mxu0 0.0
      %1239 = vmatpush2.msra.mxu0 0.0
      %1240 = vmatprep.subr.mxu0 0.0
      %1241 = vmatpush2.msra.mxu0 0.0
      %1242 = vmatprep.subr.mxu0 0.0
      %1243 = vmatpush2.msra.mxu0 0.0
      %1244 = vmatprep.subr.mxu0 0.0
      %1245 = vmatpush2.msra.mxu0 0.0
      %1246 = vmatprep.subr.mxu0 0.0
      %1247 = vmatpush2.msra.mxu0 0.0
      %1248 = vmatprep.mubr.f32.mxu0 0.0
      %1249 = vmatmul.mubr.f32.gmra.mxu0 %v1153
      %v1250 = vpop.f32.mrf.mxu0
      %v1251 = vadd.f32 0.0, %v1250
      %v1252 = vpop.f32.mrf.mxu0
      %v1253 = vadd.f32 0.0, %v1252
      %1254 = vmatprep.mubr.f32.mxu0 0.0
      %1255 = vmatmul.mubr.f32.gmra.mxu0 %v1155
      %v1256 = vpop.f32.mrf.mxu0
      %v1257 = vadd.f32 0.0, %v1256
      %v1258 = vpop.f32.mrf.mxu0
      %v1259 = vadd.f32 0.0, %v1258
      %1260 = vmatprep.mubr.f32.mxu0 0.0
      %1261 = vmatmul.mubr.f32.gmra.mxu0 %v1157
      %v1262 = vpop.f32.mrf.mxu0
      %v1263 = vadd.f32 0.0, %v1262
      %v1264 = vpop.f32.mrf.mxu0
      %v1265 = vadd.f32 0.0, %v1264
      %1266 = vmatprep.mubr.f32.mxu0 0.0
      %1267 = vmatmul.mubr.f32.gmra.mxu0 %v1159
      %v1268 = vpop.f32.mrf.mxu0
      %v1269 = vadd.f32 0.0, %v1268
      %v1270 = vpop.f32.mrf.mxu0
      %v1271 = vadd.f32 0.0, %v1270
      %1272 = vmatprep.mubr.f32.mxu0 0.0
      %1273 = vmatmul.mubr.f32.gmra.mxu0 %v1161
      %v1274 = vpop.f32.mrf.mxu0
      %v1275 = vadd.f32 0.0, %v1274
      %v1276 = vpop.f32.mrf.mxu0
      %v1277 = vadd.f32 0.0, %v1276
      %1278 = vdwg.mxu0
      %1279 = vmatprep.subr.mxu0 0.0
      %1280 = vmatpush1.msra.mxu0 0.0
      %1281 = vmatprep.subr.mxu0 0.0
      %1282 = vmatpush1.msra.mxu0 0.0
      %1283 = vmatprep.subr.mxu0 0.0
      %1284 = vmatpush1.msra.mxu0 0.0
      %1285 = vmatprep.subr.mxu0 0.0
      %1286 = vmatpush1.msra.mxu0 0.0
      %1287 = vmatprep.subr.mxu0 0.0
      %1288 = vmatpush1.msra.mxu0 0.0
      %1289 = vmatprep.subr.mxu0 0.0
      %1290 = vmatpush1.msra.mxu0 0.0
      %1291 = vmatprep.subr.mxu0 0.0
      %1292 = vmatpush1.msra.mxu0 0.0
      %1293 = vmatprep.subr.mxu0 0.0
      %1294 = vmatpush1.msra.mxu0 0.0
      %1295 = vmatprep.subr.mxu0 0.0
      %1296 = vmatpush1.msra.mxu0 0.0
      %1297 = vmatprep.subr.mxu0 0.0
      %1298 = vmatpush1.msra.mxu0 0.0
      %1299 = vmatprep.subr.mxu0 0.0
      %1300 = vmatpush1.msra.mxu0 0.0
      %1301 = vmatprep.subr.mxu0 0.0
      %1302 = vmatpush1.msra.mxu0 0.0
      %1303 = vmatprep.subr.mxu0 0.0
      %1304 = vmatpush1.msra.mxu0 0.0
      %1305 = vmatprep.subr.mxu0 0.0
      %1306 = vmatpush1.msra.mxu0 0.0
      %1307 = vmatprep.subr.mxu0 0.0
      %1308 = vmatpush1.msra.mxu0 0.0
      %1309 = vmatprep.subr.mxu0 %v1170
      %1310 = vmatpush1.msra.mxu0 %v1168
      %1311 = vmatprep.subr.mxu0 0.0
      %1312 = vmatpush2.msra.mxu0 0.0
      %1313 = vmatprep.subr.mxu0 0.0
      %1314 = vmatpush2.msra.mxu0 0.0
      %1315 = vmatprep.subr.mxu0 0.0
      %1316 = vmatpush2.msra.mxu0 0.0
      %1317 = vmatprep.subr.mxu0 0.0
      %1318 = vmatpush2.msra.mxu0 0.0
      %1319 = vmatprep.subr.mxu0 0.0
      %1320 = vmatpush2.msra.mxu0 0.0
      %1321 = vmatprep.subr.mxu0 0.0
      %1322 = vmatpush2.msra.mxu0 0.0
      %1323 = vmatprep.subr.mxu0 0.0
      %1324 = vmatpush2.msra.mxu0 0.0
      %1325 = vmatprep.subr.mxu0 0.0
      %1326 = vmatpush2.msra.mxu0 0.0
      %1327 = vmatprep.subr.mxu0 0.0
      %1328 = vmatpush2.msra.mxu0 0.0
      %1329 = vmatprep.subr.mxu0 0.0
      %1330 = vmatpush2.msra.mxu0 0.0
      %1331 = vmatprep.subr.mxu0 0.0
      %1332 = vmatpush2.msra.mxu0 0.0
      %1333 = vmatprep.subr.mxu0 0.0
      %1334 = vmatpush2.msra.mxu0 0.0
      %1335 = vmatprep.subr.mxu0 0.0
      %1336 = vmatpush2.msra.mxu0 0.0
      %1337 = vmatprep.subr.mxu0 0.0
      %1338 = vmatpush2.msra.mxu0 0.0
      %1339 = vmatprep.subr.mxu0 0.0
      %1340 = vmatpush2.msra.mxu0 0.0
      %1341 = vmatprep.subr.mxu0 0.0
      %1342 = vmatpush2.msra.mxu0 0.0
      %1343 = vmatprep.mubr.f32.mxu0 0.0
      %1344 = vmatmul.mubr.f32.gmra.mxu0 %v1153
      %v1345 = vpop.f32.mrf.mxu0
      %v1346 = vadd.f32 0.0, %v1345
      %v1347 = vpop.f32.mrf.mxu0
      %v1348 = vadd.f32 0.0, %v1347
      %1349 = vmatprep.mubr.f32.mxu0 0.0
      %1350 = vmatmul.mubr.f32.gmra.mxu0 %v1155
      %v1351 = vpop.f32.mrf.mxu0
      %v1352 = vadd.f32 0.0, %v1351
      %v1353 = vpop.f32.mrf.mxu0
      %v1354 = vadd.f32 0.0, %v1353
      %1355 = vmatprep.mubr.f32.mxu0 0.0
      %1356 = vmatmul.mubr.f32.gmra.mxu0 %v1157
      %v1357 = vpop.f32.mrf.mxu0
      %v1358 = vadd.f32 0.0, %v1357
      %v1359 = vpop.f32.mrf.mxu0
      %v1360 = vadd.f32 0.0, %v1359
      %1361 = vmatprep.mubr.f32.mxu0 0.0
      %1362 = vmatmul.mubr.f32.gmra.mxu0 %v1159
      %v1363 = vpop.f32.mrf.mxu0
      %v1364 = vadd.f32 0.0, %v1363
      %v1365 = vpop.f32.mrf.mxu0
      %v1366 = vadd.f32 0.0, %v1365
      %1367 = vmatprep.mubr.f32.mxu0 0.0
      %1368 = vmatmul.mubr.f32.gmra.mxu0 %v1161
      %v1369 = vpop.f32.mrf.mxu0
      %v1370 = vadd.f32 0.0, %v1369
      %v1371 = vpop.f32.mrf.mxu0
      %v1372 = vadd.f32 0.0, %v1371
      %1373 = vdwg.mxu0
      %1374 = vmatprep.subr.mxu0 0.0
      %1375 = vmatpush1.msra.mxu0 0.0
      %1376 = vmatprep.subr.mxu0 0.0
      %1377 = vmatpush1.msra.mxu0 0.0
      %1378 = vmatprep.subr.mxu0 0.0
      %1379 = vmatpush1.msra.mxu0 0.0
      %1380 = vmatprep.subr.mxu0 0.0
      %1381 = vmatpush1.msra.mxu0 0.0
      %1382 = vmatprep.subr.mxu0 0.0
      %1383 = vmatpush1.msra.mxu0 0.0
      %1384 = vmatprep.subr.mxu0 0.0
      %1385 = vmatpush1.msra.mxu0 0.0
      %1386 = vmatprep.subr.mxu0 0.0
      %1387 = vmatpush1.msra.mxu0 0.0
      %1388 = vmatprep.subr.mxu0 0.0
      %1389 = vmatpush1.msra.mxu0 0.0
      %1390 = vmatprep.subr.mxu0 0.0
      %1391 = vmatpush1.msra.mxu0 0.0
      %1392 = vmatprep.subr.mxu0 0.0
      %1393 = vmatpush1.msra.mxu0 0.0
      %1394 = vmatprep.subr.mxu0 0.0
      %1395 = vmatpush1.msra.mxu0 0.0
      %1396 = vmatprep.subr.mxu0 0.0
      %1397 = vmatpush1.msra.mxu0 0.0
      %1398 = vmatprep.subr.mxu0 0.0
      %1399 = vmatpush1.msra.mxu0 0.0
      %1400 = vmatprep.subr.mxu0 0.0
      %1401 = vmatpush1.msra.mxu0 0.0
      %1402 = vmatprep.subr.mxu0 0.0
      %1403 = vmatpush1.msra.mxu0 0.0
      %1404 = vmatprep.subr.mxu0 %v1174
      %1405 = vmatpush1.msra.mxu0 %v1172
      %1406 = vmatprep.subr.mxu0 0.0
      %1407 = vmatpush2.msra.mxu0 0.0
      %1408 = vmatprep.subr.mxu0 0.0
      %1409 = vmatpush2.msra.mxu0 0.0
      %1410 = vmatprep.subr.mxu0 0.0
      %1411 = vmatpush2.msra.mxu0 0.0
      %1412 = vmatprep.subr.mxu0 0.0
      %1413 = vmatpush2.msra.mxu0 0.0
      %1414 = vmatprep.subr.mxu0 0.0
      %1415 = vmatpush2.msra.mxu0 0.0
      %1416 = vmatprep.subr.mxu0 0.0
      %1417 = vmatpush2.msra.mxu0 0.0
      %1418 = vmatprep.subr.mxu0 0.0
      %1419 = vmatpush2.msra.mxu0 0.0
      %1420 = vmatprep.subr.mxu0 0.0
      %1421 = vmatpush2.msra.mxu0 0.0
      %1422 = vmatprep.subr.mxu0 0.0
      %1423 = vmatpush2.msra.mxu0 0.0
      %1424 = vmatprep.subr.mxu0 0.0
      %1425 = vmatpush2.msra.mxu0 0.0
      %1426 = vmatprep.subr.mxu0 0.0
      %1427 = vmatpush2.msra.mxu0 0.0
      %1428 = vmatprep.subr.mxu0 0.0
      %1429 = vmatpush2.msra.mxu0 0.0
      %1430 = vmatprep.subr.mxu0 0.0
      %1431 = vmatpush2.msra.mxu0 0.0
      %1432 = vmatprep.subr.mxu0 0.0
      %1433 = vmatpush2.msra.mxu0 0.0
      %1434 = vmatprep.subr.mxu0 0.0
      %1435 = vmatpush2.msra.mxu0 0.0
      %1436 = vmatprep.subr.mxu0 0.0
      %1437 = vmatpush2.msra.mxu0 0.0
      %1438 = vmatprep.mubr.f32.mxu0 0.0
      %1439 = vmatmul.mubr.f32.gmra.mxu0 %v1153
      %v1440 = vpop.f32.mrf.mxu0
      %v1441 = vadd.f32 0.0, %v1440
      %v1442 = vpop.f32.mrf.mxu0
      %v1443 = vadd.f32 0.0, %v1442
      %1444 = vmatprep.mubr.f32.mxu0 0.0
      %1445 = vmatmul.mubr.f32.gmra.mxu0 %v1155
      %v1446 = vpop.f32.mrf.mxu0
      %v1447 = vadd.f32 0.0, %v1446
      %v1448 = vpop.f32.mrf.mxu0
      %v1449 = vadd.f32 0.0, %v1448
      %1450 = vmatprep.mubr.f32.mxu0 0.0
      %1451 = vmatmul.mubr.f32.gmra.mxu0 %v1157
      %v1452 = vpop.f32.mrf.mxu0
      %v1453 = vadd.f32 0.0, %v1452
      %v1454 = vpop.f32.mrf.mxu0
      %v1455 = vadd.f32 0.0, %v1454
      %1456 = vmatprep.mubr.f32.mxu0 0.0
      %1457 = vmatmul.mubr.f32.gmra.mxu0 %v1159
      %v1458 = vpop.f32.mrf.mxu0
      %v1459 = vadd.f32 0.0, %v1458
      %v1460 = vpop.f32.mrf.mxu0
      %v1461 = vadd.f32 0.0, %v1460
      %1462 = vmatprep.mubr.f32.mxu0 0.0
      %1463 = vmatmul.mubr.f32.gmra.mxu0 %v1161
      %v1464 = vpop.f32.mrf.mxu0
      %v1465 = vadd.f32 0.0, %v1464
      %v1466 = vpop.f32.mrf.mxu0
      %v1467 = vadd.f32 0.0, %v1466
      %1468 = vdwg.mxu0
      %1469 = vmatprep.subr.mxu0 0.0
      %1470 = vmatpush1.msra.mxu0 0.0
      %1471 = vmatprep.subr.mxu0 0.0
      %1472 = vmatpush1.msra.mxu0 0.0
      %1473 = vmatprep.subr.mxu0 0.0
      %1474 = vmatpush1.msra.mxu0 0.0
      %1475 = vmatprep.subr.mxu0 0.0
      %1476 = vmatpush1.msra.mxu0 0.0
      %1477 = vmatprep.subr.mxu0 0.0
      %1478 = vmatpush1.msra.mxu0 0.0
      %1479 = vmatprep.subr.mxu0 0.0
      %1480 = vmatpush1.msra.mxu0 0.0
      %1481 = vmatprep.subr.mxu0 0.0
      %1482 = vmatpush1.msra.mxu0 0.0
      %1483 = vmatprep.subr.mxu0 0.0
      %1484 = vmatpush1.msra.mxu0 0.0
      %1485 = vmatprep.subr.mxu0 0.0
      %1486 = vmatpush1.msra.mxu0 0.0
      %1487 = vmatprep.subr.mxu0 0.0
      %1488 = vmatpush1.msra.mxu0 0.0
      %1489 = vmatprep.subr.mxu0 0.0
      %1490 = vmatpush1.msra.mxu0 0.0
      %1491 = vmatprep.subr.mxu0 0.0
      %1492 = vmatpush1.msra.mxu0 0.0
      %1493 = vmatprep.subr.mxu0 0.0
      %1494 = vmatpush1.msra.mxu0 0.0
      %1495 = vmatprep.subr.mxu0 0.0
      %1496 = vmatpush1.msra.mxu0 0.0
      %1497 = vmatprep.subr.mxu0 0.0
      %1498 = vmatpush1.msra.mxu0 0.0
      %1499 = vmatprep.subr.mxu0 %v1178
      %1500 = vmatpush1.msra.mxu0 %v1176
      %1501 = vmatprep.subr.mxu0 0.0
      %1502 = vmatpush2.msra.mxu0 0.0
      %1503 = vmatprep.subr.mxu0 0.0
      %1504 = vmatpush2.msra.mxu0 0.0
      %1505 = vmatprep.subr.mxu0 0.0
      %1506 = vmatpush2.msra.mxu0 0.0
      %1507 = vmatprep.subr.mxu0 0.0
      %1508 = vmatpush2.msra.mxu0 0.0
      %1509 = vmatprep.subr.mxu0 0.0
      %1510 = vmatpush2.msra.mxu0 0.0
      %1511 = vmatprep.subr.mxu0 0.0
      %1512 = vmatpush2.msra.mxu0 0.0
      %1513 = vmatprep.subr.mxu0 0.0
      %1514 = vmatpush2.msra.mxu0 0.0
      %1515 = vmatprep.subr.mxu0 0.0
      %1516 = vmatpush2.msra.mxu0 0.0
      %1517 = vmatprep.subr.mxu0 0.0
      %1518 = vmatpush2.msra.mxu0 0.0
      %1519 = vmatprep.subr.mxu0 0.0
      %1520 = vmatpush2.msra.mxu0 0.0
      %1521 = vmatprep.subr.mxu0 0.0
      %1522 = vmatpush2.msra.mxu0 0.0
      %1523 = vmatprep.subr.mxu0 0.0
      %1524 = vmatpush2.msra.mxu0 0.0
      %1525 = vmatprep.subr.mxu0 0.0
      %1526 = vmatpush2.msra.mxu0 0.0
      %1527 = vmatprep.subr.mxu0 0.0
      %1528 = vmatpush2.msra.mxu0 0.0
      %1529 = vmatprep.subr.mxu0 0.0
      %1530 = vmatpush2.msra.mxu0 0.0
      %1531 = vmatprep.subr.mxu0 0.0
      %1532 = vmatpush2.msra.mxu0 0.0
      %1533 = vmatprep.mubr.f32.mxu0 0.0
      %1534 = vmatmul.mubr.f32.gmra.mxu0 %v1153
      %v1535 = vpop.f32.mrf.mxu0
      %v1536 = vadd.f32 0.0, %v1535
      %v1537 = vpop.f32.mrf.mxu0
      %v1538 = vadd.f32 0.0, %v1537
      %1539 = vmatprep.mubr.f32.mxu0 0.0
      %1540 = vmatmul.mubr.f32.gmra.mxu0 %v1155
      %v1541 = vpop.f32.mrf.mxu0
      %v1542 = vadd.f32 0.0, %v1541
      %v1543 = vpop.f32.mrf.mxu0
      %v1544 = vadd.f32 0.0, %v1543
      %1545 = vmatprep.mubr.f32.mxu0 0.0
      %1546 = vmatmul.mubr.f32.gmra.mxu0 %v1157
      %v1547 = vpop.f32.mrf.mxu0
      %v1548 = vadd.f32 0.0, %v1547
      %v1549 = vpop.f32.mrf.mxu0
      %v1550 = vadd.f32 0.0, %v1549
      %1551 = vmatprep.mubr.f32.mxu0 0.0
      %1552 = vmatmul.mubr.f32.gmra.mxu0 %v1159
      %v1553 = vpop.f32.mrf.mxu0
      %v1554 = vadd.f32 0.0, %v1553
      %v1555 = vpop.f32.mrf.mxu0
      %v1556 = vadd.f32 0.0, %v1555
      %1557 = vmatprep.mubr.f32.mxu0 0.0
      %1558 = vmatmul.mubr.f32.gmra.mxu0 %v1161
      %v1559 = vpop.f32.mrf.mxu0
      %v1560 = vadd.f32 0.0, %v1559
      %v1561 = vpop.f32.mrf.mxu0
      %v1562 = vadd.f32 0.0, %v1561
      %1563 = vdwg.mxu0
      %1564 = vmatprep.subr.mxu0 0.0
      %1565 = vmatpush1.msra.mxu0 0.0
      %1566 = vmatprep.subr.mxu0 0.0
      %1567 = vmatpush1.msra.mxu0 0.0
      %1568 = vmatprep.subr.mxu0 0.0
      %1569 = vmatpush1.msra.mxu0 0.0
      %1570 = vmatprep.subr.mxu0 0.0
      %1571 = vmatpush1.msra.mxu0 0.0
      %1572 = vmatprep.subr.mxu0 0.0
      %1573 = vmatpush1.msra.mxu0 0.0
      %1574 = vmatprep.subr.mxu0 0.0
      %1575 = vmatpush1.msra.mxu0 0.0
      %1576 = vmatprep.subr.mxu0 0.0
      %1577 = vmatpush1.msra.mxu0 0.0
      %1578 = vmatprep.subr.mxu0 0.0
      %1579 = vmatpush1.msra.mxu0 0.0
      %1580 = vmatprep.subr.mxu0 0.0
      %1581 = vmatpush1.msra.mxu0 0.0
      %1582 = vmatprep.subr.mxu0 0.0
      %1583 = vmatpush1.msra.mxu0 0.0
      %1584 = vmatprep.subr.mxu0 0.0
      %1585 = vmatpush1.msra.mxu0 0.0
      %1586 = vmatprep.subr.mxu0 0.0
      %1587 = vmatpush1.msra.mxu0 0.0
      %1588 = vmatprep.subr.mxu0 0.0
      %1589 = vmatpush1.msra.mxu0 0.0
      %1590 = vmatprep.subr.mxu0 0.0
      %1591 = vmatpush1.msra.mxu0 0.0
      %1592 = vmatprep.subr.mxu0 0.0
      %1593 = vmatpush1.msra.mxu0 0.0
      %1594 = vmatprep.subr.mxu0 %v1182
      %1595 = vmatpush1.msra.mxu0 %v1180
      %1596 = vmatprep.subr.mxu0 0.0
      %1597 = vmatpush2.msra.mxu0 0.0
      %1598 = vmatprep.subr.mxu0 0.0
      %1599 = vmatpush2.msra.mxu0 0.0
      %1600 = vmatprep.subr.mxu0 0.0
      %1601 = vmatpush2.msra.mxu0 0.0
      %1602 = vmatprep.subr.mxu0 0.0
      %1603 = vmatpush2.msra.mxu0 0.0
      %1604 = vmatprep.subr.mxu0 0.0
      %1605 = vmatpush2.msra.mxu0 0.0
      %1606 = vmatprep.subr.mxu0 0.0
      %1607 = vmatpush2.msra.mxu0 0.0
      %1608 = vmatprep.subr.mxu0 0.0
      %1609 = vmatpush2.msra.mxu0 0.0
      %1610 = vmatprep.subr.mxu0 0.0
      %1611 = vmatpush2.msra.mxu0 0.0
      %1612 = vmatprep.subr.mxu0 0.0
      %1613 = vmatpush2.msra.mxu0 0.0
      %1614 = vmatprep.subr.mxu0 0.0
      %1615 = vmatpush2.msra.mxu0 0.0
      %1616 = vmatprep.subr.mxu0 0.0
      %1617 = vmatpush2.msra.mxu0 0.0
      %1618 = vmatprep.subr.mxu0 0.0
      %1619 = vmatpush2.msra.mxu0 0.0
      %1620 = vmatprep.subr.mxu0 0.0
      %1621 = vmatpush2.msra.mxu0 0.0
      %1622 = vmatprep.subr.mxu0 0.0
      %1623 = vmatpush2.msra.mxu0 0.0
      %1624 = vmatprep.subr.mxu0 0.0
      %1625 = vmatpush2.msra.mxu0 0.0
      %1626 = vmatprep.subr.mxu0 0.0
      %1627 = vmatpush2.msra.mxu0 0.0
      %1628 = vmatprep.mubr.f32.mxu0 0.0
      %1629 = vmatmul.mubr.f32.gmra.mxu0 %v1153
      %v1630 = vpop.f32.mrf.mxu0
      %v1631 = vadd.f32 0.0, %v1630
      %v1632 = vpop.f32.mrf.mxu0
      %v1633 = vadd.f32 0.0, %v1632
      %1634 = vmatprep.mubr.f32.mxu0 0.0
      %1635 = vmatmul.mubr.f32.gmra.mxu0 %v1155
      %v1636 = vpop.f32.mrf.mxu0
      %v1637 = vadd.f32 0.0, %v1636
      %v1638 = vpop.f32.mrf.mxu0
      %v1639 = vadd.f32 0.0, %v1638
      %1640 = vmatprep.mubr.f32.mxu0 0.0
      %1641 = vmatmul.mubr.f32.gmra.mxu0 %v1157
      %v1642 = vpop.f32.mrf.mxu0
      %v1643 = vadd.f32 0.0, %v1642
      %v1644 = vpop.f32.mrf.mxu0
      %v1645 = vadd.f32 0.0, %v1644
      %1646 = vmatprep.mubr.f32.mxu0 0.0
      %1647 = vmatmul.mubr.f32.gmra.mxu0 %v1159
      %v1648 = vpop.f32.mrf.mxu0
      %v1649 = vadd.f32 0.0, %v1648
      %v1650 = vpop.f32.mrf.mxu0
      %v1651 = vadd.f32 0.0, %v1650
      %1652 = vmatprep.mubr.f32.mxu0 0.0
      %1653 = vmatmul.mubr.f32.gmra.mxu0 %v1161
      %v1654 = vpop.f32.mrf.mxu0
      %v1655 = vadd.f32 0.0, %v1654
      %v1656 = vpop.f32.mrf.mxu0
      %v1657 = vadd.f32 0.0, %v1656
      %1658 = vdwg.mxu0
      %v1669 = vrot.slane %v1251, 4
      %v1670 = vrot.slane %v1253, 4
      %v1671 = vrot.slane %v1346, 4
      %v1672 = vrot.slane %v1348, 4
      %v1673 = vrot.slane %v1441, 4
      %v1674 = vrot.slane %v1443, 4
      %v1675 = vrot.slane %v1536, 4
      %v1676 = vrot.slane %v1538, 4
      %v1677 = vrot.slane %v1631, 4
      %v1678 = vrot.slane %v1633, 4
      %1679 = vrot.lane.b32.xlu0 %v1669, 127
      %v1680 = vpop.permute.xlu0 %1679
      %1681 = vrot.lane.b32.xlu0 %v1670, 127
      %v1682 = vpop.permute.xlu0 %1681
      %1683 = vrot.lane.b32.xlu0 %v1671, 127
      %v1684 = vpop.permute.xlu0 %1683
      %1685 = vrot.lane.b32.xlu0 %v1672, 127
      %v1686 = vpop.permute.xlu0 %1685
      %1687 = vrot.lane.b32.xlu0 %v1673, 127
      %v1688 = vpop.permute.xlu0 %1687
      %1689 = vrot.lane.b32.xlu0 %v1674, 127
      %v1690 = vpop.permute.xlu0 %1689
      %1691 = vrot.lane.b32.xlu0 %v1675, 127
      %v1692 = vpop.permute.xlu0 %1691
      %1693 = vrot.lane.b32.xlu0 %v1676, 127
      %v1694 = vpop.permute.xlu0 %1693
      %1695 = vrot.lane.b32.xlu0 %v1677, 127
      %v1696 = vpop.permute.xlu0 %1695
      %1697 = vrot.lane.b32.xlu0 %v1678, 127
      %v1698 = vpop.permute.xlu0 %1697
      %vm1699 = vcmask 1039360
      %v1700 = vsel %vm1699, %v1680, %v1682
      %v1701 = vsel %vm1699, %v1682, %v1684
      %v1702 = vsel %vm1699, %v1684, %v1686
      %v1703 = vsel %vm1699, %v1686, %v1688
      %v1704 = vsel %vm1699, %v1688, %v1690
      %v1705 = vsel %vm1699, %v1690, %v1692
      %v1706 = vsel %vm1699, %v1692, %v1694
      %v1707 = vsel %vm1699, %v1694, %v1696
      %v1708 = vsel %vm1699, %v1696, %v1698
      %v1719 = vadd.f32 %v1251, %v1700
      %v1720 = vadd.f32 %v1253, %v1701
      %v1721 = vadd.f32 %v1346, %v1702
      %v1722 = vadd.f32 %v1348, %v1703
      %v1723 = vadd.f32 %v1441, %v1704
      %v1724 = vadd.f32 %v1443, %v1705
      %v1725 = vadd.f32 %v1536, %v1706
      %v1726 = vadd.f32 %v1538, %v1707
      %v1727 = vadd.f32 %v1631, %v1708
      %v1728 = vadd.f32 %v1633, %v1698
      %1739 = vrot.lane.b32.xlu0 %v1257, 126
      %v1740 = vpop.permute.xlu0 %1739
      %1741 = vrot.lane.b32.xlu0 %v1259, 126
      %v1742 = vpop.permute.xlu0 %1741
      %1743 = vrot.lane.b32.xlu0 %v1352, 126
      %v1744 = vpop.permute.xlu0 %1743
      %1745 = vrot.lane.b32.xlu0 %v1354, 126
      %v1746 = vpop.permute.xlu0 %1745
      %1747 = vrot.lane.b32.xlu0 %v1447, 126
      %v1748 = vpop.permute.xlu0 %1747
      %1749 = vrot.lane.b32.xlu0 %v1449, 126
      %v1750 = vpop.permute.xlu0 %1749
      %1751 = vrot.lane.b32.xlu0 %v1542, 126
      %v1752 = vpop.permute.xlu0 %1751
      %1753 = vrot.lane.b32.xlu0 %v1544, 126
      %v1754 = vpop.permute.xlu0 %1753
      %1755 = vrot.lane.b32.xlu0 %v1637, 126
      %v1756 = vpop.permute.xlu0 %1755
      %1757 = vrot.lane.b32.xlu0 %v1639, 126
      %v1758 = vpop.permute.xlu0 %1757
      %vm1759 = vcmask 1031168
      %v1760 = vsel %vm1759, %v1740, %v1742
      %v1761 = vsel %vm1759, %v1742, %v1744
      %v1762 = vsel %vm1759, %v1744, %v1746
      %v1763 = vsel %vm1759, %v1746, %v1748
      %v1764 = vsel %vm1759, %v1748, %v1750
      %v1765 = vsel %vm1759, %v1750, %v1752
      %v1766 = vsel %vm1759, %v1752, %v1754
      %v1767 = vsel %vm1759, %v1754, %v1756
      %v1768 = vsel %vm1759, %v1756, %v1758
      %v1779 = vadd.f32 %v1719, %v1760
      %v1780 = vadd.f32 %v1720, %v1761
      %v1781 = vadd.f32 %v1721, %v1762
      %v1782 = vadd.f32 %v1722, %v1763
      %v1783 = vadd.f32 %v1723, %v1764
      %v1784 = vadd.f32 %v1724, %v1765
      %v1785 = vadd.f32 %v1725, %v1766
      %v1786 = vadd.f32 %v1726, %v1767
      %v1787 = vadd.f32 %v1727, %v1768
      %v1788 = vadd.f32 %v1728, %v1758
      %v1789 = vrot.slane %v1257, 4
      %v1790 = vrot.slane %v1259, 4
      %v1791 = vrot.slane %v1352, 4
      %v1792 = vrot.slane %v1354, 4
      %v1793 = vrot.slane %v1447, 4
      %v1794 = vrot.slane %v1449, 4
      %v1795 = vrot.slane %v1542, 4
      %v1796 = vrot.slane %v1544, 4
      %v1797 = vrot.slane %v1637, 4
      %v1798 = vrot.slane %v1639, 4
      %1799 = vrot.lane.b32.xlu0 %v1789, 93
      %v1800 = vpop.permute.xlu0 %1799
      %1801 = vrot.lane.b32.xlu0 %v1790, 93
      %v1802 = vpop.permute.xlu0 %1801
      %1803 = vrot.lane.b32.xlu0 %v1791, 93
      %v1804 = vpop.permute.xlu0 %1803
      %1805 = vrot.lane.b32.xlu0 %v1792, 93
      %v1806 = vpop.permute.xlu0 %1805
      %1807 = vrot.lane.b32.xlu0 %v1793, 93
      %v1808 = vpop.permute.xlu0 %1807
      %1809 = vrot.lane.b32.xlu0 %v1794, 93
      %v1810 = vpop.permute.xlu0 %1809
      %1811 = vrot.lane.b32.xlu0 %v1795, 93
      %v1812 = vpop.permute.xlu0 %1811
      %1813 = vrot.lane.b32.xlu0 %v1796, 93
      %v1814 = vpop.permute.xlu0 %1813
      %1815 = vrot.lane.b32.xlu0 %v1797, 93
      %v1816 = vpop.permute.xlu0 %1815
      %1817 = vrot.lane.b32.xlu0 %v1798, 93
      %v1818 = vpop.permute.xlu0 %1817
      %vm1819 = vcmask 760832
      %v1820 = vsel %vm1819, %v1800, %v1802
      %v1821 = vsel %vm1819, %v1802, %v1804
      %v1822 = vsel %vm1819, %v1804, %v1806
      %v1823 = vsel %vm1819, %v1806, %v1808
      %v1824 = vsel %vm1819, %v1808, %v1810
      %v1825 = vsel %vm1819, %v1810, %v1812
      %v1826 = vsel %vm1819, %v1812, %v1814
      %v1827 = vsel %vm1819, %v1814, %v1816
      %v1828 = vsel %vm1819, %v1816, %v1818
      %v1839 = vadd.f32 %v1779, %v1820
      %v1840 = vadd.f32 %v1780, %v1821
      %v1841 = vadd.f32 %v1781, %v1822
      %v1842 = vadd.f32 %v1782, %v1823
      %v1843 = vadd.f32 %v1783, %v1824
      %v1844 = vadd.f32 %v1784, %v1825
      %v1845 = vadd.f32 %v1785, %v1826
      %v1846 = vadd.f32 %v1786, %v1827
      %v1847 = vadd.f32 %v1787, %v1828
      %v1848 = vadd.f32 %v1788, %v1818
      %1859 = vrot.lane.b32.xlu0 %v1263, 92
      %v1860 = vpop.permute.xlu0 %1859
      %1861 = vrot.lane.b32.xlu0 %v1265, 92
      %v1862 = vpop.permute.xlu0 %1861
      %1863 = vrot.lane.b32.xlu0 %v1358, 92
      %v1864 = vpop.permute.xlu0 %1863
      %1865 = vrot.lane.b32.xlu0 %v1360, 92
      %v1866 = vpop.permute.xlu0 %1865
      %1867 = vrot.lane.b32.xlu0 %v1453, 92
      %v1868 = vpop.permute.xlu0 %1867
      %1869 = vrot.lane.b32.xlu0 %v1455, 92
      %v1870 = vpop.permute.xlu0 %1869
      %1871 = vrot.lane.b32.xlu0 %v1548, 92
      %v1872 = vpop.permute.xlu0 %1871
      %1873 = vrot.lane.b32.xlu0 %v1550, 92
      %v1874 = vpop.permute.xlu0 %1873
      %1875 = vrot.lane.b32.xlu0 %v1643, 92
      %v1876 = vpop.permute.xlu0 %1875
      %1877 = vrot.lane.b32.xlu0 %v1645, 92
      %v1878 = vpop.permute.xlu0 %1877
      %vm1879 = vcmask 752640
      %v1880 = vsel %vm1879, %v1860, %v1862
      %v1881 = vsel %vm1879, %v1862, %v1864
      %v1882 = vsel %vm1879, %v1864, %v1866
      %v1883 = vsel %vm1879, %v1866, %v1868
      %v1884 = vsel %vm1879, %v1868, %v1870
      %v1885 = vsel %vm1879, %v1870, %v1872
      %v1886 = vsel %vm1879, %v1872, %v1874
      %v1887 = vsel %vm1879, %v1874, %v1876
      %v1888 = vsel %vm1879, %v1876, %v1878
      %v1899 = vadd.f32 %v1839, %v1880
      %v1900 = vadd.f32 %v1840, %v1881
      %v1901 = vadd.f32 %v1841, %v1882
      %v1902 = vadd.f32 %v1842, %v1883
      %v1903 = vadd.f32 %v1843, %v1884
      %v1904 = vadd.f32 %v1844, %v1885
      %v1905 = vadd.f32 %v1845, %v1886
      %v1906 = vadd.f32 %v1846, %v1887
      %v1907 = vadd.f32 %v1847, %v1888
      %v1908 = vadd.f32 %v1848, %v1878
      %v1909 = vrot.slane %v1263, 4
      %v1910 = vrot.slane %v1265, 4
      %v1911 = vrot.slane %v1358, 4
      %v1912 = vrot.slane %v1360, 4
      %v1913 = vrot.slane %v1453, 4
      %v1914 = vrot.slane %v1455, 4
      %v1915 = vrot.slane %v1548, 4
      %v1916 = vrot.slane %v1550, 4
      %v1917 = vrot.slane %v1643, 4
      %v1918 = vrot.slane %v1645, 4
      %1919 = vrot.lane.b32.xlu0 %v1909, 91
      %v1920 = vpop.permute.xlu0 %1919
      %1921 = vrot.lane.b32.xlu0 %v1910, 91
      %v1922 = vpop.permute.xlu0 %1921
      %1923 = vrot.lane.b32.xlu0 %v1911, 91
      %v1924 = vpop.permute.xlu0 %1923
      %1925 = vrot.lane.b32.xlu0 %v1912, 91
      %v1926 = vpop.permute.xlu0 %1925
      %1927 = vrot.lane.b32.xlu0 %v1913, 91
      %v1928 = vpop.permute.xlu0 %1927
      %1929 = vrot.lane.b32.xlu0 %v1914, 91
      %v1930 = vpop.permute.xlu0 %1929
      %1931 = vrot.lane.b32.xlu0 %v1915, 91
      %v1932 = vpop.permute.xlu0 %1931
      %1933 = vrot.lane.b32.xlu0 %v1916, 91
      %v1934 = vpop.permute.xlu0 %1933
      %1935 = vrot.lane.b32.xlu0 %v1917, 91
      %v1936 = vpop.permute.xlu0 %1935
      %1937 = vrot.lane.b32.xlu0 %v1918, 91
      %v1938 = vpop.permute.xlu0 %1937
      %vm1939 = vcmask 744448
      %v1940 = vsel %vm1939, %v1920, %v1922
      %v1941 = vsel %vm1939, %v1922, %v1924
      %v1942 = vsel %vm1939, %v1924, %v1926
      %v1943 = vsel %vm1939, %v1926, %v1928
      %v1944 = vsel %vm1939, %v1928, %v1930
      %v1945 = vsel %vm1939, %v1930, %v1932
      %v1946 = vsel %vm1939, %v1932, %v1934
      %v1947 = vsel %vm1939, %v1934, %v1936
      %v1948 = vsel %vm1939, %v1936, %v1938
      %v1959 = vadd.f32 %v1899, %v1940
      %v1960 = vadd.f32 %v1900, %v1941
      %v1961 = vadd.f32 %v1901, %v1942
      %v1962 = vadd.f32 %v1902, %v1943
      %v1963 = vadd.f32 %v1903, %v1944
      %v1964 = vadd.f32 %v1904, %v1945
      %v1965 = vadd.f32 %v1905, %v1946
      %v1966 = vadd.f32 %v1906, %v1947
      %v1967 = vadd.f32 %v1907, %v1948
      %v1968 = vadd.f32 %v1908, %v1938
      %1979 = vrot.lane.b32.xlu0 %v1269, 58
      %v1980 = vpop.permute.xlu0 %1979
      %1981 = vrot.lane.b32.xlu0 %v1271, 58
      %v1982 = vpop.permute.xlu0 %1981
      %1983 = vrot.lane.b32.xlu0 %v1364, 58
      %v1984 = vpop.permute.xlu0 %1983
      %1985 = vrot.lane.b32.xlu0 %v1366, 58
      %v1986 = vpop.permute.xlu0 %1985
      %1987 = vrot.lane.b32.xlu0 %v1459, 58
      %v1988 = vpop.permute.xlu0 %1987
      %1989 = vrot.lane.b32.xlu0 %v1461, 58
      %v1990 = vpop.permute.xlu0 %1989
      %1991 = vrot.lane.b32.xlu0 %v1554, 58
      %v1992 = vpop.permute.xlu0 %1991
      %1993 = vrot.lane.b32.xlu0 %v1556, 58
      %v1994 = vpop.permute.xlu0 %1993
      %1995 = vrot.lane.b32.xlu0 %v1649, 58
      %v1996 = vpop.permute.xlu0 %1995
      %1997 = vrot.lane.b32.xlu0 %v1651, 58
      %v1998 = vpop.permute.xlu0 %1997
      %vm1999 = vcmask 474112
      %v2000 = vsel %vm1999, %v1980, %v1982
      %v2001 = vsel %vm1999, %v1982, %v1984
      %v2002 = vsel %vm1999, %v1984, %v1986
      %v2003 = vsel %vm1999, %v1986, %v1988
      %v2004 = vsel %vm1999, %v1988, %v1990
      %v2005 = vsel %vm1999, %v1990, %v1992
      %v2006 = vsel %vm1999, %v1992, %v1994
      %v2007 = vsel %vm1999, %v1994, %v1996
      %v2008 = vsel %vm1999, %v1996, %v1998
      %v2019 = vadd.f32 %v1959, %v2000
      %v2020 = vadd.f32 %v1960, %v2001
      %v2021 = vadd.f32 %v1961, %v2002
      %v2022 = vadd.f32 %v1962, %v2003
      %v2023 = vadd.f32 %v1963, %v2004
      %v2024 = vadd.f32 %v1964, %v2005
      %v2025 = vadd.f32 %v1965, %v2006
      %v2026 = vadd.f32 %v1966, %v2007
      %v2027 = vadd.f32 %v1967, %v2008
      %v2028 = vadd.f32 %v1968, %v1998
      %v2029 = vrot.slane %v1269, 4
      %v2030 = vrot.slane %v1271, 4
      %v2031 = vrot.slane %v1364, 4
      %v2032 = vrot.slane %v1366, 4
      %v2033 = vrot.slane %v1459, 4
      %v2034 = vrot.slane %v1461, 4
      %v2035 = vrot.slane %v1554, 4
      %v2036 = vrot.slane %v1556, 4
      %v2037 = vrot.slane %v1649, 4
      %v2038 = vrot.slane %v1651, 4
      %2039 = vrot.lane.b32.xlu0 %v2029, 57
      %v2040 = vpop.permute.xlu0 %2039
      %2041 = vrot.lane.b32.xlu0 %v2030, 57
      %v2042 = vpop.permute.xlu0 %2041
      %2043 = vrot.lane.b32.xlu0 %v2031, 57
      %v2044 = vpop.permute.xlu0 %2043
      %2045 = vrot.lane.b32.xlu0 %v2032, 57
      %v2046 = vpop.permute.xlu0 %2045
      %2047 = vrot.lane.b32.xlu0 %v2033, 57
      %v2048 = vpop.permute.xlu0 %2047
      %2049 = vrot.lane.b32.xlu0 %v2034, 57
      %v2050 = vpop.permute.xlu0 %2049
      %2051 = vrot.lane.b32.xlu0 %v2035, 57
      %v2052 = vpop.permute.xlu0 %2051
      %2053 = vrot.lane.b32.xlu0 %v2036, 57
      %v2054 = vpop.permute.xlu0 %2053
      %2055 = vrot.lane.b32.xlu0 %v2037, 57
      %v2056 = vpop.permute.xlu0 %2055
      %2057 = vrot.lane.b32.xlu0 %v2038, 57
      %v2058 = vpop.permute.xlu0 %2057
      %vm2059 = vcmask 465920
      %v2060 = vsel %vm2059, %v2040, %v2042
      %v2061 = vsel %vm2059, %v2042, %v2044
      %v2062 = vsel %vm2059, %v2044, %v2046
      %v2063 = vsel %vm2059, %v2046, %v2048
      %v2064 = vsel %vm2059, %v2048, %v2050
      %v2065 = vsel %vm2059, %v2050, %v2052
      %v2066 = vsel %vm2059, %v2052, %v2054
      %v2067 = vsel %vm2059, %v2054, %v2056
      %v2068 = vsel %vm2059, %v2056, %v2058
      %v2079 = vadd.f32 %v2019, %v2060
      %v2080 = vadd.f32 %v2020, %v2061
      %v2081 = vadd.f32 %v2021, %v2062
      %v2082 = vadd.f32 %v2022, %v2063
      %v2083 = vadd.f32 %v2023, %v2064
      %v2084 = vadd.f32 %v2024, %v2065
      %v2085 = vadd.f32 %v2025, %v2066
      %v2086 = vadd.f32 %v2026, %v2067
      %v2087 = vadd.f32 %v2027, %v2068
      %v2088 = vadd.f32 %v2028, %v2058
      %2099 = vrot.lane.b32.xlu0 %v1275, 56
      %v2100 = vpop.permute.xlu0 %2099
      %2101 = vrot.lane.b32.xlu0 %v1277, 56
      %v2102 = vpop.permute.xlu0 %2101
      %2103 = vrot.lane.b32.xlu0 %v1370, 56
      %v2104 = vpop.permute.xlu0 %2103
      %2105 = vrot.lane.b32.xlu0 %v1372, 56
      %v2106 = vpop.permute.xlu0 %2105
      %2107 = vrot.lane.b32.xlu0 %v1465, 56
      %v2108 = vpop.permute.xlu0 %2107
      %2109 = vrot.lane.b32.xlu0 %v1467, 56
      %v2110 = vpop.permute.xlu0 %2109
      %2111 = vrot.lane.b32.xlu0 %v1560, 56
      %v2112 = vpop.permute.xlu0 %2111
      %2113 = vrot.lane.b32.xlu0 %v1562, 56
      %v2114 = vpop.permute.xlu0 %2113
      %2115 = vrot.lane.b32.xlu0 %v1655, 56
      %v2116 = vpop.permute.xlu0 %2115
      %2117 = vrot.lane.b32.xlu0 %v1657, 56
      %v2118 = vpop.permute.xlu0 %2117
      %vm2119 = vcmask 457728
      %v2120 = vsel %vm2119, %v2100, %v2102
      %v2121 = vsel %vm2119, %v2102, %v2104
      %v2122 = vsel %vm2119, %v2104, %v2106
      %v2123 = vsel %vm2119, %v2106, %v2108
      %v2124 = vsel %vm2119, %v2108, %v2110
      %v2125 = vsel %vm2119, %v2110, %v2112
      %v2126 = vsel %vm2119, %v2112, %v2114
      %v2127 = vsel %vm2119, %v2114, %v2116
      %v2128 = vsel %vm2119, %v2116, %v2118
      %v2139 = vadd.f32 %v2079, %v2120
      %v2140 = vadd.f32 %v2080, %v2121
      %v2141 = vadd.f32 %v2081, %v2122
      %v2142 = vadd.f32 %v2082, %v2123
      %v2143 = vadd.f32 %v2083, %v2124
      %v2144 = vadd.f32 %v2084, %v2125
      %v2145 = vadd.f32 %v2085, %v2126
      %v2146 = vadd.f32 %v2086, %v2127
      %v2147 = vadd.f32 %v2087, %v2128
      %v2148 = vadd.f32 %v2088, %v2118
      %2149 = vset.pattern.permute.xlu0 24
      %2150 = vperm.xlu0 %2149, %v1083
      %v2151 = vpop.permute.xlu0 %2150
      %v2153 = vadd.f32 %v2139, %v2151
      %v2154 = vadd.f32 %v2140, %v2151
      %v2155 = vadd.f32 %v2141, %v2151
      %v2156 = vadd.f32 %v2142, %v2151
      %v2157 = vadd.f32 %v2143, %v2151
      %v2158 = vadd.f32 %v2144, %v2151
      %v2159 = vadd.f32 %v2145, %v2151
      %v2160 = vadd.f32 %v2146, %v2151
      %v2161 = vadd.f32 %v2147, %v2151
      %v2162 = vadd.f32 %v2148, %v2151
      %v2163 = vmax.f32 %v2153, 0.0
      %v2164 = vmax.f32 %v2154, 0.0
      %v2165 = vmax.f32 %v2155, 0.0
      %v2166 = vmax.f32 %v2156, 0.0
      %v2167 = vmax.f32 %v2157, 0.0
      %v2168 = vmax.f32 %v2158, 0.0
      %v2169 = vmax.f32 %v2159, 0.0
      %v2170 = vmax.f32 %v2160, 0.0
      %v2171 = vmax.f32 %v2161, 0.0
      %v2172 = vmax.f32 %v2162, 0.0
      %2183 = vrot.lane.b32.xlu0 %v2163, 36
      %v2184 = vpop.permute.xlu0 %2183
      %2185 = vrot.lane.b32.xlu0 %v2164, 36
      %v2186 = vpop.permute.xlu0 %2185
      %2187 = vrot.lane.b32.xlu0 %v2165, 36
      %v2188 = vpop.permute.xlu0 %2187
      %2189 = vrot.lane.b32.xlu0 %v2166, 36
      %v2190 = vpop.permute.xlu0 %2189
      %2191 = vrot.lane.b32.xlu0 %v2167, 36
      %v2192 = vpop.permute.xlu0 %2191
      %2193 = vrot.lane.b32.xlu0 %v2168, 36
      %v2194 = vpop.permute.xlu0 %2193
      %2195 = vrot.lane.b32.xlu0 %v2169, 36
      %v2196 = vpop.permute.xlu0 %2195
      %2197 = vrot.lane.b32.xlu0 %v2170, 36
      %v2198 = vpop.permute.xlu0 %2197
      %2199 = vrot.lane.b32.xlu0 %v2171, 36
      %v2200 = vpop.permute.xlu0 %2199
      %2201 = vrot.lane.b32.xlu0 %v2172, 36
      %v2202 = vpop.permute.xlu0 %2201
      %vm2203 = vcmask 293888
      %v2204 = vsel %vm2203, %v2184, %v2186
      %v2205 = vsel %vm2203, %v2186, %v2188
      %v2206 = vsel %vm2203, %v2188, %v2190
      %v2207 = vsel %vm2203, %v2190, %v2192
      %v2208 = vsel %vm2203, %v2192, %v2194
      %v2209 = vsel %vm2203, %v2194, %v2196
      %v2210 = vsel %vm2203, %v2196, %v2198
      %v2211 = vsel %vm2203, %v2198, %v2200
      %v2212 = vsel %vm2203, %v2200, %v2202
      %v2223 = vsel %vm2203, 0.0, %v2184
      %v2224 = vsel %vm1879, %v2212, 0.0
      %v2227 = vlaneseq
      %v2228 = vshrl.u32 %v2227, 7
      %v2229 = vsub.s32 0, %v2228
      %v2230 = vrot.slane %v253, %v2229
      %v2231 = vlaneseq
      %v2232 = vshrl.u32 %v2231, 7
      %v2233 = vsub.s32 1, %v2232
      %v2234 = vrot.slane %v253, %v2233
      %v2235 = vlaneseq
      %v2236 = vshrl.u32 %v2235, 7
      %v2237 = vsub.s32 2, %v2236
      %v2238 = vrot.slane %v253, %v2237
      %v2239 = vlaneseq
      %v2240 = vshrl.u32 %v2239, 7
      %v2241 = vsub.s32 3, %v2240
      %v2242 = vrot.slane %v253, %v2241
      %v2243 = vlaneseq
      %v2244 = vshrl.u32 %v2243, 7
      %v2245 = vsub.s32 4, %v2244
      %v2246 = vrot.slane %v253, %v2245
      %v2247 = vlaneseq
      %v2248 = vshrl.u32 %v2247, 7
      %v2249 = vsub.s32 5, %v2248
      %v2250 = vrot.slane %v253, %v2249
      %v2251 = vlaneseq
      %v2252 = vshrl.u32 %v2251, 7
      %v2253 = vsub.s32 6, %v2252
      %v2254 = vrot.slane %v253, %v2253
      %v2255 = vlaneseq
      %v2256 = vshrl.u32 %v2255, 7
      %v2257 = vsub.s32 7, %v2256
      %v2258 = vrot.slane %v253, %v2257
      %v2259 = vlaneseq
      %v2260 = vshrl.u32 %v2259, 7
      %v2261 = vsub.s32 0, %v2260
      %v2262 = vrot.slane %v254, %v2261
      %v2263 = vlaneseq
      %v2264 = vshrl.u32 %v2263, 7
      %v2265 = vsub.s32 1, %v2264
      %v2266 = vrot.slane %v254, %v2265
      %v2277 = vmul.f32 %v2223, %v2230
      %v2278 = vmul.f32 %v2204, %v2234
      %v2279 = vmul.f32 %v2205, %v2238
      %v2280 = vmul.f32 %v2206, %v2242
      %v2281 = vmul.f32 %v2207, %v2246
      %v2282 = vmul.f32 %v2208, %v2250
      %v2283 = vmul.f32 %v2209, %v2254
      %v2284 = vmul.f32 %v2210, %v2258
      %v2285 = vmul.f32 %v2211, %v2262
      %v2286 = vmul.f32 %v2224, %v2266
      %2297 = vrot.lane.b32.xlu0 %v2277, 127
      %v2298 = vpop.permute.xlu0 %2297
      %2299 = vrot.lane.b32.xlu0 %v2278, 127
      %v2300 = vpop.permute.xlu0 %2299
      %2301 = vrot.lane.b32.xlu0 %v2279, 127
      %v2302 = vpop.permute.xlu0 %2301
      %2303 = vrot.lane.b32.xlu0 %v2280, 127
      %v2304 = vpop.permute.xlu0 %2303
      %2305 = vrot.lane.b32.xlu0 %v2281, 127
      %v2306 = vpop.permute.xlu0 %2305
      %2307 = vrot.lane.b32.xlu0 %v2282, 127
      %v2308 = vpop.permute.xlu0 %2307
      %2309 = vrot.lane.b32.xlu0 %v2283, 127
      %v2310 = vpop.permute.xlu0 %2309
      %2311 = vrot.lane.b32.xlu0 %v2284, 127
      %v2312 = vpop.permute.xlu0 %2311
      %2313 = vrot.lane.b32.xlu0 %v2285, 127
      %v2314 = vpop.permute.xlu0 %2313
      %2315 = vrot.lane.b32.xlu0 %v2286, 127
      %v2316 = vpop.permute.xlu0 %2315
      %v2317 = vsel %vm1699, %v2298, %v2300
      %v2318 = vsel %vm1699, %v2300, %v2302
      %v2319 = vsel %vm1699, %v2302, %v2304
      %v2320 = vsel %vm1699, %v2304, %v2306
      %v2321 = vsel %vm1699, %v2306, %v2308
      %v2322 = vsel %vm1699, %v2308, %v2310
      %v2323 = vsel %vm1699, %v2310, %v2312
      %v2324 = vsel %vm1699, %v2312, %v2314
      %v2325 = vsel %vm1699, %v2314, %v2316
      %v2336 = vmax.f32 %v2277, %v2317
      %v2337 = vmax.f32 %v2278, %v2318
      %v2338 = vmax.f32 %v2279, %v2319
      %v2339 = vmax.f32 %v2280, %v2320
      %v2340 = vmax.f32 %v2281, %v2321
      %v2341 = vmax.f32 %v2282, %v2322
      %v2342 = vmax.f32 %v2283, %v2323
      %v2343 = vmax.f32 %v2284, %v2324
      %v2344 = vmax.f32 %v2285, %v2325
      %v2345 = vmax.f32 %v2286, %v2316
      %2356 = vrot.lane.b32.xlu0 %v2336, 93
      %v2357 = vpop.permute.xlu0 %2356
      %2358 = vrot.lane.b32.xlu0 %v2337, 93
      %v2359 = vpop.permute.xlu0 %2358
      %2360 = vrot.lane.b32.xlu0 %v2338, 93
      %v2361 = vpop.permute.xlu0 %2360
      %2362 = vrot.lane.b32.xlu0 %v2339, 93
      %v2363 = vpop.permute.xlu0 %2362
      %2364 = vrot.lane.b32.xlu0 %v2340, 93
      %v2365 = vpop.permute.xlu0 %2364
      %2366 = vrot.lane.b32.xlu0 %v2341, 93
      %v2367 = vpop.permute.xlu0 %2366
      %2368 = vrot.lane.b32.xlu0 %v2342, 93
      %v2369 = vpop.permute.xlu0 %2368
      %2370 = vrot.lane.b32.xlu0 %v2343, 93
      %v2371 = vpop.permute.xlu0 %2370
      %2372 = vrot.lane.b32.xlu0 %v2344, 93
      %v2373 = vpop.permute.xlu0 %2372
      %2374 = vrot.lane.b32.xlu0 %v2345, 93
      %v2375 = vpop.permute.xlu0 %2374
      %v2376 = vsel %vm1819, %v2357, %v2359
      %v2377 = vsel %vm1819, %v2359, %v2361
      %v2378 = vsel %vm1819, %v2361, %v2363
      %v2379 = vsel %vm1819, %v2363, %v2365
      %v2380 = vsel %vm1819, %v2365, %v2367
      %v2381 = vsel %vm1819, %v2367, %v2369
      %v2382 = vsel %vm1819, %v2369, %v2371
      %v2383 = vsel %vm1819, %v2371, %v2373
      %v2384 = vsel %vm1819, %v2373, %v2375
      %v2395 = vmax.f32 %v2336, %v2376
      %v2396 = vmax.f32 %v2337, %v2377
      %v2397 = vmax.f32 %v2338, %v2378
      %v2398 = vmax.f32 %v2339, %v2379
      %v2399 = vmax.f32 %v2340, %v2380
      %v2400 = vmax.f32 %v2341, %v2381
      %v2401 = vmax.f32 %v2342, %v2382
      %v2402 = vmax.f32 %v2343, %v2383
      %v2403 = vmax.f32 %v2344, %v2384
      %v2404 = vmax.f32 %v2345, %v2375
      %v2406 = vsel %vm1879, %v2404, 0
      %vm2408 = vcmask 1043456
      %v2410 = vsel %vm2408, %v720, 0
      %v2413 = vsel %vm2408, %v721, 0
      %v2416 = vsel %vm2408, %v722, 0
      %2418 = vmatprep.subr.mxu0 %v301
      %2419 = vmatpush1.msra.mxu0 %v300
      %2420 = vmatprep.subr.mxu0 %v298
      %2421 = vmatpush1.msra.mxu0 %v297
      %2422 = vmatprep.subr.mxu0 %v295
      %2423 = vmatpush1.msra.mxu0 %v294
      %2424 = vmatprep.subr.mxu0 %v292
      %2425 = vmatpush1.msra.mxu0 %v291
      %2426 = vmatprep.subr.mxu0 %v289
      %2427 = vmatpush1.msra.mxu0 %v288
      %2428 = vmatprep.subr.mxu0 %v286
      %2429 = vmatpush1.msra.mxu0 %v285
      %2430 = vmatprep.subr.mxu0 %v283
      %2431 = vmatpush1.msra.mxu0 %v282
      %2432 = vmatprep.subr.mxu0 %v280
      %2433 = vmatpush1.msra.mxu0 %v279
      %2434 = vmatprep.subr.mxu0 %v277
      %2435 = vmatpush1.msra.mxu0 %v276
      %2436 = vmatprep.subr.mxu0 %v274
      %2437 = vmatpush1.msra.mxu0 %v273
      %2438 = vmatprep.subr.mxu0 %v271
      %2439 = vmatpush1.msra.mxu0 %v270
      %2440 = vmatprep.subr.mxu0 %v268
      %2441 = vmatpush1.msra.mxu0 %v267
      %2442 = vmatprep.subr.mxu0 %v265
      %2443 = vmatpush1.msra.mxu0 %v264
      %2444 = vmatprep.subr.mxu0 %v262
      %2445 = vmatpush1.msra.mxu0 %v261
      %2446 = vmatprep.subr.mxu0 %v259
      %2447 = vmatpush1.msra.mxu0 %v258
      %2448 = vmatprep.subr.mxu0 %v256
      %2449 = vmatpush1.msra.mxu0 %v255
      %2450 = vmatprep.subr.mxu0 %v349
      %2451 = vmatpush2.msra.mxu0 %v348
      %2452 = vmatprep.subr.mxu0 %v346
      %2453 = vmatpush2.msra.mxu0 %v345
      %2454 = vmatprep.subr.mxu0 %v343
      %2455 = vmatpush2.msra.mxu0 %v342
      %2456 = vmatprep.subr.mxu0 %v340
      %2457 = vmatpush2.msra.mxu0 %v339
      %2458 = vmatprep.subr.mxu0 %v337
      %2459 = vmatpush2.msra.mxu0 %v336
      %2460 = vmatprep.subr.mxu0 %v334
      %2461 = vmatpush2.msra.mxu0 %v333
      %2462 = vmatprep.subr.mxu0 %v331
      %2463 = vmatpush2.msra.mxu0 %v330
      %2464 = vmatprep.subr.mxu0 %v328
      %2465 = vmatpush2.msra.mxu0 %v327
      %2466 = vmatprep.subr.mxu0 %v325
      %2467 = vmatpush2.msra.mxu0 %v324
      %2468 = vmatprep.subr.mxu0 %v322
      %2469 = vmatpush2.msra.mxu0 %v321
      %2470 = vmatprep.subr.mxu0 %v319
      %2471 = vmatpush2.msra.mxu0 %v318
      %2472 = vmatprep.subr.mxu0 %v316
      %2473 = vmatpush2.msra.mxu0 %v315
      %2474 = vmatprep.subr.mxu0 %v313
      %2475 = vmatpush2.msra.mxu0 %v312
      %2476 = vmatprep.subr.mxu0 %v310
      %2477 = vmatpush2.msra.mxu0 %v309
      %2478 = vmatprep.subr.mxu0 %v307
      %2479 = vmatpush2.msra.mxu0 %v306
      %2480 = vmatprep.subr.mxu0 %v304
      %2481 = vmatpush2.msra.mxu0 %v303
      %2482 = vmatprep.mubr.f32.mxu0 %v2396
      %2483 = vmatmul.mubr.f32.gmra.mxu0 %v2395
      %v2484 = vpop.f32.mrf.mxu0
      %v2485 = vadd.f32 0.0, %v2484
      %v2486 = vpop.f32.mrf.mxu0
      %v2487 = vadd.f32 0.0, %v2486
      %2488 = vdwg.mxu0
      %2489 = vmatprep.subr.mxu0 %v397
      %2490 = vmatpush1.msra.mxu0 %v396
      %2491 = vmatprep.subr.mxu0 %v394
      %2492 = vmatpush1.msra.mxu0 %v393
      %2493 = vmatprep.subr.mxu0 %v391
      %2494 = vmatpush1.msra.mxu0 %v390
      %2495 = vmatprep.subr.mxu0 %v388
      %2496 = vmatpush1.msra.mxu0 %v387
      %2497 = vmatprep.subr.mxu0 %v385
      %2498 = vmatpush1.msra.mxu0 %v384
      %2499 = vmatprep.subr.mxu0 %v382
      %2500 = vmatpush1.msra.mxu0 %v381
      %2501 = vmatprep.subr.mxu0 %v379
      %2502 = vmatpush1.msra.mxu0 %v378
      %2503 = vmatprep.subr.mxu0 %v376
      %2504 = vmatpush1.msra.mxu0 %v375
      %2505 = vmatprep.subr.mxu0 %v373
      %2506 = vmatpush1.msra.mxu0 %v372
      %2507 = vmatprep.subr.mxu0 %v370
      %2508 = vmatpush1.msra.mxu0 %v369
      %2509 = vmatprep.subr.mxu0 %v367
      %2510 = vmatpush1.msra.mxu0 %v366
      %2511 = vmatprep.subr.mxu0 %v364
      %2512 = vmatpush1.msra.mxu0 %v363
      %2513 = vmatprep.subr.mxu0 %v361
      %2514 = vmatpush1.msra.mxu0 %v360
      %2515 = vmatprep.subr.mxu0 %v358
      %2516 = vmatpush1.msra.mxu0 %v357
      %2517 = vmatprep.subr.mxu0 %v355
      %2518 = vmatpush1.msra.mxu0 %v354
      %2519 = vmatprep.subr.mxu0 %v352
      %2520 = vmatpush1.msra.mxu0 %v351
      %2521 = vmatprep.subr.mxu0 %v445
      %2522 = vmatpush2.msra.mxu0 %v444
      %2523 = vmatprep.subr.mxu0 %v442
      %2524 = vmatpush2.msra.mxu0 %v441
      %2525 = vmatprep.subr.mxu0 %v439
      %2526 = vmatpush2.msra.mxu0 %v438
      %2527 = vmatprep.subr.mxu0 %v436
      %2528 = vmatpush2.msra.mxu0 %v435
      %2529 = vmatprep.subr.mxu0 %v433
      %2530 = vmatpush2.msra.mxu0 %v432
      %2531 = vmatprep.subr.mxu0 %v430
      %2532 = vmatpush2.msra.mxu0 %v429
      %2533 = vmatprep.subr.mxu0 %v427
      %2534 = vmatpush2.msra.mxu0 %v426
      %2535 = vmatprep.subr.mxu0 %v424
      %2536 = vmatpush2.msra.mxu0 %v423
      %2537 = vmatprep.subr.mxu0 %v421
      %2538 = vmatpush2.msra.mxu0 %v420
      %2539 = vmatprep.subr.mxu0 %v418
      %2540 = vmatpush2.msra.mxu0 %v417
      %2541 = vmatprep.subr.mxu0 %v415
      %2542 = vmatpush2.msra.mxu0 %v414
      %2543 = vmatprep.subr.mxu0 %v412
      %2544 = vmatpush2.msra.mxu0 %v411
      %2545 = vmatprep.subr.mxu0 %v409
      %2546 = vmatpush2.msra.mxu0 %v408
      %2547 = vmatprep.subr.mxu0 %v406
      %2548 = vmatpush2.msra.mxu0 %v405
      %2549 = vmatprep.subr.mxu0 %v403
      %2550 = vmatpush2.msra.mxu0 %v402
      %2551 = vmatprep.subr.mxu0 %v400
      %2552 = vmatpush2.msra.mxu0 %v399
      %2553 = vmatprep.mubr.f32.mxu0 %v2398
      %2554 = vmatmul.mubr.f32.gmra.mxu0 %v2397
      %v2555 = vpop.f32.mrf.mxu0
      %v2556 = vadd.f32 %v2485, %v2555
      %v2557 = vpop.f32.mrf.mxu0
      %v2558 = vadd.f32 %v2487, %v2557
      %2559 = vdwg.mxu0
      %2560 = vmatprep.subr.mxu0 %v493
      %2561 = vmatpush1.msra.mxu0 %v492
      %2562 = vmatprep.subr.mxu0 %v490
      %2563 = vmatpush1.msra.mxu0 %v489
      %2564 = vmatprep.subr.mxu0 %v487
      %2565 = vmatpush1.msra.mxu0 %v486
      %2566 = vmatprep.subr.mxu0 %v484
      %2567 = vmatpush1.msra.mxu0 %v483
      %2568 = vmatprep.subr.mxu0 %v481
      %2569 = vmatpush1.msra.mxu0 %v480
      %2570 = vmatprep.subr.mxu0 %v478
      %2571 = vmatpush1.msra.mxu0 %v477
      %2572 = vmatprep.subr.mxu0 %v475
      %2573 = vmatpush1.msra.mxu0 %v474
      %2574 = vmatprep.subr.mxu0 %v472
      %2575 = vmatpush1.msra.mxu0 %v471
      %2576 = vmatprep.subr.mxu0 %v469
      %2577 = vmatpush1.msra.mxu0 %v468
      %2578 = vmatprep.subr.mxu0 %v466
      %2579 = vmatpush1.msra.mxu0 %v465
      %2580 = vmatprep.subr.mxu0 %v463
      %2581 = vmatpush1.msra.mxu0 %v462
      %2582 = vmatprep.subr.mxu0 %v460
      %2583 = vmatpush1.msra.mxu0 %v459
      %2584 = vmatprep.subr.mxu0 %v457
      %2585 = vmatpush1.msra.mxu0 %v456
      %2586 = vmatprep.subr.mxu0 %v454
      %2587 = vmatpush1.msra.mxu0 %v453
      %2588 = vmatprep.subr.mxu0 %v451
      %2589 = vmatpush1.msra.mxu0 %v450
      %2590 = vmatprep.subr.mxu0 %v448
      %2591 = vmatpush1.msra.mxu0 %v447
      %2592 = vmatprep.subr.mxu0 %v541
      %2593 = vmatpush2.msra.mxu0 %v540
      %2594 = vmatprep.subr.mxu0 %v538
      %2595 = vmatpush2.msra.mxu0 %v537
      %2596 = vmatprep.subr.mxu0 %v535
      %2597 = vmatpush2.msra.mxu0 %v534
      %2598 = vmatprep.subr.mxu0 %v532
      %2599 = vmatpush2.msra.mxu0 %v531
      %2600 = vmatprep.subr.mxu0 %v529
      %2601 = vmatpush2.msra.mxu0 %v528
      %2602 = vmatprep.subr.mxu0 %v526
      %2603 = vmatpush2.msra.mxu0 %v525
      %2604 = vmatprep.subr.mxu0 %v523
      %2605 = vmatpush2.msra.mxu0 %v522
      %2606 = vmatprep.subr.mxu0 %v520
      %2607 = vmatpush2.msra.mxu0 %v519
      %2608 = vmatprep.subr.mxu0 %v517
      %2609 = vmatpush2.msra.mxu0 %v516
      %2610 = vmatprep.subr.mxu0 %v514
      %2611 = vmatpush2.msra.mxu0 %v513
      %2612 = vmatprep.subr.mxu0 %v511
      %2613 = vmatpush2.msra.mxu0 %v510
      %2614 = vmatprep.subr.mxu0 %v508
      %2615 = vmatpush2.msra.mxu0 %v507
      %2616 = vmatprep.subr.mxu0 %v505
      %2617 = vmatpush2.msra.mxu0 %v504
      %2618 = vmatprep.subr.mxu0 %v502
      %2619 = vmatpush2.msra.mxu0 %v501
      %2620 = vmatprep.subr.mxu0 %v499
      %2621 = vmatpush2.msra.mxu0 %v498
      %2622 = vmatprep.subr.mxu0 %v496
      %2623 = vmatpush2.msra.mxu0 %v495
      %2624 = vmatprep.mubr.f32.mxu0 %v2400
      %2625 = vmatmul.mubr.f32.gmra.mxu0 %v2399
      %v2626 = vpop.f32.mrf.mxu0
      %v2627 = vadd.f32 %v2556, %v2626
      %v2628 = vpop.f32.mrf.mxu0
      %v2629 = vadd.f32 %v2558, %v2628
      %2630 = vdwg.mxu0
      %2631 = vmatprep.subr.mxu0 %v589
      %2632 = vmatpush1.msra.mxu0 %v588
      %2633 = vmatprep.subr.mxu0 %v586
      %2634 = vmatpush1.msra.mxu0 %v585
      %2635 = vmatprep.subr.mxu0 %v583
      %2636 = vmatpush1.msra.mxu0 %v582
      %2637 = vmatprep.subr.mxu0 %v580
      %2638 = vmatpush1.msra.mxu0 %v579
      %2639 = vmatprep.subr.mxu0 %v577
      %2640 = vmatpush1.msra.mxu0 %v576
      %2641 = vmatprep.subr.mxu0 %v574
      %2642 = vmatpush1.msra.mxu0 %v573
      %2643 = vmatprep.subr.mxu0 %v571
      %2644 = vmatpush1.msra.mxu0 %v570
      %2645 = vmatprep.subr.mxu0 %v568
      %2646 = vmatpush1.msra.mxu0 %v567
      %2647 = vmatprep.subr.mxu0 %v565
      %2648 = vmatpush1.msra.mxu0 %v564
      %2649 = vmatprep.subr.mxu0 %v562
      %2650 = vmatpush1.msra.mxu0 %v561
      %2651 = vmatprep.subr.mxu0 %v559
      %2652 = vmatpush1.msra.mxu0 %v558
      %2653 = vmatprep.subr.mxu0 %v556
      %2654 = vmatpush1.msra.mxu0 %v555
      %2655 = vmatprep.subr.mxu0 %v553
      %2656 = vmatpush1.msra.mxu0 %v552
      %2657 = vmatprep.subr.mxu0 %v550
      %2658 = vmatpush1.msra.mxu0 %v549
      %2659 = vmatprep.subr.mxu0 %v547
      %2660 = vmatpush1.msra.mxu0 %v546
      %2661 = vmatprep.subr.mxu0 %v544
      %2662 = vmatpush1.msra.mxu0 %v543
      %2663 = vmatprep.subr.mxu0 %v637
      %2664 = vmatpush2.msra.mxu0 %v636
      %2665 = vmatprep.subr.mxu0 %v634
      %2666 = vmatpush2.msra.mxu0 %v633
      %2667 = vmatprep.subr.mxu0 %v631
      %2668 = vmatpush2.msra.mxu0 %v630
      %2669 = vmatprep.subr.mxu0 %v628
      %2670 = vmatpush2.msra.mxu0 %v627
      %2671 = vmatprep.subr.mxu0 %v625
      %2672 = vmatpush2.msra.mxu0 %v624
      %2673 = vmatprep.subr.mxu0 %v622
      %2674 = vmatpush2.msra.mxu0 %v621
      %2675 = vmatprep.subr.mxu0 %v619
      %2676 = vmatpush2.msra.mxu0 %v618
      %2677 = vmatprep.subr.mxu0 %v616
      %2678 = vmatpush2.msra.mxu0 %v615
      %2679 = vmatprep.subr.mxu0 %v613
      %2680 = vmatpush2.msra.mxu0 %v612
      %2681 = vmatprep.subr.mxu0 %v610
      %2682 = vmatpush2.msra.mxu0 %v609
      %2683 = vmatprep.subr.mxu0 %v607
      %2684 = vmatpush2.msra.mxu0 %v606
      %2685 = vmatprep.subr.mxu0 %v604
      %2686 = vmatpush2.msra.mxu0 %v603
      %2687 = vmatprep.subr.mxu0 %v601
      %2688 = vmatpush2.msra.mxu0 %v600
      %2689 = vmatprep.subr.mxu0 %v598
      %2690 = vmatpush2.msra.mxu0 %v597
      %2691 = vmatprep.subr.mxu0 %v595
      %2692 = vmatpush2.msra.mxu0 %v594
      %2693 = vmatprep.subr.mxu0 %v592
      %2694 = vmatpush2.msra.mxu0 %v591
      %2695 = vmatprep.mubr.f32.mxu0 %v2402
      %2696 = vmatmul.mubr.f32.gmra.mxu0 %v2401
      %v2697 = vpop.f32.mrf.mxu0
      %v2698 = vadd.f32 %v2627, %v2697
      %v2699 = vpop.f32.mrf.mxu0
      %v2700 = vadd.f32 %v2629, %v2699
      %2701 = vdwg.mxu0
      %2702 = vmatprep.subr.mxu0 %v685
      %2703 = vmatpush1.msra.mxu0 %v684
      %2704 = vmatprep.subr.mxu0 %v682
      %2705 = vmatpush1.msra.mxu0 %v681
      %2706 = vmatprep.subr.mxu0 %v679
      %2707 = vmatpush1.msra.mxu0 %v678
      %2708 = vmatprep.subr.mxu0 %v676
      %2709 = vmatpush1.msra.mxu0 %v675
      %2710 = vmatprep.subr.mxu0 %v673
      %2711 = vmatpush1.msra.mxu0 %v672
      %2712 = vmatprep.subr.mxu0 %v670
      %2713 = vmatpush1.msra.mxu0 %v669
      %2714 = vmatprep.subr.mxu0 %v667
      %2715 = vmatpush1.msra.mxu0 %v666
      %2716 = vmatprep.subr.mxu0 %v664
      %2717 = vmatpush1.msra.mxu0 %v663
      %2718 = vmatprep.subr.mxu0 %v661
      %2719 = vmatpush1.msra.mxu0 %v660
      %2720 = vmatprep.subr.mxu0 %v658
      %2721 = vmatpush1.msra.mxu0 %v657
      %2722 = vmatprep.subr.mxu0 %v655
      %2723 = vmatpush1.msra.mxu0 %v654
      %2724 = vmatprep.subr.mxu0 %v652
      %2725 = vmatpush1.msra.mxu0 %v651
      %2726 = vmatprep.subr.mxu0 %v649
      %2727 = vmatpush1.msra.mxu0 %v648
      %2728 = vmatprep.subr.mxu0 %v646
      %2729 = vmatpush1.msra.mxu0 %v645
      %2730 = vmatprep.subr.mxu0 %v643
      %2731 = vmatpush1.msra.mxu0 %v642
      %2732 = vmatprep.subr.mxu0 %v640
      %2733 = vmatpush1.msra.mxu0 %v639
      %2734 = vmatprep.subr.mxu0 0.0
      %2735 = vmatpush2.msra.mxu0 0.0
      %2736 = vmatprep.subr.mxu0 0.0
      %2737 = vmatpush2.msra.mxu0 0.0
      %2738 = vmatprep.subr.mxu0 0.0
      %2739 = vmatpush2.msra.mxu0 0.0
      %2740 = vmatprep.subr.mxu0 0.0
      %2741 = vmatpush2.msra.mxu0 0.0
      %2742 = vmatprep.subr.mxu0 %v2413
      %2743 = vmatpush2.msra.mxu0 %v2410
      %2744 = vmatprep.subr.mxu0 %v718
      %2745 = vmatpush2.msra.mxu0 %v717
      %2746 = vmatprep.subr.mxu0 %v715
      %2747 = vmatpush2.msra.mxu0 %v714
      %2748 = vmatprep.subr.mxu0 %v712
      %2749 = vmatpush2.msra.mxu0 %v711
      %2750 = vmatprep.subr.mxu0 %v709
      %2751 = vmatpush2.msra.mxu0 %v708
      %2752 = vmatprep.subr.mxu0 %v706
      %2753 = vmatpush2.msra.mxu0 %v705
      %2754 = vmatprep.subr.mxu0 %v703
      %2755 = vmatpush2.msra.mxu0 %v702
      %2756 = vmatprep.subr.mxu0 %v700
      %2757 = vmatpush2.msra.mxu0 %v699
      %2758 = vmatprep.subr.mxu0 %v697
      %2759 = vmatpush2.msra.mxu0 %v696
      %2760 = vmatprep.subr.mxu0 %v694
      %2761 = vmatpush2.msra.mxu0 %v693
      %2762 = vmatprep.subr.mxu0 %v691
      %2763 = vmatpush2.msra.mxu0 %v690
      %2764 = vmatprep.subr.mxu0 %v688
      %2765 = vmatpush2.msra.mxu0 %v687
      %2766 = vmatprep.mubr.f32.mxu0 %v2406
      %2767 = vmatmul.mubr.f32.gmra.mxu0 %v2403
      %v2768 = vpop.f32.mrf.mxu0
      %v2769 = vadd.f32 %v2698, %v2768
      %v2770 = vpop.f32.mrf.mxu0
      %v2771 = vadd.f32 %v2700, %v2770
      %2772 = vdwg.mxu0
      %2773 = vmatprep.subr.mxu0 0.0
      %2774 = vmatpush1.msra.mxu0 %v302
      %2775 = vmatprep.subr.mxu0 0.0
      %2776 = vmatpush1.msra.mxu0 %v299
      %2777 = vmatprep.subr.mxu0 0.0
      %2778 = vmatpush1.msra.mxu0 %v296
      %2779 = vmatprep.subr.mxu0 0.0
      %2780 = vmatpush1.msra.mxu0 %v293
      %2781 = vmatprep.subr.mxu0 0.0
      %2782 = vmatpush1.msra.mxu0 %v290
      %2783 = vmatprep.subr.mxu0 0.0
      %2784 = vmatpush1.msra.mxu0 %v287
      %2785 = vmatprep.subr.mxu0 0.0
      %2786 = vmatpush1.msra.mxu0 %v284
      %2787 = vmatprep.subr.mxu0 0.0
      %2788 = vmatpush1.msra.mxu0 %v281
      %2789 = vmatprep.subr.mxu0 0.0
      %2790 = vmatpush1.msra.mxu0 %v278
      %2791 = vmatprep.subr.mxu0 0.0
      %2792 = vmatpush1.msra.mxu0 %v275
      %2793 = vmatprep.subr.mxu0 0.0
      %2794 = vmatpush1.msra.mxu0 %v272
      %2795 = vmatprep.subr.mxu0 0.0
      %2796 = vmatpush1.msra.mxu0 %v269
      %2797 = vmatprep.subr.mxu0 0.0
      %2798 = vmatpush1.msra.mxu0 %v266
      %2799 = vmatprep.subr.mxu0 0.0
      %2800 = vmatpush1.msra.mxu0 %v263
      %2801 = vmatprep.subr.mxu0 0.0
      %2802 = vmatpush1.msra.mxu0 %v260
      %2803 = vmatprep.subr.mxu0 0.0
      %2804 = vmatpush1.msra.mxu0 %v257
      %2805 = vmatprep.subr.mxu0 0.0
      %2806 = vmatpush2.msra.mxu0 %v350
      %2807 = vmatprep.subr.mxu0 0.0
      %2808 = vmatpush2.msra.mxu0 %v347
      %2809 = vmatprep.subr.mxu0 0.0
      %2810 = vmatpush2.msra.mxu0 %v344
      %2811 = vmatprep.subr.mxu0 0.0
      %2812 = vmatpush2.msra.mxu0 %v341
      %2813 = vmatprep.subr.mxu0 0.0
      %2814 = vmatpush2.msra.mxu0 %v338
      %2815 = vmatprep.subr.mxu0 0.0
      %2816 = vmatpush2.msra.mxu0 %v335
      %2817 = vmatprep.subr.mxu0 0.0
      %2818 = vmatpush2.msra.mxu0 %v332
      %2819 = vmatprep.subr.mxu0 0.0
      %2820 = vmatpush2.msra.mxu0 %v329
      %2821 = vmatprep.subr.mxu0 0.0
      %2822 = vmatpush2.msra.mxu0 %v326
      %2823 = vmatprep.subr.mxu0 0.0
      %2824 = vmatpush2.msra.mxu0 %v323
      %2825 = vmatprep.subr.mxu0 0.0
      %2826 = vmatpush2.msra.mxu0 %v320
      %2827 = vmatprep.subr.mxu0 0.0
      %2828 = vmatpush2.msra.mxu0 %v317
      %2829 = vmatprep.subr.mxu0 0.0
      %2830 = vmatpush2.msra.mxu0 %v314
      %2831 = vmatprep.subr.mxu0 0.0
      %2832 = vmatpush2.msra.mxu0 %v311
      %2833 = vmatprep.subr.mxu0 0.0
      %2834 = vmatpush2.msra.mxu0 %v308
      %2835 = vmatprep.subr.mxu0 0.0
      %2836 = vmatpush2.msra.mxu0 %v305
      %2837 = vmatprep.mubr.f32.mxu0 %v2396
      %2838 = vmatmul.mubr.f32.gmra.mxu0 %v2395
      %v2839 = vpop.f32.mrf.mxu0
      %v2840 = vadd.f32 0.0, %v2839
      %v2841 = vpop.f32.mrf.mxu0
      %2842 = vdwg.mxu0
      %2843 = vmatprep.subr.mxu0 0.0
      %2844 = vmatpush1.msra.mxu0 %v398
      %2845 = vmatprep.subr.mxu0 0.0
      %2846 = vmatpush1.msra.mxu0 %v395
      %2847 = vmatprep.subr.mxu0 0.0
      %2848 = vmatpush1.msra.mxu0 %v392
      %2849 = vmatprep.subr.mxu0 0.0
      %2850 = vmatpush1.msra.mxu0 %v389
      %2851 = vmatprep.subr.mxu0 0.0
      %2852 = vmatpush1.msra.mxu0 %v386
      %2853 = vmatprep.subr.mxu0 0.0
      %2854 = vmatpush1.msra.mxu0 %v383
      %2855 = vmatprep.subr.mxu0 0.0
      %2856 = vmatpush1.msra.mxu0 %v380
      %2857 = vmatprep.subr.mxu0 0.0
      %2858 = vmatpush1.msra.mxu0 %v377
      %2859 = vmatprep.subr.mxu0 0.0
      %2860 = vmatpush1.msra.mxu0 %v374
      %2861 = vmatprep.subr.mxu0 0.0
      %2862 = vmatpush1.msra.mxu0 %v371
      %2863 = vmatprep.subr.mxu0 0.0
      %2864 = vmatpush1.msra.mxu0 %v368
      %2865 = vmatprep.subr.mxu0 0.0
      %2866 = vmatpush1.msra.mxu0 %v365
      %2867 = vmatprep.subr.mxu0 0.0
      %2868 = vmatpush1.msra.mxu0 %v362
      %2869 = vmatprep.subr.mxu0 0.0
      %2870 = vmatpush1.msra.mxu0 %v359
      %2871 = vmatprep.subr.mxu0 0.0
      %2872 = vmatpush1.msra.mxu0 %v356
      %2873 = vmatprep.subr.mxu0 0.0
      %2874 = vmatpush1.msra.mxu0 %v353
      %2875 = vmatprep.subr.mxu0 0.0
      %2876 = vmatpush2.msra.mxu0 %v446
      %2877 = vmatprep.subr.mxu0 0.0
      %2878 = vmatpush2.msra.mxu0 %v443
      %2879 = vmatprep.subr.mxu0 0.0
      %2880 = vmatpush2.msra.mxu0 %v440
      %2881 = vmatprep.subr.mxu0 0.0
      %2882 = vmatpush2.msra.mxu0 %v437
      %2883 = vmatprep.subr.mxu0 0.0
      %2884 = vmatpush2.msra.mxu0 %v434
      %2885 = vmatprep.subr.mxu0 0.0
      %2886 = vmatpush2.msra.mxu0 %v431
      %2887 = vmatprep.subr.mxu0 0.0
      %2888 = vmatpush2.msra.mxu0 %v428
      %2889 = vmatprep.subr.mxu0 0.0
      %2890 = vmatpush2.msra.mxu0 %v425
      %2891 = vmatprep.subr.mxu0 0.0
      %2892 = vmatpush2.msra.mxu0 %v422
      %2893 = vmatprep.subr.mxu0 0.0
      %2894 = vmatpush2.msra.mxu0 %v419
      %2895 = vmatprep.subr.mxu0 0.0
      %2896 = vmatpush2.msra.mxu0 %v416
      %2897 = vmatprep.subr.mxu0 0.0
      %2898 = vmatpush2.msra.mxu0 %v413
      %2899 = vmatprep.subr.mxu0 0.0
      %2900 = vmatpush2.msra.mxu0 %v410
      %2901 = vmatprep.subr.mxu0 0.0
      %2902 = vmatpush2.msra.mxu0 %v407
      %2903 = vmatprep.subr.mxu0 0.0
      %2904 = vmatpush2.msra.mxu0 %v404
      %2905 = vmatprep.subr.mxu0 0.0
      %2906 = vmatpush2.msra.mxu0 %v401
      %2907 = vmatprep.mubr.f32.mxu0 %v2398
      %2908 = vmatmul.mubr.f32.gmra.mxu0 %v2397
      %v2909 = vpop.f32.mrf.mxu0
      %v2910 = vadd.f32 %v2840, %v2909
      %v2911 = vpop.f32.mrf.mxu0
      %2912 = vdwg.mxu0
      %2913 = vmatprep.subr.mxu0 0.0
      %2914 = vmatpush1.msra.mxu0 %v494
      %2915 = vmatprep.subr.mxu0 0.0
      %2916 = vmatpush1.msra.mxu0 %v491
      %2917 = vmatprep.subr.mxu0 0.0
      %2918 = vmatpush1.msra.mxu0 %v488
      %2919 = vmatprep.subr.mxu0 0.0
      %2920 = vmatpush1.msra.mxu0 %v485
      %2921 = vmatprep.subr.mxu0 0.0
      %2922 = vmatpush1.msra.mxu0 %v482
      %2923 = vmatprep.subr.mxu0 0.0
      %2924 = vmatpush1.msra.mxu0 %v479
      %2925 = vmatprep.subr.mxu0 0.0
      %2926 = vmatpush1.msra.mxu0 %v476
      %2927 = vmatprep.subr.mxu0 0.0
      %2928 = vmatpush1.msra.mxu0 %v473
      %2929 = vmatprep.subr.mxu0 0.0
      %2930 = vmatpush1.msra.mxu0 %v470
      %2931 = vmatprep.subr.mxu0 0.0
      %2932 = vmatpush1.msra.mxu0 %v467
      %2933 = vmatprep.subr.mxu0 0.0
      %2934 = vmatpush1.msra.mxu0 %v464
      %2935 = vmatprep.subr.mxu0 0.0
      %2936 = vmatpush1.msra.mxu0 %v461
      %2937 = vmatprep.subr.mxu0 0.0
      %2938 = vmatpush1.msra.mxu0 %v458
      %2939 = vmatprep.subr.mxu0 0.0
      %2940 = vmatpush1.msra.mxu0 %v455
      %2941 = vmatprep.subr.mxu0 0.0
      %2942 = vmatpush1.msra.mxu0 %v452
      %2943 = vmatprep.subr.mxu0 0.0
      %2944 = vmatpush1.msra.mxu0 %v449
      %2945 = vmatprep.subr.mxu0 0.0
      %2946 = vmatpush2.msra.mxu0 %v542
      %2947 = vmatprep.subr.mxu0 0.0
      %2948 = vmatpush2.msra.mxu0 %v539
      %2949 = vmatprep.subr.mxu0 0.0
      %2950 = vmatpush2.msra.mxu0 %v536
      %2951 = vmatprep.subr.mxu0 0.0
      %2952 = vmatpush2.msra.mxu0 %v533
      %2953 = vmatprep.subr.mxu0 0.0
      %2954 = vmatpush2.msra.mxu0 %v530
      %2955 = vmatprep.subr.mxu0 0.0
      %2956 = vmatpush2.msra.mxu0 %v527
      %2957 = vmatprep.subr.mxu0 0.0
      %2958 = vmatpush2.msra.mxu0 %v524
      %2959 = vmatprep.subr.mxu0 0.0
      %2960 = vmatpush2.msra.mxu0 %v521
      %2961 = vmatprep.subr.mxu0 0.0
      %2962 = vmatpush2.msra.mxu0 %v518
      %2963 = vmatprep.subr.mxu0 0.0
      %2964 = vmatpush2.msra.mxu0 %v515
      %2965 = vmatprep.subr.mxu0 0.0
      %2966 = vmatpush2.msra.mxu0 %v512
      %2967 = vmatprep.subr.mxu0 0.0
      %2968 = vmatpush2.msra.mxu0 %v509
      %2969 = vmatprep.subr.mxu0 0.0
      %2970 = vmatpush2.msra.mxu0 %v506
      %2971 = vmatprep.subr.mxu0 0.0
      %2972 = vmatpush2.msra.mxu0 %v503
      %2973 = vmatprep.subr.mxu0 0.0
      %2974 = vmatpush2.msra.mxu0 %v500
      %2975 = vmatprep.subr.mxu0 0.0
      %2976 = vmatpush2.msra.mxu0 %v497
      %2977 = vmatprep.mubr.f32.mxu0 %v2400
      %2978 = vmatmul.mubr.f32.gmra.mxu0 %v2399
      %v2979 = vpop.f32.mrf.mxu0
      %v2980 = vadd.f32 %v2910, %v2979
      %v2981 = vpop.f32.mrf.mxu0
      %2982 = vdwg.mxu0
      %2983 = vmatprep.subr.mxu0 0.0
      %2984 = vmatpush1.msra.mxu0 %v590
      %2985 = vmatprep.subr.mxu0 0.0
      %2986 = vmatpush1.msra.mxu0 %v587
      %2987 = vmatprep.subr.mxu0 0.0
      %2988 = vmatpush1.msra.mxu0 %v584
      %2989 = vmatprep.subr.mxu0 0.0
      %2990 = vmatpush1.msra.mxu0 %v581
      %2991 = vmatprep.subr.mxu0 0.0
      %2992 = vmatpush1.msra.mxu0 %v578
      %2993 = vmatprep.subr.mxu0 0.0
      %2994 = vmatpush1.msra.mxu0 %v575
      %2995 = vmatprep.subr.mxu0 0.0
      %2996 = vmatpush1.msra.mxu0 %v572
      %2997 = vmatprep.subr.mxu0 0.0
      %2998 = vmatpush1.msra.mxu0 %v569
      %2999 = vmatprep.subr.mxu0 0.0
      %3000 = vmatpush1.msra.mxu0 %v566
      %3001 = vmatprep.subr.mxu0 0.0
      %3002 = vmatpush1.msra.mxu0 %v563
      %3003 = vmatprep.subr.mxu0 0.0
      %3004 = vmatpush1.msra.mxu0 %v560
      %3005 = vmatprep.subr.mxu0 0.0
      %3006 = vmatpush1.msra.mxu0 %v557
      %3007 = vmatprep.subr.mxu0 0.0
      %3008 = vmatpush1.msra.mxu0 %v554
      %3009 = vmatprep.subr.mxu0 0.0
      %3010 = vmatpush1.msra.mxu0 %v551
      %3011 = vmatprep.subr.mxu0 0.0
      %3012 = vmatpush1.msra.mxu0 %v548
      %3013 = vmatprep.subr.mxu0 0.0
      %3014 = vmatpush1.msra.mxu0 %v545
      %3015 = vmatprep.subr.mxu0 0.0
      %3016 = vmatpush2.msra.mxu0 %v638
      %3017 = vmatprep.subr.mxu0 0.0
      %3018 = vmatpush2.msra.mxu0 %v635
      %3019 = vmatprep.subr.mxu0 0.0
      %3020 = vmatpush2.msra.mxu0 %v632
      %3021 = vmatprep.subr.mxu0 0.0
      %3022 = vmatpush2.msra.mxu0 %v629
      %3023 = vmatprep.subr.mxu0 0.0
      %3024 = vmatpush2.msra.mxu0 %v626
      %3025 = vmatprep.subr.mxu0 0.0
      %3026 = vmatpush2.msra.mxu0 %v623
      %3027 = vmatprep.subr.mxu0 0.0
      %3028 = vmatpush2.msra.mxu0 %v620
      %3029 = vmatprep.subr.mxu0 0.0
      %3030 = vmatpush2.msra.mxu0 %v617
      %3031 = vmatprep.subr.mxu0 0.0
      %3032 = vmatpush2.msra.mxu0 %v614
      %3033 = vmatprep.subr.mxu0 0.0
      %3034 = vmatpush2.msra.mxu0 %v611
      %3035 = vmatprep.subr.mxu0 0.0
      %3036 = vmatpush2.msra.mxu0 %v608
      %3037 = vmatprep.subr.mxu0 0.0
      %3038 = vmatpush2.msra.mxu0 %v605
      %3039 = vmatprep.subr.mxu0 0.0
      %3040 = vmatpush2.msra.mxu0 %v602
      %3041 = vmatprep.subr.mxu0 0.0
      %3042 = vmatpush2.msra.mxu0 %v599
      %3043 = vmatprep.subr.mxu0 0.0
      %3044 = vmatpush2.msra.mxu0 %v596
      %3045 = vmatprep.subr.mxu0 0.0
      %3046 = vmatpush2.msra.mxu0 %v593
      %3047 = vmatprep.mubr.f32.mxu0 %v2402
      %3048 = vmatmul.mubr.f32.gmra.mxu0 %v2401
      %v3049 = vpop.f32.mrf.mxu0
      %v3050 = vadd.f32 %v2980, %v3049
      %v3051 = vpop.f32.mrf.mxu0
      %3052 = vdwg.mxu0
      %3053 = vmatprep.subr.mxu0 0.0
      %3054 = vmatpush1.msra.mxu0 %v686
      %3055 = vmatprep.subr.mxu0 0.0
      %3056 = vmatpush1.msra.mxu0 %v683
      %3057 = vmatprep.subr.mxu0 0.0
      %3058 = vmatpush1.msra.mxu0 %v680
      %3059 = vmatprep.subr.mxu0 0.0
      %3060 = vmatpush1.msra.mxu0 %v677
      %3061 = vmatprep.subr.mxu0 0.0
      %3062 = vmatpush1.msra.mxu0 %v674
      %3063 = vmatprep.subr.mxu0 0.0
      %3064 = vmatpush1.msra.mxu0 %v671
      %3065 = vmatprep.subr.mxu0 0.0
      %3066 = vmatpush1.msra.mxu0 %v668
      %3067 = vmatprep.subr.mxu0 0.0
      %3068 = vmatpush1.msra.mxu0 %v665
      %3069 = vmatprep.subr.mxu0 0.0
      %3070 = vmatpush1.msra.mxu0 %v662
      %3071 = vmatprep.subr.mxu0 0.0
      %3072 = vmatpush1.msra.mxu0 %v659
      %3073 = vmatprep.subr.mxu0 0.0
      %3074 = vmatpush1.msra.mxu0 %v656
      %3075 = vmatprep.subr.mxu0 0.0
      %3076 = vmatpush1.msra.mxu0 %v653
      %3077 = vmatprep.subr.mxu0 0.0
      %3078 = vmatpush1.msra.mxu0 %v650
      %3079 = vmatprep.subr.mxu0 0.0
      %3080 = vmatpush1.msra.mxu0 %v647
      %3081 = vmatprep.subr.mxu0 0.0
      %3082 = vmatpush1.msra.mxu0 %v644
      %3083 = vmatprep.subr.mxu0 0.0
      %3084 = vmatpush1.msra.mxu0 %v641
      %3085 = vmatprep.subr.mxu0 0.0
      %3086 = vmatpush2.msra.mxu0 0.0
      %3087 = vmatprep.subr.mxu0 0.0
      %3088 = vmatpush2.msra.mxu0 0.0
      %3089 = vmatprep.subr.mxu0 0.0
      %3090 = vmatpush2.msra.mxu0 0.0
      %3091 = vmatprep.subr.mxu0 0.0
      %3092 = vmatpush2.msra.mxu0 0.0
      %3093 = vmatprep.subr.mxu0 0.0
      %3094 = vmatpush2.msra.mxu0 %v2416
      %3095 = vmatprep.subr.mxu0 0.0
      %3096 = vmatpush2.msra.mxu0 %v719
      %3097 = vmatprep.subr.mxu0 0.0
      %3098 = vmatpush2.msra.mxu0 %v716
      %3099 = vmatprep.subr.mxu0 0.0
      %3100 = vmatpush2.msra.mxu0 %v713
      %3101 = vmatprep.subr.mxu0 0.0
      %3102 = vmatpush2.msra.mxu0 %v710
      %3103 = vmatprep.subr.mxu0 0.0
      %3104 = vmatpush2.msra.mxu0 %v707
      %3105 = vmatprep.subr.mxu0 0.0
      %3106 = vmatpush2.msra.mxu0 %v704
      %3107 = vmatprep.subr.mxu0 0.0
      %3108 = vmatpush2.msra.mxu0 %v701
      %3109 = vmatprep.subr.mxu0 0.0
      %3110 = vmatpush2.msra.mxu0 %v698
      %3111 = vmatprep.subr.mxu0 0.0
      %3112 = vmatpush2.msra.mxu0 %v695
      %3113 = vmatprep.subr.mxu0 0.0
      %3114 = vmatpush2.msra.mxu0 %v692
      %3115 = vmatprep.subr.mxu0 0.0
      %3116 = vmatpush2.msra.mxu0 %v689
      %3117 = vmatprep.mubr.f32.mxu0 %v2406
      %3118 = vmatmul.mubr.f32.gmra.mxu0 %v2403
      %v3119 = vpop.f32.mrf.mxu0
      %v3120 = vadd.f32 %v3050, %v3119
      %v3121 = vpop.f32.mrf.mxu0
      %3122 = vdwg.mxu0
      %vm3123 = vcmask 31744
      %v3124 = vsel %vm3123, %v1083, 0
      %v3126 = vsel %vm3123, %v1084, 0
      %v3128 = vsel %vm3123, %v1085, 0
      %v3130 = vsel %vm3123, %v1086, 0
      %v3132 = vsel %vm3123, %v1087, 0
      %v3135 = vsel %vm3123, %v1088, 0
      %v3138 = vsel %vm3123, %v1089, 0
      %v3141 = vsel %vm3123, %v1090, 0
      %v3144 = vsel %vm3123, %v1091, 0
      %v3147 = vsel %vm2408, %v2769, 0
      %v3150 = vsel %vm2408, %v2771, 0
      %v3153 = vsel %vm2408, %v3120, 0
      %3155 = vmatprep.subr.mxu0 0.0
      %3156 = vmatpush1.msra.mxu0 0.0
      %3157 = vmatprep.subr.mxu0 0.0
      %3158 = vmatpush1.msra.mxu0 0.0
      %3159 = vmatprep.subr.mxu0 0.0
      %3160 = vmatpush1.msra.mxu0 0.0
      %3161 = vmatprep.subr.mxu0 0.0
      %3162 = vmatpush1.msra.mxu0 0.0
      %3163 = vmatprep.subr.mxu0 0.0
      %3164 = vmatpush1.msra.mxu0 0.0
      %3165 = vmatprep.subr.mxu0 0.0
      %3166 = vmatpush1.msra.mxu0 0.0
      %3167 = vmatprep.subr.mxu0 0.0
      %3168 = vmatpush1.msra.mxu0 0.0
      %3169 = vmatprep.subr.mxu0 0.0
      %3170 = vmatpush1.msra.mxu0 0.0
      %3171 = vmatprep.subr.mxu0 0.0
      %3172 = vmatpush1.msra.mxu0 0.0
      %3173 = vmatprep.subr.mxu0 0.0
      %3174 = vmatpush1.msra.mxu0 0.0
      %3175 = vmatprep.subr.mxu0 0.0
      %3176 = vmatpush1.msra.mxu0 0.0
      %3177 = vmatprep.subr.mxu0 0.0
      %3178 = vmatpush1.msra.mxu0 0.0
      %3179 = vmatprep.subr.mxu0 0.0
      %3180 = vmatpush1.msra.mxu0 0.0
      %3181 = vmatprep.subr.mxu0 0.0
      %3182 = vmatpush1.msra.mxu0 0.0
      %3183 = vmatprep.subr.mxu0 0.0
      %3184 = vmatpush1.msra.mxu0 0.0
      %3185 = vmatprep.subr.mxu0 %v3150
      %3186 = vmatpush1.msra.mxu0 %v3147
      %3187 = vmatprep.subr.mxu0 0.0
      %3188 = vmatpush2.msra.mxu0 0.0
      %3189 = vmatprep.subr.mxu0 0.0
      %3190 = vmatpush2.msra.mxu0 0.0
      %3191 = vmatprep.subr.mxu0 0.0
      %3192 = vmatpush2.msra.mxu0 0.0
      %3193 = vmatprep.subr.mxu0 0.0
      %3194 = vmatpush2.msra.mxu0 0.0
      %3195 = vmatprep.subr.mxu0 0.0
      %3196 = vmatpush2.msra.mxu0 0.0
      %3197 = vmatprep.subr.mxu0 0.0
      %3198 = vmatpush2.msra.mxu0 0.0
      %3199 = vmatprep.subr.mxu0 0.0
      %3200 = vmatpush2.msra.mxu0 0.0
      %3201 = vmatprep.subr.mxu0 0.0
      %3202 = vmatpush2.msra.mxu0 0.0
      %3203 = vmatprep.subr.mxu0 0.0
      %3204 = vmatpush2.msra.mxu0 0.0
      %3205 = vmatprep.subr.mxu0 0.0
      %3206 = vmatpush2.msra.mxu0 0.0
      %3207 = vmatprep.subr.mxu0 0.0
      %3208 = vmatpush2.msra.mxu0 0.0
      %3209 = vmatprep.subr.mxu0 0.0
      %3210 = vmatpush2.msra.mxu0 0.0
      %3211 = vmatprep.subr.mxu0 0.0
      %3212 = vmatpush2.msra.mxu0 0.0
      %3213 = vmatprep.subr.mxu0 0.0
      %3214 = vmatpush2.msra.mxu0 0.0
      %3215 = vmatprep.subr.mxu0 0.0
      %3216 = vmatpush2.msra.mxu0 0.0
      %3217 = vmatprep.subr.mxu0 0.0
      %3218 = vmatpush2.msra.mxu0 0.0
      %3219 = vmatprep.mubr.f32.mxu0 0.0
      %3220 = vmatmul.mubr.f32.gmra.mxu0 %v3124
      %v3221 = vpop.f32.mrf.mxu0
      %v3222 = vadd.f32 0.0, %v3221
      %v3223 = vpop.f32.mrf.mxu0
      %v3224 = vadd.f32 0.0, %v3223
      %3225 = vmatprep.mubr.f32.mxu0 0.0
      %3226 = vmatmul.mubr.f32.gmra.mxu0 %v3126
      %v3227 = vpop.f32.mrf.mxu0
      %v3228 = vadd.f32 0.0, %v3227
      %v3229 = vpop.f32.mrf.mxu0
      %v3230 = vadd.f32 0.0, %v3229
      %3231 = vmatprep.mubr.f32.mxu0 0.0
      %3232 = vmatmul.mubr.f32.gmra.mxu0 %v3128
      %v3233 = vpop.f32.mrf.mxu0
      %v3234 = vadd.f32 0.0, %v3233
      %v3235 = vpop.f32.mrf.mxu0
      %v3236 = vadd.f32 0.0, %v3235
      %3237 = vmatprep.mubr.f32.mxu0 0.0
      %3238 = vmatmul.mubr.f32.gmra.mxu0 %v3130
      %v3239 = vpop.f32.mrf.mxu0
      %v3240 = vadd.f32 0.0, %v3239
      %v3241 = vpop.f32.mrf.mxu0
      %v3242 = vadd.f32 0.0, %v3241
      %3243 = vmatprep.mubr.f32.mxu0 0.0
      %3244 = vmatmul.mubr.f32.gmra.mxu0 %v3132
      %v3245 = vpop.f32.mrf.mxu0
      %v3246 = vadd.f32 0.0, %v3245
      %v3247 = vpop.f32.mrf.mxu0
      %v3248 = vadd.f32 0.0, %v3247
      %3249 = vmatprep.mubr.f32.mxu0 0.0
      %3250 = vmatmul.mubr.f32.gmra.mxu0 %v3135
      %v3251 = vpop.f32.mrf.mxu0
      %v3252 = vadd.f32 0.0, %v3251
      %v3253 = vpop.f32.mrf.mxu0
      %v3254 = vadd.f32 0.0, %v3253
      %3255 = vmatprep.mubr.f32.mxu0 0.0
      %3256 = vmatmul.mubr.f32.gmra.mxu0 %v3138
      %v3257 = vpop.f32.mrf.mxu0
      %v3258 = vadd.f32 0.0, %v3257
      %v3259 = vpop.f32.mrf.mxu0
      %v3260 = vadd.f32 0.0, %v3259
      %3261 = vmatprep.mubr.f32.mxu0 0.0
      %3262 = vmatmul.mubr.f32.gmra.mxu0 %v3141
      %v3263 = vpop.f32.mrf.mxu0
      %v3264 = vadd.f32 0.0, %v3263
      %v3265 = vpop.f32.mrf.mxu0
      %v3266 = vadd.f32 0.0, %v3265
      %3267 = vmatprep.mubr.f32.mxu0 0.0
      %3268 = vmatmul.mubr.f32.gmra.mxu0 %v3144
      %v3269 = vpop.f32.mrf.mxu0
      %v3270 = vadd.f32 0.0, %v3269
      %v3271 = vpop.f32.mrf.mxu0
      %v3272 = vadd.f32 0.0, %v3271
      %3273 = vdwg.mxu0
      %3274 = vmatprep.subr.mxu0 0.0
      %3275 = vmatpush1.msra.mxu0 0.0
      %3276 = vmatprep.subr.mxu0 0.0
      %3277 = vmatpush1.msra.mxu0 0.0
      %3278 = vmatprep.subr.mxu0 0.0
      %3279 = vmatpush1.msra.mxu0 0.0
      %3280 = vmatprep.subr.mxu0 0.0
      %3281 = vmatpush1.msra.mxu0 0.0
      %3282 = vmatprep.subr.mxu0 0.0
      %3283 = vmatpush1.msra.mxu0 0.0
      %3284 = vmatprep.subr.mxu0 0.0
      %3285 = vmatpush1.msra.mxu0 0.0
      %3286 = vmatprep.subr.mxu0 0.0
      %3287 = vmatpush1.msra.mxu0 0.0
      %3288 = vmatprep.subr.mxu0 0.0
      %3289 = vmatpush1.msra.mxu0 0.0
      %3290 = vmatprep.subr.mxu0 0.0
      %3291 = vmatpush1.msra.mxu0 0.0
      %3292 = vmatprep.subr.mxu0 0.0
      %3293 = vmatpush1.msra.mxu0 0.0
      %3294 = vmatprep.subr.mxu0 0.0
      %3295 = vmatpush1.msra.mxu0 0.0
      %3296 = vmatprep.subr.mxu0 0.0
      %3297 = vmatpush1.msra.mxu0 0.0
      %3298 = vmatprep.subr.mxu0 0.0
      %3299 = vmatpush1.msra.mxu0 0.0
      %3300 = vmatprep.subr.mxu0 0.0
      %3301 = vmatpush1.msra.mxu0 0.0
      %3302 = vmatprep.subr.mxu0 0.0
      %3303 = vmatpush1.msra.mxu0 0.0
      %3304 = vmatprep.subr.mxu0 0.0
      %3305 = vmatpush1.msra.mxu0 %v3153
      %3306 = vmatprep.subr.mxu0 0.0
      %3307 = vmatpush2.msra.mxu0 0.0
      %3308 = vmatprep.subr.mxu0 0.0
      %3309 = vmatpush2.msra.mxu0 0.0
      %3310 = vmatprep.subr.mxu0 0.0
      %3311 = vmatpush2.msra.mxu0 0.0
      %3312 = vmatprep.subr.mxu0 0.0
      %3313 = vmatpush2.msra.mxu0 0.0
      %3314 = vmatprep.subr.mxu0 0.0
      %3315 = vmatpush2.msra.mxu0 0.0
      %3316 = vmatprep.subr.mxu0 0.0
      %3317 = vmatpush2.msra.mxu0 0.0
      %3318 = vmatprep.subr.mxu0 0.0
      %3319 = vmatpush2.msra.mxu0 0.0
      %3320 = vmatprep.subr.mxu0 0.0
      %3321 = vmatpush2.msra.mxu0 0.0
      %3322 = vmatprep.subr.mxu0 0.0
      %3323 = vmatpush2.msra.mxu0 0.0
      %3324 = vmatprep.subr.mxu0 0.0
      %3325 = vmatpush2.msra.mxu0 0.0
      %3326 = vmatprep.subr.mxu0 0.0
      %3327 = vmatpush2.msra.mxu0 0.0
      %3328 = vmatprep.subr.mxu0 0.0
      %3329 = vmatpush2.msra.mxu0 0.0
      %3330 = vmatprep.subr.mxu0 0.0
      %3331 = vmatpush2.msra.mxu0 0.0
      %3332 = vmatprep.subr.mxu0 0.0
      %3333 = vmatpush2.msra.mxu0 0.0
      %3334 = vmatprep.subr.mxu0 0.0
      %3335 = vmatpush2.msra.mxu0 0.0
      %3336 = vmatprep.subr.mxu0 0.0
      %3337 = vmatpush2.msra.mxu0 0.0
      %3338 = vmatprep.mubr.f32.mxu0 0.0
      %3339 = vmatmul.mubr.f32.gmra.mxu0 %v3124
      %v3340 = vpop.f32.mrf.mxu0
      %v3341 = vadd.f32 0.0, %v3340
      %v3342 = vpop.f32.mrf.mxu0
      %3343 = vmatprep.mubr.f32.mxu0 0.0
      %3344 = vmatmul.mubr.f32.gmra.mxu0 %v3126
      %v3345 = vpop.f32.mrf.mxu0
      %v3346 = vadd.f32 0.0, %v3345
      %v3347 = vpop.f32.mrf.mxu0
      %3348 = vmatprep.mubr.f32.mxu0 0.0
      %3349 = vmatmul.mubr.f32.gmra.mxu0 %v3128
      %v3350 = vpop.f32.mrf.mxu0
      %v3351 = vadd.f32 0.0, %v3350
      %v3352 = vpop.f32.mrf.mxu0
      %3353 = vmatprep.mubr.f32.mxu0 0.0
      %3354 = vmatmul.mubr.f32.gmra.mxu0 %v3130
      %v3355 = vpop.f32.mrf.mxu0
      %v3356 = vadd.f32 0.0, %v3355
      %v3357 = vpop.f32.mrf.mxu0
      %3358 = vmatprep.mubr.f32.mxu0 0.0
      %3359 = vmatmul.mubr.f32.gmra.mxu0 %v3132
      %v3360 = vpop.f32.mrf.mxu0
      %v3361 = vadd.f32 0.0, %v3360
      %v3362 = vpop.f32.mrf.mxu0
      %3363 = vmatprep.mubr.f32.mxu0 0.0
      %3364 = vmatmul.mubr.f32.gmra.mxu0 %v3135
      %v3365 = vpop.f32.mrf.mxu0
      %v3366 = vadd.f32 0.0, %v3365
      %v3367 = vpop.f32.mrf.mxu0
      %3368 = vmatprep.mubr.f32.mxu0 0.0
      %3369 = vmatmul.mubr.f32.gmra.mxu0 %v3138
      %v3370 = vpop.f32.mrf.mxu0
      %v3371 = vadd.f32 0.0, %v3370
      %v3372 = vpop.f32.mrf.mxu0
      %3373 = vmatprep.mubr.f32.mxu0 0.0
      %3374 = vmatmul.mubr.f32.gmra.mxu0 %v3141
      %v3375 = vpop.f32.mrf.mxu0
      %v3376 = vadd.f32 0.0, %v3375
      %v3377 = vpop.f32.mrf.mxu0
      %3378 = vmatprep.mubr.f32.mxu0 0.0
      %3379 = vmatmul.mubr.f32.gmra.mxu0 %v3144
      %v3380 = vpop.f32.mrf.mxu0
      %v3381 = vadd.f32 0.0, %v3380
      %v3382 = vpop.f32.mrf.mxu0
      %3383 = vdwg.mxu0
      %3387 = vrot.lane.b32.xlu0 %v3228, 127
      %v3388 = vpop.permute.xlu0 %3387
      %3389 = vrot.lane.b32.xlu0 %v3230, 127
      %v3390 = vpop.permute.xlu0 %3389
      %3391 = vrot.lane.b32.xlu0 %v3346, 127
      %v3392 = vpop.permute.xlu0 %3391
      %v3393 = vsel %vm1699, %v3388, %v3390
      %v3394 = vsel %vm1699, %v3390, %v3392
      %v3398 = vadd.f32 %v3222, %v3393
      %v3399 = vadd.f32 %v3224, %v3394
      %v3400 = vadd.f32 %v3341, %v3392
      %3404 = vrot.lane.b32.xlu0 %v3234, 126
      %v3405 = vpop.permute.xlu0 %3404
      %3406 = vrot.lane.b32.xlu0 %v3236, 126
      %v3407 = vpop.permute.xlu0 %3406
      %3408 = vrot.lane.b32.xlu0 %v3351, 126
      %v3409 = vpop.permute.xlu0 %3408
      %v3410 = vsel %vm1759, %v3405, %v3407
      %v3411 = vsel %vm1759, %v3407, %v3409
      %v3415 = vadd.f32 %v3398, %v3410
      %v3416 = vadd.f32 %v3399, %v3411
      %v3417 = vadd.f32 %v3400, %v3409
      %3421 = vrot.lane.b32.xlu0 %v3240, 110
      %v3422 = vpop.permute.xlu0 %3421
      %3423 = vrot.lane.b32.xlu0 %v3242, 110
      %v3424 = vpop.permute.xlu0 %3423
      %3425 = vrot.lane.b32.xlu0 %v3356, 110
      %v3426 = vpop.permute.xlu0 %3425
      %vm3427 = vcmask 900096
      %v3428 = vsel %vm3427, %v3422, %v3424
      %v3429 = vsel %vm3427, %v3424, %v3426
      %v3433 = vadd.f32 %v3415, %v3428
      %v3434 = vadd.f32 %v3416, %v3429
      %v3435 = vadd.f32 %v3417, %v3426
      %3439 = vrot.lane.b32.xlu0 %v3246, 109
      %v3440 = vpop.permute.xlu0 %3439
      %3441 = vrot.lane.b32.xlu0 %v3248, 109
      %v3442 = vpop.permute.xlu0 %3441
      %3443 = vrot.lane.b32.xlu0 %v3361, 109
      %v3444 = vpop.permute.xlu0 %3443
      %vm3445 = vcmask 891904
      %v3446 = vsel %vm3445, %v3440, %v3442
      %v3447 = vsel %vm3445, %v3442, %v3444
      %v3451 = vadd.f32 %v3433, %v3446
      %v3452 = vadd.f32 %v3434, %v3447
      %v3453 = vadd.f32 %v3435, %v3444
      %3457 = vrot.lane.b32.xlu0 %v3252, 108
      %v3458 = vpop.permute.xlu0 %3457
      %3459 = vrot.lane.b32.xlu0 %v3254, 108
      %v3460 = vpop.permute.xlu0 %3459
      %3461 = vrot.lane.b32.xlu0 %v3366, 108
      %v3462 = vpop.permute.xlu0 %3461
      %vm3463 = vcmask 883712
      %v3464 = vsel %vm3463, %v3458, %v3460
      %v3465 = vsel %vm3463, %v3460, %v3462
      %v3469 = vadd.f32 %v3451, %v3464
      %v3470 = vadd.f32 %v3452, %v3465
      %v3471 = vadd.f32 %v3453, %v3462
      %3475 = vrot.lane.b32.xlu0 %v3258, 92
      %v3476 = vpop.permute.xlu0 %3475
      %3477 = vrot.lane.b32.xlu0 %v3260, 92
      %v3478 = vpop.permute.xlu0 %3477
      %3479 = vrot.lane.b32.xlu0 %v3371, 92
      %v3480 = vpop.permute.xlu0 %3479
      %v3481 = vsel %vm1879, %v3476, %v3478
      %v3482 = vsel %vm1879, %v3478, %v3480
      %v3486 = vadd.f32 %v3469, %v3481
      %v3487 = vadd.f32 %v3470, %v3482
      %v3488 = vadd.f32 %v3471, %v3480
      %3492 = vrot.lane.b32.xlu0 %v3264, 91
      %v3493 = vpop.permute.xlu0 %3492
      %3494 = vrot.lane.b32.xlu0 %v3266, 91
      %v3495 = vpop.permute.xlu0 %3494
      %3496 = vrot.lane.b32.xlu0 %v3376, 91
      %v3497 = vpop.permute.xlu0 %3496
      %v3498 = vsel %vm1939, %v3493, %v3495
      %v3499 = vsel %vm1939, %v3495, %v3497
      %v3503 = vadd.f32 %v3486, %v3498
      %v3504 = vadd.f32 %v3487, %v3499
      %v3505 = vadd.f32 %v3488, %v3497
      %3509 = vrot.lane.b32.xlu0 %v3270, 90
      %v3510 = vpop.permute.xlu0 %3509
      %3511 = vrot.lane.b32.xlu0 %v3272, 90
      %v3512 = vpop.permute.xlu0 %3511
      %3513 = vrot.lane.b32.xlu0 %v3381, 90
      %v3514 = vpop.permute.xlu0 %3513
      %vm3515 = vcmask 736256
      %v3516 = vsel %vm3515, %v3510, %v3512
      %v3517 = vsel %vm3515, %v3512, %v3514
      %v3521 = vadd.f32 %v3503, %v3516
      %v3522 = vadd.f32 %v3504, %v3517
      %v3523 = vadd.f32 %v3505, %v3514
      %3524 = vset.pattern.permute.xlu0 25
      %3525 = vperm.xlu0 %3524, %v1083
      %v3526 = vpop.permute.xlu0 %3525
      %v3528 = vadd.f32 %v3521, %v3526
      %v3529 = vadd.f32 %v3522, %v3526
      %v3530 = vadd.f32 %v3523, %v3526
      %v3531 = vmax.f32 %v3528, 0.0
      %v3532 = vmax.f32 %v3529, 0.0
      %v3533 = vmax.f32 %v3530, 0.0
      %vm3534 = vcmask 261120
      %v3536 = vsel %vm3534, %v3533, 0
      %3538 = vmatprep.subr.mxu0 %v874
      %3539 = vmatpush1.msra.mxu0 %v873
      %3540 = vmatprep.subr.mxu0 %v864
      %3541 = vmatpush1.msra.mxu0 %v863
      %3542 = vmatprep.subr.mxu0 %v854
      %3543 = vmatpush1.msra.mxu0 %v853
      %3544 = vmatprep.subr.mxu0 %v844
      %3545 = vmatpush1.msra.mxu0 %v843
      %3546 = vmatprep.subr.mxu0 %v834
      %3547 = vmatpush1.msra.mxu0 %v833
      %3548 = vmatprep.subr.mxu0 %v824
      %3549 = vmatpush1.msra.mxu0 %v823
      %3550 = vmatprep.subr.mxu0 %v814
      %3551 = vmatpush1.msra.mxu0 %v813
      %3552 = vmatprep.subr.mxu0 %v804
      %3553 = vmatpush1.msra.mxu0 %v803
      %3554 = vmatprep.subr.mxu0 %v794
      %3555 = vmatpush1.msra.mxu0 %v793
      %3556 = vmatprep.subr.mxu0 %v784
      %3557 = vmatpush1.msra.mxu0 %v783
      %3558 = vmatprep.subr.mxu0 %v774
      %3559 = vmatpush1.msra.mxu0 %v773
      %3560 = vmatprep.subr.mxu0 %v764
      %3561 = vmatpush1.msra.mxu0 %v763
      %3562 = vmatprep.subr.mxu0 %v754
      %3563 = vmatpush1.msra.mxu0 %v753
      %3564 = vmatprep.subr.mxu0 %v744
      %3565 = vmatpush1.msra.mxu0 %v743
      %3566 = vmatprep.subr.mxu0 %v734
      %3567 = vmatpush1.msra.mxu0 %v733
      %3568 = vmatprep.subr.mxu0 %v724
      %3569 = vmatpush1.msra.mxu0 %v723
      %3570 = vmatprep.subr.mxu0 %v1034
      %3571 = vmatpush2.msra.mxu0 %v1033
      %3572 = vmatprep.subr.mxu0 %v1024
      %3573 = vmatpush2.msra.mxu0 %v1023
      %3574 = vmatprep.subr.mxu0 %v1014
      %3575 = vmatpush2.msra.mxu0 %v1013
      %3576 = vmatprep.subr.mxu0 %v1004
      %3577 = vmatpush2.msra.mxu0 %v1003
      %3578 = vmatprep.subr.mxu0 %v994
      %3579 = vmatpush2.msra.mxu0 %v993
      %3580 = vmatprep.subr.mxu0 %v984
      %3581 = vmatpush2.msra.mxu0 %v983
      %3582 = vmatprep.subr.mxu0 %v974
      %3583 = vmatpush2.msra.mxu0 %v973
      %3584 = vmatprep.subr.mxu0 %v964
      %3585 = vmatpush2.msra.mxu0 %v963
      %3586 = vmatprep.subr.mxu0 %v954
      %3587 = vmatpush2.msra.mxu0 %v953
      %3588 = vmatprep.subr.mxu0 %v944
      %3589 = vmatpush2.msra.mxu0 %v943
      %3590 = vmatprep.subr.mxu0 %v934
      %3591 = vmatpush2.msra.mxu0 %v933
      %3592 = vmatprep.subr.mxu0 %v924
      %3593 = vmatpush2.msra.mxu0 %v923
      %3594 = vmatprep.subr.mxu0 %v914
      %3595 = vmatpush2.msra.mxu0 %v913
      %3596 = vmatprep.subr.mxu0 %v904
      %3597 = vmatpush2.msra.mxu0 %v903
      %3598 = vmatprep.subr.mxu0 %v894
      %3599 = vmatpush2.msra.mxu0 %v893
      %3600 = vmatprep.subr.mxu0 %v884
      %3601 = vmatpush2.msra.mxu0 %v883
      %3602 = vmatprep.mubr.f32.mxu0 %v3532
      %3603 = vmatmul.mubr.f32.gmra.mxu0 %v3531
      %v3604 = vpop.f32.mrf.mxu0
      %v3605 = vadd.f32 0.0, %v3604
      %v3606 = vpop.f32.mrf.mxu0
      %v3607 = vadd.f32 0.0, %v3606
      %3608 = vdwg.mxu0
      %3609 = vmatprep.subr.mxu0 0.0
      %3610 = vmatpush1.msra.mxu0 0.0
      %3611 = vmatprep.subr.mxu0 0.0
      %3612 = vmatpush1.msra.mxu0 0.0
      %3613 = vmatprep.subr.mxu0 0.0
      %3614 = vmatpush1.msra.mxu0 0.0
      %3615 = vmatprep.subr.mxu0 0.0
      %3616 = vmatpush1.msra.mxu0 0.0
      %3617 = vmatprep.subr.mxu0 0.0
      %3618 = vmatpush1.msra.mxu0 0.0
      %3619 = vmatprep.subr.mxu0 0.0
      %3620 = vmatpush1.msra.mxu0 0.0
      %3621 = vmatprep.subr.mxu0 0.0
      %3622 = vmatpush1.msra.mxu0 0.0
      %3623 = vmatprep.subr.mxu0 0.0
      %3624 = vmatpush1.msra.mxu0 0.0
      %3625 = vmatprep.subr.mxu0 0.0
      %3626 = vmatpush1.msra.mxu0 0.0
      %3627 = vmatprep.subr.mxu0 0.0
      %3628 = vmatpush1.msra.mxu0 0.0
      %3629 = vmatprep.subr.mxu0 0.0
      %3630 = vmatpush1.msra.mxu0 0.0
      %3631 = vmatprep.subr.mxu0 0.0
      %3632 = vmatpush1.msra.mxu0 0.0
      %3633 = vmatprep.subr.mxu0 %v1074
      %3634 = vmatpush1.msra.mxu0 %v1073
      %3635 = vmatprep.subr.mxu0 %v1064
      %3636 = vmatpush1.msra.mxu0 %v1063
      %3637 = vmatprep.subr.mxu0 %v1054
      %3638 = vmatpush1.msra.mxu0 %v1053
      %3639 = vmatprep.subr.mxu0 %v1044
      %3640 = vmatpush1.msra.mxu0 %v1043
      %3641 = vmatprep.subr.mxu0 0.0
      %3642 = vmatpush2.msra.mxu0 0.0
      %3643 = vmatprep.subr.mxu0 0.0
      %3644 = vmatpush2.msra.mxu0 0.0
      %3645 = vmatprep.subr.mxu0 0.0
      %3646 = vmatpush2.msra.mxu0 0.0
      %3647 = vmatprep.subr.mxu0 0.0
      %3648 = vmatpush2.msra.mxu0 0.0
      %3649 = vmatprep.subr.mxu0 0.0
      %3650 = vmatpush2.msra.mxu0 0.0
      %3651 = vmatprep.subr.mxu0 0.0
      %3652 = vmatpush2.msra.mxu0 0.0
      %3653 = vmatprep.subr.mxu0 0.0
      %3654 = vmatpush2.msra.mxu0 0.0
      %3655 = vmatprep.subr.mxu0 0.0
      %3656 = vmatpush2.msra.mxu0 0.0
      %3657 = vmatprep.subr.mxu0 0.0
      %3658 = vmatpush2.msra.mxu0 0.0
      %3659 = vmatprep.subr.mxu0 0.0
      %3660 = vmatpush2.msra.mxu0 0.0
      %3661 = vmatprep.subr.mxu0 0.0
      %3662 = vmatpush2.msra.mxu0 0.0
      %3663 = vmatprep.subr.mxu0 0.0
      %3664 = vmatpush2.msra.mxu0 0.0
      %3665 = vmatprep.subr.mxu0 0.0
      %3666 = vmatpush2.msra.mxu0 0.0
      %3667 = vmatprep.subr.mxu0 0.0
      %3668 = vmatpush2.msra.mxu0 0.0
      %3669 = vmatprep.subr.mxu0 0.0
      %3670 = vmatpush2.msra.mxu0 0.0
      %3671 = vmatprep.subr.mxu0 0.0
      %3672 = vmatpush2.msra.mxu0 0.0
      %3673 = vmatprep.mubr.f32.mxu0 0.0
      %3674 = vmatmul.mubr.f32.gmra.mxu0 %v3536
      %v3675 = vpop.f32.mrf.mxu0
      %v3676 = vadd.f32 %v3605, %v3675
      %v3677 = vpop.f32.mrf.mxu0
      %v3678 = vadd.f32 %v3607, %v3677
      %3679 = vdwg.mxu0
      %3680 = vmatprep.subr.mxu0 %v876
      %3681 = vmatpush1.msra.mxu0 %v875
      %3682 = vmatprep.subr.mxu0 %v866
      %3683 = vmatpush1.msra.mxu0 %v865
      %3684 = vmatprep.subr.mxu0 %v856
      %3685 = vmatpush1.msra.mxu0 %v855
      %3686 = vmatprep.subr.mxu0 %v846
      %3687 = vmatpush1.msra.mxu0 %v845
      %3688 = vmatprep.subr.mxu0 %v836
      %3689 = vmatpush1.msra.mxu0 %v835
      %3690 = vmatprep.subr.mxu0 %v826
      %3691 = vmatpush1.msra.mxu0 %v825
      %3692 = vmatprep.subr.mxu0 %v816
      %3693 = vmatpush1.msra.mxu0 %v815
      %3694 = vmatprep.subr.mxu0 %v806
      %3695 = vmatpush1.msra.mxu0 %v805
      %3696 = vmatprep.subr.mxu0 %v796
      %3697 = vmatpush1.msra.mxu0 %v795
      %3698 = vmatprep.subr.mxu0 %v786
      %3699 = vmatpush1.msra.mxu0 %v785
      %3700 = vmatprep.subr.mxu0 %v776
      %3701 = vmatpush1.msra.mxu0 %v775
      %3702 = vmatprep.subr.mxu0 %v766
      %3703 = vmatpush1.msra.mxu0 %v765
      %3704 = vmatprep.subr.mxu0 %v756
      %3705 = vmatpush1.msra.mxu0 %v755
      %3706 = vmatprep.subr.mxu0 %v746
      %3707 = vmatpush1.msra.mxu0 %v745
      %3708 = vmatprep.subr.mxu0 %v736
      %3709 = vmatpush1.msra.mxu0 %v735
      %3710 = vmatprep.subr.mxu0 %v726
      %3711 = vmatpush1.msra.mxu0 %v725
      %3712 = vmatprep.subr.mxu0 %v1036
      %3713 = vmatpush2.msra.mxu0 %v1035
      %3714 = vmatprep.subr.mxu0 %v1026
      %3715 = vmatpush2.msra.mxu0 %v1025
      %3716 = vmatprep.subr.mxu0 %v1016
      %3717 = vmatpush2.msra.mxu0 %v1015
      %3718 = vmatprep.subr.mxu0 %v1006
      %3719 = vmatpush2.msra.mxu0 %v1005
      %3720 = vmatprep.subr.mxu0 %v996
      %3721 = vmatpush2.msra.mxu0 %v995
      %3722 = vmatprep.subr.mxu0 %v986
      %3723 = vmatpush2.msra.mxu0 %v985
      %3724 = vmatprep.subr.mxu0 %v976
      %3725 = vmatpush2.msra.mxu0 %v975
      %3726 = vmatprep.subr.mxu0 %v966
      %3727 = vmatpush2.msra.mxu0 %v965
      %3728 = vmatprep.subr.mxu0 %v956
      %3729 = vmatpush2.msra.mxu0 %v955
      %3730 = vmatprep.subr.mxu0 %v946
      %3731 = vmatpush2.msra.mxu0 %v945
      %3732 = vmatprep.subr.mxu0 %v936
      %3733 = vmatpush2.msra.mxu0 %v935
      %3734 = vmatprep.subr.mxu0 %v926
      %3735 = vmatpush2.msra.mxu0 %v925
      %3736 = vmatprep.subr.mxu0 %v916
      %3737 = vmatpush2.msra.mxu0 %v915
      %3738 = vmatprep.subr.mxu0 %v906
      %3739 = vmatpush2.msra.mxu0 %v905
      %3740 = vmatprep.subr.mxu0 %v896
      %3741 = vmatpush2.msra.mxu0 %v895
      %3742 = vmatprep.subr.mxu0 %v886
      %3743 = vmatpush2.msra.mxu0 %v885
      %3744 = vmatprep.mubr.f32.mxu0 %v3532
      %3745 = vmatmul.mubr.f32.gmra.mxu0 %v3531
      %v3746 = vpop.f32.mrf.mxu0
      %v3747 = vadd.f32 0.0, %v3746
      %v3748 = vpop.f32.mrf.mxu0
      %v3749 = vadd.f32 0.0, %v3748
      %3750 = vdwg.mxu0
      %3751 = vmatprep.subr.mxu0 0.0
      %3752 = vmatpush1.msra.mxu0 0.0
      %3753 = vmatprep.subr.mxu0 0.0
      %3754 = vmatpush1.msra.mxu0 0.0
      %3755 = vmatprep.subr.mxu0 0.0
      %3756 = vmatpush1.msra.mxu0 0.0
      %3757 = vmatprep.subr.mxu0 0.0
      %3758 = vmatpush1.msra.mxu0 0.0
      %3759 = vmatprep.subr.mxu0 0.0
      %3760 = vmatpush1.msra.mxu0 0.0
      %3761 = vmatprep.subr.mxu0 0.0
      %3762 = vmatpush1.msra.mxu0 0.0
      %3763 = vmatprep.subr.mxu0 0.0
      %3764 = vmatpush1.msra.mxu0 0.0
      %3765 = vmatprep.subr.mxu0 0.0
      %3766 = vmatpush1.msra.mxu0 0.0
      %3767 = vmatprep.subr.mxu0 0.0
      %3768 = vmatpush1.msra.mxu0 0.0
      %3769 = vmatprep.subr.mxu0 0.0
      %3770 = vmatpush1.msra.mxu0 0.0
      %3771 = vmatprep.subr.mxu0 0.0
      %3772 = vmatpush1.msra.mxu0 0.0
      %3773 = vmatprep.subr.mxu0 0.0
      %3774 = vmatpush1.msra.mxu0 0.0
      %3775 = vmatprep.subr.mxu0 %v1076
      %3776 = vmatpush1.msra.mxu0 %v1075
      %3777 = vmatprep.subr.mxu0 %v1066
      %3778 = vmatpush1.msra.mxu0 %v1065
      %3779 = vmatprep.subr.mxu0 %v1056
      %3780 = vmatpush1.msra.mxu0 %v1055
      %3781 = vmatprep.subr.mxu0 %v1046
      %3782 = vmatpush1.msra.mxu0 %v1045
      %3783 = vmatprep.subr.mxu0 0.0
      %3784 = vmatpush2.msra.mxu0 0.0
      %3785 = vmatprep.subr.mxu0 0.0
      %3786 = vmatpush2.msra.mxu0 0.0
      %3787 = vmatprep.subr.mxu0 0.0
      %3788 = vmatpush2.msra.mxu0 0.0
      %3789 = vmatprep.subr.mxu0 0.0
      %3790 = vmatpush2.msra.mxu0 0.0
      %3791 = vmatprep.subr.mxu0 0.0
      %3792 = vmatpush2.msra.mxu0 0.0
      %3793 = vmatprep.subr.mxu0 0.0
      %3794 = vmatpush2.msra.mxu0 0.0
      %3795 = vmatprep.subr.mxu0 0.0
      %3796 = vmatpush2.msra.mxu0 0.0
      %3797 = vmatprep.subr.mxu0 0.0
      %3798 = vmatpush2.msra.mxu0 0.0
      %3799 = vmatprep.subr.mxu0 0.0
      %3800 = vmatpush2.msra.mxu0 0.0
      %3801 = vmatprep.subr.mxu0 0.0
      %3802 = vmatpush2.msra.mxu0 0.0
      %3803 = vmatprep.subr.mxu0 0.0
      %3804 = vmatpush2.msra.mxu0 0.0
      %3805 = vmatprep.subr.mxu0 0.0
      %3806 = vmatpush2.msra.mxu0 0.0
      %3807 = vmatprep.subr.mxu0 0.0
      %3808 = vmatpush2.msra.mxu0 0.0
      %3809 = vmatprep.subr.mxu0 0.0
      %3810 = vmatpush2.msra.mxu0 0.0
      %3811 = vmatprep.subr.mxu0 0.0
      %3812 = vmatpush2.msra.mxu0 0.0
      %3813 = vmatprep.subr.mxu0 0.0
      %3814 = vmatpush2.msra.mxu0 0.0
      %3815 = vmatprep.mubr.f32.mxu0 0.0
      %3816 = vmatmul.mubr.f32.gmra.mxu0 %v3536
      %v3817 = vpop.f32.mrf.mxu0
      %v3818 = vadd.f32 %v3747, %v3817
      %v3819 = vpop.f32.mrf.mxu0
      %v3820 = vadd.f32 %v3749, %v3819
      %3821 = vdwg.mxu0
      %3822 = vmatprep.subr.mxu0 %v878
      %3823 = vmatpush1.msra.mxu0 %v877
      %3824 = vmatprep.subr.mxu0 %v868
      %3825 = vmatpush1.msra.mxu0 %v867
      %3826 = vmatprep.subr.mxu0 %v858
      %3827 = vmatpush1.msra.mxu0 %v857
      %3828 = vmatprep.subr.mxu0 %v848
      %3829 = vmatpush1.msra.mxu0 %v847
      %3830 = vmatprep.subr.mxu0 %v838
      %3831 = vmatpush1.msra.mxu0 %v837
      %3832 = vmatprep.subr.mxu0 %v828
      %3833 = vmatpush1.msra.mxu0 %v827
      %3834 = vmatprep.subr.mxu0 %v818
      %3835 = vmatpush1.msra.mxu0 %v817
      %3836 = vmatprep.subr.mxu0 %v808
      %3837 = vmatpush1.msra.mxu0 %v807
      %3838 = vmatprep.subr.mxu0 %v798
      %3839 = vmatpush1.msra.mxu0 %v797
      %3840 = vmatprep.subr.mxu0 %v788
      %3841 = vmatpush1.msra.mxu0 %v787
      %3842 = vmatprep.subr.mxu0 %v778
      %3843 = vmatpush1.msra.mxu0 %v777
      %3844 = vmatprep.subr.mxu0 %v768
      %3845 = vmatpush1.msra.mxu0 %v767
      %3846 = vmatprep.subr.mxu0 %v758
      %3847 = vmatpush1.msra.mxu0 %v757
      %3848 = vmatprep.subr.mxu0 %v748
      %3849 = vmatpush1.msra.mxu0 %v747
      %3850 = vmatprep.subr.mxu0 %v738
      %3851 = vmatpush1.msra.mxu0 %v737
      %3852 = vmatprep.subr.mxu0 %v728
      %3853 = vmatpush1.msra.mxu0 %v727
      %3854 = vmatprep.subr.mxu0 %v1038
      %3855 = vmatpush2.msra.mxu0 %v1037
      %3856 = vmatprep.subr.mxu0 %v1028
      %3857 = vmatpush2.msra.mxu0 %v1027
      %3858 = vmatprep.subr.mxu0 %v1018
      %3859 = vmatpush2.msra.mxu0 %v1017
      %3860 = vmatprep.subr.mxu0 %v1008
      %3861 = vmatpush2.msra.mxu0 %v1007
      %3862 = vmatprep.subr.mxu0 %v998
      %3863 = vmatpush2.msra.mxu0 %v997
      %3864 = vmatprep.subr.mxu0 %v988
      %3865 = vmatpush2.msra.mxu0 %v987
      %3866 = vmatprep.subr.mxu0 %v978
      %3867 = vmatpush2.msra.mxu0 %v977
      %3868 = vmatprep.subr.mxu0 %v968
      %3869 = vmatpush2.msra.mxu0 %v967
      %3870 = vmatprep.subr.mxu0 %v958
      %3871 = vmatpush2.msra.mxu0 %v957
      %3872 = vmatprep.subr.mxu0 %v948
      %3873 = vmatpush2.msra.mxu0 %v947
      %3874 = vmatprep.subr.mxu0 %v938
      %3875 = vmatpush2.msra.mxu0 %v937
      %3876 = vmatprep.subr.mxu0 %v928
      %3877 = vmatpush2.msra.mxu0 %v927
      %3878 = vmatprep.subr.mxu0 %v918
      %3879 = vmatpush2.msra.mxu0 %v917
      %3880 = vmatprep.subr.mxu0 %v908
      %3881 = vmatpush2.msra.mxu0 %v907
      %3882 = vmatprep.subr.mxu0 %v898
      %3883 = vmatpush2.msra.mxu0 %v897
      %3884 = vmatprep.subr.mxu0 %v888
      %3885 = vmatpush2.msra.mxu0 %v887
      %3886 = vmatprep.mubr.f32.mxu0 %v3532
      %3887 = vmatmul.mubr.f32.gmra.mxu0 %v3531
      %v3888 = vpop.f32.mrf.mxu0
      %v3889 = vadd.f32 0.0, %v3888
      %v3890 = vpop.f32.mrf.mxu0
      %v3891 = vadd.f32 0.0, %v3890
      %3892 = vdwg.mxu0
      %3893 = vmatprep.subr.mxu0 0.0
      %3894 = vmatpush1.msra.mxu0 0.0
      %3895 = vmatprep.subr.mxu0 0.0
      %3896 = vmatpush1.msra.mxu0 0.0
      %3897 = vmatprep.subr.mxu0 0.0
      %3898 = vmatpush1.msra.mxu0 0.0
      %3899 = vmatprep.subr.mxu0 0.0
      %3900 = vmatpush1.msra.mxu0 0.0
      %3901 = vmatprep.subr.mxu0 0.0
      %3902 = vmatpush1.msra.mxu0 0.0
      %3903 = vmatprep.subr.mxu0 0.0
      %3904 = vmatpush1.msra.mxu0 0.0
      %3905 = vmatprep.subr.mxu0 0.0
      %3906 = vmatpush1.msra.mxu0 0.0
      %3907 = vmatprep.subr.mxu0 0.0
      %3908 = vmatpush1.msra.mxu0 0.0
      %3909 = vmatprep.subr.mxu0 0.0
      %3910 = vmatpush1.msra.mxu0 0.0
      %3911 = vmatprep.subr.mxu0 0.0
      %3912 = vmatpush1.msra.mxu0 0.0
      %3913 = vmatprep.subr.mxu0 0.0
      %3914 = vmatpush1.msra.mxu0 0.0
      %3915 = vmatprep.subr.mxu0 0.0
      %3916 = vmatpush1.msra.mxu0 0.0
      %3917 = vmatprep.subr.mxu0 %v1078
      %3918 = vmatpush1.msra.mxu0 %v1077
      %3919 = vmatprep.subr.mxu0 %v1068
      %3920 = vmatpush1.msra.mxu0 %v1067
      %3921 = vmatprep.subr.mxu0 %v1058
      %3922 = vmatpush1.msra.mxu0 %v1057
      %3923 = vmatprep.subr.mxu0 %v1048
      %3924 = vmatpush1.msra.mxu0 %v1047
      %3925 = vmatprep.subr.mxu0 0.0
      %3926 = vmatpush2.msra.mxu0 0.0
      %3927 = vmatprep.subr.mxu0 0.0
      %3928 = vmatpush2.msra.mxu0 0.0
      %3929 = vmatprep.subr.mxu0 0.0
      %3930 = vmatpush2.msra.mxu0 0.0
      %3931 = vmatprep.subr.mxu0 0.0
      %3932 = vmatpush2.msra.mxu0 0.0
      %3933 = vmatprep.subr.mxu0 0.0
      %3934 = vmatpush2.msra.mxu0 0.0
      %3935 = vmatprep.subr.mxu0 0.0
      %3936 = vmatpush2.msra.mxu0 0.0
      %3937 = vmatprep.subr.mxu0 0.0
      %3938 = vmatpush2.msra.mxu0 0.0
      %3939 = vmatprep.subr.mxu0 0.0
      %3940 = vmatpush2.msra.mxu0 0.0
      %3941 = vmatprep.subr.mxu0 0.0
      %3942 = vmatpush2.msra.mxu0 0.0
      %3943 = vmatprep.subr.mxu0 0.0
      %3944 = vmatpush2.msra.mxu0 0.0
      %3945 = vmatprep.subr.mxu0 0.0
      %3946 = vmatpush2.msra.mxu0 0.0
      %3947 = vmatprep.subr.mxu0 0.0
      %3948 = vmatpush2.msra.mxu0 0.0
      %3949 = vmatprep.subr.mxu0 0.0
      %3950 = vmatpush2.msra.mxu0 0.0
      %3951 = vmatprep.subr.mxu0 0.0
      %3952 = vmatpush2.msra.mxu0 0.0
      %3953 = vmatprep.subr.mxu0 0.0
      %3954 = vmatpush2.msra.mxu0 0.0
      %3955 = vmatprep.subr.mxu0 0.0
      %3956 = vmatpush2.msra.mxu0 0.0
      %3957 = vmatprep.mubr.f32.mxu0 0.0
      %3958 = vmatmul.mubr.f32.gmra.mxu0 %v3536
      %v3959 = vpop.f32.mrf.mxu0
      %v3960 = vadd.f32 %v3889, %v3959
      %v3961 = vpop.f32.mrf.mxu0
      %v3962 = vadd.f32 %v3891, %v3961
      %3963 = vdwg.mxu0
      %3964 = vmatprep.subr.mxu0 %v880
      %3965 = vmatpush1.msra.mxu0 %v879
      %3966 = vmatprep.subr.mxu0 %v870
      %3967 = vmatpush1.msra.mxu0 %v869
      %3968 = vmatprep.subr.mxu0 %v860
      %3969 = vmatpush1.msra.mxu0 %v859
      %3970 = vmatprep.subr.mxu0 %v850
      %3971 = vmatpush1.msra.mxu0 %v849
      %3972 = vmatprep.subr.mxu0 %v840
      %3973 = vmatpush1.msra.mxu0 %v839
      %3974 = vmatprep.subr.mxu0 %v830
      %3975 = vmatpush1.msra.mxu0 %v829
      %3976 = vmatprep.subr.mxu0 %v820
      %3977 = vmatpush1.msra.mxu0 %v819
      %3978 = vmatprep.subr.mxu0 %v810
      %3979 = vmatpush1.msra.mxu0 %v809
      %3980 = vmatprep.subr.mxu0 %v800
      %3981 = vmatpush1.msra.mxu0 %v799
      %3982 = vmatprep.subr.mxu0 %v790
      %3983 = vmatpush1.msra.mxu0 %v789
      %3984 = vmatprep.subr.mxu0 %v780
      %3985 = vmatpush1.msra.mxu0 %v779
      %3986 = vmatprep.subr.mxu0 %v770
      %3987 = vmatpush1.msra.mxu0 %v769
      %3988 = vmatprep.subr.mxu0 %v760
      %3989 = vmatpush1.msra.mxu0 %v759
      %3990 = vmatprep.subr.mxu0 %v750
      %3991 = vmatpush1.msra.mxu0 %v749
      %3992 = vmatprep.subr.mxu0 %v740
      %3993 = vmatpush1.msra.mxu0 %v739
      %3994 = vmatprep.subr.mxu0 %v730
      %3995 = vmatpush1.msra.mxu0 %v729
      %3996 = vmatprep.subr.mxu0 %v1040
      %3997 = vmatpush2.msra.mxu0 %v1039
      %3998 = vmatprep.subr.mxu0 %v1030
      %3999 = vmatpush2.msra.mxu0 %v1029
      %4000 = vmatprep.subr.mxu0 %v1020
      %4001 = vmatpush2.msra.mxu0 %v1019
      %4002 = vmatprep.subr.mxu0 %v1010
      %4003 = vmatpush2.msra.mxu0 %v1009
      %4004 = vmatprep.subr.mxu0 %v1000
      %4005 = vmatpush2.msra.mxu0 %v999
      %4006 = vmatprep.subr.mxu0 %v990
      %4007 = vmatpush2.msra.mxu0 %v989
      %4008 = vmatprep.subr.mxu0 %v980
      %4009 = vmatpush2.msra.mxu0 %v979
      %4010 = vmatprep.subr.mxu0 %v970
      %4011 = vmatpush2.msra.mxu0 %v969
      %4012 = vmatprep.subr.mxu0 %v960
      %4013 = vmatpush2.msra.mxu0 %v959
      %4014 = vmatprep.subr.mxu0 %v950
      %4015 = vmatpush2.msra.mxu0 %v949
      %4016 = vmatprep.subr.mxu0 %v940
      %4017 = vmatpush2.msra.mxu0 %v939
      %4018 = vmatprep.subr.mxu0 %v930
      %4019 = vmatpush2.msra.mxu0 %v929
      %4020 = vmatprep.subr.mxu0 %v920
      %4021 = vmatpush2.msra.mxu0 %v919
      %4022 = vmatprep.subr.mxu0 %v910
      %4023 = vmatpush2.msra.mxu0 %v909
      %4024 = vmatprep.subr.mxu0 %v900
      %4025 = vmatpush2.msra.mxu0 %v899
      %4026 = vmatprep.subr.mxu0 %v890
      %4027 = vmatpush2.msra.mxu0 %v889
      %4028 = vmatprep.mubr.f32.mxu0 %v3532
      %4029 = vmatmul.mubr.f32.gmra.mxu0 %v3531
      %v4030 = vpop.f32.mrf.mxu0
      %v4031 = vadd.f32 0.0, %v4030
      %v4032 = vpop.f32.mrf.mxu0
      %v4033 = vadd.f32 0.0, %v4032
      %4034 = vdwg.mxu0
      %4035 = vmatprep.subr.mxu0 0.0
      %4036 = vmatpush1.msra.mxu0 0.0
      %4037 = vmatprep.subr.mxu0 0.0
      %4038 = vmatpush1.msra.mxu0 0.0
      %4039 = vmatprep.subr.mxu0 0.0
      %4040 = vmatpush1.msra.mxu0 0.0
      %4041 = vmatprep.subr.mxu0 0.0
      %4042 = vmatpush1.msra.mxu0 0.0
      %4043 = vmatprep.subr.mxu0 0.0
      %4044 = vmatpush1.msra.mxu0 0.0
      %4045 = vmatprep.subr.mxu0 0.0
      %4046 = vmatpush1.msra.mxu0 0.0
      %4047 = vmatprep.subr.mxu0 0.0
      %4048 = vmatpush1.msra.mxu0 0.0
      %4049 = vmatprep.subr.mxu0 0.0
      %4050 = vmatpush1.msra.mxu0 0.0
      %4051 = vmatprep.subr.mxu0 0.0
      %4052 = vmatpush1.msra.mxu0 0.0
      %4053 = vmatprep.subr.mxu0 0.0
      %4054 = vmatpush1.msra.mxu0 0.0
      %4055 = vmatprep.subr.mxu0 0.0
      %4056 = vmatpush1.msra.mxu0 0.0
      %4057 = vmatprep.subr.mxu0 0.0
      %4058 = vmatpush1.msra.mxu0 0.0
      %4059 = vmatprep.subr.mxu0 %v1080
      %4060 = vmatpush1.msra.mxu0 %v1079
      %4061 = vmatprep.subr.mxu0 %v1070
      %4062 = vmatpush1.msra.mxu0 %v1069
      %4063 = vmatprep.subr.mxu0 %v1060
      %4064 = vmatpush1.msra.mxu0 %v1059
      %4065 = vmatprep.subr.mxu0 %v1050
      %4066 = vmatpush1.msra.mxu0 %v1049
      %4067 = vmatprep.subr.mxu0 0.0
      %4068 = vmatpush2.msra.mxu0 0.0
      %4069 = vmatprep.subr.mxu0 0.0
      %4070 = vmatpush2.msra.mxu0 0.0
      %4071 = vmatprep.subr.mxu0 0.0
      %4072 = vmatpush2.msra.mxu0 0.0
      %4073 = vmatprep.subr.mxu0 0.0
      %4074 = vmatpush2.msra.mxu0 0.0
      %4075 = vmatprep.subr.mxu0 0.0
      %4076 = vmatpush2.msra.mxu0 0.0
      %4077 = vmatprep.subr.mxu0 0.0
      %4078 = vmatpush2.msra.mxu0 0.0
      %4079 = vmatprep.subr.mxu0 0.0
      %4080 = vmatpush2.msra.mxu0 0.0
      %4081 = vmatprep.subr.mxu0 0.0
      %4082 = vmatpush2.msra.mxu0 0.0
      %4083 = vmatprep.subr.mxu0 0.0
      %4084 = vmatpush2.msra.mxu0 0.0
      %4085 = vmatprep.subr.mxu0 0.0
      %4086 = vmatpush2.msra.mxu0 0.0
      %4087 = vmatprep.subr.mxu0 0.0
      %4088 = vmatpush2.msra.mxu0 0.0
      %4089 = vmatprep.subr.mxu0 0.0
      %4090 = vmatpush2.msra.mxu0 0.0
      %4091 = vmatprep.subr.mxu0 0.0
      %4092 = vmatpush2.msra.mxu0 0.0
      %4093 = vmatprep.subr.mxu0 0.0
      %4094 = vmatpush2.msra.mxu0 0.0
      %4095 = vmatprep.subr.mxu0 0.0
      %4096 = vmatpush2.msra.mxu0 0.0
      %4097 = vmatprep.subr.mxu0 0.0
      %4098 = vmatpush2.msra.mxu0 0.0
      %4099 = vmatprep.mubr.f32.mxu0 0.0
      %4100 = vmatmul.mubr.f32.gmra.mxu0 %v3536
      %v4101 = vpop.f32.mrf.mxu0
      %v4102 = vadd.f32 %v4031, %v4101
      %v4103 = vpop.f32.mrf.mxu0
      %v4104 = vadd.f32 %v4033, %v4103
      %4105 = vdwg.mxu0
      %4106 = vmatprep.subr.mxu0 %v882
      %4107 = vmatpush1.msra.mxu0 %v881
      %4108 = vmatprep.subr.mxu0 %v872
      %4109 = vmatpush1.msra.mxu0 %v871
      %4110 = vmatprep.subr.mxu0 %v862
      %4111 = vmatpush1.msra.mxu0 %v861
      %4112 = vmatprep.subr.mxu0 %v852
      %4113 = vmatpush1.msra.mxu0 %v851
      %4114 = vmatprep.subr.mxu0 %v842
      %4115 = vmatpush1.msra.mxu0 %v841
      %4116 = vmatprep.subr.mxu0 %v832
      %4117 = vmatpush1.msra.mxu0 %v831
      %4118 = vmatprep.subr.mxu0 %v822
      %4119 = vmatpush1.msra.mxu0 %v821
      %4120 = vmatprep.subr.mxu0 %v812
      %4121 = vmatpush1.msra.mxu0 %v811
      %4122 = vmatprep.subr.mxu0 %v802
      %4123 = vmatpush1.msra.mxu0 %v801
      %4124 = vmatprep.subr.mxu0 %v792
      %4125 = vmatpush1.msra.mxu0 %v791
      %4126 = vmatprep.subr.mxu0 %v782
      %4127 = vmatpush1.msra.mxu0 %v781
      %4128 = vmatprep.subr.mxu0 %v772
      %4129 = vmatpush1.msra.mxu0 %v771
      %4130 = vmatprep.subr.mxu0 %v762
      %4131 = vmatpush1.msra.mxu0 %v761
      %4132 = vmatprep.subr.mxu0 %v752
      %4133 = vmatpush1.msra.mxu0 %v751
      %4134 = vmatprep.subr.mxu0 %v742
      %4135 = vmatpush1.msra.mxu0 %v741
      %4136 = vmatprep.subr.mxu0 %v732
      %4137 = vmatpush1.msra.mxu0 %v731
      %4138 = vmatprep.subr.mxu0 %v1042
      %4139 = vmatpush2.msra.mxu0 %v1041
      %4140 = vmatprep.subr.mxu0 %v1032
      %4141 = vmatpush2.msra.mxu0 %v1031
      %4142 = vmatprep.subr.mxu0 %v1022
      %4143 = vmatpush2.msra.mxu0 %v1021
      %4144 = vmatprep.subr.mxu0 %v1012
      %4145 = vmatpush2.msra.mxu0 %v1011
      %4146 = vmatprep.subr.mxu0 %v1002
      %4147 = vmatpush2.msra.mxu0 %v1001
      %4148 = vmatprep.subr.mxu0 %v992
      %4149 = vmatpush2.msra.mxu0 %v991
      %4150 = vmatprep.subr.mxu0 %v982
      %4151 = vmatpush2.msra.mxu0 %v981
      %4152 = vmatprep.subr.mxu0 %v972
      %4153 = vmatpush2.msra.mxu0 %v971
      %4154 = vmatprep.subr.mxu0 %v962
      %4155 = vmatpush2.msra.mxu0 %v961
      %4156 = vmatprep.subr.mxu0 %v952
      %4157 = vmatpush2.msra.mxu0 %v951
      %4158 = vmatprep.subr.mxu0 %v942
      %4159 = vmatpush2.msra.mxu0 %v941
      %4160 = vmatprep.subr.mxu0 %v932
      %4161 = vmatpush2.msra.mxu0 %v931
      %4162 = vmatprep.subr.mxu0 %v922
      %4163 = vmatpush2.msra.mxu0 %v921
      %4164 = vmatprep.subr.mxu0 %v912
      %4165 = vmatpush2.msra.mxu0 %v911
      %4166 = vmatprep.subr.mxu0 %v902
      %4167 = vmatpush2.msra.mxu0 %v901
      %4168 = vmatprep.subr.mxu0 %v892
      %4169 = vmatpush2.msra.mxu0 %v891
      %4170 = vmatprep.mubr.f32.mxu0 %v3532
      %4171 = vmatmul.mubr.f32.gmra.mxu0 %v3531
      %v4172 = vpop.f32.mrf.mxu0
      %v4173 = vadd.f32 0.0, %v4172
      %v4174 = vpop.f32.mrf.mxu0
      %v4175 = vadd.f32 0.0, %v4174
      %4176 = vdwg.mxu0
      %4177 = vmatprep.subr.mxu0 0.0
      %4178 = vmatpush1.msra.mxu0 0.0
      %4179 = vmatprep.subr.mxu0 0.0
      %4180 = vmatpush1.msra.mxu0 0.0
      %4181 = vmatprep.subr.mxu0 0.0
      %4182 = vmatpush1.msra.mxu0 0.0
      %4183 = vmatprep.subr.mxu0 0.0
      %4184 = vmatpush1.msra.mxu0 0.0
      %4185 = vmatprep.subr.mxu0 0.0
      %4186 = vmatpush1.msra.mxu0 0.0
      %4187 = vmatprep.subr.mxu0 0.0
      %4188 = vmatpush1.msra.mxu0 0.0
      %4189 = vmatprep.subr.mxu0 0.0
      %4190 = vmatpush1.msra.mxu0 0.0
      %4191 = vmatprep.subr.mxu0 0.0
      %4192 = vmatpush1.msra.mxu0 0.0
      %4193 = vmatprep.subr.mxu0 0.0
      %4194 = vmatpush1.msra.mxu0 0.0
      %4195 = vmatprep.subr.mxu0 0.0
      %4196 = vmatpush1.msra.mxu0 0.0
      %4197 = vmatprep.subr.mxu0 0.0
      %4198 = vmatpush1.msra.mxu0 0.0
      %4199 = vmatprep.subr.mxu0 0.0
      %4200 = vmatpush1.msra.mxu0 0.0
      %4201 = vmatprep.subr.mxu0 %v1082
      %4202 = vmatpush1.msra.mxu0 %v1081
      %4203 = vmatprep.subr.mxu0 %v1072
      %4204 = vmatpush1.msra.mxu0 %v1071
      %4205 = vmatprep.subr.mxu0 %v1062
      %4206 = vmatpush1.msra.mxu0 %v1061
      %4207 = vmatprep.subr.mxu0 %v1052
      %4208 = vmatpush1.msra.mxu0 %v1051
      %4209 = vmatprep.subr.mxu0 0.0
      %4210 = vmatpush2.msra.mxu0 0.0
      %4211 = vmatprep.subr.mxu0 0.0
      %4212 = vmatpush2.msra.mxu0 0.0
      %4213 = vmatprep.subr.mxu0 0.0
      %4214 = vmatpush2.msra.mxu0 0.0
      %4215 = vmatprep.subr.mxu0 0.0
      %4216 = vmatpush2.msra.mxu0 0.0
      %4217 = vmatprep.subr.mxu0 0.0
      %4218 = vmatpush2.msra.mxu0 0.0
      %4219 = vmatprep.subr.mxu0 0.0
      %4220 = vmatpush2.msra.mxu0 0.0
      %4221 = vmatprep.subr.mxu0 0.0
      %4222 = vmatpush2.msra.mxu0 0.0
      %4223 = vmatprep.subr.mxu0 0.0
      %4224 = vmatpush2.msra.mxu0 0.0
      %4225 = vmatprep.subr.mxu0 0.0
      %4226 = vmatpush2.msra.mxu0 0.0
      %4227 = vmatprep.subr.mxu0 0.0
      %4228 = vmatpush2.msra.mxu0 0.0
      %4229 = vmatprep.subr.mxu0 0.0
      %4230 = vmatpush2.msra.mxu0 0.0
      %4231 = vmatprep.subr.mxu0 0.0
      %4232 = vmatpush2.msra.mxu0 0.0
      %4233 = vmatprep.subr.mxu0 0.0
      %4234 = vmatpush2.msra.mxu0 0.0
      %4235 = vmatprep.subr.mxu0 0.0
      %4236 = vmatpush2.msra.mxu0 0.0
      %4237 = vmatprep.subr.mxu0 0.0
      %4238 = vmatpush2.msra.mxu0 0.0
      %4239 = vmatprep.subr.mxu0 0.0
      %4240 = vmatpush2.msra.mxu0 0.0
      %4241 = vmatprep.mubr.f32.mxu0 0.0
      %4242 = vmatmul.mubr.f32.gmra.mxu0 %v3536
      %v4243 = vpop.f32.mrf.mxu0
      %v4244 = vadd.f32 %v4173, %v4243
      %v4245 = vpop.f32.mrf.mxu0
      %v4246 = vadd.f32 %v4175, %v4245
      %4247 = vdwg.mxu0
      %v4258 = vrot.slane %v3676, 4
      %v4259 = vrot.slane %v3678, 4
      %v4260 = vrot.slane %v3818, 4
      %v4261 = vrot.slane %v3820, 4
      %v4262 = vrot.slane %v3960, 4
      %v4263 = vrot.slane %v3962, 4
      %v4264 = vrot.slane %v4102, 4
      %v4265 = vrot.slane %v4104, 4
      %v4266 = vrot.slane %v4244, 4
      %v4267 = vrot.slane %v4246, 4
      %v4278 = vsel %vm2408, %v2277, %v4258
      %v4279 = vsel %vm2408, %v2278, %v4259
      %v4280 = vsel %vm2408, %v2279, %v4260
      %v4281 = vsel %vm2408, %v2280, %v4261
      %v4282 = vsel %vm2408, %v2281, %v4262
      %v4283 = vsel %vm2408, %v2282, %v4263
      %v4284 = vsel %vm2408, %v2283, %v4264
      %v4285 = vsel %vm2408, %v2284, %v4265
      %v4286 = vsel %vm2408, %v2285, %v4266
      %v4287 = vsel %vm2408, %v2286, %v4267
      %4288 = vrot.lane.b32.xlu0 %v1083, 124
      %v4289 = vpop.permute.xlu0 %4288
      %4290 = vrot.lane.b32.xlu0 %v1084, 124
      %v4291 = vpop.permute.xlu0 %4290
      %4292 = vrot.lane.b32.xlu0 %v1085, 124
      %v4293 = vpop.permute.xlu0 %4292
      %4294 = vrot.lane.b32.xlu0 %v1086, 124
      %v4295 = vpop.permute.xlu0 %4294
      %4296 = vrot.lane.b32.xlu0 %v1087, 124
      %v4297 = vpop.permute.xlu0 %4296
      %vm4298 = vcmask 97280
      %v4299 = vsel %vm4298, %v4289, 0
      %v4301 = vsel %vm4298, %v4291, 0
      %v4303 = vsel %vm4298, %v4293, 0
      %v4305 = vsel %vm4298, %v4295, 0
      %v4307 = vsel %vm4298, %v4297, 0
      %v4309 = vsel %vm2408, %v4258, 0
      %v4311 = vsel %vm2408, %v4259, 0
      %v4313 = vsel %vm2408, %v4260, 0
      %v4315 = vsel %vm2408, %v4261, 0
      %v4317 = vsel %vm2408, %v4262, 0
      %v4319 = vsel %vm2408, %v4263, 0
      %v4321 = vsel %vm2408, %v4264, 0
      %v4323 = vsel %vm2408, %v4265, 0
      %v4325 = vsel %vm2408, %v4266, 0
      %v4327 = vsel %vm2408, %v4267, 0
      %4329 = vmatprep.subr.mxu0 0.0
      %4330 = vmatpush1.msra.mxu0 0.0
      %4331 = vmatprep.subr.mxu0 0.0
      %4332 = vmatpush1.msra.mxu0 0.0
      %4333 = vmatprep.subr.mxu0 0.0
      %4334 = vmatpush1.msra.mxu0 0.0
      %4335 = vmatprep.subr.mxu0 0.0
      %4336 = vmatpush1.msra.mxu0 0.0
      %4337 = vmatprep.subr.mxu0 0.0
      %4338 = vmatpush1.msra.mxu0 0.0
      %4339 = vmatprep.subr.mxu0 0.0
      %4340 = vmatpush1.msra.mxu0 0.0
      %4341 = vmatprep.subr.mxu0 0.0
      %4342 = vmatpush1.msra.mxu0 0.0
      %4343 = vmatprep.subr.mxu0 0.0
      %4344 = vmatpush1.msra.mxu0 0.0
      %4345 = vmatprep.subr.mxu0 0.0
      %4346 = vmatpush1.msra.mxu0 0.0
      %4347 = vmatprep.subr.mxu0 0.0
      %4348 = vmatpush1.msra.mxu0 0.0
      %4349 = vmatprep.subr.mxu0 0.0
      %4350 = vmatpush1.msra.mxu0 0.0
      %4351 = vmatprep.subr.mxu0 0.0
      %4352 = vmatpush1.msra.mxu0 0.0
      %4353 = vmatprep.subr.mxu0 0.0
      %4354 = vmatpush1.msra.mxu0 0.0
      %4355 = vmatprep.subr.mxu0 0.0
      %4356 = vmatpush1.msra.mxu0 0.0
      %4357 = vmatprep.subr.mxu0 %v4311
      %4358 = vmatpush1.msra.mxu0 %v4309
      %4359 = vmatprep.subr.mxu0 %v4279
      %4360 = vmatpush1.msra.mxu0 %v4278
      %4361 = vmatprep.subr.mxu0 0.0
      %4362 = vmatpush2.msra.mxu0 0.0
      %4363 = vmatprep.subr.mxu0 0.0
      %4364 = vmatpush2.msra.mxu0 0.0
      %4365 = vmatprep.subr.mxu0 0.0
      %4366 = vmatpush2.msra.mxu0 0.0
      %4367 = vmatprep.subr.mxu0 0.0
      %4368 = vmatpush2.msra.mxu0 0.0
      %4369 = vmatprep.subr.mxu0 0.0
      %4370 = vmatpush2.msra.mxu0 0.0
      %4371 = vmatprep.subr.mxu0 0.0
      %4372 = vmatpush2.msra.mxu0 0.0
      %4373 = vmatprep.subr.mxu0 0.0
      %4374 = vmatpush2.msra.mxu0 0.0
      %4375 = vmatprep.subr.mxu0 0.0
      %4376 = vmatpush2.msra.mxu0 0.0
      %4377 = vmatprep.subr.mxu0 0.0
      %4378 = vmatpush2.msra.mxu0 0.0
      %4379 = vmatprep.subr.mxu0 0.0
      %4380 = vmatpush2.msra.mxu0 0.0
      %4381 = vmatprep.subr.mxu0 0.0
      %4382 = vmatpush2.msra.mxu0 0.0
      %4383 = vmatprep.subr.mxu0 0.0
      %4384 = vmatpush2.msra.mxu0 0.0
      %4385 = vmatprep.subr.mxu0 0.0
      %4386 = vmatpush2.msra.mxu0 0.0
      %4387 = vmatprep.subr.mxu0 0.0
      %4388 = vmatpush2.msra.mxu0 0.0
      %4389 = vmatprep.subr.mxu0 0.0
      %4390 = vmatpush2.msra.mxu0 0.0
      %4391 = vmatprep.subr.mxu0 0.0
      %4392 = vmatpush2.msra.mxu0 0.0
      %4393 = vmatprep.mubr.f32.mxu0 0.0
      %4394 = vmatmul.mubr.f32.gmra.mxu0 %v4299
      %v4395 = vpop.f32.mrf.mxu0
      %v4396 = vadd.f32 0.0, %v4395
      %v4397 = vpop.f32.mrf.mxu0
      %v4398 = vadd.f32 0.0, %v4397
      %4399 = vmatprep.mubr.f32.mxu0 0.0
      %4400 = vmatmul.mubr.f32.gmra.mxu0 %v4301
      %v4401 = vpop.f32.mrf.mxu0
      %v4402 = vadd.f32 0.0, %v4401
      %v4403 = vpop.f32.mrf.mxu0
      %v4404 = vadd.f32 0.0, %v4403
      %4405 = vmatprep.mubr.f32.mxu0 0.0
      %4406 = vmatmul.mubr.f32.gmra.mxu0 %v4303
      %v4407 = vpop.f32.mrf.mxu0
      %v4408 = vadd.f32 0.0, %v4407
      %v4409 = vpop.f32.mrf.mxu0
      %v4410 = vadd.f32 0.0, %v4409
      %4411 = vmatprep.mubr.f32.mxu0 0.0
      %4412 = vmatmul.mubr.f32.gmra.mxu0 %v4305
      %v4413 = vpop.f32.mrf.mxu0
      %v4414 = vadd.f32 0.0, %v4413
      %v4415 = vpop.f32.mrf.mxu0
      %v4416 = vadd.f32 0.0, %v4415
      %4417 = vmatprep.mubr.f32.mxu0 0.0
      %4418 = vmatmul.mubr.f32.gmra.mxu0 %v4307
      %v4419 = vpop.f32.mrf.mxu0
      %v4420 = vadd.f32 0.0, %v4419
      %v4421 = vpop.f32.mrf.mxu0
      %v4422 = vadd.f32 0.0, %v4421
      %4423 = vdwg.mxu0
      %4424 = vmatprep.subr.mxu0 0.0
      %4425 = vmatpush1.msra.mxu0 0.0
      %4426 = vmatprep.subr.mxu0 0.0
      %4427 = vmatpush1.msra.mxu0 0.0
      %4428 = vmatprep.subr.mxu0 0.0
      %4429 = vmatpush1.msra.mxu0 0.0
      %4430 = vmatprep.subr.mxu0 0.0
      %4431 = vmatpush1.msra.mxu0 0.0
      %4432 = vmatprep.subr.mxu0 0.0
      %4433 = vmatpush1.msra.mxu0 0.0
      %4434 = vmatprep.subr.mxu0 0.0
      %4435 = vmatpush1.msra.mxu0 0.0
      %4436 = vmatprep.subr.mxu0 0.0
      %4437 = vmatpush1.msra.mxu0 0.0
      %4438 = vmatprep.subr.mxu0 0.0
      %4439 = vmatpush1.msra.mxu0 0.0
      %4440 = vmatprep.subr.mxu0 0.0
      %4441 = vmatpush1.msra.mxu0 0.0
      %4442 = vmatprep.subr.mxu0 0.0
      %4443 = vmatpush1.msra.mxu0 0.0
      %4444 = vmatprep.subr.mxu0 0.0
      %4445 = vmatpush1.msra.mxu0 0.0
      %4446 = vmatprep.subr.mxu0 0.0
      %4447 = vmatpush1.msra.mxu0 0.0
      %4448 = vmatprep.subr.mxu0 0.0
      %4449 = vmatpush1.msra.mxu0 0.0
      %4450 = vmatprep.subr.mxu0 0.0
      %4451 = vmatpush1.msra.mxu0 0.0
      %4452 = vmatprep.subr.mxu0 %v4315
      %4453 = vmatpush1.msra.mxu0 %v4313
      %4454 = vmatprep.subr.mxu0 %v4281
      %4455 = vmatpush1.msra.mxu0 %v4280
      %4456 = vmatprep.subr.mxu0 0.0
      %4457 = vmatpush2.msra.mxu0 0.0
      %4458 = vmatprep.subr.mxu0 0.0
      %4459 = vmatpush2.msra.mxu0 0.0
      %4460 = vmatprep.subr.mxu0 0.0
      %4461 = vmatpush2.msra.mxu0 0.0
      %4462 = vmatprep.subr.mxu0 0.0
      %4463 = vmatpush2.msra.mxu0 0.0
      %4464 = vmatprep.subr.mxu0 0.0
      %4465 = vmatpush2.msra.mxu0 0.0
      %4466 = vmatprep.subr.mxu0 0.0
      %4467 = vmatpush2.msra.mxu0 0.0
      %4468 = vmatprep.subr.mxu0 0.0
      %4469 = vmatpush2.msra.mxu0 0.0
      %4470 = vmatprep.subr.mxu0 0.0
      %4471 = vmatpush2.msra.mxu0 0.0
      %4472 = vmatprep.subr.mxu0 0.0
      %4473 = vmatpush2.msra.mxu0 0.0
      %4474 = vmatprep.subr.mxu0 0.0
      %4475 = vmatpush2.msra.mxu0 0.0
      %4476 = vmatprep.subr.mxu0 0.0
      %4477 = vmatpush2.msra.mxu0 0.0
      %4478 = vmatprep.subr.mxu0 0.0
      %4479 = vmatpush2.msra.mxu0 0.0
      %4480 = vmatprep.subr.mxu0 0.0
      %4481 = vmatpush2.msra.mxu0 0.0
      %4482 = vmatprep.subr.mxu0 0.0
      %4483 = vmatpush2.msra.mxu0 0.0
      %4484 = vmatprep.subr.mxu0 0.0
      %4485 = vmatpush2.msra.mxu0 0.0
      %4486 = vmatprep.subr.mxu0 0.0
      %4487 = vmatpush2.msra.mxu0 0.0
      %4488 = vmatprep.mubr.f32.mxu0 0.0
      %4489 = vmatmul.mubr.f32.gmra.mxu0 %v4299
      %v4490 = vpop.f32.mrf.mxu0
      %v4491 = vadd.f32 0.0, %v4490
      %v4492 = vpop.f32.mrf.mxu0
      %v4493 = vadd.f32 0.0, %v4492
      %4494 = vmatprep.mubr.f32.mxu0 0.0
      %4495 = vmatmul.mubr.f32.gmra.mxu0 %v4301
      %v4496 = vpop.f32.mrf.mxu0
      %v4497 = vadd.f32 0.0, %v4496
      %v4498 = vpop.f32.mrf.mxu0
      %v4499 = vadd.f32 0.0, %v4498
      %4500 = vmatprep.mubr.f32.mxu0 0.0
      %4501 = vmatmul.mubr.f32.gmra.mxu0 %v4303
      %v4502 = vpop.f32.mrf.mxu0
      %v4503 = vadd.f32 0.0, %v4502
      %v4504 = vpop.f32.mrf.mxu0
      %v4505 = vadd.f32 0.0, %v4504
      %4506 = vmatprep.mubr.f32.mxu0 0.0
      %4507 = vmatmul.mubr.f32.gmra.mxu0 %v4305
      %v4508 = vpop.f32.mrf.mxu0
      %v4509 = vadd.f32 0.0, %v4508
      %v4510 = vpop.f32.mrf.mxu0
      %v4511 = vadd.f32 0.0, %v4510
      %4512 = vmatprep.mubr.f32.mxu0 0.0
      %4513 = vmatmul.mubr.f32.gmra.mxu0 %v4307
      %v4514 = vpop.f32.mrf.mxu0
      %v4515 = vadd.f32 0.0, %v4514
      %v4516 = vpop.f32.mrf.mxu0
      %v4517 = vadd.f32 0.0, %v4516
      %4518 = vdwg.mxu0
      %4519 = vmatprep.subr.mxu0 0.0
      %4520 = vmatpush1.msra.mxu0 0.0
      %4521 = vmatprep.subr.mxu0 0.0
      %4522 = vmatpush1.msra.mxu0 0.0
      %4523 = vmatprep.subr.mxu0 0.0
      %4524 = vmatpush1.msra.mxu0 0.0
      %4525 = vmatprep.subr.mxu0 0.0
      %4526 = vmatpush1.msra.mxu0 0.0
      %4527 = vmatprep.subr.mxu0 0.0
      %4528 = vmatpush1.msra.mxu0 0.0
      %4529 = vmatprep.subr.mxu0 0.0
      %4530 = vmatpush1.msra.mxu0 0.0
      %4531 = vmatprep.subr.mxu0 0.0
      %4532 = vmatpush1.msra.mxu0 0.0
      %4533 = vmatprep.subr.mxu0 0.0
      %4534 = vmatpush1.msra.mxu0 0.0
      %4535 = vmatprep.subr.mxu0 0.0
      %4536 = vmatpush1.msra.mxu0 0.0
      %4537 = vmatprep.subr.mxu0 0.0
      %4538 = vmatpush1.msra.mxu0 0.0
      %4539 = vmatprep.subr.mxu0 0.0
      %4540 = vmatpush1.msra.mxu0 0.0
      %4541 = vmatprep.subr.mxu0 0.0
      %4542 = vmatpush1.msra.mxu0 0.0
      %4543 = vmatprep.subr.mxu0 0.0
      %4544 = vmatpush1.msra.mxu0 0.0
      %4545 = vmatprep.subr.mxu0 0.0
      %4546 = vmatpush1.msra.mxu0 0.0
      %4547 = vmatprep.subr.mxu0 %v4319
      %4548 = vmatpush1.msra.mxu0 %v4317
      %4549 = vmatprep.subr.mxu0 %v4283
      %4550 = vmatpush1.msra.mxu0 %v4282
      %4551 = vmatprep.subr.mxu0 0.0
      %4552 = vmatpush2.msra.mxu0 0.0
      %4553 = vmatprep.subr.mxu0 0.0
      %4554 = vmatpush2.msra.mxu0 0.0
      %4555 = vmatprep.subr.mxu0 0.0
      %4556 = vmatpush2.msra.mxu0 0.0
      %4557 = vmatprep.subr.mxu0 0.0
      %4558 = vmatpush2.msra.mxu0 0.0
      %4559 = vmatprep.subr.mxu0 0.0
      %4560 = vmatpush2.msra.mxu0 0.0
      %4561 = vmatprep.subr.mxu0 0.0
      %4562 = vmatpush2.msra.mxu0 0.0
      %4563 = vmatprep.subr.mxu0 0.0
      %4564 = vmatpush2.msra.mxu0 0.0
      %4565 = vmatprep.subr.mxu0 0.0
      %4566 = vmatpush2.msra.mxu0 0.0
      %4567 = vmatprep.subr.mxu0 0.0
      %4568 = vmatpush2.msra.mxu0 0.0
      %4569 = vmatprep.subr.mxu0 0.0
      %4570 = vmatpush2.msra.mxu0 0.0
      %4571 = vmatprep.subr.mxu0 0.0
      %4572 = vmatpush2.msra.mxu0 0.0
      %4573 = vmatprep.subr.mxu0 0.0
      %4574 = vmatpush2.msra.mxu0 0.0
      %4575 = vmatprep.subr.mxu0 0.0
      %4576 = vmatpush2.msra.mxu0 0.0
      %4577 = vmatprep.subr.mxu0 0.0
      %4578 = vmatpush2.msra.mxu0 0.0
      %4579 = vmatprep.subr.mxu0 0.0
      %4580 = vmatpush2.msra.mxu0 0.0
      %4581 = vmatprep.subr.mxu0 0.0
      %4582 = vmatpush2.msra.mxu0 0.0
      %4583 = vmatprep.mubr.f32.mxu0 0.0
      %4584 = vmatmul.mubr.f32.gmra.mxu0 %v4299
      %v4585 = vpop.f32.mrf.mxu0
      %v4586 = vadd.f32 0.0, %v4585
      %v4587 = vpop.f32.mrf.mxu0
      %v4588 = vadd.f32 0.0, %v4587
      %4589 = vmatprep.mubr.f32.mxu0 0.0
      %4590 = vmatmul.mubr.f32.gmra.mxu0 %v4301
      %v4591 = vpop.f32.mrf.mxu0
      %v4592 = vadd.f32 0.0, %v4591
      %v4593 = vpop.f32.mrf.mxu0
      %v4594 = vadd.f32 0.0, %v4593
      %4595 = vmatprep.mubr.f32.mxu0 0.0
      %4596 = vmatmul.mubr.f32.gmra.mxu0 %v4303
      %v4597 = vpop.f32.mrf.mxu0
      %v4598 = vadd.f32 0.0, %v4597
      %v4599 = vpop.f32.mrf.mxu0
      %v4600 = vadd.f32 0.0, %v4599
      %4601 = vmatprep.mubr.f32.mxu0 0.0
      %4602 = vmatmul.mubr.f32.gmra.mxu0 %v4305
      %v4603 = vpop.f32.mrf.mxu0
      %v4604 = vadd.f32 0.0, %v4603
      %v4605 = vpop.f32.mrf.mxu0
      %v4606 = vadd.f32 0.0, %v4605
      %4607 = vmatprep.mubr.f32.mxu0 0.0
      %4608 = vmatmul.mubr.f32.gmra.mxu0 %v4307
      %v4609 = vpop.f32.mrf.mxu0
      %v4610 = vadd.f32 0.0, %v4609
      %v4611 = vpop.f32.mrf.mxu0
      %v4612 = vadd.f32 0.0, %v4611
      %4613 = vdwg.mxu0
      %4614 = vmatprep.subr.mxu0 0.0
      %4615 = vmatpush1.msra.mxu0 0.0
      %4616 = vmatprep.subr.mxu0 0.0
      %4617 = vmatpush1.msra.mxu0 0.0
      %4618 = vmatprep.subr.mxu0 0.0
      %4619 = vmatpush1.msra.mxu0 0.0
      %4620 = vmatprep.subr.mxu0 0.0
      %4621 = vmatpush1.msra.mxu0 0.0
      %4622 = vmatprep.subr.mxu0 0.0
      %4623 = vmatpush1.msra.mxu0 0.0
      %4624 = vmatprep.subr.mxu0 0.0
      %4625 = vmatpush1.msra.mxu0 0.0
      %4626 = vmatprep.subr.mxu0 0.0
      %4627 = vmatpush1.msra.mxu0 0.0
      %4628 = vmatprep.subr.mxu0 0.0
      %4629 = vmatpush1.msra.mxu0 0.0
      %4630 = vmatprep.subr.mxu0 0.0
      %4631 = vmatpush1.msra.mxu0 0.0
      %4632 = vmatprep.subr.mxu0 0.0
      %4633 = vmatpush1.msra.mxu0 0.0
      %4634 = vmatprep.subr.mxu0 0.0
      %4635 = vmatpush1.msra.mxu0 0.0
      %4636 = vmatprep.subr.mxu0 0.0
      %4637 = vmatpush1.msra.mxu0 0.0
      %4638 = vmatprep.subr.mxu0 0.0
      %4639 = vmatpush1.msra.mxu0 0.0
      %4640 = vmatprep.subr.mxu0 0.0
      %4641 = vmatpush1.msra.mxu0 0.0
      %4642 = vmatprep.subr.mxu0 %v4323
      %4643 = vmatpush1.msra.mxu0 %v4321
      %4644 = vmatprep.subr.mxu0 %v4285
      %4645 = vmatpush1.msra.mxu0 %v4284
      %4646 = vmatprep.subr.mxu0 0.0
      %4647 = vmatpush2.msra.mxu0 0.0
      %4648 = vmatprep.subr.mxu0 0.0
      %4649 = vmatpush2.msra.mxu0 0.0
      %4650 = vmatprep.subr.mxu0 0.0
      %4651 = vmatpush2.msra.mxu0 0.0
      %4652 = vmatprep.subr.mxu0 0.0
      %4653 = vmatpush2.msra.mxu0 0.0
      %4654 = vmatprep.subr.mxu0 0.0
      %4655 = vmatpush2.msra.mxu0 0.0
      %4656 = vmatprep.subr.mxu0 0.0
      %4657 = vmatpush2.msra.mxu0 0.0
      %4658 = vmatprep.subr.mxu0 0.0
      %4659 = vmatpush2.msra.mxu0 0.0
      %4660 = vmatprep.subr.mxu0 0.0
      %4661 = vmatpush2.msra.mxu0 0.0
      %4662 = vmatprep.subr.mxu0 0.0
      %4663 = vmatpush2.msra.mxu0 0.0
      %4664 = vmatprep.subr.mxu0 0.0
      %4665 = vmatpush2.msra.mxu0 0.0
      %4666 = vmatprep.subr.mxu0 0.0
      %4667 = vmatpush2.msra.mxu0 0.0
      %4668 = vmatprep.subr.mxu0 0.0
      %4669 = vmatpush2.msra.mxu0 0.0
      %4670 = vmatprep.subr.mxu0 0.0
      %4671 = vmatpush2.msra.mxu0 0.0
      %4672 = vmatprep.subr.mxu0 0.0
      %4673 = vmatpush2.msra.mxu0 0.0
      %4674 = vmatprep.subr.mxu0 0.0
      %4675 = vmatpush2.msra.mxu0 0.0
      %4676 = vmatprep.subr.mxu0 0.0
      %4677 = vmatpush2.msra.mxu0 0.0
      %4678 = vmatprep.mubr.f32.mxu0 0.0
      %4679 = vmatmul.mubr.f32.gmra.mxu0 %v4299
      %v4680 = vpop.f32.mrf.mxu0
      %v4681 = vadd.f32 0.0, %v4680
      %v4682 = vpop.f32.mrf.mxu0
      %v4683 = vadd.f32 0.0, %v4682
      %4684 = vmatprep.mubr.f32.mxu0 0.0
      %4685 = vmatmul.mubr.f32.gmra.mxu0 %v4301
      %v4686 = vpop.f32.mrf.mxu0
      %v4687 = vadd.f32 0.0, %v4686
      %v4688 = vpop.f32.mrf.mxu0
      %v4689 = vadd.f32 0.0, %v4688
      %4690 = vmatprep.mubr.f32.mxu0 0.0
      %4691 = vmatmul.mubr.f32.gmra.mxu0 %v4303
      %v4692 = vpop.f32.mrf.mxu0
      %v4693 = vadd.f32 0.0, %v4692
      %v4694 = vpop.f32.mrf.mxu0
      %v4695 = vadd.f32 0.0, %v4694
      %4696 = vmatprep.mubr.f32.mxu0 0.0
      %4697 = vmatmul.mubr.f32.gmra.mxu0 %v4305
      %v4698 = vpop.f32.mrf.mxu0
      %v4699 = vadd.f32 0.0, %v4698
      %v4700 = vpop.f32.mrf.mxu0
      %v4701 = vadd.f32 0.0, %v4700
      %4702 = vmatprep.mubr.f32.mxu0 0.0
      %4703 = vmatmul.mubr.f32.gmra.mxu0 %v4307
      %v4704 = vpop.f32.mrf.mxu0
      %v4705 = vadd.f32 0.0, %v4704
      %v4706 = vpop.f32.mrf.mxu0
      %v4707 = vadd.f32 0.0, %v4706
      %4708 = vdwg.mxu0
      %4709 = vmatprep.subr.mxu0 0.0
      %4710 = vmatpush1.msra.mxu0 0.0
      %4711 = vmatprep.subr.mxu0 0.0
      %4712 = vmatpush1.msra.mxu0 0.0
      %4713 = vmatprep.subr.mxu0 0.0
      %4714 = vmatpush1.msra.mxu0 0.0
      %4715 = vmatprep.subr.mxu0 0.0
      %4716 = vmatpush1.msra.mxu0 0.0
      %4717 = vmatprep.subr.mxu0 0.0
      %4718 = vmatpush1.msra.mxu0 0.0
      %4719 = vmatprep.subr.mxu0 0.0
      %4720 = vmatpush1.msra.mxu0 0.0
      %4721 = vmatprep.subr.mxu0 0.0
      %4722 = vmatpush1.msra.mxu0 0.0
      %4723 = vmatprep.subr.mxu0 0.0
      %4724 = vmatpush1.msra.mxu0 0.0
      %4725 = vmatprep.subr.mxu0 0.0
      %4726 = vmatpush1.msra.mxu0 0.0
      %4727 = vmatprep.subr.mxu0 0.0
      %4728 = vmatpush1.msra.mxu0 0.0
      %4729 = vmatprep.subr.mxu0 0.0
      %4730 = vmatpush1.msra.mxu0 0.0
      %4731 = vmatprep.subr.mxu0 0.0
      %4732 = vmatpush1.msra.mxu0 0.0
      %4733 = vmatprep.subr.mxu0 0.0
      %4734 = vmatpush1.msra.mxu0 0.0
      %4735 = vmatprep.subr.mxu0 0.0
      %4736 = vmatpush1.msra.mxu0 0.0
      %4737 = vmatprep.subr.mxu0 %v4327
      %4738 = vmatpush1.msra.mxu0 %v4325
      %4739 = vmatprep.subr.mxu0 %v4287
      %4740 = vmatpush1.msra.mxu0 %v4286
      %4741 = vmatprep.subr.mxu0 0.0
      %4742 = vmatpush2.msra.mxu0 0.0
      %4743 = vmatprep.subr.mxu0 0.0
      %4744 = vmatpush2.msra.mxu0 0.0
      %4745 = vmatprep.subr.mxu0 0.0
      %4746 = vmatpush2.msra.mxu0 0.0
      %4747 = vmatprep.subr.mxu0 0.0
      %4748 = vmatpush2.msra.mxu0 0.0
      %4749 = vmatprep.subr.mxu0 0.0
      %4750 = vmatpush2.msra.mxu0 0.0
      %4751 = vmatprep.subr.mxu0 0.0
      %4752 = vmatpush2.msra.mxu0 0.0
      %4753 = vmatprep.subr.mxu0 0.0
      %4754 = vmatpush2.msra.mxu0 0.0
      %4755 = vmatprep.subr.mxu0 0.0
      %4756 = vmatpush2.msra.mxu0 0.0
      %4757 = vmatprep.subr.mxu0 0.0
      %4758 = vmatpush2.msra.mxu0 0.0
      %4759 = vmatprep.subr.mxu0 0.0
      %4760 = vmatpush2.msra.mxu0 0.0
      %4761 = vmatprep.subr.mxu0 0.0
      %4762 = vmatpush2.msra.mxu0 0.0
      %4763 = vmatprep.subr.mxu0 0.0
      %4764 = vmatpush2.msra.mxu0 0.0
      %4765 = vmatprep.subr.mxu0 0.0
      %4766 = vmatpush2.msra.mxu0 0.0
      %4767 = vmatprep.subr.mxu0 0.0
      %4768 = vmatpush2.msra.mxu0 0.0
      %4769 = vmatprep.subr.mxu0 0.0
      %4770 = vmatpush2.msra.mxu0 0.0
      %4771 = vmatprep.subr.mxu0 0.0
      %4772 = vmatpush2.msra.mxu0 0.0
      %4773 = vmatprep.mubr.f32.mxu0 0.0
      %4774 = vmatmul.mubr.f32.gmra.mxu0 %v4299
      %v4775 = vpop.f32.mrf.mxu0
      %v4776 = vadd.f32 0.0, %v4775
      %v4777 = vpop.f32.mrf.mxu0
      %v4778 = vadd.f32 0.0, %v4777
      %4779 = vmatprep.mubr.f32.mxu0 0.0
      %4780 = vmatmul.mubr.f32.gmra.mxu0 %v4301
      %v4781 = vpop.f32.mrf.mxu0
      %v4782 = vadd.f32 0.0, %v4781
      %v4783 = vpop.f32.mrf.mxu0
      %v4784 = vadd.f32 0.0, %v4783
      %4785 = vmatprep.mubr.f32.mxu0 0.0
      %4786 = vmatmul.mubr.f32.gmra.mxu0 %v4303
      %v4787 = vpop.f32.mrf.mxu0
      %v4788 = vadd.f32 0.0, %v4787
      %v4789 = vpop.f32.mrf.mxu0
      %v4790 = vadd.f32 0.0, %v4789
      %4791 = vmatprep.mubr.f32.mxu0 0.0
      %4792 = vmatmul.mubr.f32.gmra.mxu0 %v4305
      %v4793 = vpop.f32.mrf.mxu0
      %v4794 = vadd.f32 0.0, %v4793
      %v4795 = vpop.f32.mrf.mxu0
      %v4796 = vadd.f32 0.0, %v4795
      %4797 = vmatprep.mubr.f32.mxu0 0.0
      %4798 = vmatmul.mubr.f32.gmra.mxu0 %v4307
      %v4799 = vpop.f32.mrf.mxu0
      %v4800 = vadd.f32 0.0, %v4799
      %v4801 = vpop.f32.mrf.mxu0
      %v4802 = vadd.f32 0.0, %v4801
      %4803 = vdwg.mxu0
      %v4814 = vrot.slane %v4396, 4
      %v4815 = vrot.slane %v4398, 4
      %v4816 = vrot.slane %v4491, 4
      %v4817 = vrot.slane %v4493, 4
      %v4818 = vrot.slane %v4586, 4
      %v4819 = vrot.slane %v4588, 4
      %v4820 = vrot.slane %v4681, 4
      %v4821 = vrot.slane %v4683, 4
      %v4822 = vrot.slane %v4776, 4
      %v4823 = vrot.slane %v4778, 4
      %4824 = vrot.lane.b32.xlu0 %v4814, 127
      %v4825 = vpop.permute.xlu0 %4824
      %4826 = vrot.lane.b32.xlu0 %v4815, 127
      %v4827 = vpop.permute.xlu0 %4826
      %4828 = vrot.lane.b32.xlu0 %v4816, 127
      %v4829 = vpop.permute.xlu0 %4828
      %4830 = vrot.lane.b32.xlu0 %v4817, 127
      %v4831 = vpop.permute.xlu0 %4830
      %4832 = vrot.lane.b32.xlu0 %v4818, 127
      %v4833 = vpop.permute.xlu0 %4832
      %4834 = vrot.lane.b32.xlu0 %v4819, 127
      %v4835 = vpop.permute.xlu0 %4834
      %4836 = vrot.lane.b32.xlu0 %v4820, 127
      %v4837 = vpop.permute.xlu0 %4836
      %4838 = vrot.lane.b32.xlu0 %v4821, 127
      %v4839 = vpop.permute.xlu0 %4838
      %4840 = vrot.lane.b32.xlu0 %v4822, 127
      %v4841 = vpop.permute.xlu0 %4840
      %4842 = vrot.lane.b32.xlu0 %v4823, 127
      %v4843 = vpop.permute.xlu0 %4842
      %v4844 = vsel %vm1699, %v4825, %v4827
      %v4845 = vsel %vm1699, %v4827, %v4829
      %v4846 = vsel %vm1699, %v4829, %v4831
      %v4847 = vsel %vm1699, %v4831, %v4833
      %v4848 = vsel %vm1699, %v4833, %v4835
      %v4849 = vsel %vm1699, %v4835, %v4837
      %v4850 = vsel %vm1699, %v4837, %v4839
      %v4851 = vsel %vm1699, %v4839, %v4841
      %v4852 = vsel %vm1699, %v4841, %v4843
      %v4863 = vadd.f32 %v4396, %v4844
      %v4864 = vadd.f32 %v4398, %v4845
      %v4865 = vadd.f32 %v4491, %v4846
      %v4866 = vadd.f32 %v4493, %v4847
      %v4867 = vadd.f32 %v4586, %v4848
      %v4868 = vadd.f32 %v4588, %v4849
      %v4869 = vadd.f32 %v4681, %v4850
      %v4870 = vadd.f32 %v4683, %v4851
      %v4871 = vadd.f32 %v4776, %v4852
      %v4872 = vadd.f32 %v4778, %v4843
      %4883 = vrot.lane.b32.xlu0 %v4402, 126
      %v4884 = vpop.permute.xlu0 %4883
      %4885 = vrot.lane.b32.xlu0 %v4404, 126
      %v4886 = vpop.permute.xlu0 %4885
      %4887 = vrot.lane.b32.xlu0 %v4497, 126
      %v4888 = vpop.permute.xlu0 %4887
      %4889 = vrot.lane.b32.xlu0 %v4499, 126
      %v4890 = vpop.permute.xlu0 %4889
      %4891 = vrot.lane.b32.xlu0 %v4592, 126
      %v4892 = vpop.permute.xlu0 %4891
      %4893 = vrot.lane.b32.xlu0 %v4594, 126
      %v4894 = vpop.permute.xlu0 %4893
      %4895 = vrot.lane.b32.xlu0 %v4687, 126
      %v4896 = vpop.permute.xlu0 %4895
      %4897 = vrot.lane.b32.xlu0 %v4689, 126
      %v4898 = vpop.permute.xlu0 %4897
      %4899 = vrot.lane.b32.xlu0 %v4782, 126
      %v4900 = vpop.permute.xlu0 %4899
      %4901 = vrot.lane.b32.xlu0 %v4784, 126
      %v4902 = vpop.permute.xlu0 %4901
      %v4903 = vsel %vm1759, %v4884, %v4886
      %v4904 = vsel %vm1759, %v4886, %v4888
      %v4905 = vsel %vm1759, %v4888, %v4890
      %v4906 = vsel %vm1759, %v4890, %v4892
      %v4907 = vsel %vm1759, %v4892, %v4894
      %v4908 = vsel %vm1759, %v4894, %v4896
      %v4909 = vsel %vm1759, %v4896, %v4898
      %v4910 = vsel %vm1759, %v4898, %v4900
      %v4911 = vsel %vm1759, %v4900, %v4902
      %v4922 = vadd.f32 %v4863, %v4903
      %v4923 = vadd.f32 %v4864, %v4904
      %v4924 = vadd.f32 %v4865, %v4905
      %v4925 = vadd.f32 %v4866, %v4906
      %v4926 = vadd.f32 %v4867, %v4907
      %v4927 = vadd.f32 %v4868, %v4908
      %v4928 = vadd.f32 %v4869, %v4909
      %v4929 = vadd.f32 %v4870, %v4910
      %v4930 = vadd.f32 %v4871, %v4911
      %v4931 = vadd.f32 %v4872, %v4902
      %v4932 = vrot.slane %v4402, 4
      %v4933 = vrot.slane %v4404, 4
      %v4934 = vrot.slane %v4497, 4
      %v4935 = vrot.slane %v4499, 4
      %v4936 = vrot.slane %v4592, 4
      %v4937 = vrot.slane %v4594, 4
      %v4938 = vrot.slane %v4687, 4
      %v4939 = vrot.slane %v4689, 4
      %v4940 = vrot.slane %v4782, 4
      %v4941 = vrot.slane %v4784, 4
      %4942 = vrot.lane.b32.xlu0 %v4932, 93
      %v4943 = vpop.permute.xlu0 %4942
      %4944 = vrot.lane.b32.xlu0 %v4933, 93
      %v4945 = vpop.permute.xlu0 %4944
      %4946 = vrot.lane.b32.xlu0 %v4934, 93
      %v4947 = vpop.permute.xlu0 %4946
      %4948 = vrot.lane.b32.xlu0 %v4935, 93
      %v4949 = vpop.permute.xlu0 %4948
      %4950 = vrot.lane.b32.xlu0 %v4936, 93
      %v4951 = vpop.permute.xlu0 %4950
      %4952 = vrot.lane.b32.xlu0 %v4937, 93
      %v4953 = vpop.permute.xlu0 %4952
      %4954 = vrot.lane.b32.xlu0 %v4938, 93
      %v4955 = vpop.permute.xlu0 %4954
      %4956 = vrot.lane.b32.xlu0 %v4939, 93
      %v4957 = vpop.permute.xlu0 %4956
      %4958 = vrot.lane.b32.xlu0 %v4940, 93
      %v4959 = vpop.permute.xlu0 %4958
      %4960 = vrot.lane.b32.xlu0 %v4941, 93
      %v4961 = vpop.permute.xlu0 %4960
      %v4962 = vsel %vm1819, %v4943, %v4945
      %v4963 = vsel %vm1819, %v4945, %v4947
      %v4964 = vsel %vm1819, %v4947, %v4949
      %v4965 = vsel %vm1819, %v4949, %v4951
      %v4966 = vsel %vm1819, %v4951, %v4953
      %v4967 = vsel %vm1819, %v4953, %v4955
      %v4968 = vsel %vm1819, %v4955, %v4957
      %v4969 = vsel %vm1819, %v4957, %v4959
      %v4970 = vsel %vm1819, %v4959, %v4961
      %v4981 = vadd.f32 %v4922, %v4962
      %v4982 = vadd.f32 %v4923, %v4963
      %v4983 = vadd.f32 %v4924, %v4964
      %v4984 = vadd.f32 %v4925, %v4965
      %v4985 = vadd.f32 %v4926, %v4966
      %v4986 = vadd.f32 %v4927, %v4967
      %v4987 = vadd.f32 %v4928, %v4968
      %v4988 = vadd.f32 %v4929, %v4969
      %v4989 = vadd.f32 %v4930, %v4970
      %v4990 = vadd.f32 %v4931, %v4961
      %5001 = vrot.lane.b32.xlu0 %v4408, 92
      %v5002 = vpop.permute.xlu0 %5001
      %5003 = vrot.lane.b32.xlu0 %v4410, 92
      %v5004 = vpop.permute.xlu0 %5003
      %5005 = vrot.lane.b32.xlu0 %v4503, 92
      %v5006 = vpop.permute.xlu0 %5005
      %5007 = vrot.lane.b32.xlu0 %v4505, 92
      %v5008 = vpop.permute.xlu0 %5007
      %5009 = vrot.lane.b32.xlu0 %v4598, 92
      %v5010 = vpop.permute.xlu0 %5009
      %5011 = vrot.lane.b32.xlu0 %v4600, 92
      %v5012 = vpop.permute.xlu0 %5011
      %5013 = vrot.lane.b32.xlu0 %v4693, 92
      %v5014 = vpop.permute.xlu0 %5013
      %5015 = vrot.lane.b32.xlu0 %v4695, 92
      %v5016 = vpop.permute.xlu0 %5015
      %5017 = vrot.lane.b32.xlu0 %v4788, 92
      %v5018 = vpop.permute.xlu0 %5017
      %5019 = vrot.lane.b32.xlu0 %v4790, 92
      %v5020 = vpop.permute.xlu0 %5019
      %v5021 = vsel %vm1879, %v5002, %v5004
      %v5022 = vsel %vm1879, %v5004, %v5006
      %v5023 = vsel %vm1879, %v5006, %v5008
      %v5024 = vsel %vm1879, %v5008, %v5010
      %v5025 = vsel %vm1879, %v5010, %v5012
      %v5026 = vsel %vm1879, %v5012, %v5014
      %v5027 = vsel %vm1879, %v5014, %v5016
      %v5028 = vsel %vm1879, %v5016, %v5018
      %v5029 = vsel %vm1879, %v5018, %v5020
      %v5040 = vadd.f32 %v4981, %v5021
      %v5041 = vadd.f32 %v4982, %v5022
      %v5042 = vadd.f32 %v4983, %v5023
      %v5043 = vadd.f32 %v4984, %v5024
      %v5044 = vadd.f32 %v4985, %v5025
      %v5045 = vadd.f32 %v4986, %v5026
      %v5046 = vadd.f32 %v4987, %v5027
      %v5047 = vadd.f32 %v4988, %v5028
      %v5048 = vadd.f32 %v4989, %v5029
      %v5049 = vadd.f32 %v4990, %v5020
      %v5050 = vrot.slane %v4408, 4
      %v5051 = vrot.slane %v4410, 4
      %v5052 = vrot.slane %v4503, 4
      %v5053 = vrot.slane %v4505, 4
      %v5054 = vrot.slane %v4598, 4
      %v5055 = vrot.slane %v4600, 4
      %v5056 = vrot.slane %v4693, 4
      %v5057 = vrot.slane %v4695, 4
      %v5058 = vrot.slane %v4788, 4
      %v5059 = vrot.slane %v4790, 4
      %5060 = vrot.lane.b32.xlu0 %v5050, 91
      %v5061 = vpop.permute.xlu0 %5060
      %5062 = vrot.lane.b32.xlu0 %v5051, 91
      %v5063 = vpop.permute.xlu0 %5062
      %5064 = vrot.lane.b32.xlu0 %v5052, 91
      %v5065 = vpop.permute.xlu0 %5064
      %5066 = vrot.lane.b32.xlu0 %v5053, 91
      %v5067 = vpop.permute.xlu0 %5066
      %5068 = vrot.lane.b32.xlu0 %v5054, 91
      %v5069 = vpop.permute.xlu0 %5068
      %5070 = vrot.lane.b32.xlu0 %v5055, 91
      %v5071 = vpop.permute.xlu0 %5070
      %5072 = vrot.lane.b32.xlu0 %v5056, 91
      %v5073 = vpop.permute.xlu0 %5072
      %5074 = vrot.lane.b32.xlu0 %v5057, 91
      %v5075 = vpop.permute.xlu0 %5074
      %5076 = vrot.lane.b32.xlu0 %v5058, 91
      %v5077 = vpop.permute.xlu0 %5076
      %5078 = vrot.lane.b32.xlu0 %v5059, 91
      %v5079 = vpop.permute.xlu0 %5078
      %v5080 = vsel %vm1939, %v5061, %v5063
      %v5081 = vsel %vm1939, %v5063, %v5065
      %v5082 = vsel %vm1939, %v5065, %v5067
      %v5083 = vsel %vm1939, %v5067, %v5069
      %v5084 = vsel %vm1939, %v5069, %v5071
      %v5085 = vsel %vm1939, %v5071, %v5073
      %v5086 = vsel %vm1939, %v5073, %v5075
      %v5087 = vsel %vm1939, %v5075, %v5077
      %v5088 = vsel %vm1939, %v5077, %v5079
      %v5099 = vadd.f32 %v5040, %v5080
      %v5100 = vadd.f32 %v5041, %v5081
      %v5101 = vadd.f32 %v5042, %v5082
      %v5102 = vadd.f32 %v5043, %v5083
      %v5103 = vadd.f32 %v5044, %v5084
      %v5104 = vadd.f32 %v5045, %v5085
      %v5105 = vadd.f32 %v5046, %v5086
      %v5106 = vadd.f32 %v5047, %v5087
      %v5107 = vadd.f32 %v5048, %v5088
      %v5108 = vadd.f32 %v5049, %v5079
      %5119 = vrot.lane.b32.xlu0 %v4414, 58
      %v5120 = vpop.permute.xlu0 %5119
      %5121 = vrot.lane.b32.xlu0 %v4416, 58
      %v5122 = vpop.permute.xlu0 %5121
      %5123 = vrot.lane.b32.xlu0 %v4509, 58
      %v5124 = vpop.permute.xlu0 %5123
      %5125 = vrot.lane.b32.xlu0 %v4511, 58
      %v5126 = vpop.permute.xlu0 %5125
      %5127 = vrot.lane.b32.xlu0 %v4604, 58
      %v5128 = vpop.permute.xlu0 %5127
      %5129 = vrot.lane.b32.xlu0 %v4606, 58
      %v5130 = vpop.permute.xlu0 %5129
      %5131 = vrot.lane.b32.xlu0 %v4699, 58
      %v5132 = vpop.permute.xlu0 %5131
      %5133 = vrot.lane.b32.xlu0 %v4701, 58
      %v5134 = vpop.permute.xlu0 %5133
      %5135 = vrot.lane.b32.xlu0 %v4794, 58
      %v5136 = vpop.permute.xlu0 %5135
      %5137 = vrot.lane.b32.xlu0 %v4796, 58
      %v5138 = vpop.permute.xlu0 %5137
      %v5139 = vsel %vm1999, %v5120, %v5122
      %v5140 = vsel %vm1999, %v5122, %v5124
      %v5141 = vsel %vm1999, %v5124, %v5126
      %v5142 = vsel %vm1999, %v5126, %v5128
      %v5143 = vsel %vm1999, %v5128, %v5130
      %v5144 = vsel %vm1999, %v5130, %v5132
      %v5145 = vsel %vm1999, %v5132, %v5134
      %v5146 = vsel %vm1999, %v5134, %v5136
      %v5147 = vsel %vm1999, %v5136, %v5138
      %v5158 = vadd.f32 %v5099, %v5139
      %v5159 = vadd.f32 %v5100, %v5140
      %v5160 = vadd.f32 %v5101, %v5141
      %v5161 = vadd.f32 %v5102, %v5142
      %v5162 = vadd.f32 %v5103, %v5143
      %v5163 = vadd.f32 %v5104, %v5144
      %v5164 = vadd.f32 %v5105, %v5145
      %v5165 = vadd.f32 %v5106, %v5146
      %v5166 = vadd.f32 %v5107, %v5147
      %v5167 = vadd.f32 %v5108, %v5138
      %v5168 = vrot.slane %v4414, 4
      %v5169 = vrot.slane %v4416, 4
      %v5170 = vrot.slane %v4509, 4
      %v5171 = vrot.slane %v4511, 4
      %v5172 = vrot.slane %v4604, 4
      %v5173 = vrot.slane %v4606, 4
      %v5174 = vrot.slane %v4699, 4
      %v5175 = vrot.slane %v4701, 4
      %v5176 = vrot.slane %v4794, 4
      %v5177 = vrot.slane %v4796, 4
      %5178 = vrot.lane.b32.xlu0 %v5168, 57
      %v5179 = vpop.permute.xlu0 %5178
      %5180 = vrot.lane.b32.xlu0 %v5169, 57
      %v5181 = vpop.permute.xlu0 %5180
      %5182 = vrot.lane.b32.xlu0 %v5170, 57
      %v5183 = vpop.permute.xlu0 %5182
      %5184 = vrot.lane.b32.xlu0 %v5171, 57
      %v5185 = vpop.permute.xlu0 %5184
      %5186 = vrot.lane.b32.xlu0 %v5172, 57
      %v5187 = vpop.permute.xlu0 %5186
      %5188 = vrot.lane.b32.xlu0 %v5173, 57
      %v5189 = vpop.permute.xlu0 %5188
      %5190 = vrot.lane.b32.xlu0 %v5174, 57
      %v5191 = vpop.permute.xlu0 %5190
      %5192 = vrot.lane.b32.xlu0 %v5175, 57
      %v5193 = vpop.permute.xlu0 %5192
      %5194 = vrot.lane.b32.xlu0 %v5176, 57
      %v5195 = vpop.permute.xlu0 %5194
      %5196 = vrot.lane.b32.xlu0 %v5177, 57
      %v5197 = vpop.permute.xlu0 %5196
      %v5198 = vsel %vm2059, %v5179, %v5181
      %v5199 = vsel %vm2059, %v5181, %v5183
      %v5200 = vsel %vm2059, %v5183, %v5185
      %v5201 = vsel %vm2059, %v5185, %v5187
      %v5202 = vsel %vm2059, %v5187, %v5189
      %v5203 = vsel %vm2059, %v5189, %v5191
      %v5204 = vsel %vm2059, %v5191, %v5193
      %v5205 = vsel %vm2059, %v5193, %v5195
      %v5206 = vsel %vm2059, %v5195, %v5197
      %v5217 = vadd.f32 %v5158, %v5198
      %v5218 = vadd.f32 %v5159, %v5199
      %v5219 = vadd.f32 %v5160, %v5200
      %v5220 = vadd.f32 %v5161, %v5201
      %v5221 = vadd.f32 %v5162, %v5202
      %v5222 = vadd.f32 %v5163, %v5203
      %v5223 = vadd.f32 %v5164, %v5204
      %v5224 = vadd.f32 %v5165, %v5205
      %v5225 = vadd.f32 %v5166, %v5206
      %v5226 = vadd.f32 %v5167, %v5197
      %5237 = vrot.lane.b32.xlu0 %v4420, 56
      %v5238 = vpop.permute.xlu0 %5237
      %5239 = vrot.lane.b32.xlu0 %v4422, 56
      %v5240 = vpop.permute.xlu0 %5239
      %5241 = vrot.lane.b32.xlu0 %v4515, 56
      %v5242 = vpop.permute.xlu0 %5241
      %5243 = vrot.lane.b32.xlu0 %v4517, 56
      %v5244 = vpop.permute.xlu0 %5243
      %5245 = vrot.lane.b32.xlu0 %v4610, 56
      %v5246 = vpop.permute.xlu0 %5245
      %5247 = vrot.lane.b32.xlu0 %v4612, 56
      %v5248 = vpop.permute.xlu0 %5247
      %5249 = vrot.lane.b32.xlu0 %v4705, 56
      %v5250 = vpop.permute.xlu0 %5249
      %5251 = vrot.lane.b32.xlu0 %v4707, 56
      %v5252 = vpop.permute.xlu0 %5251
      %5253 = vrot.lane.b32.xlu0 %v4800, 56
      %v5254 = vpop.permute.xlu0 %5253
      %5255 = vrot.lane.b32.xlu0 %v4802, 56
      %v5256 = vpop.permute.xlu0 %5255
      %v5257 = vsel %vm2119, %v5238, %v5240
      %v5258 = vsel %vm2119, %v5240, %v5242
      %v5259 = vsel %vm2119, %v5242, %v5244
      %v5260 = vsel %vm2119, %v5244, %v5246
      %v5261 = vsel %vm2119, %v5246, %v5248
      %v5262 = vsel %vm2119, %v5248, %v5250
      %v5263 = vsel %vm2119, %v5250, %v5252
      %v5264 = vsel %vm2119, %v5252, %v5254
      %v5265 = vsel %vm2119, %v5254, %v5256
      %v5276 = vadd.f32 %v5217, %v5257
      %v5277 = vadd.f32 %v5218, %v5258
      %v5278 = vadd.f32 %v5219, %v5259
      %v5279 = vadd.f32 %v5220, %v5260
      %v5280 = vadd.f32 %v5221, %v5261
      %v5281 = vadd.f32 %v5222, %v5262
      %v5282 = vadd.f32 %v5223, %v5263
      %v5283 = vadd.f32 %v5224, %v5264
      %v5284 = vadd.f32 %v5225, %v5265
      %v5285 = vadd.f32 %v5226, %v5256
      %5286 = vset.pattern.permute.xlu0 26
      %5287 = vperm.xlu0 %5286, %v1083
      %v5288 = vpop.permute.xlu0 %5287
      %v5290 = vadd.f32 %v5276, %v5288
      %v5291 = vadd.f32 %v5277, %v5288
      %v5292 = vadd.f32 %v5278, %v5288
      %v5293 = vadd.f32 %v5279, %v5288
      %v5294 = vadd.f32 %v5280, %v5288
      %v5295 = vadd.f32 %v5281, %v5288
      %v5296 = vadd.f32 %v5282, %v5288
      %v5297 = vadd.f32 %v5283, %v5288
      %v5298 = vadd.f32 %v5284, %v5288
      %v5299 = vadd.f32 %v5285, %v5288
      %v5300 = vmax.f32 %v5290, 0.0
      %v5301 = vmax.f32 %v5291, 0.0
      %v5302 = vmax.f32 %v5292, 0.0
      %v5303 = vmax.f32 %v5293, 0.0
      %v5304 = vmax.f32 %v5294, 0.0
      %v5305 = vmax.f32 %v5295, 0.0
      %v5306 = vmax.f32 %v5296, 0.0
      %v5307 = vmax.f32 %v5297, 0.0
      %v5308 = vmax.f32 %v5298, 0.0
      %v5309 = vmax.f32 %v5299, 0.0
      %5310 = vset.pattern.permute.xlu0 27
      %5311 = vperm.xlu0 %5310, %v1083
      %v5312 = vpop.permute.xlu0 %5311
      %5314 = vrot.lane.b32.xlu0 %v1083, 108
      %v5315 = vpop.permute.xlu0 %5314
      %v5316 = vsel %vm3123, %v5315, 0
      %v5319 = vsel %vm2408, %v5300, 0
      %v5322 = vsel %vm2408, %v5301, 0
      %v5325 = vsel %vm2408, %v5302, 0
      %v5328 = vsel %vm2408, %v5303, 0
      %v5331 = vsel %vm2408, %v5304, 0
      %v5334 = vsel %vm2408, %v5305, 0
      %v5337 = vsel %vm2408, %v5306, 0
      %v5340 = vsel %vm2408, %v5307, 0
      %v5343 = vsel %vm2408, %v5308, 0
      %v5346 = vsel %vm2408, %v5309, 0
      %5348 = vmatprep.subr.mxu0 0.0
      %5349 = vmatpush1.msra.mxu0 0.0
      %5350 = vmatprep.subr.mxu0 0.0
      %5351 = vmatpush1.msra.mxu0 0.0
      %5352 = vmatprep.subr.mxu0 0.0
      %5353 = vmatpush1.msra.mxu0 0.0
      %5354 = vmatprep.subr.mxu0 0.0
      %5355 = vmatpush1.msra.mxu0 0.0
      %5356 = vmatprep.subr.mxu0 0.0
      %5357 = vmatpush1.msra.mxu0 0.0
      %5358 = vmatprep.subr.mxu0 0.0
      %5359 = vmatpush1.msra.mxu0 0.0
      %5360 = vmatprep.subr.mxu0 0.0
      %5361 = vmatpush1.msra.mxu0 0.0
      %5362 = vmatprep.subr.mxu0 0.0
      %5363 = vmatpush1.msra.mxu0 0.0
      %5364 = vmatprep.subr.mxu0 0.0
      %5365 = vmatpush1.msra.mxu0 0.0
      %5366 = vmatprep.subr.mxu0 0.0
      %5367 = vmatpush1.msra.mxu0 0.0
      %5368 = vmatprep.subr.mxu0 0.0
      %5369 = vmatpush1.msra.mxu0 0.0
      %5370 = vmatprep.subr.mxu0 0.0
      %5371 = vmatpush1.msra.mxu0 0.0
      %5372 = vmatprep.subr.mxu0 0.0
      %5373 = vmatpush1.msra.mxu0 0.0
      %5374 = vmatprep.subr.mxu0 0.0
      %5375 = vmatpush1.msra.mxu0 0.0
      %5376 = vmatprep.subr.mxu0 0.0
      %5377 = vmatpush1.msra.mxu0 0.0
      %5378 = vmatprep.subr.mxu0 %v5322
      %5379 = vmatpush1.msra.mxu0 %v5319
      %5380 = vmatprep.subr.mxu0 0.0
      %5381 = vmatpush2.msra.mxu0 0.0
      %5382 = vmatprep.subr.mxu0 0.0
      %5383 = vmatpush2.msra.mxu0 0.0
      %5384 = vmatprep.subr.mxu0 0.0
      %5385 = vmatpush2.msra.mxu0 0.0
      %5386 = vmatprep.subr.mxu0 0.0
      %5387 = vmatpush2.msra.mxu0 0.0
      %5388 = vmatprep.subr.mxu0 0.0
      %5389 = vmatpush2.msra.mxu0 0.0
      %5390 = vmatprep.subr.mxu0 0.0
      %5391 = vmatpush2.msra.mxu0 0.0
      %5392 = vmatprep.subr.mxu0 0.0
      %5393 = vmatpush2.msra.mxu0 0.0
      %5394 = vmatprep.subr.mxu0 0.0
      %5395 = vmatpush2.msra.mxu0 0.0
      %5396 = vmatprep.subr.mxu0 0.0
      %5397 = vmatpush2.msra.mxu0 0.0
      %5398 = vmatprep.subr.mxu0 0.0
      %5399 = vmatpush2.msra.mxu0 0.0
      %5400 = vmatprep.subr.mxu0 0.0
      %5401 = vmatpush2.msra.mxu0 0.0
      %5402 = vmatprep.subr.mxu0 0.0
      %5403 = vmatpush2.msra.mxu0 0.0
      %5404 = vmatprep.subr.mxu0 0.0
      %5405 = vmatpush2.msra.mxu0 0.0
      %5406 = vmatprep.subr.mxu0 0.0
      %5407 = vmatpush2.msra.mxu0 0.0
      %5408 = vmatprep.subr.mxu0 0.0
      %5409 = vmatpush2.msra.mxu0 0.0
      %5410 = vmatprep.subr.mxu0 0.0
      %5411 = vmatpush2.msra.mxu0 0.0
      %5412 = vmatprep.mubr.f32.mxu0 0.0
      %5413 = vmatmul.mubr.f32.gmra.mxu0 %v5316
      %v5414 = vpop.f32.mrf.mxu0
      %v5415 = vadd.f32 %v5312, %v5414
      %v5416 = vpop.f32.mrf.mxu0
      %v5417 = vadd.f32 %v5312, %v5416
      %5418 = vdwg.mxu0
      %5419 = vmatprep.subr.mxu0 0.0
      %5420 = vmatpush1.msra.mxu0 0.0
      %5421 = vmatprep.subr.mxu0 0.0
      %5422 = vmatpush1.msra.mxu0 0.0
      %5423 = vmatprep.subr.mxu0 0.0
      %5424 = vmatpush1.msra.mxu0 0.0
      %5425 = vmatprep.subr.mxu0 0.0
      %5426 = vmatpush1.msra.mxu0 0.0
      %5427 = vmatprep.subr.mxu0 0.0
      %5428 = vmatpush1.msra.mxu0 0.0
      %5429 = vmatprep.subr.mxu0 0.0
      %5430 = vmatpush1.msra.mxu0 0.0
      %5431 = vmatprep.subr.mxu0 0.0
      %5432 = vmatpush1.msra.mxu0 0.0
      %5433 = vmatprep.subr.mxu0 0.0
      %5434 = vmatpush1.msra.mxu0 0.0
      %5435 = vmatprep.subr.mxu0 0.0
      %5436 = vmatpush1.msra.mxu0 0.0
      %5437 = vmatprep.subr.mxu0 0.0
      %5438 = vmatpush1.msra.mxu0 0.0
      %5439 = vmatprep.subr.mxu0 0.0
      %5440 = vmatpush1.msra.mxu0 0.0
      %5441 = vmatprep.subr.mxu0 0.0
      %5442 = vmatpush1.msra.mxu0 0.0
      %5443 = vmatprep.subr.mxu0 0.0
      %5444 = vmatpush1.msra.mxu0 0.0
      %5445 = vmatprep.subr.mxu0 0.0
      %5446 = vmatpush1.msra.mxu0 0.0
      %5447 = vmatprep.subr.mxu0 0.0
      %5448 = vmatpush1.msra.mxu0 0.0
      %5449 = vmatprep.subr.mxu0 %v5328
      %5450 = vmatpush1.msra.mxu0 %v5325
      %5451 = vmatprep.subr.mxu0 0.0
      %5452 = vmatpush2.msra.mxu0 0.0
      %5453 = vmatprep.subr.mxu0 0.0
      %5454 = vmatpush2.msra.mxu0 0.0
      %5455 = vmatprep.subr.mxu0 0.0
      %5456 = vmatpush2.msra.mxu0 0.0
      %5457 = vmatprep.subr.mxu0 0.0
      %5458 = vmatpush2.msra.mxu0 0.0
      %5459 = vmatprep.subr.mxu0 0.0
      %5460 = vmatpush2.msra.mxu0 0.0
      %5461 = vmatprep.subr.mxu0 0.0
      %5462 = vmatpush2.msra.mxu0 0.0
      %5463 = vmatprep.subr.mxu0 0.0
      %5464 = vmatpush2.msra.mxu0 0.0
      %5465 = vmatprep.subr.mxu0 0.0
      %5466 = vmatpush2.msra.mxu0 0.0
      %5467 = vmatprep.subr.mxu0 0.0
      %5468 = vmatpush2.msra.mxu0 0.0
      %5469 = vmatprep.subr.mxu0 0.0
      %5470 = vmatpush2.msra.mxu0 0.0
      %5471 = vmatprep.subr.mxu0 0.0
      %5472 = vmatpush2.msra.mxu0 0.0
      %5473 = vmatprep.subr.mxu0 0.0
      %5474 = vmatpush2.msra.mxu0 0.0
      %5475 = vmatprep.subr.mxu0 0.0
      %5476 = vmatpush2.msra.mxu0 0.0
      %5477 = vmatprep.subr.mxu0 0.0
      %5478 = vmatpush2.msra.mxu0 0.0
      %5479 = vmatprep.subr.mxu0 0.0
      %5480 = vmatpush2.msra.mxu0 0.0
      %5481 = vmatprep.subr.mxu0 0.0
      %5482 = vmatpush2.msra.mxu0 0.0
      %5483 = vmatprep.mubr.f32.mxu0 0.0
      %5484 = vmatmul.mubr.f32.gmra.mxu0 %v5316
      %v5485 = vpop.f32.mrf.mxu0
      %v5486 = vadd.f32 %v5312, %v5485
      %v5487 = vpop.f32.mrf.mxu0
      %v5488 = vadd.f32 %v5312, %v5487
      %5489 = vdwg.mxu0
      %5490 = vmatprep.subr.mxu0 0.0
      %5491 = vmatpush1.msra.mxu0 0.0
      %5492 = vmatprep.subr.mxu0 0.0
      %5493 = vmatpush1.msra.mxu0 0.0
      %5494 = vmatprep.subr.mxu0 0.0
      %5495 = vmatpush1.msra.mxu0 0.0
      %5496 = vmatprep.subr.mxu0 0.0
      %5497 = vmatpush1.msra.mxu0 0.0
      %5498 = vmatprep.subr.mxu0 0.0
      %5499 = vmatpush1.msra.mxu0 0.0
      %5500 = vmatprep.subr.mxu0 0.0
      %5501 = vmatpush1.msra.mxu0 0.0
      %5502 = vmatprep.subr.mxu0 0.0
      %5503 = vmatpush1.msra.mxu0 0.0
      %5504 = vmatprep.subr.mxu0 0.0
      %5505 = vmatpush1.msra.mxu0 0.0
      %5506 = vmatprep.subr.mxu0 0.0
      %5507 = vmatpush1.msra.mxu0 0.0
      %5508 = vmatprep.subr.mxu0 0.0
      %5509 = vmatpush1.msra.mxu0 0.0
      %5510 = vmatprep.subr.mxu0 0.0
      %5511 = vmatpush1.msra.mxu0 0.0
      %5512 = vmatprep.subr.mxu0 0.0
      %5513 = vmatpush1.msra.mxu0 0.0
      %5514 = vmatprep.subr.mxu0 0.0
      %5515 = vmatpush1.msra.mxu0 0.0
      %5516 = vmatprep.subr.mxu0 0.0
      %5517 = vmatpush1.msra.mxu0 0.0
      %5518 = vmatprep.subr.mxu0 0.0
      %5519 = vmatpush1.msra.mxu0 0.0
      %5520 = vmatprep.subr.mxu0 %v5334
      %5521 = vmatpush1.msra.mxu0 %v5331
      %5522 = vmatprep.subr.mxu0 0.0
      %5523 = vmatpush2.msra.mxu0 0.0
      %5524 = vmatprep.subr.mxu0 0.0
      %5525 = vmatpush2.msra.mxu0 0.0
      %5526 = vmatprep.subr.mxu0 0.0
      %5527 = vmatpush2.msra.mxu0 0.0
      %5528 = vmatprep.subr.mxu0 0.0
      %5529 = vmatpush2.msra.mxu0 0.0
      %5530 = vmatprep.subr.mxu0 0.0
      %5531 = vmatpush2.msra.mxu0 0.0
      %5532 = vmatprep.subr.mxu0 0.0
      %5533 = vmatpush2.msra.mxu0 0.0
      %5534 = vmatprep.subr.mxu0 0.0
      %5535 = vmatpush2.msra.mxu0 0.0
      %5536 = vmatprep.subr.mxu0 0.0
      %5537 = vmatpush2.msra.mxu0 0.0
      %5538 = vmatprep.subr.mxu0 0.0
      %5539 = vmatpush2.msra.mxu0 0.0
      %5540 = vmatprep.subr.mxu0 0.0
      %5541 = vmatpush2.msra.mxu0 0.0
      %5542 = vmatprep.subr.mxu0 0.0
      %5543 = vmatpush2.msra.mxu0 0.0
      %5544 = vmatprep.subr.mxu0 0.0
      %5545 = vmatpush2.msra.mxu0 0.0
      %5546 = vmatprep.subr.mxu0 0.0
      %5547 = vmatpush2.msra.mxu0 0.0
      %5548 = vmatprep.subr.mxu0 0.0
      %5549 = vmatpush2.msra.mxu0 0.0
      %5550 = vmatprep.subr.mxu0 0.0
      %5551 = vmatpush2.msra.mxu0 0.0
      %5552 = vmatprep.subr.mxu0 0.0
      %5553 = vmatpush2.msra.mxu0 0.0
      %5554 = vmatprep.mubr.f32.mxu0 0.0
      %5555 = vmatmul.mubr.f32.gmra.mxu0 %v5316
      %v5556 = vpop.f32.mrf.mxu0
      %v5557 = vadd.f32 %v5312, %v5556
      %v5558 = vpop.f32.mrf.mxu0
      %v5559 = vadd.f32 %v5312, %v5558
      %5560 = vdwg.mxu0
      %5561 = vmatprep.subr.mxu0 0.0
      %5562 = vmatpush1.msra.mxu0 0.0
      %5563 = vmatprep.subr.mxu0 0.0
      %5564 = vmatpush1.msra.mxu0 0.0
      %5565 = vmatprep.subr.mxu0 0.0
      %5566 = vmatpush1.msra.mxu0 0.0
      %5567 = vmatprep.subr.mxu0 0.0
      %5568 = vmatpush1.msra.mxu0 0.0
      %5569 = vmatprep.subr.mxu0 0.0
      %5570 = vmatpush1.msra.mxu0 0.0
      %5571 = vmatprep.subr.mxu0 0.0
      %5572 = vmatpush1.msra.mxu0 0.0
      %5573 = vmatprep.subr.mxu0 0.0
      %5574 = vmatpush1.msra.mxu0 0.0
      %5575 = vmatprep.subr.mxu0 0.0
      %5576 = vmatpush1.msra.mxu0 0.0
      %5577 = vmatprep.subr.mxu0 0.0
      %5578 = vmatpush1.msra.mxu0 0.0
      %5579 = vmatprep.subr.mxu0 0.0
      %5580 = vmatpush1.msra.mxu0 0.0
      %5581 = vmatprep.subr.mxu0 0.0
      %5582 = vmatpush1.msra.mxu0 0.0
      %5583 = vmatprep.subr.mxu0 0.0
      %5584 = vmatpush1.msra.mxu0 0.0
      %5585 = vmatprep.subr.mxu0 0.0
      %5586 = vmatpush1.msra.mxu0 0.0
      %5587 = vmatprep.subr.mxu0 0.0
      %5588 = vmatpush1.msra.mxu0 0.0
      %5589 = vmatprep.subr.mxu0 0.0
      %5590 = vmatpush1.msra.mxu0 0.0
      %5591 = vmatprep.subr.mxu0 %v5340
      %5592 = vmatpush1.msra.mxu0 %v5337
      %5593 = vmatprep.subr.mxu0 0.0
      %5594 = vmatpush2.msra.mxu0 0.0
      %5595 = vmatprep.subr.mxu0 0.0
      %5596 = vmatpush2.msra.mxu0 0.0
      %5597 = vmatprep.subr.mxu0 0.0
      %5598 = vmatpush2.msra.mxu0 0.0
      %5599 = vmatprep.subr.mxu0 0.0
      %5600 = vmatpush2.msra.mxu0 0.0
      %5601 = vmatprep.subr.mxu0 0.0
      %5602 = vmatpush2.msra.mxu0 0.0
      %5603 = vmatprep.subr.mxu0 0.0
      %5604 = vmatpush2.msra.mxu0 0.0
      %5605 = vmatprep.subr.mxu0 0.0
      %5606 = vmatpush2.msra.mxu0 0.0
      %5607 = vmatprep.subr.mxu0 0.0
      %5608 = vmatpush2.msra.mxu0 0.0
      %5609 = vmatprep.subr.mxu0 0.0
      %5610 = vmatpush2.msra.mxu0 0.0
      %5611 = vmatprep.subr.mxu0 0.0
      %5612 = vmatpush2.msra.mxu0 0.0
      %5613 = vmatprep.subr.mxu0 0.0
      %5614 = vmatpush2.msra.mxu0 0.0
      %5615 = vmatprep.subr.mxu0 0.0
      %5616 = vmatpush2.msra.mxu0 0.0
      %5617 = vmatprep.subr.mxu0 0.0
      %5618 = vmatpush2.msra.mxu0 0.0
      %5619 = vmatprep.subr.mxu0 0.0
      %5620 = vmatpush2.msra.mxu0 0.0
      %5621 = vmatprep.subr.mxu0 0.0
      %5622 = vmatpush2.msra.mxu0 0.0
      %5623 = vmatprep.subr.mxu0 0.0
      %5624 = vmatpush2.msra.mxu0 0.0
      %5625 = vmatprep.mubr.f32.mxu0 0.0
      %5626 = vmatmul.mubr.f32.gmra.mxu0 %v5316
      %v5627 = vpop.f32.mrf.mxu0
      %v5628 = vadd.f32 %v5312, %v5627
      %v5629 = vpop.f32.mrf.mxu0
      %v5630 = vadd.f32 %v5312, %v5629
      %5631 = vdwg.mxu0
      %5632 = vmatprep.subr.mxu0 0.0
      %5633 = vmatpush1.msra.mxu0 0.0
      %5634 = vmatprep.subr.mxu0 0.0
      %5635 = vmatpush1.msra.mxu0 0.0
      %5636 = vmatprep.subr.mxu0 0.0
      %5637 = vmatpush1.msra.mxu0 0.0
      %5638 = vmatprep.subr.mxu0 0.0
      %5639 = vmatpush1.msra.mxu0 0.0
      %5640 = vmatprep.subr.mxu0 0.0
      %5641 = vmatpush1.msra.mxu0 0.0
      %5642 = vmatprep.subr.mxu0 0.0
      %5643 = vmatpush1.msra.mxu0 0.0
      %5644 = vmatprep.subr.mxu0 0.0
      %5645 = vmatpush1.msra.mxu0 0.0
      %5646 = vmatprep.subr.mxu0 0.0
      %5647 = vmatpush1.msra.mxu0 0.0
      %5648 = vmatprep.subr.mxu0 0.0
      %5649 = vmatpush1.msra.mxu0 0.0
      %5650 = vmatprep.subr.mxu0 0.0
      %5651 = vmatpush1.msra.mxu0 0.0
      %5652 = vmatprep.subr.mxu0 0.0
      %5653 = vmatpush1.msra.mxu0 0.0
      %5654 = vmatprep.subr.mxu0 0.0
      %5655 = vmatpush1.msra.mxu0 0.0
      %5656 = vmatprep.subr.mxu0 0.0
      %5657 = vmatpush1.msra.mxu0 0.0
      %5658 = vmatprep.subr.mxu0 0.0
      %5659 = vmatpush1.msra.mxu0 0.0
      %5660 = vmatprep.subr.mxu0 0.0
      %5661 = vmatpush1.msra.mxu0 0.0
      %5662 = vmatprep.subr.mxu0 %v5346
      %5663 = vmatpush1.msra.mxu0 %v5343
      %5664 = vmatprep.subr.mxu0 0.0
      %5665 = vmatpush2.msra.mxu0 0.0
      %5666 = vmatprep.subr.mxu0 0.0
      %5667 = vmatpush2.msra.mxu0 0.0
      %5668 = vmatprep.subr.mxu0 0.0
      %5669 = vmatpush2.msra.mxu0 0.0
      %5670 = vmatprep.subr.mxu0 0.0
      %5671 = vmatpush2.msra.mxu0 0.0
      %5672 = vmatprep.subr.mxu0 0.0
      %5673 = vmatpush2.msra.mxu0 0.0
      %5674 = vmatprep.subr.mxu0 0.0
      %5675 = vmatpush2.msra.mxu0 0.0
      %5676 = vmatprep.subr.mxu0 0.0
      %5677 = vmatpush2.msra.mxu0 0.0
      %5678 = vmatprep.subr.mxu0 0.0
      %5679 = vmatpush2.msra.mxu0 0.0
      %5680 = vmatprep.subr.mxu0 0.0
      %5681 = vmatpush2.msra.mxu0 0.0
      %5682 = vmatprep.subr.mxu0 0.0
      %5683 = vmatpush2.msra.mxu0 0.0
      %5684 = vmatprep.subr.mxu0 0.0
      %5685 = vmatpush2.msra.mxu0 0.0
      %5686 = vmatprep.subr.mxu0 0.0
      %5687 = vmatpush2.msra.mxu0 0.0
      %5688 = vmatprep.subr.mxu0 0.0
      %5689 = vmatpush2.msra.mxu0 0.0
      %5690 = vmatprep.subr.mxu0 0.0
      %5691 = vmatpush2.msra.mxu0 0.0
      %5692 = vmatprep.subr.mxu0 0.0
      %5693 = vmatpush2.msra.mxu0 0.0
      %5694 = vmatprep.subr.mxu0 0.0
      %5695 = vmatpush2.msra.mxu0 0.0
      %5696 = vmatprep.mubr.f32.mxu0 0.0
      %5697 = vmatmul.mubr.f32.gmra.mxu0 %v5316
      %v5698 = vpop.f32.mrf.mxu0
      %v5699 = vadd.f32 %v5312, %v5698
      %v5700 = vpop.f32.mrf.mxu0
      %v5701 = vadd.f32 %v5312, %v5700
      %5702 = vdwg.mxu0
      %5713 = vrot.lane.b32.xlu0 %v5415, 36
      %v5714 = vpop.permute.xlu0 %5713
      %5715 = vrot.lane.b32.xlu0 %v5417, 36
      %v5716 = vpop.permute.xlu0 %5715
      %5717 = vrot.lane.b32.xlu0 %v5486, 36
      %v5718 = vpop.permute.xlu0 %5717
      %5719 = vrot.lane.b32.xlu0 %v5488, 36
      %v5720 = vpop.permute.xlu0 %5719
      %5721 = vrot.lane.b32.xlu0 %v5557, 36
      %v5722 = vpop.permute.xlu0 %5721
      %5723 = vrot.lane.b32.xlu0 %v5559, 36
      %v5724 = vpop.permute.xlu0 %5723
      %5725 = vrot.lane.b32.xlu0 %v5628, 36
      %v5726 = vpop.permute.xlu0 %5725
      %5727 = vrot.lane.b32.xlu0 %v5630, 36
      %v5728 = vpop.permute.xlu0 %5727
      %5729 = vrot.lane.b32.xlu0 %v5699, 36
      %v5730 = vpop.permute.xlu0 %5729
      %5731 = vrot.lane.b32.xlu0 %v5701, 36
      %v5732 = vpop.permute.xlu0 %5731
      %v5733 = vsel %vm2203, %v5714, %v5716
      %v5734 = vsel %vm2203, %v5716, %v5718
      %v5735 = vsel %vm2203, %v5718, %v5720
      %v5736 = vsel %vm2203, %v5720, %v5722
      %v5737 = vsel %vm2203, %v5722, %v5724
      %v5738 = vsel %vm2203, %v5724, %v5726
      %v5739 = vsel %vm2203, %v5726, %v5728
      %v5740 = vsel %vm2203, %v5728, %v5730
      %v5741 = vsel %vm2203, %v5730, %v5732
      %v5752 = vsel %vm2203, 0.0, %v5714
      %v5753 = vsel %vm1879, %v5741, 0.0
      %v5754 = vmul.f32 %v5752, %v2230
      %v5755 = vmul.f32 %v5733, %v2234
      %v5756 = vmul.f32 %v5734, %v2238
      %v5757 = vmul.f32 %v5735, %v2242
      %v5758 = vmul.f32 %v5736, %v2246
      %v5759 = vmul.f32 %v5737, %v2250
      %v5760 = vmul.f32 %v5738, %v2254
      %v5761 = vmul.f32 %v5739, %v2258
      %v5762 = vmul.f32 %v5740, %v2262
      %v5763 = vmul.f32 %v5753, %v2266
      %v5784 = vrot.slane %v5754, 6
      %v5785 = vrot.slane %v5755, 6
      %v5786 = vrot.slane %v5756, 6
      %v5787 = vrot.slane %v5757, 6
      %v5788 = vrot.slane %v5758, 6
      %v5789 = vrot.slane %v5759, 6
      %v5790 = vrot.slane %v5760, 6
      %v5791 = vrot.slane %v5761, 6
      %v5792 = vrot.slane %v5762, 6
      %v5793 = vrot.slane %v5763, 6
      %v5804 = vsel %vm1163, %v1117, %v5784
      %v5805 = vsel %vm1163, %v1125, %v5785
      %v5806 = vsel %vm1163, %v1124, %v5786
      %v5807 = vsel %vm1163, %v1126, %v5787
      %v5808 = vsel %vm1163, %v1134, %v5788
      %v5809 = vsel %vm1163, %v1142, %v5789
      %v5810 = vsel %vm1163, %v1141, %v5790
      %v5811 = vsel %vm1163, %v1143, %v5791
      %v5812 = vsel %vm1163, %v1150, %v5792
      %v5813 = vsel %vm1163, %v1151, %v5793
      %v5814 = vld [vmem:[%s2] sm:$0xff]
      %v5815 = vld [vmem:[%s2 + $0x8] sm:$0xff]
      %v5816 = vld [vmem:[%s2 + $0x10] sm:$0xff]
      %v5817 = vld [vmem:[%s2 + $0x18] sm:$0xff]
      %v5818 = vld [vmem:[%s2 + $0x20] sm:$0xff]
      %v5819 = vld [vmem:[%s2 + $0x28] sm:$0xff]
      %v5820 = vld [vmem:[%s2 + $0x30] sm:$0xff]
      %v5821 = vld [vmem:[%s2 + $0x38] sm:$0xff]
      %v5822 = vld [vmem:[%s2 + $0x40] sm:$0xff]
      %5828 = vrot.lane.b32.xlu0 %v5814, 112
      %v5829 = vpop.permute.xlu0 %5828
      %5830 = vrot.lane.b32.xlu0 %v5815, 112
      %v5831 = vpop.permute.xlu0 %5830
      %5832 = vrot.lane.b32.xlu0 %v5816, 112
      %v5833 = vpop.permute.xlu0 %5832
      %5834 = vrot.lane.b32.xlu0 %v5817, 112
      %v5835 = vpop.permute.xlu0 %5834
      %5836 = vrot.lane.b32.xlu0 %v5818, 112
      %v5837 = vpop.permute.xlu0 %5836
      %vm5838 = vcmask 23552
      %v5839 = vsel %vm5838, %v5829, 0
      %v5841 = vsel %vm5838, %v5831, 0
      %v5843 = vsel %vm5838, %v5833, 0
      %v5845 = vsel %vm5838, %v5835, 0
      %v5847 = vsel %vm5838, %v5837, 0
      %vm5849 = vcmask 1042432
      %v5851 = vsel %vm5849, %v5804, 0
      %v5854 = vsel %vm5849, %v5805, 0
      %v5857 = vsel %vm5849, %v5806, 0
      %v5860 = vsel %vm5849, %v5807, 0
      %v5863 = vsel %vm5849, %v5808, 0
      %v5866 = vsel %vm5849, %v5809, 0
      %v5869 = vsel %vm5849, %v5810, 0
      %v5872 = vsel %vm5849, %v5811, 0
      %v5875 = vsel %vm5849, %v5812, 0
      %v5878 = vsel %vm5849, %v5813, 0
      %5880 = vmatprep.subr.mxu0 0.0
      %5881 = vmatpush1.msra.mxu0 0.0
      %5882 = vmatprep.subr.mxu0 0.0
      %5883 = vmatpush1.msra.mxu0 0.0
      %5884 = vmatprep.subr.mxu0 0.0
      %5885 = vmatpush1.msra.mxu0 0.0
      %5886 = vmatprep.subr.mxu0 0.0
      %5887 = vmatpush1.msra.mxu0 0.0
      %5888 = vmatprep.subr.mxu0 0.0
      %5889 = vmatpush1.msra.mxu0 0.0
      %5890 = vmatprep.subr.mxu0 0.0
      %5891 = vmatpush1.msra.mxu0 0.0
      %5892 = vmatprep.subr.mxu0 0.0
      %5893 = vmatpush1.msra.mxu0 0.0
      %5894 = vmatprep.subr.mxu0 0.0
      %5895 = vmatpush1.msra.mxu0 0.0
      %5896 = vmatprep.subr.mxu0 0.0
      %5897 = vmatpush1.msra.mxu0 0.0
      %5898 = vmatprep.subr.mxu0 0.0
      %5899 = vmatpush1.msra.mxu0 0.0
      %5900 = vmatprep.subr.mxu0 0.0
      %5901 = vmatpush1.msra.mxu0 0.0
      %5902 = vmatprep.subr.mxu0 0.0
      %5903 = vmatpush1.msra.mxu0 0.0
      %5904 = vmatprep.subr.mxu0 0.0
      %5905 = vmatpush1.msra.mxu0 0.0
      %5906 = vmatprep.subr.mxu0 0.0
      %5907 = vmatpush1.msra.mxu0 0.0
      %5908 = vmatprep.subr.mxu0 0.0
      %5909 = vmatpush1.msra.mxu0 0.0
      %5910 = vmatprep.subr.mxu0 %v5854
      %5911 = vmatpush1.msra.mxu0 %v5851
      %5912 = vmatprep.subr.mxu0 0.0
      %5913 = vmatpush2.msra.mxu0 0.0
      %5914 = vmatprep.subr.mxu0 0.0
      %5915 = vmatpush2.msra.mxu0 0.0
      %5916 = vmatprep.subr.mxu0 0.0
      %5917 = vmatpush2.msra.mxu0 0.0
      %5918 = vmatprep.subr.mxu0 0.0
      %5919 = vmatpush2.msra.mxu0 0.0
      %5920 = vmatprep.subr.mxu0 0.0
      %5921 = vmatpush2.msra.mxu0 0.0
      %5922 = vmatprep.subr.mxu0 0.0
      %5923 = vmatpush2.msra.mxu0 0.0
      %5924 = vmatprep.subr.mxu0 0.0
      %5925 = vmatpush2.msra.mxu0 0.0
      %5926 = vmatprep.subr.mxu0 0.0
      %5927 = vmatpush2.msra.mxu0 0.0
      %5928 = vmatprep.subr.mxu0 0.0
      %5929 = vmatpush2.msra.mxu0 0.0
      %5930 = vmatprep.subr.mxu0 0.0
      %5931 = vmatpush2.msra.mxu0 0.0
      %5932 = vmatprep.subr.mxu0 0.0
      %5933 = vmatpush2.msra.mxu0 0.0
      %5934 = vmatprep.subr.mxu0 0.0
      %5935 = vmatpush2.msra.mxu0 0.0
      %5936 = vmatprep.subr.mxu0 0.0
      %5937 = vmatpush2.msra.mxu0 0.0
      %5938 = vmatprep.subr.mxu0 0.0
      %5939 = vmatpush2.msra.mxu0 0.0
      %5940 = vmatprep.subr.mxu0 0.0
      %5941 = vmatpush2.msra.mxu0 0.0
      %5942 = vmatprep.subr.mxu0 0.0
      %5943 = vmatpush2.msra.mxu0 0.0
      %5944 = vmatprep.mubr.f32.mxu0 0.0
      %5945 = vmatmul.mubr.f32.gmra.mxu0 %v5839
      %v5946 = vpop.f32.mrf.mxu0
      %v5947 = vadd.f32 0.0, %v5946
      %v5948 = vpop.f32.mrf.mxu0
      %v5949 = vadd.f32 0.0, %v5948
      %5950 = vmatprep.mubr.f32.mxu0 0.0
      %5951 = vmatmul.mubr.f32.gmra.mxu0 %v5841
      %v5952 = vpop.f32.mrf.mxu0
      %v5953 = vadd.f32 0.0, %v5952
      %v5954 = vpop.f32.mrf.mxu0
      %v5955 = vadd.f32 0.0, %v5954
      %5956 = vmatprep.mubr.f32.mxu0 0.0
      %5957 = vmatmul.mubr.f32.gmra.mxu0 %v5843
      %v5958 = vpop.f32.mrf.mxu0
      %v5959 = vadd.f32 0.0, %v5958
      %v5960 = vpop.f32.mrf.mxu0
      %v5961 = vadd.f32 0.0, %v5960
      %5962 = vmatprep.mubr.f32.mxu0 0.0
      %5963 = vmatmul.mubr.f32.gmra.mxu0 %v5845
      %v5964 = vpop.f32.mrf.mxu0
      %v5965 = vadd.f32 0.0, %v5964
      %v5966 = vpop.f32.mrf.mxu0
      %v5967 = vadd.f32 0.0, %v5966
      %5968 = vmatprep.mubr.f32.mxu0 0.0
      %5969 = vmatmul.mubr.f32.gmra.mxu0 %v5847
      %v5970 = vpop.f32.mrf.mxu0
      %v5971 = vadd.f32 0.0, %v5970
      %v5972 = vpop.f32.mrf.mxu0
      %v5973 = vadd.f32 0.0, %v5972
      %5974 = vdwg.mxu0
      %5975 = vmatprep.subr.mxu0 0.0
      %5976 = vmatpush1.msra.mxu0 0.0
      %5977 = vmatprep.subr.mxu0 0.0
      %5978 = vmatpush1.msra.mxu0 0.0
      %5979 = vmatprep.subr.mxu0 0.0
      %5980 = vmatpush1.msra.mxu0 0.0
      %5981 = vmatprep.subr.mxu0 0.0
      %5982 = vmatpush1.msra.mxu0 0.0
      %5983 = vmatprep.subr.mxu0 0.0
      %5984 = vmatpush1.msra.mxu0 0.0
      %5985 = vmatprep.subr.mxu0 0.0
      %5986 = vmatpush1.msra.mxu0 0.0
      %5987 = vmatprep.subr.mxu0 0.0
      %5988 = vmatpush1.msra.mxu0 0.0
      %5989 = vmatprep.subr.mxu0 0.0
      %5990 = vmatpush1.msra.mxu0 0.0
      %5991 = vmatprep.subr.mxu0 0.0
      %5992 = vmatpush1.msra.mxu0 0.0
      %5993 = vmatprep.subr.mxu0 0.0
      %5994 = vmatpush1.msra.mxu0 0.0
      %5995 = vmatprep.subr.mxu0 0.0
      %5996 = vmatpush1.msra.mxu0 0.0
      %5997 = vmatprep.subr.mxu0 0.0
      %5998 = vmatpush1.msra.mxu0 0.0
      %5999 = vmatprep.subr.mxu0 0.0
      %6000 = vmatpush1.msra.mxu0 0.0
      %6001 = vmatprep.subr.mxu0 0.0
      %6002 = vmatpush1.msra.mxu0 0.0
      %6003 = vmatprep.subr.mxu0 0.0
      %6004 = vmatpush1.msra.mxu0 0.0
      %6005 = vmatprep.subr.mxu0 %v5860
      %6006 = vmatpush1.msra.mxu0 %v5857
      %6007 = vmatprep.subr.mxu0 0.0
      %6008 = vmatpush2.msra.mxu0 0.0
      %6009 = vmatprep.subr.mxu0 0.0
      %6010 = vmatpush2.msra.mxu0 0.0
      %6011 = vmatprep.subr.mxu0 0.0
      %6012 = vmatpush2.msra.mxu0 0.0
      %6013 = vmatprep.subr.mxu0 0.0
      %6014 = vmatpush2.msra.mxu0 0.0
      %6015 = vmatprep.subr.mxu0 0.0
      %6016 = vmatpush2.msra.mxu0 0.0
      %6017 = vmatprep.subr.mxu0 0.0
      %6018 = vmatpush2.msra.mxu0 0.0
      %6019 = vmatprep.subr.mxu0 0.0
      %6020 = vmatpush2.msra.mxu0 0.0
      %6021 = vmatprep.subr.mxu0 0.0
      %6022 = vmatpush2.msra.mxu0 0.0
      %6023 = vmatprep.subr.mxu0 0.0
      %6024 = vmatpush2.msra.mxu0 0.0
      %6025 = vmatprep.subr.mxu0 0.0
      %6026 = vmatpush2.msra.mxu0 0.0
      %6027 = vmatprep.subr.mxu0 0.0
      %6028 = vmatpush2.msra.mxu0 0.0
      %6029 = vmatprep.subr.mxu0 0.0
      %6030 = vmatpush2.msra.mxu0 0.0
      %6031 = vmatprep.subr.mxu0 0.0
      %6032 = vmatpush2.msra.mxu0 0.0
      %6033 = vmatprep.subr.mxu0 0.0
      %6034 = vmatpush2.msra.mxu0 0.0
      %6035 = vmatprep.subr.mxu0 0.0
      %6036 = vmatpush2.msra.mxu0 0.0
      %6037 = vmatprep.subr.mxu0 0.0
      %6038 = vmatpush2.msra.mxu0 0.0
      %6039 = vmatprep.mubr.f32.mxu0 0.0
      %6040 = vmatmul.mubr.f32.gmra.mxu0 %v5839
      %v6041 = vpop.f32.mrf.mxu0
      %v6042 = vadd.f32 0.0, %v6041
      %v6043 = vpop.f32.mrf.mxu0
      %v6044 = vadd.f32 0.0, %v6043
      %6045 = vmatprep.mubr.f32.mxu0 0.0
      %6046 = vmatmul.mubr.f32.gmra.mxu0 %v5841
      %v6047 = vpop.f32.mrf.mxu0
      %v6048 = vadd.f32 0.0, %v6047
      %v6049 = vpop.f32.mrf.mxu0
      %v6050 = vadd.f32 0.0, %v6049
      %6051 = vmatprep.mubr.f32.mxu0 0.0
      %6052 = vmatmul.mubr.f32.gmra.mxu0 %v5843
      %v6053 = vpop.f32.mrf.mxu0
      %v6054 = vadd.f32 0.0, %v6053
      %v6055 = vpop.f32.mrf.mxu0
      %v6056 = vadd.f32 0.0, %v6055
      %6057 = vmatprep.mubr.f32.mxu0 0.0
      %6058 = vmatmul.mubr.f32.gmra.mxu0 %v5845
      %v6059 = vpop.f32.mrf.mxu0
      %v6060 = vadd.f32 0.0, %v6059
      %v6061 = vpop.f32.mrf.mxu0
      %v6062 = vadd.f32 0.0, %v6061
      %6063 = vmatprep.mubr.f32.mxu0 0.0
      %6064 = vmatmul.mubr.f32.gmra.mxu0 %v5847
      %v6065 = vpop.f32.mrf.mxu0
      %v6066 = vadd.f32 0.0, %v6065
      %v6067 = vpop.f32.mrf.mxu0
      %v6068 = vadd.f32 0.0, %v6067
      %6069 = vdwg.mxu0
      %6070 = vmatprep.subr.mxu0 0.0
      %6071 = vmatpush1.msra.mxu0 0.0
      %6072 = vmatprep.subr.mxu0 0.0
      %6073 = vmatpush1.msra.mxu0 0.0
      %6074 = vmatprep.subr.mxu0 0.0
      %6075 = vmatpush1.msra.mxu0 0.0
      %6076 = vmatprep.subr.mxu0 0.0
      %6077 = vmatpush1.msra.mxu0 0.0
      %6078 = vmatprep.subr.mxu0 0.0
      %6079 = vmatpush1.msra.mxu0 0.0
      %6080 = vmatprep.subr.mxu0 0.0
      %6081 = vmatpush1.msra.mxu0 0.0
      %6082 = vmatprep.subr.mxu0 0.0
      %6083 = vmatpush1.msra.mxu0 0.0
      %6084 = vmatprep.subr.mxu0 0.0
      %6085 = vmatpush1.msra.mxu0 0.0
      %6086 = vmatprep.subr.mxu0 0.0
      %6087 = vmatpush1.msra.mxu0 0.0
      %6088 = vmatprep.subr.mxu0 0.0
      %6089 = vmatpush1.msra.mxu0 0.0
      %6090 = vmatprep.subr.mxu0 0.0
      %6091 = vmatpush1.msra.mxu0 0.0
      %6092 = vmatprep.subr.mxu0 0.0
      %6093 = vmatpush1.msra.mxu0 0.0
      %6094 = vmatprep.subr.mxu0 0.0
      %6095 = vmatpush1.msra.mxu0 0.0
      %6096 = vmatprep.subr.mxu0 0.0
      %6097 = vmatpush1.msra.mxu0 0.0
      %6098 = vmatprep.subr.mxu0 0.0
      %6099 = vmatpush1.msra.mxu0 0.0
      %6100 = vmatprep.subr.mxu0 %v5866
      %6101 = vmatpush1.msra.mxu0 %v5863
      %6102 = vmatprep.subr.mxu0 0.0
      %6103 = vmatpush2.msra.mxu0 0.0
      %6104 = vmatprep.subr.mxu0 0.0
      %6105 = vmatpush2.msra.mxu0 0.0
      %6106 = vmatprep.subr.mxu0 0.0
      %6107 = vmatpush2.msra.mxu0 0.0
      %6108 = vmatprep.subr.mxu0 0.0
      %6109 = vmatpush2.msra.mxu0 0.0
      %6110 = vmatprep.subr.mxu0 0.0
      %6111 = vmatpush2.msra.mxu0 0.0
      %6112 = vmatprep.subr.mxu0 0.0
      %6113 = vmatpush2.msra.mxu0 0.0
      %6114 = vmatprep.subr.mxu0 0.0
      %6115 = vmatpush2.msra.mxu0 0.0
      %6116 = vmatprep.subr.mxu0 0.0
      %6117 = vmatpush2.msra.mxu0 0.0
      %6118 = vmatprep.subr.mxu0 0.0
      %6119 = vmatpush2.msra.mxu0 0.0
      %6120 = vmatprep.subr.mxu0 0.0
      %6121 = vmatpush2.msra.mxu0 0.0
      %6122 = vmatprep.subr.mxu0 0.0
      %6123 = vmatpush2.msra.mxu0 0.0
      %6124 = vmatprep.subr.mxu0 0.0
      %6125 = vmatpush2.msra.mxu0 0.0
      %6126 = vmatprep.subr.mxu0 0.0
      %6127 = vmatpush2.msra.mxu0 0.0
      %6128 = vmatprep.subr.mxu0 0.0
      %6129 = vmatpush2.msra.mxu0 0.0
      %6130 = vmatprep.subr.mxu0 0.0
      %6131 = vmatpush2.msra.mxu0 0.0
      %6132 = vmatprep.subr.mxu0 0.0
      %6133 = vmatpush2.msra.mxu0 0.0
      %6134 = vmatprep.mubr.f32.mxu0 0.0
      %6135 = vmatmul.mubr.f32.gmra.mxu0 %v5839
      %v6136 = vpop.f32.mrf.mxu0
      %v6137 = vadd.f32 0.0, %v6136
      %v6138 = vpop.f32.mrf.mxu0
      %v6139 = vadd.f32 0.0, %v6138
      %6140 = vmatprep.mubr.f32.mxu0 0.0
      %6141 = vmatmul.mubr.f32.gmra.mxu0 %v5841
      %v6142 = vpop.f32.mrf.mxu0
      %v6143 = vadd.f32 0.0, %v6142
      %v6144 = vpop.f32.mrf.mxu0
      %v6145 = vadd.f32 0.0, %v6144
      %6146 = vmatprep.mubr.f32.mxu0 0.0
      %6147 = vmatmul.mubr.f32.gmra.mxu0 %v5843
      %v6148 = vpop.f32.mrf.mxu0
      %v6149 = vadd.f32 0.0, %v6148
      %v6150 = vpop.f32.mrf.mxu0
      %v6151 = vadd.f32 0.0, %v6150
      %6152 = vmatprep.mubr.f32.mxu0 0.0
      %6153 = vmatmul.mubr.f32.gmra.mxu0 %v5845
      %v6154 = vpop.f32.mrf.mxu0
      %v6155 = vadd.f32 0.0, %v6154
      %v6156 = vpop.f32.mrf.mxu0
      %v6157 = vadd.f32 0.0, %v6156
      %6158 = vmatprep.mubr.f32.mxu0 0.0
      %6159 = vmatmul.mubr.f32.gmra.mxu0 %v5847
      %v6160 = vpop.f32.mrf.mxu0
      %v6161 = vadd.f32 0.0, %v6160
      %v6162 = vpop.f32.mrf.mxu0
      %v6163 = vadd.f32 0.0, %v6162
      %6164 = vdwg.mxu0
      %6165 = vmatprep.subr.mxu0 0.0
      %6166 = vmatpush1.msra.mxu0 0.0
      %6167 = vmatprep.subr.mxu0 0.0
      %6168 = vmatpush1.msra.mxu0 0.0
      %6169 = vmatprep.subr.mxu0 0.0
      %6170 = vmatpush1.msra.mxu0 0.0
      %6171 = vmatprep.subr.mxu0 0.0
      %6172 = vmatpush1.msra.mxu0 0.0
      %6173 = vmatprep.subr.mxu0 0.0
      %6174 = vmatpush1.msra.mxu0 0.0
      %6175 = vmatprep.subr.mxu0 0.0
      %6176 = vmatpush1.msra.mxu0 0.0
      %6177 = vmatprep.subr.mxu0 0.0
      %6178 = vmatpush1.msra.mxu0 0.0
      %6179 = vmatprep.subr.mxu0 0.0
      %6180 = vmatpush1.msra.mxu0 0.0
      %6181 = vmatprep.subr.mxu0 0.0
      %6182 = vmatpush1.msra.mxu0 0.0
      %6183 = vmatprep.subr.mxu0 0.0
      %6184 = vmatpush1.msra.mxu0 0.0
      %6185 = vmatprep.subr.mxu0 0.0
      %6186 = vmatpush1.msra.mxu0 0.0
      %6187 = vmatprep.subr.mxu0 0.0
      %6188 = vmatpush1.msra.mxu0 0.0
      %6189 = vmatprep.subr.mxu0 0.0
      %6190 = vmatpush1.msra.mxu0 0.0
      %6191 = vmatprep.subr.mxu0 0.0
      %6192 = vmatpush1.msra.mxu0 0.0
      %6193 = vmatprep.subr.mxu0 0.0
      %6194 = vmatpush1.msra.mxu0 0.0
      %6195 = vmatprep.subr.mxu0 %v5872
      %6196 = vmatpush1.msra.mxu0 %v5869
      %6197 = vmatprep.subr.mxu0 0.0
      %6198 = vmatpush2.msra.mxu0 0.0
      %6199 = vmatprep.subr.mxu0 0.0
      %6200 = vmatpush2.msra.mxu0 0.0
      %6201 = vmatprep.subr.mxu0 0.0
      %6202 = vmatpush2.msra.mxu0 0.0
      %6203 = vmatprep.subr.mxu0 0.0
      %6204 = vmatpush2.msra.mxu0 0.0
      %6205 = vmatprep.subr.mxu0 0.0
      %6206 = vmatpush2.msra.mxu0 0.0
      %6207 = vmatprep.subr.mxu0 0.0
      %6208 = vmatpush2.msra.mxu0 0.0
      %6209 = vmatprep.subr.mxu0 0.0
      %6210 = vmatpush2.msra.mxu0 0.0
      %6211 = vmatprep.subr.mxu0 0.0
      %6212 = vmatpush2.msra.mxu0 0.0
      %6213 = vmatprep.subr.mxu0 0.0
      %6214 = vmatpush2.msra.mxu0 0.0
      %6215 = vmatprep.subr.mxu0 0.0
      %6216 = vmatpush2.msra.mxu0 0.0
      %6217 = vmatprep.subr.mxu0 0.0
      %6218 = vmatpush2.msra.mxu0 0.0
      %6219 = vmatprep.subr.mxu0 0.0
      %6220 = vmatpush2.msra.mxu0 0.0
      %6221 = vmatprep.subr.mxu0 0.0
      %6222 = vmatpush2.msra.mxu0 0.0
      %6223 = vmatprep.subr.mxu0 0.0
      %6224 = vmatpush2.msra.mxu0 0.0
      %6225 = vmatprep.subr.mxu0 0.0
      %6226 = vmatpush2.msra.mxu0 0.0
      %6227 = vmatprep.subr.mxu0 0.0
      %6228 = vmatpush2.msra.mxu0 0.0
      %6229 = vmatprep.mubr.f32.mxu0 0.0
      %6230 = vmatmul.mubr.f32.gmra.mxu0 %v5839
      %v6231 = vpop.f32.mrf.mxu0
      %v6232 = vadd.f32 0.0, %v6231
      %v6233 = vpop.f32.mrf.mxu0
      %v6234 = vadd.f32 0.0, %v6233
      %6235 = vmatprep.mubr.f32.mxu0 0.0
      %6236 = vmatmul.mubr.f32.gmra.mxu0 %v5841
      %v6237 = vpop.f32.mrf.mxu0
      %v6238 = vadd.f32 0.0, %v6237
      %v6239 = vpop.f32.mrf.mxu0
      %v6240 = vadd.f32 0.0, %v6239
      %6241 = vmatprep.mubr.f32.mxu0 0.0
      %6242 = vmatmul.mubr.f32.gmra.mxu0 %v5843
      %v6243 = vpop.f32.mrf.mxu0
      %v6244 = vadd.f32 0.0, %v6243
      %v6245 = vpop.f32.mrf.mxu0
      %v6246 = vadd.f32 0.0, %v6245
      %6247 = vmatprep.mubr.f32.mxu0 0.0
      %6248 = vmatmul.mubr.f32.gmra.mxu0 %v5845
      %v6249 = vpop.f32.mrf.mxu0
      %v6250 = vadd.f32 0.0, %v6249
      %v6251 = vpop.f32.mrf.mxu0
      %v6252 = vadd.f32 0.0, %v6251
      %6253 = vmatprep.mubr.f32.mxu0 0.0
      %6254 = vmatmul.mubr.f32.gmra.mxu0 %v5847
      %v6255 = vpop.f32.mrf.mxu0
      %v6256 = vadd.f32 0.0, %v6255
      %v6257 = vpop.f32.mrf.mxu0
      %v6258 = vadd.f32 0.0, %v6257
      %6259 = vdwg.mxu0
      %6260 = vmatprep.subr.mxu0 0.0
      %6261 = vmatpush1.msra.mxu0 0.0
      %6262 = vmatprep.subr.mxu0 0.0
      %6263 = vmatpush1.msra.mxu0 0.0
      %6264 = vmatprep.subr.mxu0 0.0
      %6265 = vmatpush1.msra.mxu0 0.0
      %6266 = vmatprep.subr.mxu0 0.0
      %6267 = vmatpush1.msra.mxu0 0.0
      %6268 = vmatprep.subr.mxu0 0.0
      %6269 = vmatpush1.msra.mxu0 0.0
      %6270 = vmatprep.subr.mxu0 0.0
      %6271 = vmatpush1.msra.mxu0 0.0
      %6272 = vmatprep.subr.mxu0 0.0
      %6273 = vmatpush1.msra.mxu0 0.0
      %6274 = vmatprep.subr.mxu0 0.0
      %6275 = vmatpush1.msra.mxu0 0.0
      %6276 = vmatprep.subr.mxu0 0.0
      %6277 = vmatpush1.msra.mxu0 0.0
      %6278 = vmatprep.subr.mxu0 0.0
      %6279 = vmatpush1.msra.mxu0 0.0
      %6280 = vmatprep.subr.mxu0 0.0
      %6281 = vmatpush1.msra.mxu0 0.0
      %6282 = vmatprep.subr.mxu0 0.0
      %6283 = vmatpush1.msra.mxu0 0.0
      %6284 = vmatprep.subr.mxu0 0.0
      %6285 = vmatpush1.msra.mxu0 0.0
      %6286 = vmatprep.subr.mxu0 0.0
      %6287 = vmatpush1.msra.mxu0 0.0
      %6288 = vmatprep.subr.mxu0 0.0
      %6289 = vmatpush1.msra.mxu0 0.0
      %6290 = vmatprep.subr.mxu0 %v5878
      %6291 = vmatpush1.msra.mxu0 %v5875
      %6292 = vmatprep.subr.mxu0 0.0
      %6293 = vmatpush2.msra.mxu0 0.0
      %6294 = vmatprep.subr.mxu0 0.0
      %6295 = vmatpush2.msra.mxu0 0.0
      %6296 = vmatprep.subr.mxu0 0.0
      %6297 = vmatpush2.msra.mxu0 0.0
      %6298 = vmatprep.subr.mxu0 0.0
      %6299 = vmatpush2.msra.mxu0 0.0
      %6300 = vmatprep.subr.mxu0 0.0
      %6301 = vmatpush2.msra.mxu0 0.0
      %6302 = vmatprep.subr.mxu0 0.0
      %6303 = vmatpush2.msra.mxu0 0.0
      %6304 = vmatprep.subr.mxu0 0.0
      %6305 = vmatpush2.msra.mxu0 0.0
      %6306 = vmatprep.subr.mxu0 0.0
      %6307 = vmatpush2.msra.mxu0 0.0
      %6308 = vmatprep.subr.mxu0 0.0
      %6309 = vmatpush2.msra.mxu0 0.0
      %6310 = vmatprep.subr.mxu0 0.0
      %6311 = vmatpush2.msra.mxu0 0.0
      %6312 = vmatprep.subr.mxu0 0.0
      %6313 = vmatpush2.msra.mxu0 0.0
      %6314 = vmatprep.subr.mxu0 0.0
      %6315 = vmatpush2.msra.mxu0 0.0
      %6316 = vmatprep.subr.mxu0 0.0
      %6317 = vmatpush2.msra.mxu0 0.0
      %6318 = vmatprep.subr.mxu0 0.0
      %6319 = vmatpush2.msra.mxu0 0.0
      %6320 = vmatprep.subr.mxu0 0.0
      %6321 = vmatpush2.msra.mxu0 0.0
      %6322 = vmatprep.subr.mxu0 0.0
      %6323 = vmatpush2.msra.mxu0 0.0
      %6324 = vmatprep.mubr.f32.mxu0 0.0
      %6325 = vmatmul.mubr.f32.gmra.mxu0 %v5839
      %v6326 = vpop.f32.mrf.mxu0
      %v6327 = vadd.f32 0.0, %v6326
      %v6328 = vpop.f32.mrf.mxu0
      %v6329 = vadd.f32 0.0, %v6328
      %6330 = vmatprep.mubr.f32.mxu0 0.0
      %6331 = vmatmul.mubr.f32.gmra.mxu0 %v5841
      %v6332 = vpop.f32.mrf.mxu0
      %v6333 = vadd.f32 0.0, %v6332
      %v6334 = vpop.f32.mrf.mxu0
      %v6335 = vadd.f32 0.0, %v6334
      %6336 = vmatprep.mubr.f32.mxu0 0.0
      %6337 = vmatmul.mubr.f32.gmra.mxu0 %v5843
      %v6338 = vpop.f32.mrf.mxu0
      %v6339 = vadd.f32 0.0, %v6338
      %v6340 = vpop.f32.mrf.mxu0
      %v6341 = vadd.f32 0.0, %v6340
      %6342 = vmatprep.mubr.f32.mxu0 0.0
      %6343 = vmatmul.mubr.f32.gmra.mxu0 %v5845
      %v6344 = vpop.f32.mrf.mxu0
      %v6345 = vadd.f32 0.0, %v6344
      %v6346 = vpop.f32.mrf.mxu0
      %v6347 = vadd.f32 0.0, %v6346
      %6348 = vmatprep.mubr.f32.mxu0 0.0
      %6349 = vmatmul.mubr.f32.gmra.mxu0 %v5847
      %v6350 = vpop.f32.mrf.mxu0
      %v6351 = vadd.f32 0.0, %v6350
      %v6352 = vpop.f32.mrf.mxu0
      %v6353 = vadd.f32 0.0, %v6352
      %6354 = vdwg.mxu0
      %v6365 = vrot.slane %v5947, 4
      %v6366 = vrot.slane %v5949, 4
      %v6367 = vrot.slane %v6042, 4
      %v6368 = vrot.slane %v6044, 4
      %v6369 = vrot.slane %v6137, 4
      %v6370 = vrot.slane %v6139, 4
      %v6371 = vrot.slane %v6232, 4
      %v6372 = vrot.slane %v6234, 4
      %v6373 = vrot.slane %v6327, 4
      %v6374 = vrot.slane %v6329, 4
      %6375 = vrot.lane.b32.xlu0 %v6365, 127
      %v6376 = vpop.permute.xlu0 %6375
      %6377 = vrot.lane.b32.xlu0 %v6366, 127
      %v6378 = vpop.permute.xlu0 %6377
      %6379 = vrot.lane.b32.xlu0 %v6367, 127
      %v6380 = vpop.permute.xlu0 %6379
      %6381 = vrot.lane.b32.xlu0 %v6368, 127
      %v6382 = vpop.permute.xlu0 %6381
      %6383 = vrot.lane.b32.xlu0 %v6369, 127
      %v6384 = vpop.permute.xlu0 %6383
      %6385 = vrot.lane.b32.xlu0 %v6370, 127
      %v6386 = vpop.permute.xlu0 %6385
      %6387 = vrot.lane.b32.xlu0 %v6371, 127
      %v6388 = vpop.permute.xlu0 %6387
      %6389 = vrot.lane.b32.xlu0 %v6372, 127
      %v6390 = vpop.permute.xlu0 %6389
      %6391 = vrot.lane.b32.xlu0 %v6373, 127
      %v6392 = vpop.permute.xlu0 %6391
      %6393 = vrot.lane.b32.xlu0 %v6374, 127
      %v6394 = vpop.permute.xlu0 %6393
      %v6395 = vsel %vm1699, %v6376, %v6378
      %v6396 = vsel %vm1699, %v6378, %v6380
      %v6397 = vsel %vm1699, %v6380, %v6382
      %v6398 = vsel %vm1699, %v6382, %v6384
      %v6399 = vsel %vm1699, %v6384, %v6386
      %v6400 = vsel %vm1699, %v6386, %v6388
      %v6401 = vsel %vm1699, %v6388, %v6390
      %v6402 = vsel %vm1699, %v6390, %v6392
      %v6403 = vsel %vm1699, %v6392, %v6394
      %v6414 = vadd.f32 %v5947, %v6395
      %v6415 = vadd.f32 %v5949, %v6396
      %v6416 = vadd.f32 %v6042, %v6397
      %v6417 = vadd.f32 %v6044, %v6398
      %v6418 = vadd.f32 %v6137, %v6399
      %v6419 = vadd.f32 %v6139, %v6400
      %v6420 = vadd.f32 %v6232, %v6401
      %v6421 = vadd.f32 %v6234, %v6402
      %v6422 = vadd.f32 %v6327, %v6403
      %v6423 = vadd.f32 %v6329, %v6394
      %6434 = vrot.lane.b32.xlu0 %v5953, 126
      %v6435 = vpop.permute.xlu0 %6434
      %6436 = vrot.lane.b32.xlu0 %v5955, 126
      %v6437 = vpop.permute.xlu0 %6436
      %6438 = vrot.lane.b32.xlu0 %v6048, 126
      %v6439 = vpop.permute.xlu0 %6438
      %6440 = vrot.lane.b32.xlu0 %v6050, 126
      %v6441 = vpop.permute.xlu0 %6440
      %6442 = vrot.lane.b32.xlu0 %v6143, 126
      %v6443 = vpop.permute.xlu0 %6442
      %6444 = vrot.lane.b32.xlu0 %v6145, 126
      %v6445 = vpop.permute.xlu0 %6444
      %6446 = vrot.lane.b32.xlu0 %v6238, 126
      %v6447 = vpop.permute.xlu0 %6446
      %6448 = vrot.lane.b32.xlu0 %v6240, 126
      %v6449 = vpop.permute.xlu0 %6448
      %6450 = vrot.lane.b32.xlu0 %v6333, 126
      %v6451 = vpop.permute.xlu0 %6450
      %6452 = vrot.lane.b32.xlu0 %v6335, 126
      %v6453 = vpop.permute.xlu0 %6452
      %v6454 = vsel %vm1759, %v6435, %v6437
      %v6455 = vsel %vm1759, %v6437, %v6439
      %v6456 = vsel %vm1759, %v6439, %v6441
      %v6457 = vsel %vm1759, %v6441, %v6443
      %v6458 = vsel %vm1759, %v6443, %v6445
      %v6459 = vsel %vm1759, %v6445, %v6447
      %v6460 = vsel %vm1759, %v6447, %v6449
      %v6461 = vsel %vm1759, %v6449, %v6451
      %v6462 = vsel %vm1759, %v6451, %v6453
      %v6473 = vadd.f32 %v6414, %v6454
      %v6474 = vadd.f32 %v6415, %v6455
      %v6475 = vadd.f32 %v6416, %v6456
      %v6476 = vadd.f32 %v6417, %v6457
      %v6477 = vadd.f32 %v6418, %v6458
      %v6478 = vadd.f32 %v6419, %v6459
      %v6479 = vadd.f32 %v6420, %v6460
      %v6480 = vadd.f32 %v6421, %v6461
      %v6481 = vadd.f32 %v6422, %v6462
      %v6482 = vadd.f32 %v6423, %v6453
      %v6483 = vrot.slane %v5953, 4
      %v6484 = vrot.slane %v5955, 4
      %v6485 = vrot.slane %v6048, 4
      %v6486 = vrot.slane %v6050, 4
      %v6487 = vrot.slane %v6143, 4
      %v6488 = vrot.slane %v6145, 4
      %v6489 = vrot.slane %v6238, 4
      %v6490 = vrot.slane %v6240, 4
      %v6491 = vrot.slane %v6333, 4
      %v6492 = vrot.slane %v6335, 4
      %6493 = vrot.lane.b32.xlu0 %v6483, 93
      %v6494 = vpop.permute.xlu0 %6493
      %6495 = vrot.lane.b32.xlu0 %v6484, 93
      %v6496 = vpop.permute.xlu0 %6495
      %6497 = vrot.lane.b32.xlu0 %v6485, 93
      %v6498 = vpop.permute.xlu0 %6497
      %6499 = vrot.lane.b32.xlu0 %v6486, 93
      %v6500 = vpop.permute.xlu0 %6499
      %6501 = vrot.lane.b32.xlu0 %v6487, 93
      %v6502 = vpop.permute.xlu0 %6501
      %6503 = vrot.lane.b32.xlu0 %v6488, 93
      %v6504 = vpop.permute.xlu0 %6503
      %6505 = vrot.lane.b32.xlu0 %v6489, 93
      %v6506 = vpop.permute.xlu0 %6505
      %6507 = vrot.lane.b32.xlu0 %v6490, 93
      %v6508 = vpop.permute.xlu0 %6507
      %6509 = vrot.lane.b32.xlu0 %v6491, 93
      %v6510 = vpop.permute.xlu0 %6509
      %6511 = vrot.lane.b32.xlu0 %v6492, 93
      %v6512 = vpop.permute.xlu0 %6511
      %v6513 = vsel %vm1819, %v6494, %v6496
      %v6514 = vsel %vm1819, %v6496, %v6498
      %v6515 = vsel %vm1819, %v6498, %v6500
      %v6516 = vsel %vm1819, %v6500, %v6502
      %v6517 = vsel %vm1819, %v6502, %v6504
      %v6518 = vsel %vm1819, %v6504, %v6506
      %v6519 = vsel %vm1819, %v6506, %v6508
      %v6520 = vsel %vm1819, %v6508, %v6510
      %v6521 = vsel %vm1819, %v6510, %v6512
      %v6532 = vadd.f32 %v6473, %v6513
      %v6533 = vadd.f32 %v6474, %v6514
      %v6534 = vadd.f32 %v6475, %v6515
      %v6535 = vadd.f32 %v6476, %v6516
      %v6536 = vadd.f32 %v6477, %v6517
      %v6537 = vadd.f32 %v6478, %v6518
      %v6538 = vadd.f32 %v6479, %v6519
      %v6539 = vadd.f32 %v6480, %v6520
      %v6540 = vadd.f32 %v6481, %v6521
      %v6541 = vadd.f32 %v6482, %v6512
      %6552 = vrot.lane.b32.xlu0 %v5959, 92
      %v6553 = vpop.permute.xlu0 %6552
      %6554 = vrot.lane.b32.xlu0 %v5961, 92
      %v6555 = vpop.permute.xlu0 %6554
      %6556 = vrot.lane.b32.xlu0 %v6054, 92
      %v6557 = vpop.permute.xlu0 %6556
      %6558 = vrot.lane.b32.xlu0 %v6056, 92
      %v6559 = vpop.permute.xlu0 %6558
      %6560 = vrot.lane.b32.xlu0 %v6149, 92
      %v6561 = vpop.permute.xlu0 %6560
      %6562 = vrot.lane.b32.xlu0 %v6151, 92
      %v6563 = vpop.permute.xlu0 %6562
      %6564 = vrot.lane.b32.xlu0 %v6244, 92
      %v6565 = vpop.permute.xlu0 %6564
      %6566 = vrot.lane.b32.xlu0 %v6246, 92
      %v6567 = vpop.permute.xlu0 %6566
      %6568 = vrot.lane.b32.xlu0 %v6339, 92
      %v6569 = vpop.permute.xlu0 %6568
      %6570 = vrot.lane.b32.xlu0 %v6341, 92
      %v6571 = vpop.permute.xlu0 %6570
      %v6572 = vsel %vm1879, %v6553, %v6555
      %v6573 = vsel %vm1879, %v6555, %v6557
      %v6574 = vsel %vm1879, %v6557, %v6559
      %v6575 = vsel %vm1879, %v6559, %v6561
      %v6576 = vsel %vm1879, %v6561, %v6563
      %v6577 = vsel %vm1879, %v6563, %v6565
      %v6578 = vsel %vm1879, %v6565, %v6567
      %v6579 = vsel %vm1879, %v6567, %v6569
      %v6580 = vsel %vm1879, %v6569, %v6571
      %v6591 = vadd.f32 %v6532, %v6572
      %v6592 = vadd.f32 %v6533, %v6573
      %v6593 = vadd.f32 %v6534, %v6574
      %v6594 = vadd.f32 %v6535, %v6575
      %v6595 = vadd.f32 %v6536, %v6576
      %v6596 = vadd.f32 %v6537, %v6577
      %v6597 = vadd.f32 %v6538, %v6578
      %v6598 = vadd.f32 %v6539, %v6579
      %v6599 = vadd.f32 %v6540, %v6580
      %v6600 = vadd.f32 %v6541, %v6571
      %v6601 = vrot.slane %v5959, 4
      %v6602 = vrot.slane %v5961, 4
      %v6603 = vrot.slane %v6054, 4
      %v6604 = vrot.slane %v6056, 4
      %v6605 = vrot.slane %v6149, 4
      %v6606 = vrot.slane %v6151, 4
      %v6607 = vrot.slane %v6244, 4
      %v6608 = vrot.slane %v6246, 4
      %v6609 = vrot.slane %v6339, 4
      %v6610 = vrot.slane %v6341, 4
      %6611 = vrot.lane.b32.xlu0 %v6601, 91
      %v6612 = vpop.permute.xlu0 %6611
      %6613 = vrot.lane.b32.xlu0 %v6602, 91
      %v6614 = vpop.permute.xlu0 %6613
      %6615 = vrot.lane.b32.xlu0 %v6603, 91
      %v6616 = vpop.permute.xlu0 %6615
      %6617 = vrot.lane.b32.xlu0 %v6604, 91
      %v6618 = vpop.permute.xlu0 %6617
      %6619 = vrot.lane.b32.xlu0 %v6605, 91
      %v6620 = vpop.permute.xlu0 %6619
      %6621 = vrot.lane.b32.xlu0 %v6606, 91
      %v6622 = vpop.permute.xlu0 %6621
      %6623 = vrot.lane.b32.xlu0 %v6607, 91
      %v6624 = vpop.permute.xlu0 %6623
      %6625 = vrot.lane.b32.xlu0 %v6608, 91
      %v6626 = vpop.permute.xlu0 %6625
      %6627 = vrot.lane.b32.xlu0 %v6609, 91
      %v6628 = vpop.permute.xlu0 %6627
      %6629 = vrot.lane.b32.xlu0 %v6610, 91
      %v6630 = vpop.permute.xlu0 %6629
      %v6631 = vsel %vm1939, %v6612, %v6614
      %v6632 = vsel %vm1939, %v6614, %v6616
      %v6633 = vsel %vm1939, %v6616, %v6618
      %v6634 = vsel %vm1939, %v6618, %v6620
      %v6635 = vsel %vm1939, %v6620, %v6622
      %v6636 = vsel %vm1939, %v6622, %v6624
      %v6637 = vsel %vm1939, %v6624, %v6626
      %v6638 = vsel %vm1939, %v6626, %v6628
      %v6639 = vsel %vm1939, %v6628, %v6630
      %v6650 = vadd.f32 %v6591, %v6631
      %v6651 = vadd.f32 %v6592, %v6632
      %v6652 = vadd.f32 %v6593, %v6633
      %v6653 = vadd.f32 %v6594, %v6634
      %v6654 = vadd.f32 %v6595, %v6635
      %v6655 = vadd.f32 %v6596, %v6636
      %v6656 = vadd.f32 %v6597, %v6637
      %v6657 = vadd.f32 %v6598, %v6638
      %v6658 = vadd.f32 %v6599, %v6639
      %v6659 = vadd.f32 %v6600, %v6630
      %6670 = vrot.lane.b32.xlu0 %v5965, 58
      %v6671 = vpop.permute.xlu0 %6670
      %6672 = vrot.lane.b32.xlu0 %v5967, 58
      %v6673 = vpop.permute.xlu0 %6672
      %6674 = vrot.lane.b32.xlu0 %v6060, 58
      %v6675 = vpop.permute.xlu0 %6674
      %6676 = vrot.lane.b32.xlu0 %v6062, 58
      %v6677 = vpop.permute.xlu0 %6676
      %6678 = vrot.lane.b32.xlu0 %v6155, 58
      %v6679 = vpop.permute.xlu0 %6678
      %6680 = vrot.lane.b32.xlu0 %v6157, 58
      %v6681 = vpop.permute.xlu0 %6680
      %6682 = vrot.lane.b32.xlu0 %v6250, 58
      %v6683 = vpop.permute.xlu0 %6682
      %6684 = vrot.lane.b32.xlu0 %v6252, 58
      %v6685 = vpop.permute.xlu0 %6684
      %6686 = vrot.lane.b32.xlu0 %v6345, 58
      %v6687 = vpop.permute.xlu0 %6686
      %6688 = vrot.lane.b32.xlu0 %v6347, 58
      %v6689 = vpop.permute.xlu0 %6688
      %v6690 = vsel %vm1999, %v6671, %v6673
      %v6691 = vsel %vm1999, %v6673, %v6675
      %v6692 = vsel %vm1999, %v6675, %v6677
      %v6693 = vsel %vm1999, %v6677, %v6679
      %v6694 = vsel %vm1999, %v6679, %v6681
      %v6695 = vsel %vm1999, %v6681, %v6683
      %v6696 = vsel %vm1999, %v6683, %v6685
      %v6697 = vsel %vm1999, %v6685, %v6687
      %v6698 = vsel %vm1999, %v6687, %v6689
      %v6709 = vadd.f32 %v6650, %v6690
      %v6710 = vadd.f32 %v6651, %v6691
      %v6711 = vadd.f32 %v6652, %v6692
      %v6712 = vadd.f32 %v6653, %v6693
      %v6713 = vadd.f32 %v6654, %v6694
      %v6714 = vadd.f32 %v6655, %v6695
      %v6715 = vadd.f32 %v6656, %v6696
      %v6716 = vadd.f32 %v6657, %v6697
      %v6717 = vadd.f32 %v6658, %v6698
      %v6718 = vadd.f32 %v6659, %v6689
      %v6719 = vrot.slane %v5965, 4
      %v6720 = vrot.slane %v5967, 4
      %v6721 = vrot.slane %v6060, 4
      %v6722 = vrot.slane %v6062, 4
      %v6723 = vrot.slane %v6155, 4
      %v6724 = vrot.slane %v6157, 4
      %v6725 = vrot.slane %v6250, 4
      %v6726 = vrot.slane %v6252, 4
      %v6727 = vrot.slane %v6345, 4
      %v6728 = vrot.slane %v6347, 4
      %6729 = vrot.lane.b32.xlu0 %v6719, 57
      %v6730 = vpop.permute.xlu0 %6729
      %6731 = vrot.lane.b32.xlu0 %v6720, 57
      %v6732 = vpop.permute.xlu0 %6731
      %6733 = vrot.lane.b32.xlu0 %v6721, 57
      %v6734 = vpop.permute.xlu0 %6733
      %6735 = vrot.lane.b32.xlu0 %v6722, 57
      %v6736 = vpop.permute.xlu0 %6735
      %6737 = vrot.lane.b32.xlu0 %v6723, 57
      %v6738 = vpop.permute.xlu0 %6737
      %6739 = vrot.lane.b32.xlu0 %v6724, 57
      %v6740 = vpop.permute.xlu0 %6739
      %6741 = vrot.lane.b32.xlu0 %v6725, 57
      %v6742 = vpop.permute.xlu0 %6741
      %6743 = vrot.lane.b32.xlu0 %v6726, 57
      %v6744 = vpop.permute.xlu0 %6743
      %6745 = vrot.lane.b32.xlu0 %v6727, 57
      %v6746 = vpop.permute.xlu0 %6745
      %6747 = vrot.lane.b32.xlu0 %v6728, 57
      %v6748 = vpop.permute.xlu0 %6747
      %v6749 = vsel %vm2059, %v6730, %v6732
      %v6750 = vsel %vm2059, %v6732, %v6734
      %v6751 = vsel %vm2059, %v6734, %v6736
      %v6752 = vsel %vm2059, %v6736, %v6738
      %v6753 = vsel %vm2059, %v6738, %v6740
      %v6754 = vsel %vm2059, %v6740, %v6742
      %v6755 = vsel %vm2059, %v6742, %v6744
      %v6756 = vsel %vm2059, %v6744, %v6746
      %v6757 = vsel %vm2059, %v6746, %v6748
      %v6768 = vadd.f32 %v6709, %v6749
      %v6769 = vadd.f32 %v6710, %v6750
      %v6770 = vadd.f32 %v6711, %v6751
      %v6771 = vadd.f32 %v6712, %v6752
      %v6772 = vadd.f32 %v6713, %v6753
      %v6773 = vadd.f32 %v6714, %v6754
      %v6774 = vadd.f32 %v6715, %v6755
      %v6775 = vadd.f32 %v6716, %v6756
      %v6776 = vadd.f32 %v6717, %v6757
      %v6777 = vadd.f32 %v6718, %v6748
      %6788 = vrot.lane.b32.xlu0 %v5971, 56
      %v6789 = vpop.permute.xlu0 %6788
      %6790 = vrot.lane.b32.xlu0 %v5973, 56
      %v6791 = vpop.permute.xlu0 %6790
      %6792 = vrot.lane.b32.xlu0 %v6066, 56
      %v6793 = vpop.permute.xlu0 %6792
      %6794 = vrot.lane.b32.xlu0 %v6068, 56
      %v6795 = vpop.permute.xlu0 %6794
      %6796 = vrot.lane.b32.xlu0 %v6161, 56
      %v6797 = vpop.permute.xlu0 %6796
      %6798 = vrot.lane.b32.xlu0 %v6163, 56
      %v6799 = vpop.permute.xlu0 %6798
      %6800 = vrot.lane.b32.xlu0 %v6256, 56
      %v6801 = vpop.permute.xlu0 %6800
      %6802 = vrot.lane.b32.xlu0 %v6258, 56
      %v6803 = vpop.permute.xlu0 %6802
      %6804 = vrot.lane.b32.xlu0 %v6351, 56
      %v6805 = vpop.permute.xlu0 %6804
      %6806 = vrot.lane.b32.xlu0 %v6353, 56
      %v6807 = vpop.permute.xlu0 %6806
      %v6808 = vsel %vm2119, %v6789, %v6791
      %v6809 = vsel %vm2119, %v6791, %v6793
      %v6810 = vsel %vm2119, %v6793, %v6795
      %v6811 = vsel %vm2119, %v6795, %v6797
      %v6812 = vsel %vm2119, %v6797, %v6799
      %v6813 = vsel %vm2119, %v6799, %v6801
      %v6814 = vsel %vm2119, %v6801, %v6803
      %v6815 = vsel %vm2119, %v6803, %v6805
      %v6816 = vsel %vm2119, %v6805, %v6807
      %v6827 = vadd.f32 %v6768, %v6808
      %v6828 = vadd.f32 %v6769, %v6809
      %v6829 = vadd.f32 %v6770, %v6810
      %v6830 = vadd.f32 %v6771, %v6811
      %v6831 = vadd.f32 %v6772, %v6812
      %v6832 = vadd.f32 %v6773, %v6813
      %v6833 = vadd.f32 %v6774, %v6814
      %v6834 = vadd.f32 %v6775, %v6815
      %v6835 = vadd.f32 %v6776, %v6816
      %v6836 = vadd.f32 %v6777, %v6807
      %6837 = vset.pattern.permute.xlu0 24
      %6838 = vperm.xlu0 %6837, %v5814
      %v6839 = vpop.permute.xlu0 %6838
      %v6841 = vadd.f32 %v6827, %v6839
      %v6842 = vadd.f32 %v6828, %v6839
      %v6843 = vadd.f32 %v6829, %v6839
      %v6844 = vadd.f32 %v6830, %v6839
      %v6845 = vadd.f32 %v6831, %v6839
      %v6846 = vadd.f32 %v6832, %v6839
      %v6847 = vadd.f32 %v6833, %v6839
      %v6848 = vadd.f32 %v6834, %v6839
      %v6849 = vadd.f32 %v6835, %v6839
      %v6850 = vadd.f32 %v6836, %v6839
      %v6851 = vmax.f32 %v6841, 0.0
      %v6852 = vmax.f32 %v6842, 0.0
      %v6853 = vmax.f32 %v6843, 0.0
      %v6854 = vmax.f32 %v6844, 0.0
      %v6855 = vmax.f32 %v6845, 0.0
      %v6856 = vmax.f32 %v6846, 0.0
      %v6857 = vmax.f32 %v6847, 0.0
      %v6858 = vmax.f32 %v6848, 0.0
      %v6859 = vmax.f32 %v6849, 0.0
      %v6860 = vmax.f32 %v6850, 0.0
      %6871 = vrot.lane.b32.xlu0 %v6851, 36
      %v6872 = vpop.permute.xlu0 %6871
      %6873 = vrot.lane.b32.xlu0 %v6852, 36
      %v6874 = vpop.permute.xlu0 %6873
      %6875 = vrot.lane.b32.xlu0 %v6853, 36
      %v6876 = vpop.permute.xlu0 %6875
      %6877 = vrot.lane.b32.xlu0 %v6854, 36
      %v6878 = vpop.permute.xlu0 %6877
      %6879 = vrot.lane.b32.xlu0 %v6855, 36
      %v6880 = vpop.permute.xlu0 %6879
      %6881 = vrot.lane.b32.xlu0 %v6856, 36
      %v6882 = vpop.permute.xlu0 %6881
      %6883 = vrot.lane.b32.xlu0 %v6857, 36
      %v6884 = vpop.permute.xlu0 %6883
      %6885 = vrot.lane.b32.xlu0 %v6858, 36
      %v6886 = vpop.permute.xlu0 %6885
      %6887 = vrot.lane.b32.xlu0 %v6859, 36
      %v6888 = vpop.permute.xlu0 %6887
      %6889 = vrot.lane.b32.xlu0 %v6860, 36
      %v6890 = vpop.permute.xlu0 %6889
      %v6891 = vsel %vm2203, %v6872, %v6874
      %v6892 = vsel %vm2203, %v6874, %v6876
      %v6893 = vsel %vm2203, %v6876, %v6878
      %v6894 = vsel %vm2203, %v6878, %v6880
      %v6895 = vsel %vm2203, %v6880, %v6882
      %v6896 = vsel %vm2203, %v6882, %v6884
      %v6897 = vsel %vm2203, %v6884, %v6886
      %v6898 = vsel %vm2203, %v6886, %v6888
      %v6899 = vsel %vm2203, %v6888, %v6890
      %v6910 = vsel %vm2203, 0.0, %v6872
      %v6911 = vsel %vm1879, %v6899, 0.0
      %v6912 = vmul.f32 %v6910, %v2230
      %v6913 = vmul.f32 %v6891, %v2234
      %v6914 = vmul.f32 %v6892, %v2238
      %v6915 = vmul.f32 %v6893, %v2242
      %v6916 = vmul.f32 %v6894, %v2246
      %v6917 = vmul.f32 %v6895, %v2250
      %v6918 = vmul.f32 %v6896, %v2254
      %v6919 = vmul.f32 %v6897, %v2258
      %v6920 = vmul.f32 %v6898, %v2262
      %v6921 = vmul.f32 %v6911, %v2266
      %6932 = vrot.lane.b32.xlu0 %v6912, 127
      %v6933 = vpop.permute.xlu0 %6932
      %6934 = vrot.lane.b32.xlu0 %v6913, 127
      %v6935 = vpop.permute.xlu0 %6934
      %6936 = vrot.lane.b32.xlu0 %v6914, 127
      %v6937 = vpop.permute.xlu0 %6936
      %6938 = vrot.lane.b32.xlu0 %v6915, 127
      %v6939 = vpop.permute.xlu0 %6938
      %6940 = vrot.lane.b32.xlu0 %v6916, 127
      %v6941 = vpop.permute.xlu0 %6940
      %6942 = vrot.lane.b32.xlu0 %v6917, 127
      %v6943 = vpop.permute.xlu0 %6942
      %6944 = vrot.lane.b32.xlu0 %v6918, 127
      %v6945 = vpop.permute.xlu0 %6944
      %6946 = vrot.lane.b32.xlu0 %v6919, 127
      %v6947 = vpop.permute.xlu0 %6946
      %6948 = vrot.lane.b32.xlu0 %v6920, 127
      %v6949 = vpop.permute.xlu0 %6948
      %6950 = vrot.lane.b32.xlu0 %v6921, 127
      %v6951 = vpop.permute.xlu0 %6950
      %v6952 = vsel %vm1699, %v6933, %v6935
      %v6953 = vsel %vm1699, %v6935, %v6937
      %v6954 = vsel %vm1699, %v6937, %v6939
      %v6955 = vsel %vm1699, %v6939, %v6941
      %v6956 = vsel %vm1699, %v6941, %v6943
      %v6957 = vsel %vm1699, %v6943, %v6945
      %v6958 = vsel %vm1699, %v6945, %v6947
      %v6959 = vsel %vm1699, %v6947, %v6949
      %v6960 = vsel %vm1699, %v6949, %v6951
      %v6971 = vmax.f32 %v6912, %v6952
      %v6972 = vmax.f32 %v6913, %v6953
      %v6973 = vmax.f32 %v6914, %v6954
      %v6974 = vmax.f32 %v6915, %v6955
      %v6975 = vmax.f32 %v6916, %v6956
      %v6976 = vmax.f32 %v6917, %v6957
      %v6977 = vmax.f32 %v6918, %v6958
      %v6978 = vmax.f32 %v6919, %v6959
      %v6979 = vmax.f32 %v6920, %v6960
      %v6980 = vmax.f32 %v6921, %v6951
      %6991 = vrot.lane.b32.xlu0 %v6971, 93
      %v6992 = vpop.permute.xlu0 %6991
      %6993 = vrot.lane.b32.xlu0 %v6972, 93
      %v6994 = vpop.permute.xlu0 %6993
      %6995 = vrot.lane.b32.xlu0 %v6973, 93
      %v6996 = vpop.permute.xlu0 %6995
      %6997 = vrot.lane.b32.xlu0 %v6974, 93
      %v6998 = vpop.permute.xlu0 %6997
      %6999 = vrot.lane.b32.xlu0 %v6975, 93
      %v7000 = vpop.permute.xlu0 %6999
      %7001 = vrot.lane.b32.xlu0 %v6976, 93
      %v7002 = vpop.permute.xlu0 %7001
      %7003 = vrot.lane.b32.xlu0 %v6977, 93
      %v7004 = vpop.permute.xlu0 %7003
      %7005 = vrot.lane.b32.xlu0 %v6978, 93
      %v7006 = vpop.permute.xlu0 %7005
      %7007 = vrot.lane.b32.xlu0 %v6979, 93
      %v7008 = vpop.permute.xlu0 %7007
      %7009 = vrot.lane.b32.xlu0 %v6980, 93
      %v7010 = vpop.permute.xlu0 %7009
      %v7011 = vsel %vm1819, %v6992, %v6994
      %v7012 = vsel %vm1819, %v6994, %v6996
      %v7013 = vsel %vm1819, %v6996, %v6998
      %v7014 = vsel %vm1819, %v6998, %v7000
      %v7015 = vsel %vm1819, %v7000, %v7002
      %v7016 = vsel %vm1819, %v7002, %v7004
      %v7017 = vsel %vm1819, %v7004, %v7006
      %v7018 = vsel %vm1819, %v7006, %v7008
      %v7019 = vsel %vm1819, %v7008, %v7010
      %v7030 = vmax.f32 %v6971, %v7011
      %v7031 = vmax.f32 %v6972, %v7012
      %v7032 = vmax.f32 %v6973, %v7013
      %v7033 = vmax.f32 %v6974, %v7014
      %v7034 = vmax.f32 %v6975, %v7015
      %v7035 = vmax.f32 %v6976, %v7016
      %v7036 = vmax.f32 %v6977, %v7017
      %v7037 = vmax.f32 %v6978, %v7018
      %v7038 = vmax.f32 %v6979, %v7019
      %v7039 = vmax.f32 %v6980, %v7010
      %v7041 = vsel %vm1879, %v7039, 0
      %7043 = vmatprep.subr.mxu0 %v301
      %7044 = vmatpush1.msra.mxu0 %v300
      %7045 = vmatprep.subr.mxu0 %v298
      %7046 = vmatpush1.msra.mxu0 %v297
      %7047 = vmatprep.subr.mxu0 %v295
      %7048 = vmatpush1.msra.mxu0 %v294
      %7049 = vmatprep.subr.mxu0 %v292
      %7050 = vmatpush1.msra.mxu0 %v291
      %7051 = vmatprep.subr.mxu0 %v289
      %7052 = vmatpush1.msra.mxu0 %v288
      %7053 = vmatprep.subr.mxu0 %v286
      %7054 = vmatpush1.msra.mxu0 %v285
      %7055 = vmatprep.subr.mxu0 %v283
      %7056 = vmatpush1.msra.mxu0 %v282
      %7057 = vmatprep.subr.mxu0 %v280
      %7058 = vmatpush1.msra.mxu0 %v279
      %7059 = vmatprep.subr.mxu0 %v277
      %7060 = vmatpush1.msra.mxu0 %v276
      %7061 = vmatprep.subr.mxu0 %v274
      %7062 = vmatpush1.msra.mxu0 %v273
      %7063 = vmatprep.subr.mxu0 %v271
      %7064 = vmatpush1.msra.mxu0 %v270
      %7065 = vmatprep.subr.mxu0 %v268
      %7066 = vmatpush1.msra.mxu0 %v267
      %7067 = vmatprep.subr.mxu0 %v265
      %7068 = vmatpush1.msra.mxu0 %v264
      %7069 = vmatprep.subr.mxu0 %v262
      %7070 = vmatpush1.msra.mxu0 %v261
      %7071 = vmatprep.subr.mxu0 %v259
      %7072 = vmatpush1.msra.mxu0 %v258
      %7073 = vmatprep.subr.mxu0 %v256
      %7074 = vmatpush1.msra.mxu0 %v255
      %7075 = vmatprep.subr.mxu0 %v349
      %7076 = vmatpush2.msra.mxu0 %v348
      %7077 = vmatprep.subr.mxu0 %v346
      %7078 = vmatpush2.msra.mxu0 %v345
      %7079 = vmatprep.subr.mxu0 %v343
      %7080 = vmatpush2.msra.mxu0 %v342
      %7081 = vmatprep.subr.mxu0 %v340
      %7082 = vmatpush2.msra.mxu0 %v339
      %7083 = vmatprep.subr.mxu0 %v337
      %7084 = vmatpush2.msra.mxu0 %v336
      %7085 = vmatprep.subr.mxu0 %v334
      %7086 = vmatpush2.msra.mxu0 %v333
      %7087 = vmatprep.subr.mxu0 %v331
      %7088 = vmatpush2.msra.mxu0 %v330
      %7089 = vmatprep.subr.mxu0 %v328
      %7090 = vmatpush2.msra.mxu0 %v327
      %7091 = vmatprep.subr.mxu0 %v325
      %7092 = vmatpush2.msra.mxu0 %v324
      %7093 = vmatprep.subr.mxu0 %v322
      %7094 = vmatpush2.msra.mxu0 %v321
      %7095 = vmatprep.subr.mxu0 %v319
      %7096 = vmatpush2.msra.mxu0 %v318
      %7097 = vmatprep.subr.mxu0 %v316
      %7098 = vmatpush2.msra.mxu0 %v315
      %7099 = vmatprep.subr.mxu0 %v313
      %7100 = vmatpush2.msra.mxu0 %v312
      %7101 = vmatprep.subr.mxu0 %v310
      %7102 = vmatpush2.msra.mxu0 %v309
      %7103 = vmatprep.subr.mxu0 %v307
      %7104 = vmatpush2.msra.mxu0 %v306
      %7105 = vmatprep.subr.mxu0 %v304
      %7106 = vmatpush2.msra.mxu0 %v303
      %7107 = vmatprep.mubr.f32.mxu0 %v7031
      %7108 = vmatmul.mubr.f32.gmra.mxu0 %v7030
      %v7109 = vpop.f32.mrf.mxu0
      %v7110 = vadd.f32 0.0, %v7109
      %v7111 = vpop.f32.mrf.mxu0
      %v7112 = vadd.f32 0.0, %v7111
      %7113 = vdwg.mxu0
      %7114 = vmatprep.subr.mxu0 %v397
      %7115 = vmatpush1.msra.mxu0 %v396
      %7116 = vmatprep.subr.mxu0 %v394
      %7117 = vmatpush1.msra.mxu0 %v393
      %7118 = vmatprep.subr.mxu0 %v391
      %7119 = vmatpush1.msra.mxu0 %v390
      %7120 = vmatprep.subr.mxu0 %v388
      %7121 = vmatpush1.msra.mxu0 %v387
      %7122 = vmatprep.subr.mxu0 %v385
      %7123 = vmatpush1.msra.mxu0 %v384
      %7124 = vmatprep.subr.mxu0 %v382
      %7125 = vmatpush1.msra.mxu0 %v381
      %7126 = vmatprep.subr.mxu0 %v379
      %7127 = vmatpush1.msra.mxu0 %v378
      %7128 = vmatprep.subr.mxu0 %v376
      %7129 = vmatpush1.msra.mxu0 %v375
      %7130 = vmatprep.subr.mxu0 %v373
      %7131 = vmatpush1.msra.mxu0 %v372
      %7132 = vmatprep.subr.mxu0 %v370
      %7133 = vmatpush1.msra.mxu0 %v369
      %7134 = vmatprep.subr.mxu0 %v367
      %7135 = vmatpush1.msra.mxu0 %v366
      %7136 = vmatprep.subr.mxu0 %v364
      %7137 = vmatpush1.msra.mxu0 %v363
      %7138 = vmatprep.subr.mxu0 %v361
      %7139 = vmatpush1.msra.mxu0 %v360
      %7140 = vmatprep.subr.mxu0 %v358
      %7141 = vmatpush1.msra.mxu0 %v357
      %7142 = vmatprep.subr.mxu0 %v355
      %7143 = vmatpush1.msra.mxu0 %v354
      %7144 = vmatprep.subr.mxu0 %v352
      %7145 = vmatpush1.msra.mxu0 %v351
      %7146 = vmatprep.subr.mxu0 %v445
      %7147 = vmatpush2.msra.mxu0 %v444
      %7148 = vmatprep.subr.mxu0 %v442
      %7149 = vmatpush2.msra.mxu0 %v441
      %7150 = vmatprep.subr.mxu0 %v439
      %7151 = vmatpush2.msra.mxu0 %v438
      %7152 = vmatprep.subr.mxu0 %v436
      %7153 = vmatpush2.msra.mxu0 %v435
      %7154 = vmatprep.subr.mxu0 %v433
      %7155 = vmatpush2.msra.mxu0 %v432
      %7156 = vmatprep.subr.mxu0 %v430
      %7157 = vmatpush2.msra.mxu0 %v429
      %7158 = vmatprep.subr.mxu0 %v427
      %7159 = vmatpush2.msra.mxu0 %v426
      %7160 = vmatprep.subr.mxu0 %v424
      %7161 = vmatpush2.msra.mxu0 %v423
      %7162 = vmatprep.subr.mxu0 %v421
      %7163 = vmatpush2.msra.mxu0 %v420
      %7164 = vmatprep.subr.mxu0 %v418
      %7165 = vmatpush2.msra.mxu0 %v417
      %7166 = vmatprep.subr.mxu0 %v415
      %7167 = vmatpush2.msra.mxu0 %v414
      %7168 = vmatprep.subr.mxu0 %v412
      %7169 = vmatpush2.msra.mxu0 %v411
      %7170 = vmatprep.subr.mxu0 %v409
      %7171 = vmatpush2.msra.mxu0 %v408
      %7172 = vmatprep.subr.mxu0 %v406
      %7173 = vmatpush2.msra.mxu0 %v405
      %7174 = vmatprep.subr.mxu0 %v403
      %7175 = vmatpush2.msra.mxu0 %v402
      %7176 = vmatprep.subr.mxu0 %v400
      %7177 = vmatpush2.msra.mxu0 %v399
      %7178 = vmatprep.mubr.f32.mxu0 %v7033
      %7179 = vmatmul.mubr.f32.gmra.mxu0 %v7032
      %v7180 = vpop.f32.mrf.mxu0
      %v7181 = vadd.f32 %v7110, %v7180
      %v7182 = vpop.f32.mrf.mxu0
      %v7183 = vadd.f32 %v7112, %v7182
      %7184 = vdwg.mxu0
      %7185 = vmatprep.subr.mxu0 %v493
      %7186 = vmatpush1.msra.mxu0 %v492
      %7187 = vmatprep.subr.mxu0 %v490
      %7188 = vmatpush1.msra.mxu0 %v489
      %7189 = vmatprep.subr.mxu0 %v487
      %7190 = vmatpush1.msra.mxu0 %v486
      %7191 = vmatprep.subr.mxu0 %v484
      %7192 = vmatpush1.msra.mxu0 %v483
      %7193 = vmatprep.subr.mxu0 %v481
      %7194 = vmatpush1.msra.mxu0 %v480
      %7195 = vmatprep.subr.mxu0 %v478
      %7196 = vmatpush1.msra.mxu0 %v477
      %7197 = vmatprep.subr.mxu0 %v475
      %7198 = vmatpush1.msra.mxu0 %v474
      %7199 = vmatprep.subr.mxu0 %v472
      %7200 = vmatpush1.msra.mxu0 %v471
      %7201 = vmatprep.subr.mxu0 %v469
      %7202 = vmatpush1.msra.mxu0 %v468
      %7203 = vmatprep.subr.mxu0 %v466
      %7204 = vmatpush1.msra.mxu0 %v465
      %7205 = vmatprep.subr.mxu0 %v463
      %7206 = vmatpush1.msra.mxu0 %v462
      %7207 = vmatprep.subr.mxu0 %v460
      %7208 = vmatpush1.msra.mxu0 %v459
      %7209 = vmatprep.subr.mxu0 %v457
      %7210 = vmatpush1.msra.mxu0 %v456
      %7211 = vmatprep.subr.mxu0 %v454
      %7212 = vmatpush1.msra.mxu0 %v453
      %7213 = vmatprep.subr.mxu0 %v451
      %7214 = vmatpush1.msra.mxu0 %v450
      %7215 = vmatprep.subr.mxu0 %v448
      %7216 = vmatpush1.msra.mxu0 %v447
      %7217 = vmatprep.subr.mxu0 %v541
      %7218 = vmatpush2.msra.mxu0 %v540
      %7219 = vmatprep.subr.mxu0 %v538
      %7220 = vmatpush2.msra.mxu0 %v537
      %7221 = vmatprep.subr.mxu0 %v535
      %7222 = vmatpush2.msra.mxu0 %v534
      %7223 = vmatprep.subr.mxu0 %v532
      %7224 = vmatpush2.msra.mxu0 %v531
      %7225 = vmatprep.subr.mxu0 %v529
      %7226 = vmatpush2.msra.mxu0 %v528
      %7227 = vmatprep.subr.mxu0 %v526
      %7228 = vmatpush2.msra.mxu0 %v525
      %7229 = vmatprep.subr.mxu0 %v523
      %7230 = vmatpush2.msra.mxu0 %v522
      %7231 = vmatprep.subr.mxu0 %v520
      %7232 = vmatpush2.msra.mxu0 %v519
      %7233 = vmatprep.subr.mxu0 %v517
      %7234 = vmatpush2.msra.mxu0 %v516
      %7235 = vmatprep.subr.mxu0 %v514
      %7236 = vmatpush2.msra.mxu0 %v513
      %7237 = vmatprep.subr.mxu0 %v511
      %7238 = vmatpush2.msra.mxu0 %v510
      %7239 = vmatprep.subr.mxu0 %v508
      %7240 = vmatpush2.msra.mxu0 %v507
      %7241 = vmatprep.subr.mxu0 %v505
      %7242 = vmatpush2.msra.mxu0 %v504
      %7243 = vmatprep.subr.mxu0 %v502
      %7244 = vmatpush2.msra.mxu0 %v501
      %7245 = vmatprep.subr.mxu0 %v499
      %7246 = vmatpush2.msra.mxu0 %v498
      %7247 = vmatprep.subr.mxu0 %v496
      %7248 = vmatpush2.msra.mxu0 %v495
      %7249 = vmatprep.mubr.f32.mxu0 %v7035
      %7250 = vmatmul.mubr.f32.gmra.mxu0 %v7034
      %v7251 = vpop.f32.mrf.mxu0
      %v7252 = vadd.f32 %v7181, %v7251
      %v7253 = vpop.f32.mrf.mxu0
      %v7254 = vadd.f32 %v7183, %v7253
      %7255 = vdwg.mxu0
      %7256 = vmatprep.subr.mxu0 %v589
      %7257 = vmatpush1.msra.mxu0 %v588
      %7258 = vmatprep.subr.mxu0 %v586
      %7259 = vmatpush1.msra.mxu0 %v585
      %7260 = vmatprep.subr.mxu0 %v583
      %7261 = vmatpush1.msra.mxu0 %v582
      %7262 = vmatprep.subr.mxu0 %v580
      %7263 = vmatpush1.msra.mxu0 %v579
      %7264 = vmatprep.subr.mxu0 %v577
      %7265 = vmatpush1.msra.mxu0 %v576
      %7266 = vmatprep.subr.mxu0 %v574
      %7267 = vmatpush1.msra.mxu0 %v573
      %7268 = vmatprep.subr.mxu0 %v571
      %7269 = vmatpush1.msra.mxu0 %v570
      %7270 = vmatprep.subr.mxu0 %v568
      %7271 = vmatpush1.msra.mxu0 %v567
      %7272 = vmatprep.subr.mxu0 %v565
      %7273 = vmatpush1.msra.mxu0 %v564
      %7274 = vmatprep.subr.mxu0 %v562
      %7275 = vmatpush1.msra.mxu0 %v561
      %7276 = vmatprep.subr.mxu0 %v559
      %7277 = vmatpush1.msra.mxu0 %v558
      %7278 = vmatprep.subr.mxu0 %v556
      %7279 = vmatpush1.msra.mxu0 %v555
      %7280 = vmatprep.subr.mxu0 %v553
      %7281 = vmatpush1.msra.mxu0 %v552
      %7282 = vmatprep.subr.mxu0 %v550
      %7283 = vmatpush1.msra.mxu0 %v549
      %7284 = vmatprep.subr.mxu0 %v547
      %7285 = vmatpush1.msra.mxu0 %v546
      %7286 = vmatprep.subr.mxu0 %v544
      %7287 = vmatpush1.msra.mxu0 %v543
      %7288 = vmatprep.subr.mxu0 %v637
      %7289 = vmatpush2.msra.mxu0 %v636
      %7290 = vmatprep.subr.mxu0 %v634
      %7291 = vmatpush2.msra.mxu0 %v633
      %7292 = vmatprep.subr.mxu0 %v631
      %7293 = vmatpush2.msra.mxu0 %v630
      %7294 = vmatprep.subr.mxu0 %v628
      %7295 = vmatpush2.msra.mxu0 %v627
      %7296 = vmatprep.subr.mxu0 %v625
      %7297 = vmatpush2.msra.mxu0 %v624
      %7298 = vmatprep.subr.mxu0 %v622
      %7299 = vmatpush2.msra.mxu0 %v621
      %7300 = vmatprep.subr.mxu0 %v619
      %7301 = vmatpush2.msra.mxu0 %v618
      %7302 = vmatprep.subr.mxu0 %v616
      %7303 = vmatpush2.msra.mxu0 %v615
      %7304 = vmatprep.subr.mxu0 %v613
      %7305 = vmatpush2.msra.mxu0 %v612
      %7306 = vmatprep.subr.mxu0 %v610
      %7307 = vmatpush2.msra.mxu0 %v609
      %7308 = vmatprep.subr.mxu0 %v607
      %7309 = vmatpush2.msra.mxu0 %v606
      %7310 = vmatprep.subr.mxu0 %v604
      %7311 = vmatpush2.msra.mxu0 %v603
      %7312 = vmatprep.subr.mxu0 %v601
      %7313 = vmatpush2.msra.mxu0 %v600
      %7314 = vmatprep.subr.mxu0 %v598
      %7315 = vmatpush2.msra.mxu0 %v597
      %7316 = vmatprep.subr.mxu0 %v595
      %7317 = vmatpush2.msra.mxu0 %v594
      %7318 = vmatprep.subr.mxu0 %v592
      %7319 = vmatpush2.msra.mxu0 %v591
      %7320 = vmatprep.mubr.f32.mxu0 %v7037
      %7321 = vmatmul.mubr.f32.gmra.mxu0 %v7036
      %v7322 = vpop.f32.mrf.mxu0
      %v7323 = vadd.f32 %v7252, %v7322
      %v7324 = vpop.f32.mrf.mxu0
      %v7325 = vadd.f32 %v7254, %v7324
      %7326 = vdwg.mxu0
      %7327 = vmatprep.subr.mxu0 %v685
      %7328 = vmatpush1.msra.mxu0 %v684
      %7329 = vmatprep.subr.mxu0 %v682
      %7330 = vmatpush1.msra.mxu0 %v681
      %7331 = vmatprep.subr.mxu0 %v679
      %7332 = vmatpush1.msra.mxu0 %v678
      %7333 = vmatprep.subr.mxu0 %v676
      %7334 = vmatpush1.msra.mxu0 %v675
      %7335 = vmatprep.subr.mxu0 %v673
      %7336 = vmatpush1.msra.mxu0 %v672
      %7337 = vmatprep.subr.mxu0 %v670
      %7338 = vmatpush1.msra.mxu0 %v669
      %7339 = vmatprep.subr.mxu0 %v667
      %7340 = vmatpush1.msra.mxu0 %v666
      %7341 = vmatprep.subr.mxu0 %v664
      %7342 = vmatpush1.msra.mxu0 %v663
      %7343 = vmatprep.subr.mxu0 %v661
      %7344 = vmatpush1.msra.mxu0 %v660
      %7345 = vmatprep.subr.mxu0 %v658
      %7346 = vmatpush1.msra.mxu0 %v657
      %7347 = vmatprep.subr.mxu0 %v655
      %7348 = vmatpush1.msra.mxu0 %v654
      %7349 = vmatprep.subr.mxu0 %v652
      %7350 = vmatpush1.msra.mxu0 %v651
      %7351 = vmatprep.subr.mxu0 %v649
      %7352 = vmatpush1.msra.mxu0 %v648
      %7353 = vmatprep.subr.mxu0 %v646
      %7354 = vmatpush1.msra.mxu0 %v645
      %7355 = vmatprep.subr.mxu0 %v643
      %7356 = vmatpush1.msra.mxu0 %v642
      %7357 = vmatprep.subr.mxu0 %v640
      %7358 = vmatpush1.msra.mxu0 %v639
      %7359 = vmatprep.subr.mxu0 0.0
      %7360 = vmatpush2.msra.mxu0 0.0
      %7361 = vmatprep.subr.mxu0 0.0
      %7362 = vmatpush2.msra.mxu0 0.0
      %7363 = vmatprep.subr.mxu0 0.0
      %7364 = vmatpush2.msra.mxu0 0.0
      %7365 = vmatprep.subr.mxu0 0.0
      %7366 = vmatpush2.msra.mxu0 0.0
      %7367 = vmatprep.subr.mxu0 %v2413
      %7368 = vmatpush2.msra.mxu0 %v2410
      %7369 = vmatprep.subr.mxu0 %v718
      %7370 = vmatpush2.msra.mxu0 %v717
      %7371 = vmatprep.subr.mxu0 %v715
      %7372 = vmatpush2.msra.mxu0 %v714
      %7373 = vmatprep.subr.mxu0 %v712
      %7374 = vmatpush2.msra.mxu0 %v711
      %7375 = vmatprep.subr.mxu0 %v709
      %7376 = vmatpush2.msra.mxu0 %v708
      %7377 = vmatprep.subr.mxu0 %v706
      %7378 = vmatpush2.msra.mxu0 %v705
      %7379 = vmatprep.subr.mxu0 %v703
      %7380 = vmatpush2.msra.mxu0 %v702
      %7381 = vmatprep.subr.mxu0 %v700
      %7382 = vmatpush2.msra.mxu0 %v699
      %7383 = vmatprep.subr.mxu0 %v697
      %7384 = vmatpush2.msra.mxu0 %v696
      %7385 = vmatprep.subr.mxu0 %v694
      %7386 = vmatpush2.msra.mxu0 %v693
      %7387 = vmatprep.subr.mxu0 %v691
      %7388 = vmatpush2.msra.mxu0 %v690
      %7389 = vmatprep.subr.mxu0 %v688
      %7390 = vmatpush2.msra.mxu0 %v687
      %7391 = vmatprep.mubr.f32.mxu0 %v7041
      %7392 = vmatmul.mubr.f32.gmra.mxu0 %v7038
      %v7393 = vpop.f32.mrf.mxu0
      %v7394 = vadd.f32 %v7323, %v7393
      %v7395 = vpop.f32.mrf.mxu0
      %v7396 = vadd.f32 %v7325, %v7395
      %7397 = vdwg.mxu0
      %7398 = vmatprep.subr.mxu0 0.0
      %7399 = vmatpush1.msra.mxu0 %v302
      %7400 = vmatprep.subr.mxu0 0.0
      %7401 = vmatpush1.msra.mxu0 %v299
      %7402 = vmatprep.subr.mxu0 0.0
      %7403 = vmatpush1.msra.mxu0 %v296
      %7404 = vmatprep.subr.mxu0 0.0
      %7405 = vmatpush1.msra.mxu0 %v293
      %7406 = vmatprep.subr.mxu0 0.0
      %7407 = vmatpush1.msra.mxu0 %v290
      %7408 = vmatprep.subr.mxu0 0.0
      %7409 = vmatpush1.msra.mxu0 %v287
      %7410 = vmatprep.subr.mxu0 0.0
      %7411 = vmatpush1.msra.mxu0 %v284
      %7412 = vmatprep.subr.mxu0 0.0
      %7413 = vmatpush1.msra.mxu0 %v281
      %7414 = vmatprep.subr.mxu0 0.0
      %7415 = vmatpush1.msra.mxu0 %v278
      %7416 = vmatprep.subr.mxu0 0.0
      %7417 = vmatpush1.msra.mxu0 %v275
      %7418 = vmatprep.subr.mxu0 0.0
      %7419 = vmatpush1.msra.mxu0 %v272
      %7420 = vmatprep.subr.mxu0 0.0
      %7421 = vmatpush1.msra.mxu0 %v269
      %7422 = vmatprep.subr.mxu0 0.0
      %7423 = vmatpush1.msra.mxu0 %v266
      %7424 = vmatprep.subr.mxu0 0.0
      %7425 = vmatpush1.msra.mxu0 %v263
      %7426 = vmatprep.subr.mxu0 0.0
      %7427 = vmatpush1.msra.mxu0 %v260
      %7428 = vmatprep.subr.mxu0 0.0
      %7429 = vmatpush1.msra.mxu0 %v257
      %7430 = vmatprep.subr.mxu0 0.0
      %7431 = vmatpush2.msra.mxu0 %v350
      %7432 = vmatprep.subr.mxu0 0.0
      %7433 = vmatpush2.msra.mxu0 %v347
      %7434 = vmatprep.subr.mxu0 0.0
      %7435 = vmatpush2.msra.mxu0 %v344
      %7436 = vmatprep.subr.mxu0 0.0
      %7437 = vmatpush2.msra.mxu0 %v341
      %7438 = vmatprep.subr.mxu0 0.0
      %7439 = vmatpush2.msra.mxu0 %v338
      %7440 = vmatprep.subr.mxu0 0.0
      %7441 = vmatpush2.msra.mxu0 %v335
      %7442 = vmatprep.subr.mxu0 0.0
      %7443 = vmatpush2.msra.mxu0 %v332
      %7444 = vmatprep.subr.mxu0 0.0
      %7445 = vmatpush2.msra.mxu0 %v329
      %7446 = vmatprep.subr.mxu0 0.0
      %7447 = vmatpush2.msra.mxu0 %v326
      %7448 = vmatprep.subr.mxu0 0.0
      %7449 = vmatpush2.msra.mxu0 %v323
      %7450 = vmatprep.subr.mxu0 0.0
      %7451 = vmatpush2.msra.mxu0 %v320
      %7452 = vmatprep.subr.mxu0 0.0
      %7453 = vmatpush2.msra.mxu0 %v317
      %7454 = vmatprep.subr.mxu0 0.0
      %7455 = vmatpush2.msra.mxu0 %v314
      %7456 = vmatprep.subr.mxu0 0.0
      %7457 = vmatpush2.msra.mxu0 %v311
      %7458 = vmatprep.subr.mxu0 0.0
      %7459 = vmatpush2.msra.mxu0 %v308
      %7460 = vmatprep.subr.mxu0 0.0
      %7461 = vmatpush2.msra.mxu0 %v305
      %7462 = vmatprep.mubr.f32.mxu0 %v7031
      %7463 = vmatmul.mubr.f32.gmra.mxu0 %v7030
      %v7464 = vpop.f32.mrf.mxu0
      %v7465 = vadd.f32 0.0, %v7464
      %v7466 = vpop.f32.mrf.mxu0
      %7467 = vdwg.mxu0
      %7468 = vmatprep.subr.mxu0 0.0
      %7469 = vmatpush1.msra.mxu0 %v398
      %7470 = vmatprep.subr.mxu0 0.0
      %7471 = vmatpush1.msra.mxu0 %v395
      %7472 = vmatprep.subr.mxu0 0.0
      %7473 = vmatpush1.msra.mxu0 %v392
      %7474 = vmatprep.subr.mxu0 0.0
      %7475 = vmatpush1.msra.mxu0 %v389
      %7476 = vmatprep.subr.mxu0 0.0
      %7477 = vmatpush1.msra.mxu0 %v386
      %7478 = vmatprep.subr.mxu0 0.0
      %7479 = vmatpush1.msra.mxu0 %v383
      %7480 = vmatprep.subr.mxu0 0.0
      %7481 = vmatpush1.msra.mxu0 %v380
      %7482 = vmatprep.subr.mxu0 0.0
      %7483 = vmatpush1.msra.mxu0 %v377
      %7484 = vmatprep.subr.mxu0 0.0
      %7485 = vmatpush1.msra.mxu0 %v374
      %7486 = vmatprep.subr.mxu0 0.0
      %7487 = vmatpush1.msra.mxu0 %v371
      %7488 = vmatprep.subr.mxu0 0.0
      %7489 = vmatpush1.msra.mxu0 %v368
      %7490 = vmatprep.subr.mxu0 0.0
      %7491 = vmatpush1.msra.mxu0 %v365
      %7492 = vmatprep.subr.mxu0 0.0
      %7493 = vmatpush1.msra.mxu0 %v362
      %7494 = vmatprep.subr.mxu0 0.0
      %7495 = vmatpush1.msra.mxu0 %v359
      %7496 = vmatprep.subr.mxu0 0.0
      %7497 = vmatpush1.msra.mxu0 %v356
      %7498 = vmatprep.subr.mxu0 0.0
      %7499 = vmatpush1.msra.mxu0 %v353
      %7500 = vmatprep.subr.mxu0 0.0
      %7501 = vmatpush2.msra.mxu0 %v446
      %7502 = vmatprep.subr.mxu0 0.0
      %7503 = vmatpush2.msra.mxu0 %v443
      %7504 = vmatprep.subr.mxu0 0.0
      %7505 = vmatpush2.msra.mxu0 %v440
      %7506 = vmatprep.subr.mxu0 0.0
      %7507 = vmatpush2.msra.mxu0 %v437
      %7508 = vmatprep.subr.mxu0 0.0
      %7509 = vmatpush2.msra.mxu0 %v434
      %7510 = vmatprep.subr.mxu0 0.0
      %7511 = vmatpush2.msra.mxu0 %v431
      %7512 = vmatprep.subr.mxu0 0.0
      %7513 = vmatpush2.msra.mxu0 %v428
      %7514 = vmatprep.subr.mxu0 0.0
      %7515 = vmatpush2.msra.mxu0 %v425
      %7516 = vmatprep.subr.mxu0 0.0
      %7517 = vmatpush2.msra.mxu0 %v422
      %7518 = vmatprep.subr.mxu0 0.0
      %7519 = vmatpush2.msra.mxu0 %v419
      %7520 = vmatprep.subr.mxu0 0.0
      %7521 = vmatpush2.msra.mxu0 %v416
      %7522 = vmatprep.subr.mxu0 0.0
      %7523 = vmatpush2.msra.mxu0 %v413
      %7524 = vmatprep.subr.mxu0 0.0
      %7525 = vmatpush2.msra.mxu0 %v410
      %7526 = vmatprep.subr.mxu0 0.0
      %7527 = vmatpush2.msra.mxu0 %v407
      %7528 = vmatprep.subr.mxu0 0.0
      %7529 = vmatpush2.msra.mxu0 %v404
      %7530 = vmatprep.subr.mxu0 0.0
      %7531 = vmatpush2.msra.mxu0 %v401
      %7532 = vmatprep.mubr.f32.mxu0 %v7033
      %7533 = vmatmul.mubr.f32.gmra.mxu0 %v7032
      %v7534 = vpop.f32.mrf.mxu0
      %v7535 = vadd.f32 %v7465, %v7534
      %v7536 = vpop.f32.mrf.mxu0
      %7537 = vdwg.mxu0
      %7538 = vmatprep.subr.mxu0 0.0
      %7539 = vmatpush1.msra.mxu0 %v494
      %7540 = vmatprep.subr.mxu0 0.0
      %7541 = vmatpush1.msra.mxu0 %v491
      %7542 = vmatprep.subr.mxu0 0.0
      %7543 = vmatpush1.msra.mxu0 %v488
      %7544 = vmatprep.subr.mxu0 0.0
      %7545 = vmatpush1.msra.mxu0 %v485
      %7546 = vmatprep.subr.mxu0 0.0
      %7547 = vmatpush1.msra.mxu0 %v482
      %7548 = vmatprep.subr.mxu0 0.0
      %7549 = vmatpush1.msra.mxu0 %v479
      %7550 = vmatprep.subr.mxu0 0.0
      %7551 = vmatpush1.msra.mxu0 %v476
      %7552 = vmatprep.subr.mxu0 0.0
      %7553 = vmatpush1.msra.mxu0 %v473
      %7554 = vmatprep.subr.mxu0 0.0
      %7555 = vmatpush1.msra.mxu0 %v470
      %7556 = vmatprep.subr.mxu0 0.0
      %7557 = vmatpush1.msra.mxu0 %v467
      %7558 = vmatprep.subr.mxu0 0.0
      %7559 = vmatpush1.msra.mxu0 %v464
      %7560 = vmatprep.subr.mxu0 0.0
      %7561 = vmatpush1.msra.mxu0 %v461
      %7562 = vmatprep.subr.mxu0 0.0
      %7563 = vmatpush1.msra.mxu0 %v458
      %7564 = vmatprep.subr.mxu0 0.0
      %7565 = vmatpush1.msra.mxu0 %v455
      %7566 = vmatprep.subr.mxu0 0.0
      %7567 = vmatpush1.msra.mxu0 %v452
      %7568 = vmatprep.subr.mxu0 0.0
      %7569 = vmatpush1.msra.mxu0 %v449
      %7570 = vmatprep.subr.mxu0 0.0
      %7571 = vmatpush2.msra.mxu0 %v542
      %7572 = vmatprep.subr.mxu0 0.0
      %7573 = vmatpush2.msra.mxu0 %v539
      %7574 = vmatprep.subr.mxu0 0.0
      %7575 = vmatpush2.msra.mxu0 %v536
      %7576 = vmatprep.subr.mxu0 0.0
      %7577 = vmatpush2.msra.mxu0 %v533
      %7578 = vmatprep.subr.mxu0 0.0
      %7579 = vmatpush2.msra.mxu0 %v530
      %7580 = vmatprep.subr.mxu0 0.0
      %7581 = vmatpush2.msra.mxu0 %v527
      %7582 = vmatprep.subr.mxu0 0.0
      %7583 = vmatpush2.msra.mxu0 %v524
      %7584 = vmatprep.subr.mxu0 0.0
      %7585 = vmatpush2.msra.mxu0 %v521
      %7586 = vmatprep.subr.mxu0 0.0
      %7587 = vmatpush2.msra.mxu0 %v518
      %7588 = vmatprep.subr.mxu0 0.0
      %7589 = vmatpush2.msra.mxu0 %v515
      %7590 = vmatprep.subr.mxu0 0.0
      %7591 = vmatpush2.msra.mxu0 %v512
      %7592 = vmatprep.subr.mxu0 0.0
      %7593 = vmatpush2.msra.mxu0 %v509
      %7594 = vmatprep.subr.mxu0 0.0
      %7595 = vmatpush2.msra.mxu0 %v506
      %7596 = vmatprep.subr.mxu0 0.0
      %7597 = vmatpush2.msra.mxu0 %v503
      %7598 = vmatprep.subr.mxu0 0.0
      %7599 = vmatpush2.msra.mxu0 %v500
      %7600 = vmatprep.subr.mxu0 0.0
      %7601 = vmatpush2.msra.mxu0 %v497
      %7602 = vmatprep.mubr.f32.mxu0 %v7035
      %7603 = vmatmul.mubr.f32.gmra.mxu0 %v7034
      %v7604 = vpop.f32.mrf.mxu0
      %v7605 = vadd.f32 %v7535, %v7604
      %v7606 = vpop.f32.mrf.mxu0
      %7607 = vdwg.mxu0
      %7608 = vmatprep.subr.mxu0 0.0
      %7609 = vmatpush1.msra.mxu0 %v590
      %7610 = vmatprep.subr.mxu0 0.0
      %7611 = vmatpush1.msra.mxu0 %v587
      %7612 = vmatprep.subr.mxu0 0.0
      %7613 = vmatpush1.msra.mxu0 %v584
      %7614 = vmatprep.subr.mxu0 0.0
      %7615 = vmatpush1.msra.mxu0 %v581
      %7616 = vmatprep.subr.mxu0 0.0
      %7617 = vmatpush1.msra.mxu0 %v578
      %7618 = vmatprep.subr.mxu0 0.0
      %7619 = vmatpush1.msra.mxu0 %v575
      %7620 = vmatprep.subr.mxu0 0.0
      %7621 = vmatpush1.msra.mxu0 %v572
      %7622 = vmatprep.subr.mxu0 0.0
      %7623 = vmatpush1.msra.mxu0 %v569
      %7624 = vmatprep.subr.mxu0 0.0
      %7625 = vmatpush1.msra.mxu0 %v566
      %7626 = vmatprep.subr.mxu0 0.0
      %7627 = vmatpush1.msra.mxu0 %v563
      %7628 = vmatprep.subr.mxu0 0.0
      %7629 = vmatpush1.msra.mxu0 %v560
      %7630 = vmatprep.subr.mxu0 0.0
      %7631 = vmatpush1.msra.mxu0 %v557
      %7632 = vmatprep.subr.mxu0 0.0
      %7633 = vmatpush1.msra.mxu0 %v554
      %7634 = vmatprep.subr.mxu0 0.0
      %7635 = vmatpush1.msra.mxu0 %v551
      %7636 = vmatprep.subr.mxu0 0.0
      %7637 = vmatpush1.msra.mxu0 %v548
      %7638 = vmatprep.subr.mxu0 0.0
      %7639 = vmatpush1.msra.mxu0 %v545
      %7640 = vmatprep.subr.mxu0 0.0
      %7641 = vmatpush2.msra.mxu0 %v638
      %7642 = vmatprep.subr.mxu0 0.0
      %7643 = vmatpush2.msra.mxu0 %v635
      %7644 = vmatprep.subr.mxu0 0.0
      %7645 = vmatpush2.msra.mxu0 %v632
      %7646 = vmatprep.subr.mxu0 0.0
      %7647 = vmatpush2.msra.mxu0 %v629
      %7648 = vmatprep.subr.mxu0 0.0
      %7649 = vmatpush2.msra.mxu0 %v626
      %7650 = vmatprep.subr.mxu0 0.0
      %7651 = vmatpush2.msra.mxu0 %v623
      %7652 = vmatprep.subr.mxu0 0.0
      %7653 = vmatpush2.msra.mxu0 %v620
      %7654 = vmatprep.subr.mxu0 0.0
      %7655 = vmatpush2.msra.mxu0 %v617
      %7656 = vmatprep.subr.mxu0 0.0
      %7657 = vmatpush2.msra.mxu0 %v614
      %7658 = vmatprep.subr.mxu0 0.0
      %7659 = vmatpush2.msra.mxu0 %v611
      %7660 = vmatprep.subr.mxu0 0.0
      %7661 = vmatpush2.msra.mxu0 %v608
      %7662 = vmatprep.subr.mxu0 0.0
      %7663 = vmatpush2.msra.mxu0 %v605
      %7664 = vmatprep.subr.mxu0 0.0
      %7665 = vmatpush2.msra.mxu0 %v602
      %7666 = vmatprep.subr.mxu0 0.0
      %7667 = vmatpush2.msra.mxu0 %v599
      %7668 = vmatprep.subr.mxu0 0.0
      %7669 = vmatpush2.msra.mxu0 %v596
      %7670 = vmatprep.subr.mxu0 0.0
      %7671 = vmatpush2.msra.mxu0 %v593
      %7672 = vmatprep.mubr.f32.mxu0 %v7037
      %7673 = vmatmul.mubr.f32.gmra.mxu0 %v7036
      %v7674 = vpop.f32.mrf.mxu0
      %v7675 = vadd.f32 %v7605, %v7674
      %v7676 = vpop.f32.mrf.mxu0
      %7677 = vdwg.mxu0
      %7678 = vmatprep.subr.mxu0 0.0
      %7679 = vmatpush1.msra.mxu0 %v686
      %7680 = vmatprep.subr.mxu0 0.0
      %7681 = vmatpush1.msra.mxu0 %v683
      %7682 = vmatprep.subr.mxu0 0.0
      %7683 = vmatpush1.msra.mxu0 %v680
      %7684 = vmatprep.subr.mxu0 0.0
      %7685 = vmatpush1.msra.mxu0 %v677
      %7686 = vmatprep.subr.mxu0 0.0
      %7687 = vmatpush1.msra.mxu0 %v674
      %7688 = vmatprep.subr.mxu0 0.0
      %7689 = vmatpush1.msra.mxu0 %v671
      %7690 = vmatprep.subr.mxu0 0.0
      %7691 = vmatpush1.msra.mxu0 %v668
      %7692 = vmatprep.subr.mxu0 0.0
      %7693 = vmatpush1.msra.mxu0 %v665
      %7694 = vmatprep.subr.mxu0 0.0
      %7695 = vmatpush1.msra.mxu0 %v662
      %7696 = vmatprep.subr.mxu0 0.0
      %7697 = vmatpush1.msra.mxu0 %v659
      %7698 = vmatprep.subr.mxu0 0.0
      %7699 = vmatpush1.msra.mxu0 %v656
      %7700 = vmatprep.subr.mxu0 0.0
      %7701 = vmatpush1.msra.mxu0 %v653
      %7702 = vmatprep.subr.mxu0 0.0
      %7703 = vmatpush1.msra.mxu0 %v650
      %7704 = vmatprep.subr.mxu0 0.0
      %7705 = vmatpush1.msra.mxu0 %v647
      %7706 = vmatprep.subr.mxu0 0.0
      %7707 = vmatpush1.msra.mxu0 %v644
      %7708 = vmatprep.subr.mxu0 0.0
      %7709 = vmatpush1.msra.mxu0 %v641
      %7710 = vmatprep.subr.mxu0 0.0
      %7711 = vmatpush2.msra.mxu0 0.0
      %7712 = vmatprep.subr.mxu0 0.0
      %7713 = vmatpush2.msra.mxu0 0.0
      %7714 = vmatprep.subr.mxu0 0.0
      %7715 = vmatpush2.msra.mxu0 0.0
      %7716 = vmatprep.subr.mxu0 0.0
      %7717 = vmatpush2.msra.mxu0 0.0
      %7718 = vmatprep.subr.mxu0 0.0
      %7719 = vmatpush2.msra.mxu0 %v2416
      %7720 = vmatprep.subr.mxu0 0.0
      %7721 = vmatpush2.msra.mxu0 %v719
      %7722 = vmatprep.subr.mxu0 0.0
      %7723 = vmatpush2.msra.mxu0 %v716
      %7724 = vmatprep.subr.mxu0 0.0
      %7725 = vmatpush2.msra.mxu0 %v713
      %7726 = vmatprep.subr.mxu0 0.0
      %7727 = vmatpush2.msra.mxu0 %v710
      %7728 = vmatprep.subr.mxu0 0.0
      %7729 = vmatpush2.msra.mxu0 %v707
      %7730 = vmatprep.subr.mxu0 0.0
      %7731 = vmatpush2.msra.mxu0 %v704
      %7732 = vmatprep.subr.mxu0 0.0
      %7733 = vmatpush2.msra.mxu0 %v701
      %7734 = vmatprep.subr.mxu0 0.0
      %7735 = vmatpush2.msra.mxu0 %v698
      %7736 = vmatprep.subr.mxu0 0.0
      %7737 = vmatpush2.msra.mxu0 %v695
      %7738 = vmatprep.subr.mxu0 0.0
      %7739 = vmatpush2.msra.mxu0 %v692
      %7740 = vmatprep.subr.mxu0 0.0
      %7741 = vmatpush2.msra.mxu0 %v689
      %7742 = vmatprep.mubr.f32.mxu0 %v7041
      %7743 = vmatmul.mubr.f32.gmra.mxu0 %v7038
      %v7744 = vpop.f32.mrf.mxu0
      %v7745 = vadd.f32 %v7675, %v7744
      %v7746 = vpop.f32.mrf.mxu0
      %7747 = vdwg.mxu0
      %v7748 = vsel %vm3123, %v5814, 0
      %v7750 = vsel %vm3123, %v5815, 0
      %v7752 = vsel %vm3123, %v5816, 0
      %v7754 = vsel %vm3123, %v5817, 0
      %v7756 = vsel %vm3123, %v5818, 0
      %v7759 = vsel %vm3123, %v5819, 0
      %v7762 = vsel %vm3123, %v5820, 0
      %v7765 = vsel %vm3123, %v5821, 0
      %v7768 = vsel %vm3123, %v5822, 0
      %v7771 = vsel %vm2408, %v7394, 0
      %v7774 = vsel %vm2408, %v7396, 0
      %v7777 = vsel %vm2408, %v7745, 0
      %7779 = vmatprep.subr.mxu0 0.0
      %7780 = vmatpush1.msra.mxu0 0.0
      %7781 = vmatprep.subr.mxu0 0.0
      %7782 = vmatpush1.msra.mxu0 0.0
      %7783 = vmatprep.subr.mxu0 0.0
      %7784 = vmatpush1.msra.mxu0 0.0
      %7785 = vmatprep.subr.mxu0 0.0
      %7786 = vmatpush1.msra.mxu0 0.0
      %7787 = vmatprep.subr.mxu0 0.0
      %7788 = vmatpush1.msra.mxu0 0.0
      %7789 = vmatprep.subr.mxu0 0.0
      %7790 = vmatpush1.msra.mxu0 0.0
      %7791 = vmatprep.subr.mxu0 0.0
      %7792 = vmatpush1.msra.mxu0 0.0
      %7793 = vmatprep.subr.mxu0 0.0
      %7794 = vmatpush1.msra.mxu0 0.0
      %7795 = vmatprep.subr.mxu0 0.0
      %7796 = vmatpush1.msra.mxu0 0.0
      %7797 = vmatprep.subr.mxu0 0.0
      %7798 = vmatpush1.msra.mxu0 0.0
      %7799 = vmatprep.subr.mxu0 0.0
      %7800 = vmatpush1.msra.mxu0 0.0
      %7801 = vmatprep.subr.mxu0 0.0
      %7802 = vmatpush1.msra.mxu0 0.0
      %7803 = vmatprep.subr.mxu0 0.0
      %7804 = vmatpush1.msra.mxu0 0.0
      %7805 = vmatprep.subr.mxu0 0.0
      %7806 = vmatpush1.msra.mxu0 0.0
      %7807 = vmatprep.subr.mxu0 0.0
      %7808 = vmatpush1.msra.mxu0 0.0
      %7809 = vmatprep.subr.mxu0 %v7774
      %7810 = vmatpush1.msra.mxu0 %v7771
      %7811 = vmatprep.subr.mxu0 0.0
      %7812 = vmatpush2.msra.mxu0 0.0
      %7813 = vmatprep.subr.mxu0 0.0
      %7814 = vmatpush2.msra.mxu0 0.0
      %7815 = vmatprep.subr.mxu0 0.0
      %7816 = vmatpush2.msra.mxu0 0.0
      %7817 = vmatprep.subr.mxu0 0.0
      %7818 = vmatpush2.msra.mxu0 0.0
      %7819 = vmatprep.subr.mxu0 0.0
      %7820 = vmatpush2.msra.mxu0 0.0
      %7821 = vmatprep.subr.mxu0 0.0
      %7822 = vmatpush2.msra.mxu0 0.0
      %7823 = vmatprep.subr.mxu0 0.0
      %7824 = vmatpush2.msra.mxu0 0.0
      %7825 = vmatprep.subr.mxu0 0.0
      %7826 = vmatpush2.msra.mxu0 0.0
      %7827 = vmatprep.subr.mxu0 0.0
      %7828 = vmatpush2.msra.mxu0 0.0
      %7829 = vmatprep.subr.mxu0 0.0
      %7830 = vmatpush2.msra.mxu0 0.0
      %7831 = vmatprep.subr.mxu0 0.0
      %7832 = vmatpush2.msra.mxu0 0.0
      %7833 = vmatprep.subr.mxu0 0.0
      %7834 = vmatpush2.msra.mxu0 0.0
      %7835 = vmatprep.subr.mxu0 0.0
      %7836 = vmatpush2.msra.mxu0 0.0
      %7837 = vmatprep.subr.mxu0 0.0
      %7838 = vmatpush2.msra.mxu0 0.0
      %7839 = vmatprep.subr.mxu0 0.0
      %7840 = vmatpush2.msra.mxu0 0.0
      %7841 = vmatprep.subr.mxu0 0.0
      %7842 = vmatpush2.msra.mxu0 0.0
      %7843 = vmatprep.mubr.f32.mxu0 0.0
      %7844 = vmatmul.mubr.f32.gmra.mxu0 %v7748
      %v7845 = vpop.f32.mrf.mxu0
      %v7846 = vadd.f32 0.0, %v7845
      %v7847 = vpop.f32.mrf.mxu0
      %v7848 = vadd.f32 0.0, %v7847
      %7849 = vmatprep.mubr.f32.mxu0 0.0
      %7850 = vmatmul.mubr.f32.gmra.mxu0 %v7750
      %v7851 = vpop.f32.mrf.mxu0
      %v7852 = vadd.f32 0.0, %v7851
      %v7853 = vpop.f32.mrf.mxu0
      %v7854 = vadd.f32 0.0, %v7853
      %7855 = vmatprep.mubr.f32.mxu0 0.0
      %7856 = vmatmul.mubr.f32.gmra.mxu0 %v7752
      %v7857 = vpop.f32.mrf.mxu0
      %v7858 = vadd.f32 0.0, %v7857
      %v7859 = vpop.f32.mrf.mxu0
      %v7860 = vadd.f32 0.0, %v7859
      %7861 = vmatprep.mubr.f32.mxu0 0.0
      %7862 = vmatmul.mubr.f32.gmra.mxu0 %v7754
      %v7863 = vpop.f32.mrf.mxu0
      %v7864 = vadd.f32 0.0, %v7863
      %v7865 = vpop.f32.mrf.mxu0
      %v7866 = vadd.f32 0.0, %v7865
      %7867 = vmatprep.mubr.f32.mxu0 0.0
      %7868 = vmatmul.mubr.f32.gmra.mxu0 %v7756
      %v7869 = vpop.f32.mrf.mxu0
      %v7870 = vadd.f32 0.0, %v7869
      %v7871 = vpop.f32.mrf.mxu0
      %v7872 = vadd.f32 0.0, %v7871
      %7873 = vmatprep.mubr.f32.mxu0 0.0
      %7874 = vmatmul.mubr.f32.gmra.mxu0 %v7759
      %v7875 = vpop.f32.mrf.mxu0
      %v7876 = vadd.f32 0.0, %v7875
      %v7877 = vpop.f32.mrf.mxu0
      %v7878 = vadd.f32 0.0, %v7877
      %7879 = vmatprep.mubr.f32.mxu0 0.0
      %7880 = vmatmul.mubr.f32.gmra.mxu0 %v7762
      %v7881 = vpop.f32.mrf.mxu0
      %v7882 = vadd.f32 0.0, %v7881
      %v7883 = vpop.f32.mrf.mxu0
      %v7884 = vadd.f32 0.0, %v7883
      %7885 = vmatprep.mubr.f32.mxu0 0.0
      %7886 = vmatmul.mubr.f32.gmra.mxu0 %v7765
      %v7887 = vpop.f32.mrf.mxu0
      %v7888 = vadd.f32 0.0, %v7887
      %v7889 = vpop.f32.mrf.mxu0
      %v7890 = vadd.f32 0.0, %v7889
      %7891 = vmatprep.mubr.f32.mxu0 0.0
      %7892 = vmatmul.mubr.f32.gmra.mxu0 %v7768
      %v7893 = vpop.f32.mrf.mxu0
      %v7894 = vadd.f32 0.0, %v7893
      %v7895 = vpop.f32.mrf.mxu0
      %v7896 = vadd.f32 0.0, %v7895
      %7897 = vdwg.mxu0
      %7898 = vmatprep.subr.mxu0 0.0
      %7899 = vmatpush1.msra.mxu0 0.0
      %7900 = vmatprep.subr.mxu0 0.0
      %7901 = vmatpush1.msra.mxu0 0.0
      %7902 = vmatprep.subr.mxu0 0.0
      %7903 = vmatpush1.msra.mxu0 0.0
      %7904 = vmatprep.subr.mxu0 0.0
      %7905 = vmatpush1.msra.mxu0 0.0
      %7906 = vmatprep.subr.mxu0 0.0
      %7907 = vmatpush1.msra.mxu0 0.0
      %7908 = vmatprep.subr.mxu0 0.0
      %7909 = vmatpush1.msra.mxu0 0.0
      %7910 = vmatprep.subr.mxu0 0.0
      %7911 = vmatpush1.msra.mxu0 0.0
      %7912 = vmatprep.subr.mxu0 0.0
      %7913 = vmatpush1.msra.mxu0 0.0
      %7914 = vmatprep.subr.mxu0 0.0
      %7915 = vmatpush1.msra.mxu0 0.0
      %7916 = vmatprep.subr.mxu0 0.0
      %7917 = vmatpush1.msra.mxu0 0.0
      %7918 = vmatprep.subr.mxu0 0.0
      %7919 = vmatpush1.msra.mxu0 0.0
      %7920 = vmatprep.subr.mxu0 0.0
      %7921 = vmatpush1.msra.mxu0 0.0
      %7922 = vmatprep.subr.mxu0 0.0
      %7923 = vmatpush1.msra.mxu0 0.0
      %7924 = vmatprep.subr.mxu0 0.0
      %7925 = vmatpush1.msra.mxu0 0.0
      %7926 = vmatprep.subr.mxu0 0.0
      %7927 = vmatpush1.msra.mxu0 0.0
      %7928 = vmatprep.subr.mxu0 0.0
      %7929 = vmatpush1.msra.mxu0 %v7777
      %7930 = vmatprep.subr.mxu0 0.0
      %7931 = vmatpush2.msra.mxu0 0.0
      %7932 = vmatprep.subr.mxu0 0.0
      %7933 = vmatpush2.msra.mxu0 0.0
      %7934 = vmatprep.subr.mxu0 0.0
      %7935 = vmatpush2.msra.mxu0 0.0
      %7936 = vmatprep.subr.mxu0 0.0
      %7937 = vmatpush2.msra.mxu0 0.0
      %7938 = vmatprep.subr.mxu0 0.0
      %7939 = vmatpush2.msra.mxu0 0.0
      %7940 = vmatprep.subr.mxu0 0.0
      %7941 = vmatpush2.msra.mxu0 0.0
      %7942 = vmatprep.subr.mxu0 0.0
      %7943 = vmatpush2.msra.mxu0 0.0
      %7944 = vmatprep.subr.mxu0 0.0
      %7945 = vmatpush2.msra.mxu0 0.0
      %7946 = vmatprep.subr.mxu0 0.0
      %7947 = vmatpush2.msra.mxu0 0.0
      %7948 = vmatprep.subr.mxu0 0.0
      %7949 = vmatpush2.msra.mxu0 0.0
      %7950 = vmatprep.subr.mxu0 0.0
      %7951 = vmatpush2.msra.mxu0 0.0
      %7952 = vmatprep.subr.mxu0 0.0
      %7953 = vmatpush2.msra.mxu0 0.0
      %7954 = vmatprep.subr.mxu0 0.0
      %7955 = vmatpush2.msra.mxu0 0.0
      %7956 = vmatprep.subr.mxu0 0.0
      %7957 = vmatpush2.msra.mxu0 0.0
      %7958 = vmatprep.subr.mxu0 0.0
      %7959 = vmatpush2.msra.mxu0 0.0
      %7960 = vmatprep.subr.mxu0 0.0
      %7961 = vmatpush2.msra.mxu0 0.0
      %7962 = vmatprep.mubr.f32.mxu0 0.0
      %7963 = vmatmul.mubr.f32.gmra.mxu0 %v7748
      %v7964 = vpop.f32.mrf.mxu0
      %v7965 = vadd.f32 0.0, %v7964
      %v7966 = vpop.f32.mrf.mxu0
      %7967 = vmatprep.mubr.f32.mxu0 0.0
      %7968 = vmatmul.mubr.f32.gmra.mxu0 %v7750
      %v7969 = vpop.f32.mrf.mxu0
      %v7970 = vadd.f32 0.0, %v7969
      %v7971 = vpop.f32.mrf.mxu0
      %7972 = vmatprep.mubr.f32.mxu0 0.0
      %7973 = vmatmul.mubr.f32.gmra.mxu0 %v7752
      %v7974 = vpop.f32.mrf.mxu0
      %v7975 = vadd.f32 0.0, %v7974
      %v7976 = vpop.f32.mrf.mxu0
      %7977 = vmatprep.mubr.f32.mxu0 0.0
      %7978 = vmatmul.mubr.f32.gmra.mxu0 %v7754
      %v7979 = vpop.f32.mrf.mxu0
      %v7980 = vadd.f32 0.0, %v7979
      %v7981 = vpop.f32.mrf.mxu0
      %7982 = vmatprep.mubr.f32.mxu0 0.0
      %7983 = vmatmul.mubr.f32.gmra.mxu0 %v7756
      %v7984 = vpop.f32.mrf.mxu0
      %v7985 = vadd.f32 0.0, %v7984
      %v7986 = vpop.f32.mrf.mxu0
      %7987 = vmatprep.mubr.f32.mxu0 0.0
      %7988 = vmatmul.mubr.f32.gmra.mxu0 %v7759
      %v7989 = vpop.f32.mrf.mxu0
      %v7990 = vadd.f32 0.0, %v7989
      %v7991 = vpop.f32.mrf.mxu0
      %7992 = vmatprep.mubr.f32.mxu0 0.0
      %7993 = vmatmul.mubr.f32.gmra.mxu0 %v7762
      %v7994 = vpop.f32.mrf.mxu0
      %v7995 = vadd.f32 0.0, %v7994
      %v7996 = vpop.f32.mrf.mxu0
      %7997 = vmatprep.mubr.f32.mxu0 0.0
      %7998 = vmatmul.mubr.f32.gmra.mxu0 %v7765
      %v7999 = vpop.f32.mrf.mxu0
      %v8000 = vadd.f32 0.0, %v7999
      %v8001 = vpop.f32.mrf.mxu0
      %8002 = vmatprep.mubr.f32.mxu0 0.0
      %8003 = vmatmul.mubr.f32.gmra.mxu0 %v7768
      %v8004 = vpop.f32.mrf.mxu0
      %v8005 = vadd.f32 0.0, %v8004
      %v8006 = vpop.f32.mrf.mxu0
      %8007 = vdwg.mxu0
      %8011 = vrot.lane.b32.xlu0 %v7852, 127
      %v8012 = vpop.permute.xlu0 %8011
      %8013 = vrot.lane.b32.xlu0 %v7854, 127
      %v8014 = vpop.permute.xlu0 %8013
      %8015 = vrot.lane.b32.xlu0 %v7970, 127
      %v8016 = vpop.permute.xlu0 %8015
      %v8017 = vsel %vm1699, %v8012, %v8014
      %v8018 = vsel %vm1699, %v8014, %v8016
      %v8022 = vadd.f32 %v7846, %v8017
      %v8023 = vadd.f32 %v7848, %v8018
      %v8024 = vadd.f32 %v7965, %v8016
      %8028 = vrot.lane.b32.xlu0 %v7858, 126
      %v8029 = vpop.permute.xlu0 %8028
      %8030 = vrot.lane.b32.xlu0 %v7860, 126
      %v8031 = vpop.permute.xlu0 %8030
      %8032 = vrot.lane.b32.xlu0 %v7975, 126
      %v8033 = vpop.permute.xlu0 %8032
      %v8034 = vsel %vm1759, %v8029, %v8031
      %v8035 = vsel %vm1759, %v8031, %v8033
      %v8039 = vadd.f32 %v8022, %v8034
      %v8040 = vadd.f32 %v8023, %v8035
      %v8041 = vadd.f32 %v8024, %v8033
      %8045 = vrot.lane.b32.xlu0 %v7864, 110
      %v8046 = vpop.permute.xlu0 %8045
      %8047 = vrot.lane.b32.xlu0 %v7866, 110
      %v8048 = vpop.permute.xlu0 %8047
      %8049 = vrot.lane.b32.xlu0 %v7980, 110
      %v8050 = vpop.permute.xlu0 %8049
      %v8051 = vsel %vm3427, %v8046, %v8048
      %v8052 = vsel %vm3427, %v8048, %v8050
      %v8056 = vadd.f32 %v8039, %v8051
      %v8057 = vadd.f32 %v8040, %v8052
      %v8058 = vadd.f32 %v8041, %v8050
      %8062 = vrot.lane.b32.xlu0 %v7870, 109
      %v8063 = vpop.permute.xlu0 %8062
      %8064 = vrot.lane.b32.xlu0 %v7872, 109
      %v8065 = vpop.permute.xlu0 %8064
      %8066 = vrot.lane.b32.xlu0 %v7985, 109
      %v8067 = vpop.permute.xlu0 %8066
      %v8068 = vsel %vm3445, %v8063, %v8065
      %v8069 = vsel %vm3445, %v8065, %v8067
      %v8073 = vadd.f32 %v8056, %v8068
      %v8074 = vadd.f32 %v8057, %v8069
      %v8075 = vadd.f32 %v8058, %v8067
      %8079 = vrot.lane.b32.xlu0 %v7876, 108
      %v8080 = vpop.permute.xlu0 %8079
      %8081 = vrot.lane.b32.xlu0 %v7878, 108
      %v8082 = vpop.permute.xlu0 %8081
      %8083 = vrot.lane.b32.xlu0 %v7990, 108
      %v8084 = vpop.permute.xlu0 %8083
      %v8085 = vsel %vm3463, %v8080, %v8082
      %v8086 = vsel %vm3463, %v8082, %v8084
      %v8090 = vadd.f32 %v8073, %v8085
      %v8091 = vadd.f32 %v8074, %v8086
      %v8092 = vadd.f32 %v8075, %v8084
      %8096 = vrot.lane.b32.xlu0 %v7882, 92
      %v8097 = vpop.permute.xlu0 %8096
      %8098 = vrot.lane.b32.xlu0 %v7884, 92
      %v8099 = vpop.permute.xlu0 %8098
      %8100 = vrot.lane.b32.xlu0 %v7995, 92
      %v8101 = vpop.permute.xlu0 %8100
      %v8102 = vsel %vm1879, %v8097, %v8099
      %v8103 = vsel %vm1879, %v8099, %v8101
      %v8107 = vadd.f32 %v8090, %v8102
      %v8108 = vadd.f32 %v8091, %v8103
      %v8109 = vadd.f32 %v8092, %v8101
      %8113 = vrot.lane.b32.xlu0 %v7888, 91
      %v8114 = vpop.permute.xlu0 %8113
      %8115 = vrot.lane.b32.xlu0 %v7890, 91
      %v8116 = vpop.permute.xlu0 %8115
      %8117 = vrot.lane.b32.xlu0 %v8000, 91
      %v8118 = vpop.permute.xlu0 %8117
      %v8119 = vsel %vm1939, %v8114, %v8116
      %v8120 = vsel %vm1939, %v8116, %v8118
      %v8124 = vadd.f32 %v8107, %v8119
      %v8125 = vadd.f32 %v8108, %v8120
      %v8126 = vadd.f32 %v8109, %v8118
      %8130 = vrot.lane.b32.xlu0 %v7894, 90
      %v8131 = vpop.permute.xlu0 %8130
      %8132 = vrot.lane.b32.xlu0 %v7896, 90
      %v8133 = vpop.permute.xlu0 %8132
      %8134 = vrot.lane.b32.xlu0 %v8005, 90
      %v8135 = vpop.permute.xlu0 %8134
      %v8136 = vsel %vm3515, %v8131, %v8133
      %v8137 = vsel %vm3515, %v8133, %v8135
      %v8141 = vadd.f32 %v8124, %v8136
      %v8142 = vadd.f32 %v8125, %v8137
      %v8143 = vadd.f32 %v8126, %v8135
      %8144 = vset.pattern.permute.xlu0 25
      %8145 = vperm.xlu0 %8144, %v5814
      %v8146 = vpop.permute.xlu0 %8145
      %v8148 = vadd.f32 %v8141, %v8146
      %v8149 = vadd.f32 %v8142, %v8146
      %v8150 = vadd.f32 %v8143, %v8146
      %v8151 = vmax.f32 %v8148, 0.0
      %v8152 = vmax.f32 %v8149, 0.0
      %v8153 = vmax.f32 %v8150, 0.0
      %v8155 = vsel %vm3534, %v8153, 0
      %8157 = vmatprep.subr.mxu0 %v874
      %8158 = vmatpush1.msra.mxu0 %v873
      %8159 = vmatprep.subr.mxu0 %v864
      %8160 = vmatpush1.msra.mxu0 %v863
      %8161 = vmatprep.subr.mxu0 %v854
      %8162 = vmatpush1.msra.mxu0 %v853
      %8163 = vmatprep.subr.mxu0 %v844
      %8164 = vmatpush1.msra.mxu0 %v843
      %8165 = vmatprep.subr.mxu0 %v834
      %8166 = vmatpush1.msra.mxu0 %v833
      %8167 = vmatprep.subr.mxu0 %v824
      %8168 = vmatpush1.msra.mxu0 %v823
      %8169 = vmatprep.subr.mxu0 %v814
      %8170 = vmatpush1.msra.mxu0 %v813
      %8171 = vmatprep.subr.mxu0 %v804
      %8172 = vmatpush1.msra.mxu0 %v803
      %8173 = vmatprep.subr.mxu0 %v794
      %8174 = vmatpush1.msra.mxu0 %v793
      %8175 = vmatprep.subr.mxu0 %v784
      %8176 = vmatpush1.msra.mxu0 %v783
      %8177 = vmatprep.subr.mxu0 %v774
      %8178 = vmatpush1.msra.mxu0 %v773
      %8179 = vmatprep.subr.mxu0 %v764
      %8180 = vmatpush1.msra.mxu0 %v763
      %8181 = vmatprep.subr.mxu0 %v754
      %8182 = vmatpush1.msra.mxu0 %v753
      %8183 = vmatprep.subr.mxu0 %v744
      %8184 = vmatpush1.msra.mxu0 %v743
      %8185 = vmatprep.subr.mxu0 %v734
      %8186 = vmatpush1.msra.mxu0 %v733
      %8187 = vmatprep.subr.mxu0 %v724
      %8188 = vmatpush1.msra.mxu0 %v723
      %8189 = vmatprep.subr.mxu0 %v1034
      %8190 = vmatpush2.msra.mxu0 %v1033
      %8191 = vmatprep.subr.mxu0 %v1024
      %8192 = vmatpush2.msra.mxu0 %v1023
      %8193 = vmatprep.subr.mxu0 %v1014
      %8194 = vmatpush2.msra.mxu0 %v1013
      %8195 = vmatprep.subr.mxu0 %v1004
      %8196 = vmatpush2.msra.mxu0 %v1003
      %8197 = vmatprep.subr.mxu0 %v994
      %8198 = vmatpush2.msra.mxu0 %v993
      %8199 = vmatprep.subr.mxu0 %v984
      %8200 = vmatpush2.msra.mxu0 %v983
      %8201 = vmatprep.subr.mxu0 %v974
      %8202 = vmatpush2.msra.mxu0 %v973
      %8203 = vmatprep.subr.mxu0 %v964
      %8204 = vmatpush2.msra.mxu0 %v963
      %8205 = vmatprep.subr.mxu0 %v954
      %8206 = vmatpush2.msra.mxu0 %v953
      %8207 = vmatprep.subr.mxu0 %v944
      %8208 = vmatpush2.msra.mxu0 %v943
      %8209 = vmatprep.subr.mxu0 %v934
      %8210 = vmatpush2.msra.mxu0 %v933
      %8211 = vmatprep.subr.mxu0 %v924
      %8212 = vmatpush2.msra.mxu0 %v923
      %8213 = vmatprep.subr.mxu0 %v914
      %8214 = vmatpush2.msra.mxu0 %v913
      %8215 = vmatprep.subr.mxu0 %v904
      %8216 = vmatpush2.msra.mxu0 %v903
      %8217 = vmatprep.subr.mxu0 %v894
      %8218 = vmatpush2.msra.mxu0 %v893
      %8219 = vmatprep.subr.mxu0 %v884
      %8220 = vmatpush2.msra.mxu0 %v883
      %8221 = vmatprep.mubr.f32.mxu0 %v8152
      %8222 = vmatmul.mubr.f32.gmra.mxu0 %v8151
      %v8223 = vpop.f32.mrf.mxu0
      %v8224 = vadd.f32 0.0, %v8223
      %v8225 = vpop.f32.mrf.mxu0
      %v8226 = vadd.f32 0.0, %v8225
      %8227 = vdwg.mxu0
      %8228 = vmatprep.subr.mxu0 0.0
      %8229 = vmatpush1.msra.mxu0 0.0
      %8230 = vmatprep.subr.mxu0 0.0
      %8231 = vmatpush1.msra.mxu0 0.0
      %8232 = vmatprep.subr.mxu0 0.0
      %8233 = vmatpush1.msra.mxu0 0.0
      %8234 = vmatprep.subr.mxu0 0.0
      %8235 = vmatpush1.msra.mxu0 0.0
      %8236 = vmatprep.subr.mxu0 0.0
      %8237 = vmatpush1.msra.mxu0 0.0
      %8238 = vmatprep.subr.mxu0 0.0
      %8239 = vmatpush1.msra.mxu0 0.0
      %8240 = vmatprep.subr.mxu0 0.0
      %8241 = vmatpush1.msra.mxu0 0.0
      %8242 = vmatprep.subr.mxu0 0.0
      %8243 = vmatpush1.msra.mxu0 0.0
      %8244 = vmatprep.subr.mxu0 0.0
      %8245 = vmatpush1.msra.mxu0 0.0
      %8246 = vmatprep.subr.mxu0 0.0
      %8247 = vmatpush1.msra.mxu0 0.0
      %8248 = vmatprep.subr.mxu0 0.0
      %8249 = vmatpush1.msra.mxu0 0.0
      %8250 = vmatprep.subr.mxu0 0.0
      %8251 = vmatpush1.msra.mxu0 0.0
      %8252 = vmatprep.subr.mxu0 %v1074
      %8253 = vmatpush1.msra.mxu0 %v1073
      %8254 = vmatprep.subr.mxu0 %v1064
      %8255 = vmatpush1.msra.mxu0 %v1063
      %8256 = vmatprep.subr.mxu0 %v1054
      %8257 = vmatpush1.msra.mxu0 %v1053
      %8258 = vmatprep.subr.mxu0 %v1044
      %8259 = vmatpush1.msra.mxu0 %v1043
      %8260 = vmatprep.subr.mxu0 0.0
      %8261 = vmatpush2.msra.mxu0 0.0
      %8262 = vmatprep.subr.mxu0 0.0
      %8263 = vmatpush2.msra.mxu0 0.0
      %8264 = vmatprep.subr.mxu0 0.0
      %8265 = vmatpush2.msra.mxu0 0.0
      %8266 = vmatprep.subr.mxu0 0.0
      %8267 = vmatpush2.msra.mxu0 0.0
      %8268 = vmatprep.subr.mxu0 0.0
      %8269 = vmatpush2.msra.mxu0 0.0
      %8270 = vmatprep.subr.mxu0 0.0
      %8271 = vmatpush2.msra.mxu0 0.0
      %8272 = vmatprep.subr.mxu0 0.0
      %8273 = vmatpush2.msra.mxu0 0.0
      %8274 = vmatprep.subr.mxu0 0.0
      %8275 = vmatpush2.msra.mxu0 0.0
      %8276 = vmatprep.subr.mxu0 0.0
      %8277 = vmatpush2.msra.mxu0 0.0
      %8278 = vmatprep.subr.mxu0 0.0
      %8279 = vmatpush2.msra.mxu0 0.0
      %8280 = vmatprep.subr.mxu0 0.0
      %8281 = vmatpush2.msra.mxu0 0.0
      %8282 = vmatprep.subr.mxu0 0.0
      %8283 = vmatpush2.msra.mxu0 0.0
      %8284 = vmatprep.subr.mxu0 0.0
      %8285 = vmatpush2.msra.mxu0 0.0
      %8286 = vmatprep.subr.mxu0 0.0
      %8287 = vmatpush2.msra.mxu0 0.0
      %8288 = vmatprep.subr.mxu0 0.0
      %8289 = vmatpush2.msra.mxu0 0.0
      %8290 = vmatprep.subr.mxu0 0.0
      %8291 = vmatpush2.msra.mxu0 0.0
      %8292 = vmatprep.mubr.f32.mxu0 0.0
      %8293 = vmatmul.mubr.f32.gmra.mxu0 %v8155
      %v8294 = vpop.f32.mrf.mxu0
      %v8295 = vadd.f32 %v8224, %v8294
      %v8296 = vpop.f32.mrf.mxu0
      %v8297 = vadd.f32 %v8226, %v8296
      %8298 = vdwg.mxu0
      %8299 = vmatprep.subr.mxu0 %v876
      %8300 = vmatpush1.msra.mxu0 %v875
      %8301 = vmatprep.subr.mxu0 %v866
      %8302 = vmatpush1.msra.mxu0 %v865
      %8303 = vmatprep.subr.mxu0 %v856
      %8304 = vmatpush1.msra.mxu0 %v855
      %8305 = vmatprep.subr.mxu0 %v846
      %8306 = vmatpush1.msra.mxu0 %v845
      %8307 = vmatprep.subr.mxu0 %v836
      %8308 = vmatpush1.msra.mxu0 %v835
      %8309 = vmatprep.subr.mxu0 %v826
      %8310 = vmatpush1.msra.mxu0 %v825
      %8311 = vmatprep.subr.mxu0 %v816
      %8312 = vmatpush1.msra.mxu0 %v815
      %8313 = vmatprep.subr.mxu0 %v806
      %8314 = vmatpush1.msra.mxu0 %v805
      %8315 = vmatprep.subr.mxu0 %v796
      %8316 = vmatpush1.msra.mxu0 %v795
      %8317 = vmatprep.subr.mxu0 %v786
      %8318 = vmatpush1.msra.mxu0 %v785
      %8319 = vmatprep.subr.mxu0 %v776
      %8320 = vmatpush1.msra.mxu0 %v775
      %8321 = vmatprep.subr.mxu0 %v766
      %8322 = vmatpush1.msra.mxu0 %v765
      %8323 = vmatprep.subr.mxu0 %v756
      %8324 = vmatpush1.msra.mxu0 %v755
      %8325 = vmatprep.subr.mxu0 %v746
      %8326 = vmatpush1.msra.mxu0 %v745
      %8327 = vmatprep.subr.mxu0 %v736
      %8328 = vmatpush1.msra.mxu0 %v735
      %8329 = vmatprep.subr.mxu0 %v726
      %8330 = vmatpush1.msra.mxu0 %v725
      %8331 = vmatprep.subr.mxu0 %v1036
      %8332 = vmatpush2.msra.mxu0 %v1035
      %8333 = vmatprep.subr.mxu0 %v1026
      %8334 = vmatpush2.msra.mxu0 %v1025
      %8335 = vmatprep.subr.mxu0 %v1016
      %8336 = vmatpush2.msra.mxu0 %v1015
      %8337 = vmatprep.subr.mxu0 %v1006
      %8338 = vmatpush2.msra.mxu0 %v1005
      %8339 = vmatprep.subr.mxu0 %v996
      %8340 = vmatpush2.msra.mxu0 %v995
      %8341 = vmatprep.subr.mxu0 %v986
      %8342 = vmatpush2.msra.mxu0 %v985
      %8343 = vmatprep.subr.mxu0 %v976
      %8344 = vmatpush2.msra.mxu0 %v975
      %8345 = vmatprep.subr.mxu0 %v966
      %8346 = vmatpush2.msra.mxu0 %v965
      %8347 = vmatprep.subr.mxu0 %v956
      %8348 = vmatpush2.msra.mxu0 %v955
      %8349 = vmatprep.subr.mxu0 %v946
      %8350 = vmatpush2.msra.mxu0 %v945
      %8351 = vmatprep.subr.mxu0 %v936
      %8352 = vmatpush2.msra.mxu0 %v935
      %8353 = vmatprep.subr.mxu0 %v926
      %8354 = vmatpush2.msra.mxu0 %v925
      %8355 = vmatprep.subr.mxu0 %v916
      %8356 = vmatpush2.msra.mxu0 %v915
      %8357 = vmatprep.subr.mxu0 %v906
      %8358 = vmatpush2.msra.mxu0 %v905
      %8359 = vmatprep.subr.mxu0 %v896
      %8360 = vmatpush2.msra.mxu0 %v895
      %8361 = vmatprep.subr.mxu0 %v886
      %8362 = vmatpush2.msra.mxu0 %v885
      %8363 = vmatprep.mubr.f32.mxu0 %v8152
      %8364 = vmatmul.mubr.f32.gmra.mxu0 %v8151
      %v8365 = vpop.f32.mrf.mxu0
      %v8366 = vadd.f32 0.0, %v8365
      %v8367 = vpop.f32.mrf.mxu0
      %v8368 = vadd.f32 0.0, %v8367
      %8369 = vdwg.mxu0
      %8370 = vmatprep.subr.mxu0 0.0
      %8371 = vmatpush1.msra.mxu0 0.0
      %8372 = vmatprep.subr.mxu0 0.0
      %8373 = vmatpush1.msra.mxu0 0.0
      %8374 = vmatprep.subr.mxu0 0.0
      %8375 = vmatpush1.msra.mxu0 0.0
      %8376 = vmatprep.subr.mxu0 0.0
      %8377 = vmatpush1.msra.mxu0 0.0
      %8378 = vmatprep.subr.mxu0 0.0
      %8379 = vmatpush1.msra.mxu0 0.0
      %8380 = vmatprep.subr.mxu0 0.0
      %8381 = vmatpush1.msra.mxu0 0.0
      %8382 = vmatprep.subr.mxu0 0.0
      %8383 = vmatpush1.msra.mxu0 0.0
      %8384 = vmatprep.subr.mxu0 0.0
      %8385 = vmatpush1.msra.mxu0 0.0
      %8386 = vmatprep.subr.mxu0 0.0
      %8387 = vmatpush1.msra.mxu0 0.0
      %8388 = vmatprep.subr.mxu0 0.0
      %8389 = vmatpush1.msra.mxu0 0.0
      %8390 = vmatprep.subr.mxu0 0.0
      %8391 = vmatpush1.msra.mxu0 0.0
      %8392 = vmatprep.subr.mxu0 0.0
      %8393 = vmatpush1.msra.mxu0 0.0
      %8394 = vmatprep.subr.mxu0 %v1076
      %8395 = vmatpush1.msra.mxu0 %v1075
      %8396 = vmatprep.subr.mxu0 %v1066
      %8397 = vmatpush1.msra.mxu0 %v1065
      %8398 = vmatprep.subr.mxu0 %v1056
      %8399 = vmatpush1.msra.mxu0 %v1055
      %8400 = vmatprep.subr.mxu0 %v1046
      %8401 = vmatpush1.msra.mxu0 %v1045
      %8402 = vmatprep.subr.mxu0 0.0
      %8403 = vmatpush2.msra.mxu0 0.0
      %8404 = vmatprep.subr.mxu0 0.0
      %8405 = vmatpush2.msra.mxu0 0.0
      %8406 = vmatprep.subr.mxu0 0.0
      %8407 = vmatpush2.msra.mxu0 0.0
      %8408 = vmatprep.subr.mxu0 0.0
      %8409 = vmatpush2.msra.mxu0 0.0
      %8410 = vmatprep.subr.mxu0 0.0
      %8411 = vmatpush2.msra.mxu0 0.0
      %8412 = vmatprep.subr.mxu0 0.0
      %8413 = vmatpush2.msra.mxu0 0.0
      %8414 = vmatprep.subr.mxu0 0.0
      %8415 = vmatpush2.msra.mxu0 0.0
      %8416 = vmatprep.subr.mxu0 0.0
      %8417 = vmatpush2.msra.mxu0 0.0
      %8418 = vmatprep.subr.mxu0 0.0
      %8419 = vmatpush2.msra.mxu0 0.0
      %8420 = vmatprep.subr.mxu0 0.0
      %8421 = vmatpush2.msra.mxu0 0.0
      %8422 = vmatprep.subr.mxu0 0.0
      %8423 = vmatpush2.msra.mxu0 0.0
      %8424 = vmatprep.subr.mxu0 0.0
      %8425 = vmatpush2.msra.mxu0 0.0
      %8426 = vmatprep.subr.mxu0 0.0
      %8427 = vmatpush2.msra.mxu0 0.0
      %8428 = vmatprep.subr.mxu0 0.0
      %8429 = vmatpush2.msra.mxu0 0.0
      %8430 = vmatprep.subr.mxu0 0.0
      %8431 = vmatpush2.msra.mxu0 0.0
      %8432 = vmatprep.subr.mxu0 0.0
      %8433 = vmatpush2.msra.mxu0 0.0
      %8434 = vmatprep.mubr.f32.mxu0 0.0
      %8435 = vmatmul.mubr.f32.gmra.mxu0 %v8155
      %v8436 = vpop.f32.mrf.mxu0
      %v8437 = vadd.f32 %v8366, %v8436
      %v8438 = vpop.f32.mrf.mxu0
      %v8439 = vadd.f32 %v8368, %v8438
      %8440 = vdwg.mxu0
      %8441 = vmatprep.subr.mxu0 %v878
      %8442 = vmatpush1.msra.mxu0 %v877
      %8443 = vmatprep.subr.mxu0 %v868
      %8444 = vmatpush1.msra.mxu0 %v867
      %8445 = vmatprep.subr.mxu0 %v858
      %8446 = vmatpush1.msra.mxu0 %v857
      %8447 = vmatprep.subr.mxu0 %v848
      %8448 = vmatpush1.msra.mxu0 %v847
      %8449 = vmatprep.subr.mxu0 %v838
      %8450 = vmatpush1.msra.mxu0 %v837
      %8451 = vmatprep.subr.mxu0 %v828
      %8452 = vmatpush1.msra.mxu0 %v827
      %8453 = vmatprep.subr.mxu0 %v818
      %8454 = vmatpush1.msra.mxu0 %v817
      %8455 = vmatprep.subr.mxu0 %v808
      %8456 = vmatpush1.msra.mxu0 %v807
      %8457 = vmatprep.subr.mxu0 %v798
      %8458 = vmatpush1.msra.mxu0 %v797
      %8459 = vmatprep.subr.mxu0 %v788
      %8460 = vmatpush1.msra.mxu0 %v787
      %8461 = vmatprep.subr.mxu0 %v778
      %8462 = vmatpush1.msra.mxu0 %v777
      %8463 = vmatprep.subr.mxu0 %v768
      %8464 = vmatpush1.msra.mxu0 %v767
      %8465 = vmatprep.subr.mxu0 %v758
      %8466 = vmatpush1.msra.mxu0 %v757
      %8467 = vmatprep.subr.mxu0 %v748
      %8468 = vmatpush1.msra.mxu0 %v747
      %8469 = vmatprep.subr.mxu0 %v738
      %8470 = vmatpush1.msra.mxu0 %v737
      %8471 = vmatprep.subr.mxu0 %v728
      %8472 = vmatpush1.msra.mxu0 %v727
      %8473 = vmatprep.subr.mxu0 %v1038
      %8474 = vmatpush2.msra.mxu0 %v1037
      %8475 = vmatprep.subr.mxu0 %v1028
      %8476 = vmatpush2.msra.mxu0 %v1027
      %8477 = vmatprep.subr.mxu0 %v1018
      %8478 = vmatpush2.msra.mxu0 %v1017
      %8479 = vmatprep.subr.mxu0 %v1008
      %8480 = vmatpush2.msra.mxu0 %v1007
      %8481 = vmatprep.subr.mxu0 %v998
      %8482 = vmatpush2.msra.mxu0 %v997
      %8483 = vmatprep.subr.mxu0 %v988
      %8484 = vmatpush2.msra.mxu0 %v987
      %8485 = vmatprep.subr.mxu0 %v978
      %8486 = vmatpush2.msra.mxu0 %v977
      %8487 = vmatprep.subr.mxu0 %v968
      %8488 = vmatpush2.msra.mxu0 %v967
      %8489 = vmatprep.subr.mxu0 %v958
      %8490 = vmatpush2.msra.mxu0 %v957
      %8491 = vmatprep.subr.mxu0 %v948
      %8492 = vmatpush2.msra.mxu0 %v947
      %8493 = vmatprep.subr.mxu0 %v938
      %8494 = vmatpush2.msra.mxu0 %v937
      %8495 = vmatprep.subr.mxu0 %v928
      %8496 = vmatpush2.msra.mxu0 %v927
      %8497 = vmatprep.subr.mxu0 %v918
      %8498 = vmatpush2.msra.mxu0 %v917
      %8499 = vmatprep.subr.mxu0 %v908
      %8500 = vmatpush2.msra.mxu0 %v907
      %8501 = vmatprep.subr.mxu0 %v898
      %8502 = vmatpush2.msra.mxu0 %v897
      %8503 = vmatprep.subr.mxu0 %v888
      %8504 = vmatpush2.msra.mxu0 %v887
      %8505 = vmatprep.mubr.f32.mxu0 %v8152
      %8506 = vmatmul.mubr.f32.gmra.mxu0 %v8151
      %v8507 = vpop.f32.mrf.mxu0
      %v8508 = vadd.f32 0.0, %v8507
      %v8509 = vpop.f32.mrf.mxu0
      %v8510 = vadd.f32 0.0, %v8509
      %8511 = vdwg.mxu0
      %8512 = vmatprep.subr.mxu0 0.0
      %8513 = vmatpush1.msra.mxu0 0.0
      %8514 = vmatprep.subr.mxu0 0.0
      %8515 = vmatpush1.msra.mxu0 0.0
      %8516 = vmatprep.subr.mxu0 0.0
      %8517 = vmatpush1.msra.mxu0 0.0
      %8518 = vmatprep.subr.mxu0 0.0
      %8519 = vmatpush1.msra.mxu0 0.0
      %8520 = vmatprep.subr.mxu0 0.0
      %8521 = vmatpush1.msra.mxu0 0.0
      %8522 = vmatprep.subr.mxu0 0.0
      %8523 = vmatpush1.msra.mxu0 0.0
      %8524 = vmatprep.subr.mxu0 0.0
      %8525 = vmatpush1.msra.mxu0 0.0
      %8526 = vmatprep.subr.mxu0 0.0
      %8527 = vmatpush1.msra.mxu0 0.0
      %8528 = vmatprep.subr.mxu0 0.0
      %8529 = vmatpush1.msra.mxu0 0.0
      %8530 = vmatprep.subr.mxu0 0.0
      %8531 = vmatpush1.msra.mxu0 0.0
      %8532 = vmatprep.subr.mxu0 0.0
      %8533 = vmatpush1.msra.mxu0 0.0
      %8534 = vmatprep.subr.mxu0 0.0
      %8535 = vmatpush1.msra.mxu0 0.0
      %8536 = vmatprep.subr.mxu0 %v1078
      %8537 = vmatpush1.msra.mxu0 %v1077
      %8538 = vmatprep.subr.mxu0 %v1068
      %8539 = vmatpush1.msra.mxu0 %v1067
      %8540 = vmatprep.subr.mxu0 %v1058
      %8541 = vmatpush1.msra.mxu0 %v1057
      %8542 = vmatprep.subr.mxu0 %v1048
      %8543 = vmatpush1.msra.mxu0 %v1047
      %8544 = vmatprep.subr.mxu0 0.0
      %8545 = vmatpush2.msra.mxu0 0.0
      %8546 = vmatprep.subr.mxu0 0.0
      %8547 = vmatpush2.msra.mxu0 0.0
      %8548 = vmatprep.subr.mxu0 0.0
      %8549 = vmatpush2.msra.mxu0 0.0
      %8550 = vmatprep.subr.mxu0 0.0
      %8551 = vmatpush2.msra.mxu0 0.0
      %8552 = vmatprep.subr.mxu0 0.0
      %8553 = vmatpush2.msra.mxu0 0.0
      %8554 = vmatprep.subr.mxu0 0.0
      %8555 = vmatpush2.msra.mxu0 0.0
      %8556 = vmatprep.subr.mxu0 0.0
      %8557 = vmatpush2.msra.mxu0 0.0
      %8558 = vmatprep.subr.mxu0 0.0
      %8559 = vmatpush2.msra.mxu0 0.0
      %8560 = vmatprep.subr.mxu0 0.0
      %8561 = vmatpush2.msra.mxu0 0.0
      %8562 = vmatprep.subr.mxu0 0.0
      %8563 = vmatpush2.msra.mxu0 0.0
      %8564 = vmatprep.subr.mxu0 0.0
      %8565 = vmatpush2.msra.mxu0 0.0
      %8566 = vmatprep.subr.mxu0 0.0
      %8567 = vmatpush2.msra.mxu0 0.0
      %8568 = vmatprep.subr.mxu0 0.0
      %8569 = vmatpush2.msra.mxu0 0.0
      %8570 = vmatprep.subr.mxu0 0.0
      %8571 = vmatpush2.msra.mxu0 0.0
      %8572 = vmatprep.subr.mxu0 0.0
      %8573 = vmatpush2.msra.mxu0 0.0
      %8574 = vmatprep.subr.mxu0 0.0
      %8575 = vmatpush2.msra.mxu0 0.0
      %8576 = vmatprep.mubr.f32.mxu0 0.0
      %8577 = vmatmul.mubr.f32.gmra.mxu0 %v8155
      %v8578 = vpop.f32.mrf.mxu0
      %v8579 = vadd.f32 %v8508, %v8578
      %v8580 = vpop.f32.mrf.mxu0
      %v8581 = vadd.f32 %v8510, %v8580
      %8582 = vdwg.mxu0
      %8583 = vmatprep.subr.mxu0 %v880
      %8584 = vmatpush1.msra.mxu0 %v879
      %8585 = vmatprep.subr.mxu0 %v870
      %8586 = vmatpush1.msra.mxu0 %v869
      %8587 = vmatprep.subr.mxu0 %v860
      %8588 = vmatpush1.msra.mxu0 %v859
      %8589 = vmatprep.subr.mxu0 %v850
      %8590 = vmatpush1.msra.mxu0 %v849
      %8591 = vmatprep.subr.mxu0 %v840
      %8592 = vmatpush1.msra.mxu0 %v839
      %8593 = vmatprep.subr.mxu0 %v830
      %8594 = vmatpush1.msra.mxu0 %v829
      %8595 = vmatprep.subr.mxu0 %v820
      %8596 = vmatpush1.msra.mxu0 %v819
      %8597 = vmatprep.subr.mxu0 %v810
      %8598 = vmatpush1.msra.mxu0 %v809
      %8599 = vmatprep.subr.mxu0 %v800
      %8600 = vmatpush1.msra.mxu0 %v799
      %8601 = vmatprep.subr.mxu0 %v790
      %8602 = vmatpush1.msra.mxu0 %v789
      %8603 = vmatprep.subr.mxu0 %v780
      %8604 = vmatpush1.msra.mxu0 %v779
      %8605 = vmatprep.subr.mxu0 %v770
      %8606 = vmatpush1.msra.mxu0 %v769
      %8607 = vmatprep.subr.mxu0 %v760
      %8608 = vmatpush1.msra.mxu0 %v759
      %8609 = vmatprep.subr.mxu0 %v750
      %8610 = vmatpush1.msra.mxu0 %v749
      %8611 = vmatprep.subr.mxu0 %v740
      %8612 = vmatpush1.msra.mxu0 %v739
      %8613 = vmatprep.subr.mxu0 %v730
      %8614 = vmatpush1.msra.mxu0 %v729
      %8615 = vmatprep.subr.mxu0 %v1040
      %8616 = vmatpush2.msra.mxu0 %v1039
      %8617 = vmatprep.subr.mxu0 %v1030
      %8618 = vmatpush2.msra.mxu0 %v1029
      %8619 = vmatprep.subr.mxu0 %v1020
      %8620 = vmatpush2.msra.mxu0 %v1019
      %8621 = vmatprep.subr.mxu0 %v1010
      %8622 = vmatpush2.msra.mxu0 %v1009
      %8623 = vmatprep.subr.mxu0 %v1000
      %8624 = vmatpush2.msra.mxu0 %v999
      %8625 = vmatprep.subr.mxu0 %v990
      %8626 = vmatpush2.msra.mxu0 %v989
      %8627 = vmatprep.subr.mxu0 %v980
      %8628 = vmatpush2.msra.mxu0 %v979
      %8629 = vmatprep.subr.mxu0 %v970
      %8630 = vmatpush2.msra.mxu0 %v969
      %8631 = vmatprep.subr.mxu0 %v960
      %8632 = vmatpush2.msra.mxu0 %v959
      %8633 = vmatprep.subr.mxu0 %v950
      %8634 = vmatpush2.msra.mxu0 %v949
      %8635 = vmatprep.subr.mxu0 %v940
      %8636 = vmatpush2.msra.mxu0 %v939
      %8637 = vmatprep.subr.mxu0 %v930
      %8638 = vmatpush2.msra.mxu0 %v929
      %8639 = vmatprep.subr.mxu0 %v920
      %8640 = vmatpush2.msra.mxu0 %v919
      %8641 = vmatprep.subr.mxu0 %v910
      %8642 = vmatpush2.msra.mxu0 %v909
      %8643 = vmatprep.subr.mxu0 %v900
      %8644 = vmatpush2.msra.mxu0 %v899
      %8645 = vmatprep.subr.mxu0 %v890
      %8646 = vmatpush2.msra.mxu0 %v889
      %8647 = vmatprep.mubr.f32.mxu0 %v8152
      %8648 = vmatmul.mubr.f32.gmra.mxu0 %v8151
      %v8649 = vpop.f32.mrf.mxu0
      %v8650 = vadd.f32 0.0, %v8649
      %v8651 = vpop.f32.mrf.mxu0
      %v8652 = vadd.f32 0.0, %v8651
      %8653 = vdwg.mxu0
      %8654 = vmatprep.subr.mxu0 0.0
      %8655 = vmatpush1.msra.mxu0 0.0
      %8656 = vmatprep.subr.mxu0 0.0
      %8657 = vmatpush1.msra.mxu0 0.0
      %8658 = vmatprep.subr.mxu0 0.0
      %8659 = vmatpush1.msra.mxu0 0.0
      %8660 = vmatprep.subr.mxu0 0.0
      %8661 = vmatpush1.msra.mxu0 0.0
      %8662 = vmatprep.subr.mxu0 0.0
      %8663 = vmatpush1.msra.mxu0 0.0
      %8664 = vmatprep.subr.mxu0 0.0
      %8665 = vmatpush1.msra.mxu0 0.0
      %8666 = vmatprep.subr.mxu0 0.0
      %8667 = vmatpush1.msra.mxu0 0.0
      %8668 = vmatprep.subr.mxu0 0.0
      %8669 = vmatpush1.msra.mxu0 0.0
      %8670 = vmatprep.subr.mxu0 0.0
      %8671 = vmatpush1.msra.mxu0 0.0
      %8672 = vmatprep.subr.mxu0 0.0
      %8673 = vmatpush1.msra.mxu0 0.0
      %8674 = vmatprep.subr.mxu0 0.0
      %8675 = vmatpush1.msra.mxu0 0.0
      %8676 = vmatprep.subr.mxu0 0.0
      %8677 = vmatpush1.msra.mxu0 0.0
      %8678 = vmatprep.subr.mxu0 %v1080
      %8679 = vmatpush1.msra.mxu0 %v1079
      %8680 = vmatprep.subr.mxu0 %v1070
      %8681 = vmatpush1.msra.mxu0 %v1069
      %8682 = vmatprep.subr.mxu0 %v1060
      %8683 = vmatpush1.msra.mxu0 %v1059
      %8684 = vmatprep.subr.mxu0 %v1050
      %8685 = vmatpush1.msra.mxu0 %v1049
      %8686 = vmatprep.subr.mxu0 0.0
      %8687 = vmatpush2.msra.mxu0 0.0
      %8688 = vmatprep.subr.mxu0 0.0
      %8689 = vmatpush2.msra.mxu0 0.0
      %8690 = vmatprep.subr.mxu0 0.0
      %8691 = vmatpush2.msra.mxu0 0.0
      %8692 = vmatprep.subr.mxu0 0.0
      %8693 = vmatpush2.msra.mxu0 0.0
      %8694 = vmatprep.subr.mxu0 0.0
      %8695 = vmatpush2.msra.mxu0 0.0
      %8696 = vmatprep.subr.mxu0 0.0
      %8697 = vmatpush2.msra.mxu0 0.0
      %8698 = vmatprep.subr.mxu0 0.0
      %8699 = vmatpush2.msra.mxu0 0.0
      %8700 = vmatprep.subr.mxu0 0.0
      %8701 = vmatpush2.msra.mxu0 0.0
      %8702 = vmatprep.subr.mxu0 0.0
      %8703 = vmatpush2.msra.mxu0 0.0
      %8704 = vmatprep.subr.mxu0 0.0
      %8705 = vmatpush2.msra.mxu0 0.0
      %8706 = vmatprep.subr.mxu0 0.0
      %8707 = vmatpush2.msra.mxu0 0.0
      %8708 = vmatprep.subr.mxu0 0.0
      %8709 = vmatpush2.msra.mxu0 0.0
      %8710 = vmatprep.subr.mxu0 0.0
      %8711 = vmatpush2.msra.mxu0 0.0
      %8712 = vmatprep.subr.mxu0 0.0
      %8713 = vmatpush2.msra.mxu0 0.0
      %8714 = vmatprep.subr.mxu0 0.0
      %8715 = vmatpush2.msra.mxu0 0.0
      %8716 = vmatprep.subr.mxu0 0.0
      %8717 = vmatpush2.msra.mxu0 0.0
      %8718 = vmatprep.mubr.f32.mxu0 0.0
      %8719 = vmatmul.mubr.f32.gmra.mxu0 %v8155
      %v8720 = vpop.f32.mrf.mxu0
      %v8721 = vadd.f32 %v8650, %v8720
      %v8722 = vpop.f32.mrf.mxu0
      %v8723 = vadd.f32 %v8652, %v8722
      %8724 = vdwg.mxu0
      %8725 = vmatprep.subr.mxu0 %v882
      %8726 = vmatpush1.msra.mxu0 %v881
      %8727 = vmatprep.subr.mxu0 %v872
      %8728 = vmatpush1.msra.mxu0 %v871
      %8729 = vmatprep.subr.mxu0 %v862
      %8730 = vmatpush1.msra.mxu0 %v861
      %8731 = vmatprep.subr.mxu0 %v852
      %8732 = vmatpush1.msra.mxu0 %v851
      %8733 = vmatprep.subr.mxu0 %v842
      %8734 = vmatpush1.msra.mxu0 %v841
      %8735 = vmatprep.subr.mxu0 %v832
      %8736 = vmatpush1.msra.mxu0 %v831
      %8737 = vmatprep.subr.mxu0 %v822
      %8738 = vmatpush1.msra.mxu0 %v821
      %8739 = vmatprep.subr.mxu0 %v812
      %8740 = vmatpush1.msra.mxu0 %v811
      %8741 = vmatprep.subr.mxu0 %v802
      %8742 = vmatpush1.msra.mxu0 %v801
      %8743 = vmatprep.subr.mxu0 %v792
      %8744 = vmatpush1.msra.mxu0 %v791
      %8745 = vmatprep.subr.mxu0 %v782
      %8746 = vmatpush1.msra.mxu0 %v781
      %8747 = vmatprep.subr.mxu0 %v772
      %8748 = vmatpush1.msra.mxu0 %v771
      %8749 = vmatprep.subr.mxu0 %v762
      %8750 = vmatpush1.msra.mxu0 %v761
      %8751 = vmatprep.subr.mxu0 %v752
      %8752 = vmatpush1.msra.mxu0 %v751
      %8753 = vmatprep.subr.mxu0 %v742
      %8754 = vmatpush1.msra.mxu0 %v741
      %8755 = vmatprep.subr.mxu0 %v732
      %8756 = vmatpush1.msra.mxu0 %v731
      %8757 = vmatprep.subr.mxu0 %v1042
      %8758 = vmatpush2.msra.mxu0 %v1041
      %8759 = vmatprep.subr.mxu0 %v1032
      %8760 = vmatpush2.msra.mxu0 %v1031
      %8761 = vmatprep.subr.mxu0 %v1022
      %8762 = vmatpush2.msra.mxu0 %v1021
      %8763 = vmatprep.subr.mxu0 %v1012
      %8764 = vmatpush2.msra.mxu0 %v1011
      %8765 = vmatprep.subr.mxu0 %v1002
      %8766 = vmatpush2.msra.mxu0 %v1001
      %8767 = vmatprep.subr.mxu0 %v992
      %8768 = vmatpush2.msra.mxu0 %v991
      %8769 = vmatprep.subr.mxu0 %v982
      %8770 = vmatpush2.msra.mxu0 %v981
      %8771 = vmatprep.subr.mxu0 %v972
      %8772 = vmatpush2.msra.mxu0 %v971
      %8773 = vmatprep.subr.mxu0 %v962
      %8774 = vmatpush2.msra.mxu0 %v961
      %8775 = vmatprep.subr.mxu0 %v952
      %8776 = vmatpush2.msra.mxu0 %v951
      %8777 = vmatprep.subr.mxu0 %v942
      %8778 = vmatpush2.msra.mxu0 %v941
      %8779 = vmatprep.subr.mxu0 %v932
      %8780 = vmatpush2.msra.mxu0 %v931
      %8781 = vmatprep.subr.mxu0 %v922
      %8782 = vmatpush2.msra.mxu0 %v921
      %8783 = vmatprep.subr.mxu0 %v912
      %8784 = vmatpush2.msra.mxu0 %v911
      %8785 = vmatprep.subr.mxu0 %v902
      %8786 = vmatpush2.msra.mxu0 %v901
      %8787 = vmatprep.subr.mxu0 %v892
      %8788 = vmatpush2.msra.mxu0 %v891
      %8789 = vmatprep.mubr.f32.mxu0 %v8152
      %8790 = vmatmul.mubr.f32.gmra.mxu0 %v8151
      %v8791 = vpop.f32.mrf.mxu0
      %v8792 = vadd.f32 0.0, %v8791
      %v8793 = vpop.f32.mrf.mxu0
      %v8794 = vadd.f32 0.0, %v8793
      %8795 = vdwg.mxu0
      %8796 = vmatprep.subr.mxu0 0.0
      %8797 = vmatpush1.msra.mxu0 0.0
      %8798 = vmatprep.subr.mxu0 0.0
      %8799 = vmatpush1.msra.mxu0 0.0
      %8800 = vmatprep.subr.mxu0 0.0
      %8801 = vmatpush1.msra.mxu0 0.0
      %8802 = vmatprep.subr.mxu0 0.0
      %8803 = vmatpush1.msra.mxu0 0.0
      %8804 = vmatprep.subr.mxu0 0.0
      %8805 = vmatpush1.msra.mxu0 0.0
      %8806 = vmatprep.subr.mxu0 0.0
      %8807 = vmatpush1.msra.mxu0 0.0
      %8808 = vmatprep.subr.mxu0 0.0
      %8809 = vmatpush1.msra.mxu0 0.0
      %8810 = vmatprep.subr.mxu0 0.0
      %8811 = vmatpush1.msra.mxu0 0.0
      %8812 = vmatprep.subr.mxu0 0.0
      %8813 = vmatpush1.msra.mxu0 0.0
      %8814 = vmatprep.subr.mxu0 0.0
      %8815 = vmatpush1.msra.mxu0 0.0
      %8816 = vmatprep.subr.mxu0 0.0
      %8817 = vmatpush1.msra.mxu0 0.0
      %8818 = vmatprep.subr.mxu0 0.0
      %8819 = vmatpush1.msra.mxu0 0.0
      %8820 = vmatprep.subr.mxu0 %v1082
      %8821 = vmatpush1.msra.mxu0 %v1081
      %8822 = vmatprep.subr.mxu0 %v1072
      %8823 = vmatpush1.msra.mxu0 %v1071
      %8824 = vmatprep.subr.mxu0 %v1062
      %8825 = vmatpush1.msra.mxu0 %v1061
      %8826 = vmatprep.subr.mxu0 %v1052
      %8827 = vmatpush1.msra.mxu0 %v1051
      %8828 = vmatprep.subr.mxu0 0.0
      %8829 = vmatpush2.msra.mxu0 0.0
      %8830 = vmatprep.subr.mxu0 0.0
      %8831 = vmatpush2.msra.mxu0 0.0
      %8832 = vmatprep.subr.mxu0 0.0
      %8833 = vmatpush2.msra.mxu0 0.0
      %8834 = vmatprep.subr.mxu0 0.0
      %8835 = vmatpush2.msra.mxu0 0.0
      %8836 = vmatprep.subr.mxu0 0.0
      %8837 = vmatpush2.msra.mxu0 0.0
      %8838 = vmatprep.subr.mxu0 0.0
      %8839 = vmatpush2.msra.mxu0 0.0
      %8840 = vmatprep.subr.mxu0 0.0
      %8841 = vmatpush2.msra.mxu0 0.0
      %8842 = vmatprep.subr.mxu0 0.0
      %8843 = vmatpush2.msra.mxu0 0.0
      %8844 = vmatprep.subr.mxu0 0.0
      %8845 = vmatpush2.msra.mxu0 0.0
      %8846 = vmatprep.subr.mxu0 0.0
      %8847 = vmatpush2.msra.mxu0 0.0
      %8848 = vmatprep.subr.mxu0 0.0
      %8849 = vmatpush2.msra.mxu0 0.0
      %8850 = vmatprep.subr.mxu0 0.0
      %8851 = vmatpush2.msra.mxu0 0.0
      %8852 = vmatprep.subr.mxu0 0.0
      %8853 = vmatpush2.msra.mxu0 0.0
      %8854 = vmatprep.subr.mxu0 0.0
      %8855 = vmatpush2.msra.mxu0 0.0
      %8856 = vmatprep.subr.mxu0 0.0
      %8857 = vmatpush2.msra.mxu0 0.0
      %8858 = vmatprep.subr.mxu0 0.0
      %8859 = vmatpush2.msra.mxu0 0.0
      %8860 = vmatprep.mubr.f32.mxu0 0.0
      %8861 = vmatmul.mubr.f32.gmra.mxu0 %v8155
      %v8862 = vpop.f32.mrf.mxu0
      %v8863 = vadd.f32 %v8792, %v8862
      %v8864 = vpop.f32.mrf.mxu0
      %v8865 = vadd.f32 %v8794, %v8864
      %8866 = vdwg.mxu0
      %v8877 = vrot.slane %v8295, 4
      %v8878 = vrot.slane %v8297, 4
      %v8879 = vrot.slane %v8437, 4
      %v8880 = vrot.slane %v8439, 4
      %v8881 = vrot.slane %v8579, 4
      %v8882 = vrot.slane %v8581, 4
      %v8883 = vrot.slane %v8721, 4
      %v8884 = vrot.slane %v8723, 4
      %v8885 = vrot.slane %v8863, 4
      %v8886 = vrot.slane %v8865, 4
      %v8897 = vsel %vm2408, %v6912, %v8877
      %v8898 = vsel %vm2408, %v6913, %v8878
      %v8899 = vsel %vm2408, %v6914, %v8879
      %v8900 = vsel %vm2408, %v6915, %v8880
      %v8901 = vsel %vm2408, %v6916, %v8881
      %v8902 = vsel %vm2408, %v6917, %v8882
      %v8903 = vsel %vm2408, %v6918, %v8883
      %v8904 = vsel %vm2408, %v6919, %v8884
      %v8905 = vsel %vm2408, %v6920, %v8885
      %v8906 = vsel %vm2408, %v6921, %v8886
      %8907 = vrot.lane.b32.xlu0 %v5814, 124
      %v8908 = vpop.permute.xlu0 %8907
      %8909 = vrot.lane.b32.xlu0 %v5815, 124
      %v8910 = vpop.permute.xlu0 %8909
      %8911 = vrot.lane.b32.xlu0 %v5816, 124
      %v8912 = vpop.permute.xlu0 %8911
      %8913 = vrot.lane.b32.xlu0 %v5817, 124
      %v8914 = vpop.permute.xlu0 %8913
      %8915 = vrot.lane.b32.xlu0 %v5818, 124
      %v8916 = vpop.permute.xlu0 %8915
      %v8917 = vsel %vm4298, %v8908, 0
      %v8919 = vsel %vm4298, %v8910, 0
      %v8921 = vsel %vm4298, %v8912, 0
      %v8923 = vsel %vm4298, %v8914, 0
      %v8925 = vsel %vm4298, %v8916, 0
      %v8927 = vsel %vm2408, %v8877, 0
      %v8929 = vsel %vm2408, %v8878, 0
      %v8931 = vsel %vm2408, %v8879, 0
      %v8933 = vsel %vm2408, %v8880, 0
      %v8935 = vsel %vm2408, %v8881, 0
      %v8937 = vsel %vm2408, %v8882, 0
      %v8939 = vsel %vm2408, %v8883, 0
      %v8941 = vsel %vm2408, %v8884, 0
      %v8943 = vsel %vm2408, %v8885, 0
      %v8945 = vsel %vm2408, %v8886, 0
      %8947 = vmatprep.subr.mxu0 0.0
      %8948 = vmatpush1.msra.mxu0 0.0
      %8949 = vmatprep.subr.mxu0 0.0
      %8950 = vmatpush1.msra.mxu0 0.0
      %8951 = vmatprep.subr.mxu0 0.0
      %8952 = vmatpush1.msra.mxu0 0.0
      %8953 = vmatprep.subr.mxu0 0.0
      %8954 = vmatpush1.msra.mxu0 0.0
      %8955 = vmatprep.subr.mxu0 0.0
      %8956 = vmatpush1.msra.mxu0 0.0
      %8957 = vmatprep.subr.mxu0 0.0
      %8958 = vmatpush1.msra.mxu0 0.0
      %8959 = vmatprep.subr.mxu0 0.0
      %8960 = vmatpush1.msra.mxu0 0.0
      %8961 = vmatprep.subr.mxu0 0.0
      %8962 = vmatpush1.msra.mxu0 0.0
      %8963 = vmatprep.subr.mxu0 0.0
      %8964 = vmatpush1.msra.mxu0 0.0
      %8965 = vmatprep.subr.mxu0 0.0
      %8966 = vmatpush1.msra.mxu0 0.0
      %8967 = vmatprep.subr.mxu0 0.0
      %8968 = vmatpush1.msra.mxu0 0.0
      %8969 = vmatprep.subr.mxu0 0.0
      %8970 = vmatpush1.msra.mxu0 0.0
      %8971 = vmatprep.subr.mxu0 0.0
      %8972 = vmatpush1.msra.mxu0 0.0
      %8973 = vmatprep.subr.mxu0 0.0
      %8974 = vmatpush1.msra.mxu0 0.0
      %8975 = vmatprep.subr.mxu0 %v8929
      %8976 = vmatpush1.msra.mxu0 %v8927
      %8977 = vmatprep.subr.mxu0 %v8898
      %8978 = vmatpush1.msra.mxu0 %v8897
      %8979 = vmatprep.subr.mxu0 0.0
      %8980 = vmatpush2.msra.mxu0 0.0
      %8981 = vmatprep.subr.mxu0 0.0
      %8982 = vmatpush2.msra.mxu0 0.0
      %8983 = vmatprep.subr.mxu0 0.0
      %8984 = vmatpush2.msra.mxu0 0.0
      %8985 = vmatprep.subr.mxu0 0.0
      %8986 = vmatpush2.msra.mxu0 0.0
      %8987 = vmatprep.subr.mxu0 0.0
      %8988 = vmatpush2.msra.mxu0 0.0
      %8989 = vmatprep.subr.mxu0 0.0
      %8990 = vmatpush2.msra.mxu0 0.0
      %8991 = vmatprep.subr.mxu0 0.0
      %8992 = vmatpush2.msra.mxu0 0.0
      %8993 = vmatprep.subr.mxu0 0.0
      %8994 = vmatpush2.msra.mxu0 0.0
      %8995 = vmatprep.subr.mxu0 0.0
      %8996 = vmatpush2.msra.mxu0 0.0
      %8997 = vmatprep.subr.mxu0 0.0
      %8998 = vmatpush2.msra.mxu0 0.0
      %8999 = vmatprep.subr.mxu0 0.0
      %9000 = vmatpush2.msra.mxu0 0.0
      %9001 = vmatprep.subr.mxu0 0.0
      %9002 = vmatpush2.msra.mxu0 0.0
      %9003 = vmatprep.subr.mxu0 0.0
      %9004 = vmatpush2.msra.mxu0 0.0
      %9005 = vmatprep.subr.mxu0 0.0
      %9006 = vmatpush2.msra.mxu0 0.0
      %9007 = vmatprep.subr.mxu0 0.0
      %9008 = vmatpush2.msra.mxu0 0.0
      %9009 = vmatprep.subr.mxu0 0.0
      %9010 = vmatpush2.msra.mxu0 0.0
      %9011 = vmatprep.mubr.f32.mxu0 0.0
      %9012 = vmatmul.mubr.f32.gmra.mxu0 %v8917
      %v9013 = vpop.f32.mrf.mxu0
      %v9014 = vadd.f32 0.0, %v9013
      %v9015 = vpop.f32.mrf.mxu0
      %v9016 = vadd.f32 0.0, %v9015
      %9017 = vmatprep.mubr.f32.mxu0 0.0
      %9018 = vmatmul.mubr.f32.gmra.mxu0 %v8919
      %v9019 = vpop.f32.mrf.mxu0
      %v9020 = vadd.f32 0.0, %v9019
      %v9021 = vpop.f32.mrf.mxu0
      %v9022 = vadd.f32 0.0, %v9021
      %9023 = vmatprep.mubr.f32.mxu0 0.0
      %9024 = vmatmul.mubr.f32.gmra.mxu0 %v8921
      %v9025 = vpop.f32.mrf.mxu0
      %v9026 = vadd.f32 0.0, %v9025
      %v9027 = vpop.f32.mrf.mxu0
      %v9028 = vadd.f32 0.0, %v9027
      %9029 = vmatprep.mubr.f32.mxu0 0.0
      %9030 = vmatmul.mubr.f32.gmra.mxu0 %v8923
      %v9031 = vpop.f32.mrf.mxu0
      %v9032 = vadd.f32 0.0, %v9031
      %v9033 = vpop.f32.mrf.mxu0
      %v9034 = vadd.f32 0.0, %v9033
      %9035 = vmatprep.mubr.f32.mxu0 0.0
      %9036 = vmatmul.mubr.f32.gmra.mxu0 %v8925
      %v9037 = vpop.f32.mrf.mxu0
      %v9038 = vadd.f32 0.0, %v9037
      %v9039 = vpop.f32.mrf.mxu0
      %v9040 = vadd.f32 0.0, %v9039
      %9041 = vdwg.mxu0
      %9042 = vmatprep.subr.mxu0 0.0
      %9043 = vmatpush1.msra.mxu0 0.0
      %9044 = vmatprep.subr.mxu0 0.0
      %9045 = vmatpush1.msra.mxu0 0.0
      %9046 = vmatprep.subr.mxu0 0.0
      %9047 = vmatpush1.msra.mxu0 0.0
      %9048 = vmatprep.subr.mxu0 0.0
      %9049 = vmatpush1.msra.mxu0 0.0
      %9050 = vmatprep.subr.mxu0 0.0
      %9051 = vmatpush1.msra.mxu0 0.0
      %9052 = vmatprep.subr.mxu0 0.0
      %9053 = vmatpush1.msra.mxu0 0.0
      %9054 = vmatprep.subr.mxu0 0.0
      %9055 = vmatpush1.msra.mxu0 0.0
      %9056 = vmatprep.subr.mxu0 0.0
      %9057 = vmatpush1.msra.mxu0 0.0
      %9058 = vmatprep.subr.mxu0 0.0
      %9059 = vmatpush1.msra.mxu0 0.0
      %9060 = vmatprep.subr.mxu0 0.0
      %9061 = vmatpush1.msra.mxu0 0.0
      %9062 = vmatprep.subr.mxu0 0.0
      %9063 = vmatpush1.msra.mxu0 0.0
      %9064 = vmatprep.subr.mxu0 0.0
      %9065 = vmatpush1.msra.mxu0 0.0
      %9066 = vmatprep.subr.mxu0 0.0
      %9067 = vmatpush1.msra.mxu0 0.0
      %9068 = vmatprep.subr.mxu0 0.0
      %9069 = vmatpush1.msra.mxu0 0.0
      %9070 = vmatprep.subr.mxu0 %v8933
      %9071 = vmatpush1.msra.mxu0 %v8931
      %9072 = vmatprep.subr.mxu0 %v8900
      %9073 = vmatpush1.msra.mxu0 %v8899
      %9074 = vmatprep.subr.mxu0 0.0
      %9075 = vmatpush2.msra.mxu0 0.0
      %9076 = vmatprep.subr.mxu0 0.0
      %9077 = vmatpush2.msra.mxu0 0.0
      %9078 = vmatprep.subr.mxu0 0.0
      %9079 = vmatpush2.msra.mxu0 0.0
      %9080 = vmatprep.subr.mxu0 0.0
      %9081 = vmatpush2.msra.mxu0 0.0
      %9082 = vmatprep.subr.mxu0 0.0
      %9083 = vmatpush2.msra.mxu0 0.0
      %9084 = vmatprep.subr.mxu0 0.0
      %9085 = vmatpush2.msra.mxu0 0.0
      %9086 = vmatprep.subr.mxu0 0.0
      %9087 = vmatpush2.msra.mxu0 0.0
      %9088 = vmatprep.subr.mxu0 0.0
      %9089 = vmatpush2.msra.mxu0 0.0
      %9090 = vmatprep.subr.mxu0 0.0
      %9091 = vmatpush2.msra.mxu0 0.0
      %9092 = vmatprep.subr.mxu0 0.0
      %9093 = vmatpush2.msra.mxu0 0.0
      %9094 = vmatprep.subr.mxu0 0.0
      %9095 = vmatpush2.msra.mxu0 0.0
      %9096 = vmatprep.subr.mxu0 0.0
      %9097 = vmatpush2.msra.mxu0 0.0
      %9098 = vmatprep.subr.mxu0 0.0
      %9099 = vmatpush2.msra.mxu0 0.0
      %9100 = vmatprep.subr.mxu0 0.0
      %9101 = vmatpush2.msra.mxu0 0.0
      %9102 = vmatprep.subr.mxu0 0.0
      %9103 = vmatpush2.msra.mxu0 0.0
      %9104 = vmatprep.subr.mxu0 0.0
      %9105 = vmatpush2.msra.mxu0 0.0
      %9106 = vmatprep.mubr.f32.mxu0 0.0
      %9107 = vmatmul.mubr.f32.gmra.mxu0 %v8917
      %v9108 = vpop.f32.mrf.mxu0
      %v9109 = vadd.f32 0.0, %v9108
      %v9110 = vpop.f32.mrf.mxu0
      %v9111 = vadd.f32 0.0, %v9110
      %9112 = vmatprep.mubr.f32.mxu0 0.0
      %9113 = vmatmul.mubr.f32.gmra.mxu0 %v8919
      %v9114 = vpop.f32.mrf.mxu0
      %v9115 = vadd.f32 0.0, %v9114
      %v9116 = vpop.f32.mrf.mxu0
      %v9117 = vadd.f32 0.0, %v9116
      %9118 = vmatprep.mubr.f32.mxu0 0.0
      %9119 = vmatmul.mubr.f32.gmra.mxu0 %v8921
      %v9120 = vpop.f32.mrf.mxu0
      %v9121 = vadd.f32 0.0, %v9120
      %v9122 = vpop.f32.mrf.mxu0
      %v9123 = vadd.f32 0.0, %v9122
      %9124 = vmatprep.mubr.f32.mxu0 0.0
      %9125 = vmatmul.mubr.f32.gmra.mxu0 %v8923
      %v9126 = vpop.f32.mrf.mxu0
      %v9127 = vadd.f32 0.0, %v9126
      %v9128 = vpop.f32.mrf.mxu0
      %v9129 = vadd.f32 0.0, %v9128
      %9130 = vmatprep.mubr.f32.mxu0 0.0
      %9131 = vmatmul.mubr.f32.gmra.mxu0 %v8925
      %v9132 = vpop.f32.mrf.mxu0
      %v9133 = vadd.f32 0.0, %v9132
      %v9134 = vpop.f32.mrf.mxu0
      %v9135 = vadd.f32 0.0, %v9134
      %9136 = vdwg.mxu0
      %9137 = vmatprep.subr.mxu0 0.0
      %9138 = vmatpush1.msra.mxu0 0.0
      %9139 = vmatprep.subr.mxu0 0.0
      %9140 = vmatpush1.msra.mxu0 0.0
      %9141 = vmatprep.subr.mxu0 0.0
      %9142 = vmatpush1.msra.mxu0 0.0
      %9143 = vmatprep.subr.mxu0 0.0
      %9144 = vmatpush1.msra.mxu0 0.0
      %9145 = vmatprep.subr.mxu0 0.0
      %9146 = vmatpush1.msra.mxu0 0.0
      %9147 = vmatprep.subr.mxu0 0.0
      %9148 = vmatpush1.msra.mxu0 0.0
      %9149 = vmatprep.subr.mxu0 0.0
      %9150 = vmatpush1.msra.mxu0 0.0
      %9151 = vmatprep.subr.mxu0 0.0
      %9152 = vmatpush1.msra.mxu0 0.0
      %9153 = vmatprep.subr.mxu0 0.0
      %9154 = vmatpush1.msra.mxu0 0.0
      %9155 = vmatprep.subr.mxu0 0.0
      %9156 = vmatpush1.msra.mxu0 0.0
      %9157 = vmatprep.subr.mxu0 0.0
      %9158 = vmatpush1.msra.mxu0 0.0
      %9159 = vmatprep.subr.mxu0 0.0
      %9160 = vmatpush1.msra.mxu0 0.0
      %9161 = vmatprep.subr.mxu0 0.0
      %9162 = vmatpush1.msra.mxu0 0.0
      %9163 = vmatprep.subr.mxu0 0.0
      %9164 = vmatpush1.msra.mxu0 0.0
      %9165 = vmatprep.subr.mxu0 %v8937
      %9166 = vmatpush1.msra.mxu0 %v8935
      %9167 = vmatprep.subr.mxu0 %v8902
      %9168 = vmatpush1.msra.mxu0 %v8901
      %9169 = vmatprep.subr.mxu0 0.0
      %9170 = vmatpush2.msra.mxu0 0.0
      %9171 = vmatprep.subr.mxu0 0.0
      %9172 = vmatpush2.msra.mxu0 0.0
      %9173 = vmatprep.subr.mxu0 0.0
      %9174 = vmatpush2.msra.mxu0 0.0
      %9175 = vmatprep.subr.mxu0 0.0
      %9176 = vmatpush2.msra.mxu0 0.0
      %9177 = vmatprep.subr.mxu0 0.0
      %9178 = vmatpush2.msra.mxu0 0.0
      %9179 = vmatprep.subr.mxu0 0.0
      %9180 = vmatpush2.msra.mxu0 0.0
      %9181 = vmatprep.subr.mxu0 0.0
      %9182 = vmatpush2.msra.mxu0 0.0
      %9183 = vmatprep.subr.mxu0 0.0
      %9184 = vmatpush2.msra.mxu0 0.0
      %9185 = vmatprep.subr.mxu0 0.0
      %9186 = vmatpush2.msra.mxu0 0.0
      %9187 = vmatprep.subr.mxu0 0.0
      %9188 = vmatpush2.msra.mxu0 0.0
      %9189 = vmatprep.subr.mxu0 0.0
      %9190 = vmatpush2.msra.mxu0 0.0
      %9191 = vmatprep.subr.mxu0 0.0
      %9192 = vmatpush2.msra.mxu0 0.0
      %9193 = vmatprep.subr.mxu0 0.0
      %9194 = vmatpush2.msra.mxu0 0.0
      %9195 = vmatprep.subr.mxu0 0.0
      %9196 = vmatpush2.msra.mxu0 0.0
      %9197 = vmatprep.subr.mxu0 0.0
      %9198 = vmatpush2.msra.mxu0 0.0
      %9199 = vmatprep.subr.mxu0 0.0
      %9200 = vmatpush2.msra.mxu0 0.0
      %9201 = vmatprep.mubr.f32.mxu0 0.0
      %9202 = vmatmul.mubr.f32.gmra.mxu0 %v8917
      %v9203 = vpop.f32.mrf.mxu0
      %v9204 = vadd.f32 0.0, %v9203
      %v9205 = vpop.f32.mrf.mxu0
      %v9206 = vadd.f32 0.0, %v9205
      %9207 = vmatprep.mubr.f32.mxu0 0.0
      %9208 = vmatmul.mubr.f32.gmra.mxu0 %v8919
      %v9209 = vpop.f32.mrf.mxu0
      %v9210 = vadd.f32 0.0, %v9209
      %v9211 = vpop.f32.mrf.mxu0
      %v9212 = vadd.f32 0.0, %v9211
      %9213 = vmatprep.mubr.f32.mxu0 0.0
      %9214 = vmatmul.mubr.f32.gmra.mxu0 %v8921
      %v9215 = vpop.f32.mrf.mxu0
      %v9216 = vadd.f32 0.0, %v9215
      %v9217 = vpop.f32.mrf.mxu0
      %v9218 = vadd.f32 0.0, %v9217
      %9219 = vmatprep.mubr.f32.mxu0 0.0
      %9220 = vmatmul.mubr.f32.gmra.mxu0 %v8923
      %v9221 = vpop.f32.mrf.mxu0
      %v9222 = vadd.f32 0.0, %v9221
      %v9223 = vpop.f32.mrf.mxu0
      %v9224 = vadd.f32 0.0, %v9223
      %9225 = vmatprep.mubr.f32.mxu0 0.0
      %9226 = vmatmul.mubr.f32.gmra.mxu0 %v8925
      %v9227 = vpop.f32.mrf.mxu0
      %v9228 = vadd.f32 0.0, %v9227
      %v9229 = vpop.f32.mrf.mxu0
      %v9230 = vadd.f32 0.0, %v9229
      %9231 = vdwg.mxu0
      %9232 = vmatprep.subr.mxu0 0.0
      %9233 = vmatpush1.msra.mxu0 0.0
      %9234 = vmatprep.subr.mxu0 0.0
      %9235 = vmatpush1.msra.mxu0 0.0
      %9236 = vmatprep.subr.mxu0 0.0
      %9237 = vmatpush1.msra.mxu0 0.0
      %9238 = vmatprep.subr.mxu0 0.0
      %9239 = vmatpush1.msra.mxu0 0.0
      %9240 = vmatprep.subr.mxu0 0.0
      %9241 = vmatpush1.msra.mxu0 0.0
      %9242 = vmatprep.subr.mxu0 0.0
      %9243 = vmatpush1.msra.mxu0 0.0
      %9244 = vmatprep.subr.mxu0 0.0
      %9245 = vmatpush1.msra.mxu0 0.0
      %9246 = vmatprep.subr.mxu0 0.0
      %9247 = vmatpush1.msra.mxu0 0.0
      %9248 = vmatprep.subr.mxu0 0.0
      %9249 = vmatpush1.msra.mxu0 0.0
      %9250 = vmatprep.subr.mxu0 0.0
      %9251 = vmatpush1.msra.mxu0 0.0
      %9252 = vmatprep.subr.mxu0 0.0
      %9253 = vmatpush1.msra.mxu0 0.0
      %9254 = vmatprep.subr.mxu0 0.0
      %9255 = vmatpush1.msra.mxu0 0.0
      %9256 = vmatprep.subr.mxu0 0.0
      %9257 = vmatpush1.msra.mxu0 0.0
      %9258 = vmatprep.subr.mxu0 0.0
      %9259 = vmatpush1.msra.mxu0 0.0
      %9260 = vmatprep.subr.mxu0 %v8941
      %9261 = vmatpush1.msra.mxu0 %v8939
      %9262 = vmatprep.subr.mxu0 %v8904
      %9263 = vmatpush1.msra.mxu0 %v8903
      %9264 = vmatprep.subr.mxu0 0.0
      %9265 = vmatpush2.msra.mxu0 0.0
      %9266 = vmatprep.subr.mxu0 0.0
      %9267 = vmatpush2.msra.mxu0 0.0
      %9268 = vmatprep.subr.mxu0 0.0
      %9269 = vmatpush2.msra.mxu0 0.0
      %9270 = vmatprep.subr.mxu0 0.0
      %9271 = vmatpush2.msra.mxu0 0.0
      %9272 = vmatprep.subr.mxu0 0.0
      %9273 = vmatpush2.msra.mxu0 0.0
      %9274 = vmatprep.subr.mxu0 0.0
      %9275 = vmatpush2.msra.mxu0 0.0
      %9276 = vmatprep.subr.mxu0 0.0
      %9277 = vmatpush2.msra.mxu0 0.0
      %9278 = vmatprep.subr.mxu0 0.0
      %9279 = vmatpush2.msra.mxu0 0.0
      %9280 = vmatprep.subr.mxu0 0.0
      %9281 = vmatpush2.msra.mxu0 0.0
      %9282 = vmatprep.subr.mxu0 0.0
      %9283 = vmatpush2.msra.mxu0 0.0
      %9284 = vmatprep.subr.mxu0 0.0
      %9285 = vmatpush2.msra.mxu0 0.0
      %9286 = vmatprep.subr.mxu0 0.0
      %9287 = vmatpush2.msra.mxu0 0.0
      %9288 = vmatprep.subr.mxu0 0.0
      %9289 = vmatpush2.msra.mxu0 0.0
      %9290 = vmatprep.subr.mxu0 0.0
      %9291 = vmatpush2.msra.mxu0 0.0
      %9292 = vmatprep.subr.mxu0 0.0
      %9293 = vmatpush2.msra.mxu0 0.0
      %9294 = vmatprep.subr.mxu0 0.0
      %9295 = vmatpush2.msra.mxu0 0.0
      %9296 = vmatprep.mubr.f32.mxu0 0.0
      %9297 = vmatmul.mubr.f32.gmra.mxu0 %v8917
      %v9298 = vpop.f32.mrf.mxu0
      %v9299 = vadd.f32 0.0, %v9298
      %v9300 = vpop.f32.mrf.mxu0
      %v9301 = vadd.f32 0.0, %v9300
      %9302 = vmatprep.mubr.f32.mxu0 0.0
      %9303 = vmatmul.mubr.f32.gmra.mxu0 %v8919
      %v9304 = vpop.f32.mrf.mxu0
      %v9305 = vadd.f32 0.0, %v9304
      %v9306 = vpop.f32.mrf.mxu0
      %v9307 = vadd.f32 0.0, %v9306
      %9308 = vmatprep.mubr.f32.mxu0 0.0
      %9309 = vmatmul.mubr.f32.gmra.mxu0 %v8921
      %v9310 = vpop.f32.mrf.mxu0
      %v9311 = vadd.f32 0.0, %v9310
      %v9312 = vpop.f32.mrf.mxu0
      %v9313 = vadd.f32 0.0, %v9312
      %9314 = vmatprep.mubr.f32.mxu0 0.0
      %9315 = vmatmul.mubr.f32.gmra.mxu0 %v8923
      %v9316 = vpop.f32.mrf.mxu0
      %v9317 = vadd.f32 0.0, %v9316
      %v9318 = vpop.f32.mrf.mxu0
      %v9319 = vadd.f32 0.0, %v9318
      %9320 = vmatprep.mubr.f32.mxu0 0.0
      %9321 = vmatmul.mubr.f32.gmra.mxu0 %v8925
      %v9322 = vpop.f32.mrf.mxu0
      %v9323 = vadd.f32 0.0, %v9322
      %v9324 = vpop.f32.mrf.mxu0
      %v9325 = vadd.f32 0.0, %v9324
      %9326 = vdwg.mxu0
      %9327 = vmatprep.subr.mxu0 0.0
      %9328 = vmatpush1.msra.mxu0 0.0
      %9329 = vmatprep.subr.mxu0 0.0
      %9330 = vmatpush1.msra.mxu0 0.0
      %9331 = vmatprep.subr.mxu0 0.0
      %9332 = vmatpush1.msra.mxu0 0.0
      %9333 = vmatprep.subr.mxu0 0.0
      %9334 = vmatpush1.msra.mxu0 0.0
      %9335 = vmatprep.subr.mxu0 0.0
      %9336 = vmatpush1.msra.mxu0 0.0
      %9337 = vmatprep.subr.mxu0 0.0
      %9338 = vmatpush1.msra.mxu0 0.0
      %9339 = vmatprep.subr.mxu0 0.0
      %9340 = vmatpush1.msra.mxu0 0.0
      %9341 = vmatprep.subr.mxu0 0.0
      %9342 = vmatpush1.msra.mxu0 0.0
      %9343 = vmatprep.subr.mxu0 0.0
      %9344 = vmatpush1.msra.mxu0 0.0
      %9345 = vmatprep.subr.mxu0 0.0
      %9346 = vmatpush1.msra.mxu0 0.0
      %9347 = vmatprep.subr.mxu0 0.0
      %9348 = vmatpush1.msra.mxu0 0.0
      %9349 = vmatprep.subr.mxu0 0.0
      %9350 = vmatpush1.msra.mxu0 0.0
      %9351 = vmatprep.subr.mxu0 0.0
      %9352 = vmatpush1.msra.mxu0 0.0
      %9353 = vmatprep.subr.mxu0 0.0
      %9354 = vmatpush1.msra.mxu0 0.0
      %9355 = vmatprep.subr.mxu0 %v8945
      %9356 = vmatpush1.msra.mxu0 %v8943
      %9357 = vmatprep.subr.mxu0 %v8906
      %9358 = vmatpush1.msra.mxu0 %v8905
      %9359 = vmatprep.subr.mxu0 0.0
      %9360 = vmatpush2.msra.mxu0 0.0
      %9361 = vmatprep.subr.mxu0 0.0
      %9362 = vmatpush2.msra.mxu0 0.0
      %9363 = vmatprep.subr.mxu0 0.0
      %9364 = vmatpush2.msra.mxu0 0.0
      %9365 = vmatprep.subr.mxu0 0.0
      %9366 = vmatpush2.msra.mxu0 0.0
      %9367 = vmatprep.subr.mxu0 0.0
      %9368 = vmatpush2.msra.mxu0 0.0
      %9369 = vmatprep.subr.mxu0 0.0
      %9370 = vmatpush2.msra.mxu0 0.0
      %9371 = vmatprep.subr.mxu0 0.0
      %9372 = vmatpush2.msra.mxu0 0.0
      %9373 = vmatprep.subr.mxu0 0.0
      %9374 = vmatpush2.msra.mxu0 0.0
      %9375 = vmatprep.subr.mxu0 0.0
      %9376 = vmatpush2.msra.mxu0 0.0
      %9377 = vmatprep.subr.mxu0 0.0
      %9378 = vmatpush2.msra.mxu0 0.0
      %9379 = vmatprep.subr.mxu0 0.0
      %9380 = vmatpush2.msra.mxu0 0.0
      %9381 = vmatprep.subr.mxu0 0.0
      %9382 = vmatpush2.msra.mxu0 0.0
      %9383 = vmatprep.subr.mxu0 0.0
      %9384 = vmatpush2.msra.mxu0 0.0
      %9385 = vmatprep.subr.mxu0 0.0
      %9386 = vmatpush2.msra.mxu0 0.0
      %9387 = vmatprep.subr.mxu0 0.0
      %9388 = vmatpush2.msra.mxu0 0.0
      %9389 = vmatprep.subr.mxu0 0.0
      %9390 = vmatpush2.msra.mxu0 0.0
      %9391 = vmatprep.mubr.f32.mxu0 0.0
      %9392 = vmatmul.mubr.f32.gmra.mxu0 %v8917
      %v9393 = vpop.f32.mrf.mxu0
      %v9394 = vadd.f32 0.0, %v9393
      %v9395 = vpop.f32.mrf.mxu0
      %v9396 = vadd.f32 0.0, %v9395
      %9397 = vmatprep.mubr.f32.mxu0 0.0
      %9398 = vmatmul.mubr.f32.gmra.mxu0 %v8919
      %v9399 = vpop.f32.mrf.mxu0
      %v9400 = vadd.f32 0.0, %v9399
      %v9401 = vpop.f32.mrf.mxu0
      %v9402 = vadd.f32 0.0, %v9401
      %9403 = vmatprep.mubr.f32.mxu0 0.0
      %9404 = vmatmul.mubr.f32.gmra.mxu0 %v8921
      %v9405 = vpop.f32.mrf.mxu0
      %v9406 = vadd.f32 0.0, %v9405
      %v9407 = vpop.f32.mrf.mxu0
      %v9408 = vadd.f32 0.0, %v9407
      %9409 = vmatprep.mubr.f32.mxu0 0.0
      %9410 = vmatmul.mubr.f32.gmra.mxu0 %v8923
      %v9411 = vpop.f32.mrf.mxu0
      %v9412 = vadd.f32 0.0, %v9411
      %v9413 = vpop.f32.mrf.mxu0
      %v9414 = vadd.f32 0.0, %v9413
      %9415 = vmatprep.mubr.f32.mxu0 0.0
      %9416 = vmatmul.mubr.f32.gmra.mxu0 %v8925
      %v9417 = vpop.f32.mrf.mxu0
      %v9418 = vadd.f32 0.0, %v9417
      %v9419 = vpop.f32.mrf.mxu0
      %v9420 = vadd.f32 0.0, %v9419
      %9421 = vdwg.mxu0
      %v9432 = vrot.slane %v9014, 4
      %v9433 = vrot.slane %v9016, 4
      %v9434 = vrot.slane %v9109, 4
      %v9435 = vrot.slane %v9111, 4
      %v9436 = vrot.slane %v9204, 4
      %v9437 = vrot.slane %v9206, 4
      %v9438 = vrot.slane %v9299, 4
      %v9439 = vrot.slane %v9301, 4
      %v9440 = vrot.slane %v9394, 4
      %v9441 = vrot.slane %v9396, 4
      %9442 = vrot.lane.b32.xlu0 %v9432, 127
      %v9443 = vpop.permute.xlu0 %9442
      %9444 = vrot.lane.b32.xlu0 %v9433, 127
      %v9445 = vpop.permute.xlu0 %9444
      %9446 = vrot.lane.b32.xlu0 %v9434, 127
      %v9447 = vpop.permute.xlu0 %9446
      %9448 = vrot.lane.b32.xlu0 %v9435, 127
      %v9449 = vpop.permute.xlu0 %9448
      %9450 = vrot.lane.b32.xlu0 %v9436, 127
      %v9451 = vpop.permute.xlu0 %9450
      %9452 = vrot.lane.b32.xlu0 %v9437, 127
      %v9453 = vpop.permute.xlu0 %9452
      %9454 = vrot.lane.b32.xlu0 %v9438, 127
      %v9455 = vpop.permute.xlu0 %9454
      %9456 = vrot.lane.b32.xlu0 %v9439, 127
      %v9457 = vpop.permute.xlu0 %9456
      %9458 = vrot.lane.b32.xlu0 %v9440, 127
      %v9459 = vpop.permute.xlu0 %9458
      %9460 = vrot.lane.b32.xlu0 %v9441, 127
      %v9461 = vpop.permute.xlu0 %9460
      %v9462 = vsel %vm1699, %v9443, %v9445
      %v9463 = vsel %vm1699, %v9445, %v9447
      %v9464 = vsel %vm1699, %v9447, %v9449
      %v9465 = vsel %vm1699, %v9449, %v9451
      %v9466 = vsel %vm1699, %v9451, %v9453
      %v9467 = vsel %vm1699, %v9453, %v9455
      %v9468 = vsel %vm1699, %v9455, %v9457
      %v9469 = vsel %vm1699, %v9457, %v9459
      %v9470 = vsel %vm1699, %v9459, %v9461
      %v9481 = vadd.f32 %v9014, %v9462
      %v9482 = vadd.f32 %v9016, %v9463
      %v9483 = vadd.f32 %v9109, %v9464
      %v9484 = vadd.f32 %v9111, %v9465
      %v9485 = vadd.f32 %v9204, %v9466
      %v9486 = vadd.f32 %v9206, %v9467
      %v9487 = vadd.f32 %v9299, %v9468
      %v9488 = vadd.f32 %v9301, %v9469
      %v9489 = vadd.f32 %v9394, %v9470
      %v9490 = vadd.f32 %v9396, %v9461
      %9501 = vrot.lane.b32.xlu0 %v9020, 126
      %v9502 = vpop.permute.xlu0 %9501
      %9503 = vrot.lane.b32.xlu0 %v9022, 126
      %v9504 = vpop.permute.xlu0 %9503
      %9505 = vrot.lane.b32.xlu0 %v9115, 126
      %v9506 = vpop.permute.xlu0 %9505
      %9507 = vrot.lane.b32.xlu0 %v9117, 126
      %v9508 = vpop.permute.xlu0 %9507
      %9509 = vrot.lane.b32.xlu0 %v9210, 126
      %v9510 = vpop.permute.xlu0 %9509
      %9511 = vrot.lane.b32.xlu0 %v9212, 126
      %v9512 = vpop.permute.xlu0 %9511
      %9513 = vrot.lane.b32.xlu0 %v9305, 126
      %v9514 = vpop.permute.xlu0 %9513
      %9515 = vrot.lane.b32.xlu0 %v9307, 126
      %v9516 = vpop.permute.xlu0 %9515
      %9517 = vrot.lane.b32.xlu0 %v9400, 126
      %v9518 = vpop.permute.xlu0 %9517
      %9519 = vrot.lane.b32.xlu0 %v9402, 126
      %v9520 = vpop.permute.xlu0 %9519
      %v9521 = vsel %vm1759, %v9502, %v9504
      %v9522 = vsel %vm1759, %v9504, %v9506
      %v9523 = vsel %vm1759, %v9506, %v9508
      %v9524 = vsel %vm1759, %v9508, %v9510
      %v9525 = vsel %vm1759, %v9510, %v9512
      %v9526 = vsel %vm1759, %v9512, %v9514
      %v9527 = vsel %vm1759, %v9514, %v9516
      %v9528 = vsel %vm1759, %v9516, %v9518
      %v9529 = vsel %vm1759, %v9518, %v9520
      %v9540 = vadd.f32 %v9481, %v9521
      %v9541 = vadd.f32 %v9482, %v9522
      %v9542 = vadd.f32 %v9483, %v9523
      %v9543 = vadd.f32 %v9484, %v9524
      %v9544 = vadd.f32 %v9485, %v9525
      %v9545 = vadd.f32 %v9486, %v9526
      %v9546 = vadd.f32 %v9487, %v9527
      %v9547 = vadd.f32 %v9488, %v9528
      %v9548 = vadd.f32 %v9489, %v9529
      %v9549 = vadd.f32 %v9490, %v9520
      %v9550 = vrot.slane %v9020, 4
      %v9551 = vrot.slane %v9022, 4
      %v9552 = vrot.slane %v9115, 4
      %v9553 = vrot.slane %v9117, 4
      %v9554 = vrot.slane %v9210, 4
      %v9555 = vrot.slane %v9212, 4
      %v9556 = vrot.slane %v9305, 4
      %v9557 = vrot.slane %v9307, 4
      %v9558 = vrot.slane %v9400, 4
      %v9559 = vrot.slane %v9402, 4
      %9560 = vrot.lane.b32.xlu0 %v9550, 93
      %v9561 = vpop.permute.xlu0 %9560
      %9562 = vrot.lane.b32.xlu0 %v9551, 93
      %v9563 = vpop.permute.xlu0 %9562
      %9564 = vrot.lane.b32.xlu0 %v9552, 93
      %v9565 = vpop.permute.xlu0 %9564
      %9566 = vrot.lane.b32.xlu0 %v9553, 93
      %v9567 = vpop.permute.xlu0 %9566
      %9568 = vrot.lane.b32.xlu0 %v9554, 93
      %v9569 = vpop.permute.xlu0 %9568
      %9570 = vrot.lane.b32.xlu0 %v9555, 93
      %v9571 = vpop.permute.xlu0 %9570
      %9572 = vrot.lane.b32.xlu0 %v9556, 93
      %v9573 = vpop.permute.xlu0 %9572
      %9574 = vrot.lane.b32.xlu0 %v9557, 93
      %v9575 = vpop.permute.xlu0 %9574
      %9576 = vrot.lane.b32.xlu0 %v9558, 93
      %v9577 = vpop.permute.xlu0 %9576
      %9578 = vrot.lane.b32.xlu0 %v9559, 93
      %v9579 = vpop.permute.xlu0 %9578
      %v9580 = vsel %vm1819, %v9561, %v9563
      %v9581 = vsel %vm1819, %v9563, %v9565
      %v9582 = vsel %vm1819, %v9565, %v9567
      %v9583 = vsel %vm1819, %v9567, %v9569
      %v9584 = vsel %vm1819, %v9569, %v9571
      %v9585 = vsel %vm1819, %v9571, %v9573
      %v9586 = vsel %vm1819, %v9573, %v9575
      %v9587 = vsel %vm1819, %v9575, %v9577
      %v9588 = vsel %vm1819, %v9577, %v9579
      %v9599 = vadd.f32 %v9540, %v9580
      %v9600 = vadd.f32 %v9541, %v9581
      %v9601 = vadd.f32 %v9542, %v9582
      %v9602 = vadd.f32 %v9543, %v9583
      %v9603 = vadd.f32 %v9544, %v9584
      %v9604 = vadd.f32 %v9545, %v9585
      %v9605 = vadd.f32 %v9546, %v9586
      %v9606 = vadd.f32 %v9547, %v9587
      %v9607 = vadd.f32 %v9548, %v9588
      %v9608 = vadd.f32 %v9549, %v9579
      %9619 = vrot.lane.b32.xlu0 %v9026, 92
      %v9620 = vpop.permute.xlu0 %9619
      %9621 = vrot.lane.b32.xlu0 %v9028, 92
      %v9622 = vpop.permute.xlu0 %9621
      %9623 = vrot.lane.b32.xlu0 %v9121, 92
      %v9624 = vpop.permute.xlu0 %9623
      %9625 = vrot.lane.b32.xlu0 %v9123, 92
      %v9626 = vpop.permute.xlu0 %9625
      %9627 = vrot.lane.b32.xlu0 %v9216, 92
      %v9628 = vpop.permute.xlu0 %9627
      %9629 = vrot.lane.b32.xlu0 %v9218, 92
      %v9630 = vpop.permute.xlu0 %9629
      %9631 = vrot.lane.b32.xlu0 %v9311, 92
      %v9632 = vpop.permute.xlu0 %9631
      %9633 = vrot.lane.b32.xlu0 %v9313, 92
      %v9634 = vpop.permute.xlu0 %9633
      %9635 = vrot.lane.b32.xlu0 %v9406, 92
      %v9636 = vpop.permute.xlu0 %9635
      %9637 = vrot.lane.b32.xlu0 %v9408, 92
      %v9638 = vpop.permute.xlu0 %9637
      %v9639 = vsel %vm1879, %v9620, %v9622
      %v9640 = vsel %vm1879, %v9622, %v9624
      %v9641 = vsel %vm1879, %v9624, %v9626
      %v9642 = vsel %vm1879, %v9626, %v9628
      %v9643 = vsel %vm1879, %v9628, %v9630
      %v9644 = vsel %vm1879, %v9630, %v9632
      %v9645 = vsel %vm1879, %v9632, %v9634
      %v9646 = vsel %vm1879, %v9634, %v9636
      %v9647 = vsel %vm1879, %v9636, %v9638
      %v9658 = vadd.f32 %v9599, %v9639
      %v9659 = vadd.f32 %v9600, %v9640
      %v9660 = vadd.f32 %v9601, %v9641
      %v9661 = vadd.f32 %v9602, %v9642
      %v9662 = vadd.f32 %v9603, %v9643
      %v9663 = vadd.f32 %v9604, %v9644
      %v9664 = vadd.f32 %v9605, %v9645
      %v9665 = vadd.f32 %v9606, %v9646
      %v9666 = vadd.f32 %v9607, %v9647
      %v9667 = vadd.f32 %v9608, %v9638
      %v9668 = vrot.slane %v9026, 4
      %v9669 = vrot.slane %v9028, 4
      %v9670 = vrot.slane %v9121, 4
      %v9671 = vrot.slane %v9123, 4
      %v9672 = vrot.slane %v9216, 4
      %v9673 = vrot.slane %v9218, 4
      %v9674 = vrot.slane %v9311, 4
      %v9675 = vrot.slane %v9313, 4
      %v9676 = vrot.slane %v9406, 4
      %v9677 = vrot.slane %v9408, 4
      %9678 = vrot.lane.b32.xlu0 %v9668, 91
      %v9679 = vpop.permute.xlu0 %9678
      %9680 = vrot.lane.b32.xlu0 %v9669, 91
      %v9681 = vpop.permute.xlu0 %9680
      %9682 = vrot.lane.b32.xlu0 %v9670, 91
      %v9683 = vpop.permute.xlu0 %9682
      %9684 = vrot.lane.b32.xlu0 %v9671, 91
      %v9685 = vpop.permute.xlu0 %9684
      %9686 = vrot.lane.b32.xlu0 %v9672, 91
      %v9687 = vpop.permute.xlu0 %9686
      %9688 = vrot.lane.b32.xlu0 %v9673, 91
      %v9689 = vpop.permute.xlu0 %9688
      %9690 = vrot.lane.b32.xlu0 %v9674, 91
      %v9691 = vpop.permute.xlu0 %9690
      %9692 = vrot.lane.b32.xlu0 %v9675, 91
      %v9693 = vpop.permute.xlu0 %9692
      %9694 = vrot.lane.b32.xlu0 %v9676, 91
      %v9695 = vpop.permute.xlu0 %9694
      %9696 = vrot.lane.b32.xlu0 %v9677, 91
      %v9697 = vpop.permute.xlu0 %9696
      %v9698 = vsel %vm1939, %v9679, %v9681
      %v9699 = vsel %vm1939, %v9681, %v9683
      %v9700 = vsel %vm1939, %v9683, %v9685
      %v9701 = vsel %vm1939, %v9685, %v9687
      %v9702 = vsel %vm1939, %v9687, %v9689
      %v9703 = vsel %vm1939, %v9689, %v9691
      %v9704 = vsel %vm1939, %v9691, %v9693
      %v9705 = vsel %vm1939, %v9693, %v9695
      %v9706 = vsel %vm1939, %v9695, %v9697
      %v9717 = vadd.f32 %v9658, %v9698
      %v9718 = vadd.f32 %v9659, %v9699
      %v9719 = vadd.f32 %v9660, %v9700
      %v9720 = vadd.f32 %v9661, %v9701
      %v9721 = vadd.f32 %v9662, %v9702
      %v9722 = vadd.f32 %v9663, %v9703
      %v9723 = vadd.f32 %v9664, %v9704
      %v9724 = vadd.f32 %v9665, %v9705
      %v9725 = vadd.f32 %v9666, %v9706
      %v9726 = vadd.f32 %v9667, %v9697
      %9737 = vrot.lane.b32.xlu0 %v9032, 58
      %v9738 = vpop.permute.xlu0 %9737
      %9739 = vrot.lane.b32.xlu0 %v9034, 58
      %v9740 = vpop.permute.xlu0 %9739
      %9741 = vrot.lane.b32.xlu0 %v9127, 58
      %v9742 = vpop.permute.xlu0 %9741
      %9743 = vrot.lane.b32.xlu0 %v9129, 58
      %v9744 = vpop.permute.xlu0 %9743
      %9745 = vrot.lane.b32.xlu0 %v9222, 58
      %v9746 = vpop.permute.xlu0 %9745
      %9747 = vrot.lane.b32.xlu0 %v9224, 58
      %v9748 = vpop.permute.xlu0 %9747
      %9749 = vrot.lane.b32.xlu0 %v9317, 58
      %v9750 = vpop.permute.xlu0 %9749
      %9751 = vrot.lane.b32.xlu0 %v9319, 58
      %v9752 = vpop.permute.xlu0 %9751
      %9753 = vrot.lane.b32.xlu0 %v9412, 58
      %v9754 = vpop.permute.xlu0 %9753
      %9755 = vrot.lane.b32.xlu0 %v9414, 58
      %v9756 = vpop.permute.xlu0 %9755
      %v9757 = vsel %vm1999, %v9738, %v9740
      %v9758 = vsel %vm1999, %v9740, %v9742
      %v9759 = vsel %vm1999, %v9742, %v9744
      %v9760 = vsel %vm1999, %v9744, %v9746
      %v9761 = vsel %vm1999, %v9746, %v9748
      %v9762 = vsel %vm1999, %v9748, %v9750
      %v9763 = vsel %vm1999, %v9750, %v9752
      %v9764 = vsel %vm1999, %v9752, %v9754
      %v9765 = vsel %vm1999, %v9754, %v9756
      %v9776 = vadd.f32 %v9717, %v9757
      %v9777 = vadd.f32 %v9718, %v9758
      %v9778 = vadd.f32 %v9719, %v9759
      %v9779 = vadd.f32 %v9720, %v9760
      %v9780 = vadd.f32 %v9721, %v9761
      %v9781 = vadd.f32 %v9722, %v9762
      %v9782 = vadd.f32 %v9723, %v9763
      %v9783 = vadd.f32 %v9724, %v9764
      %v9784 = vadd.f32 %v9725, %v9765
      %v9785 = vadd.f32 %v9726, %v9756
      %v9786 = vrot.slane %v9032, 4
      %v9787 = vrot.slane %v9034, 4
      %v9788 = vrot.slane %v9127, 4
      %v9789 = vrot.slane %v9129, 4
      %v9790 = vrot.slane %v9222, 4
      %v9791 = vrot.slane %v9224, 4
      %v9792 = vrot.slane %v9317, 4
      %v9793 = vrot.slane %v9319, 4
      %v9794 = vrot.slane %v9412, 4
      %v9795 = vrot.slane %v9414, 4
      %9796 = vrot.lane.b32.xlu0 %v9786, 57
      %v9797 = vpop.permute.xlu0 %9796
      %9798 = vrot.lane.b32.xlu0 %v9787, 57
      %v9799 = vpop.permute.xlu0 %9798
      %9800 = vrot.lane.b32.xlu0 %v9788, 57
      %v9801 = vpop.permute.xlu0 %9800
      %9802 = vrot.lane.b32.xlu0 %v9789, 57
      %v9803 = vpop.permute.xlu0 %9802
      %9804 = vrot.lane.b32.xlu0 %v9790, 57
      %v9805 = vpop.permute.xlu0 %9804
      %9806 = vrot.lane.b32.xlu0 %v9791, 57
      %v9807 = vpop.permute.xlu0 %9806
      %9808 = vrot.lane.b32.xlu0 %v9792, 57
      %v9809 = vpop.permute.xlu0 %9808
      %9810 = vrot.lane.b32.xlu0 %v9793, 57
      %v9811 = vpop.permute.xlu0 %9810
      %9812 = vrot.lane.b32.xlu0 %v9794, 57
      %v9813 = vpop.permute.xlu0 %9812
      %9814 = vrot.lane.b32.xlu0 %v9795, 57
      %v9815 = vpop.permute.xlu0 %9814
      %v9816 = vsel %vm2059, %v9797, %v9799
      %v9817 = vsel %vm2059, %v9799, %v9801
      %v9818 = vsel %vm2059, %v9801, %v9803
      %v9819 = vsel %vm2059, %v9803, %v9805
      %v9820 = vsel %vm2059, %v9805, %v9807
      %v9821 = vsel %vm2059, %v9807, %v9809
      %v9822 = vsel %vm2059, %v9809, %v9811
      %v9823 = vsel %vm2059, %v9811, %v9813
      %v9824 = vsel %vm2059, %v9813, %v9815
      %v9835 = vadd.f32 %v9776, %v9816
      %v9836 = vadd.f32 %v9777, %v9817
      %v9837 = vadd.f32 %v9778, %v9818
      %v9838 = vadd.f32 %v9779, %v9819
      %v9839 = vadd.f32 %v9780, %v9820
      %v9840 = vadd.f32 %v9781, %v9821
      %v9841 = vadd.f32 %v9782, %v9822
      %v9842 = vadd.f32 %v9783, %v9823
      %v9843 = vadd.f32 %v9784, %v9824
      %v9844 = vadd.f32 %v9785, %v9815
      %9855 = vrot.lane.b32.xlu0 %v9038, 56
      %v9856 = vpop.permute.xlu0 %9855
      %9857 = vrot.lane.b32.xlu0 %v9040, 56
      %v9858 = vpop.permute.xlu0 %9857
      %9859 = vrot.lane.b32.xlu0 %v9133, 56
      %v9860 = vpop.permute.xlu0 %9859
      %9861 = vrot.lane.b32.xlu0 %v9135, 56
      %v9862 = vpop.permute.xlu0 %9861
      %9863 = vrot.lane.b32.xlu0 %v9228, 56
      %v9864 = vpop.permute.xlu0 %9863
      %9865 = vrot.lane.b32.xlu0 %v9230, 56
      %v9866 = vpop.permute.xlu0 %9865
      %9867 = vrot.lane.b32.xlu0 %v9323, 56
      %v9868 = vpop.permute.xlu0 %9867
      %9869 = vrot.lane.b32.xlu0 %v9325, 56
      %v9870 = vpop.permute.xlu0 %9869
      %9871 = vrot.lane.b32.xlu0 %v9418, 56
      %v9872 = vpop.permute.xlu0 %9871
      %9873 = vrot.lane.b32.xlu0 %v9420, 56
      %v9874 = vpop.permute.xlu0 %9873
      %v9875 = vsel %vm2119, %v9856, %v9858
      %v9876 = vsel %vm2119, %v9858, %v9860
      %v9877 = vsel %vm2119, %v9860, %v9862
      %v9878 = vsel %vm2119, %v9862, %v9864
      %v9879 = vsel %vm2119, %v9864, %v9866
      %v9880 = vsel %vm2119, %v9866, %v9868
      %v9881 = vsel %vm2119, %v9868, %v9870
      %v9882 = vsel %vm2119, %v9870, %v9872
      %v9883 = vsel %vm2119, %v9872, %v9874
      %v9894 = vadd.f32 %v9835, %v9875
      %v9895 = vadd.f32 %v9836, %v9876
      %v9896 = vadd.f32 %v9837, %v9877
      %v9897 = vadd.f32 %v9838, %v9878
      %v9898 = vadd.f32 %v9839, %v9879
      %v9899 = vadd.f32 %v9840, %v9880
      %v9900 = vadd.f32 %v9841, %v9881
      %v9901 = vadd.f32 %v9842, %v9882
      %v9902 = vadd.f32 %v9843, %v9883
      %v9903 = vadd.f32 %v9844, %v9874
      %9904 = vset.pattern.permute.xlu0 26
      %9905 = vperm.xlu0 %9904, %v5814
      %v9906 = vpop.permute.xlu0 %9905
      %v9908 = vadd.f32 %v9894, %v9906
      %v9909 = vadd.f32 %v9895, %v9906
      %v9910 = vadd.f32 %v9896, %v9906
      %v9911 = vadd.f32 %v9897, %v9906
      %v9912 = vadd.f32 %v9898, %v9906
      %v9913 = vadd.f32 %v9899, %v9906
      %v9914 = vadd.f32 %v9900, %v9906
      %v9915 = vadd.f32 %v9901, %v9906
      %v9916 = vadd.f32 %v9902, %v9906
      %v9917 = vadd.f32 %v9903, %v9906
      %v9918 = vmax.f32 %v9908, 0.0
      %v9919 = vmax.f32 %v9909, 0.0
      %v9920 = vmax.f32 %v9910, 0.0
      %v9921 = vmax.f32 %v9911, 0.0
      %v9922 = vmax.f32 %v9912, 0.0
      %v9923 = vmax.f32 %v9913, 0.0
      %v9924 = vmax.f32 %v9914, 0.0
      %v9925 = vmax.f32 %v9915, 0.0
      %v9926 = vmax.f32 %v9916, 0.0
      %v9927 = vmax.f32 %v9917, 0.0
      %9928 = vset.pattern.permute.xlu0 27
      %9929 = vperm.xlu0 %9928, %v5814
      %v9930 = vpop.permute.xlu0 %9929
      %9932 = vrot.lane.b32.xlu0 %v5814, 108
      %v9933 = vpop.permute.xlu0 %9932
      %v9934 = vsel %vm3123, %v9933, 0
      %v9937 = vsel %vm2408, %v9918, 0
      %v9940 = vsel %vm2408, %v9919, 0
      %v9943 = vsel %vm2408, %v9920, 0
      %v9946 = vsel %vm2408, %v9921, 0
      %v9949 = vsel %vm2408, %v9922, 0
      %v9952 = vsel %vm2408, %v9923, 0
      %v9955 = vsel %vm2408, %v9924, 0
      %v9958 = vsel %vm2408, %v9925, 0
      %v9961 = vsel %vm2408, %v9926, 0
      %v9964 = vsel %vm2408, %v9927, 0
      %9966 = vmatprep.subr.mxu0 0.0
      %9967 = vmatpush1.msra.mxu0 0.0
      %9968 = vmatprep.subr.mxu0 0.0
      %9969 = vmatpush1.msra.mxu0 0.0
      %9970 = vmatprep.subr.mxu0 0.0
      %9971 = vmatpush1.msra.mxu0 0.0
      %9972 = vmatprep.subr.mxu0 0.0
      %9973 = vmatpush1.msra.mxu0 0.0
      %9974 = vmatprep.subr.mxu0 0.0
      %9975 = vmatpush1.msra.mxu0 0.0
      %9976 = vmatprep.subr.mxu0 0.0
      %9977 = vmatpush1.msra.mxu0 0.0
      %9978 = vmatprep.subr.mxu0 0.0
      %9979 = vmatpush1.msra.mxu0 0.0
      %9980 = vmatprep.subr.mxu0 0.0
      %9981 = vmatpush1.msra.mxu0 0.0
      %9982 = vmatprep.subr.mxu0 0.0
      %9983 = vmatpush1.msra.mxu0 0.0
      %9984 = vmatprep.subr.mxu0 0.0
      %9985 = vmatpush1.msra.mxu0 0.0
      %9986 = vmatprep.subr.mxu0 0.0
      %9987 = vmatpush1.msra.mxu0 0.0
      %9988 = vmatprep.subr.mxu0 0.0
      %9989 = vmatpush1.msra.mxu0 0.0
      %9990 = vmatprep.subr.mxu0 0.0
      %9991 = vmatpush1.msra.mxu0 0.0
      %9992 = vmatprep.subr.mxu0 0.0
      %9993 = vmatpush1.msra.mxu0 0.0
      %9994 = vmatprep.subr.mxu0 0.0
      %9995 = vmatpush1.msra.mxu0 0.0
      %9996 = vmatprep.subr.mxu0 %v9940
      %9997 = vmatpush1.msra.mxu0 %v9937
      %9998 = vmatprep.subr.mxu0 0.0
      %9999 = vmatpush2.msra.mxu0 0.0
      %10000 = vmatprep.subr.mxu0 0.0
      %10001 = vmatpush2.msra.mxu0 0.0
      %10002 = vmatprep.subr.mxu0 0.0
      %10003 = vmatpush2.msra.mxu0 0.0
      %10004 = vmatprep.subr.mxu0 0.0
      %10005 = vmatpush2.msra.mxu0 0.0
      %10006 = vmatprep.subr.mxu0 0.0
      %10007 = vmatpush2.msra.mxu0 0.0
      %10008 = vmatprep.subr.mxu0 0.0
      %10009 = vmatpush2.msra.mxu0 0.0
      %10010 = vmatprep.subr.mxu0 0.0
      %10011 = vmatpush2.msra.mxu0 0.0
      %10012 = vmatprep.subr.mxu0 0.0
      %10013 = vmatpush2.msra.mxu0 0.0
      %10014 = vmatprep.subr.mxu0 0.0
      %10015 = vmatpush2.msra.mxu0 0.0
      %10016 = vmatprep.subr.mxu0 0.0
      %10017 = vmatpush2.msra.mxu0 0.0
      %10018 = vmatprep.subr.mxu0 0.0
      %10019 = vmatpush2.msra.mxu0 0.0
      %10020 = vmatprep.subr.mxu0 0.0
      %10021 = vmatpush2.msra.mxu0 0.0
      %10022 = vmatprep.subr.mxu0 0.0
      %10023 = vmatpush2.msra.mxu0 0.0
      %10024 = vmatprep.subr.mxu0 0.0
      %10025 = vmatpush2.msra.mxu0 0.0
      %10026 = vmatprep.subr.mxu0 0.0
      %10027 = vmatpush2.msra.mxu0 0.0
      %10028 = vmatprep.subr.mxu0 0.0
      %10029 = vmatpush2.msra.mxu0 0.0
      %10030 = vmatprep.mubr.f32.mxu0 0.0
      %10031 = vmatmul.mubr.f32.gmra.mxu0 %v9934
      %v10032 = vpop.f32.mrf.mxu0
      %v10033 = vadd.f32 %v9930, %v10032
      %v10034 = vpop.f32.mrf.mxu0
      %v10035 = vadd.f32 %v9930, %v10034
      %10036 = vdwg.mxu0
      %10037 = vmatprep.subr.mxu0 0.0
      %10038 = vmatpush1.msra.mxu0 0.0
      %10039 = vmatprep.subr.mxu0 0.0
      %10040 = vmatpush1.msra.mxu0 0.0
      %10041 = vmatprep.subr.mxu0 0.0
      %10042 = vmatpush1.msra.mxu0 0.0
      %10043 = vmatprep.subr.mxu0 0.0
      %10044 = vmatpush1.msra.mxu0 0.0
      %10045 = vmatprep.subr.mxu0 0.0
      %10046 = vmatpush1.msra.mxu0 0.0
      %10047 = vmatprep.subr.mxu0 0.0
      %10048 = vmatpush1.msra.mxu0 0.0
      %10049 = vmatprep.subr.mxu0 0.0
      %10050 = vmatpush1.msra.mxu0 0.0
      %10051 = vmatprep.subr.mxu0 0.0
      %10052 = vmatpush1.msra.mxu0 0.0
      %10053 = vmatprep.subr.mxu0 0.0
      %10054 = vmatpush1.msra.mxu0 0.0
      %10055 = vmatprep.subr.mxu0 0.0
      %10056 = vmatpush1.msra.mxu0 0.0
      %10057 = vmatprep.subr.mxu0 0.0
      %10058 = vmatpush1.msra.mxu0 0.0
      %10059 = vmatprep.subr.mxu0 0.0
      %10060 = vmatpush1.msra.mxu0 0.0
      %10061 = vmatprep.subr.mxu0 0.0
      %10062 = vmatpush1.msra.mxu0 0.0
      %10063 = vmatprep.subr.mxu0 0.0
      %10064 = vmatpush1.msra.mxu0 0.0
      %10065 = vmatprep.subr.mxu0 0.0
      %10066 = vmatpush1.msra.mxu0 0.0
      %10067 = vmatprep.subr.mxu0 %v9946
      %10068 = vmatpush1.msra.mxu0 %v9943
      %10069 = vmatprep.subr.mxu0 0.0
      %10070 = vmatpush2.msra.mxu0 0.0
      %10071 = vmatprep.subr.mxu0 0.0
      %10072 = vmatpush2.msra.mxu0 0.0
      %10073 = vmatprep.subr.mxu0 0.0
      %10074 = vmatpush2.msra.mxu0 0.0
      %10075 = vmatprep.subr.mxu0 0.0
      %10076 = vmatpush2.msra.mxu0 0.0
      %10077 = vmatprep.subr.mxu0 0.0
      %10078 = vmatpush2.msra.mxu0 0.0
      %10079 = vmatprep.subr.mxu0 0.0
      %10080 = vmatpush2.msra.mxu0 0.0
      %10081 = vmatprep.subr.mxu0 0.0
      %10082 = vmatpush2.msra.mxu0 0.0
      %10083 = vmatprep.subr.mxu0 0.0
      %10084 = vmatpush2.msra.mxu0 0.0
      %10085 = vmatprep.subr.mxu0 0.0
      %10086 = vmatpush2.msra.mxu0 0.0
      %10087 = vmatprep.subr.mxu0 0.0
      %10088 = vmatpush2.msra.mxu0 0.0
      %10089 = vmatprep.subr.mxu0 0.0
      %10090 = vmatpush2.msra.mxu0 0.0
      %10091 = vmatprep.subr.mxu0 0.0
      %10092 = vmatpush2.msra.mxu0 0.0
      %10093 = vmatprep.subr.mxu0 0.0
      %10094 = vmatpush2.msra.mxu0 0.0
      %10095 = vmatprep.subr.mxu0 0.0
      %10096 = vmatpush2.msra.mxu0 0.0
      %10097 = vmatprep.subr.mxu0 0.0
      %10098 = vmatpush2.msra.mxu0 0.0
      %10099 = vmatprep.subr.mxu0 0.0
      %10100 = vmatpush2.msra.mxu0 0.0
      %10101 = vmatprep.mubr.f32.mxu0 0.0
      %10102 = vmatmul.mubr.f32.gmra.mxu0 %v9934
      %v10103 = vpop.f32.mrf.mxu0
      %v10104 = vadd.f32 %v9930, %v10103
      %v10105 = vpop.f32.mrf.mxu0
      %v10106 = vadd.f32 %v9930, %v10105
      %10107 = vdwg.mxu0
      %10108 = vmatprep.subr.mxu0 0.0
      %10109 = vmatpush1.msra.mxu0 0.0
      %10110 = vmatprep.subr.mxu0 0.0
      %10111 = vmatpush1.msra.mxu0 0.0
      %10112 = vmatprep.subr.mxu0 0.0
      %10113 = vmatpush1.msra.mxu0 0.0
      %10114 = vmatprep.subr.mxu0 0.0
      %10115 = vmatpush1.msra.mxu0 0.0
      %10116 = vmatprep.subr.mxu0 0.0
      %10117 = vmatpush1.msra.mxu0 0.0
      %10118 = vmatprep.subr.mxu0 0.0
      %10119 = vmatpush1.msra.mxu0 0.0
      %10120 = vmatprep.subr.mxu0 0.0
      %10121 = vmatpush1.msra.mxu0 0.0
      %10122 = vmatprep.subr.mxu0 0.0
      %10123 = vmatpush1.msra.mxu0 0.0
      %10124 = vmatprep.subr.mxu0 0.0
      %10125 = vmatpush1.msra.mxu0 0.0
      %10126 = vmatprep.subr.mxu0 0.0
      %10127 = vmatpush1.msra.mxu0 0.0
      %10128 = vmatprep.subr.mxu0 0.0
      %10129 = vmatpush1.msra.mxu0 0.0
      %10130 = vmatprep.subr.mxu0 0.0
      %10131 = vmatpush1.msra.mxu0 0.0
      %10132 = vmatprep.subr.mxu0 0.0
      %10133 = vmatpush1.msra.mxu0 0.0
      %10134 = vmatprep.subr.mxu0 0.0
      %10135 = vmatpush1.msra.mxu0 0.0
      %10136 = vmatprep.subr.mxu0 0.0
      %10137 = vmatpush1.msra.mxu0 0.0
      %10138 = vmatprep.subr.mxu0 %v9952
      %10139 = vmatpush1.msra.mxu0 %v9949
      %10140 = vmatprep.subr.mxu0 0.0
      %10141 = vmatpush2.msra.mxu0 0.0
      %10142 = vmatprep.subr.mxu0 0.0
      %10143 = vmatpush2.msra.mxu0 0.0
      %10144 = vmatprep.subr.mxu0 0.0
      %10145 = vmatpush2.msra.mxu0 0.0
      %10146 = vmatprep.subr.mxu0 0.0
      %10147 = vmatpush2.msra.mxu0 0.0
      %10148 = vmatprep.subr.mxu0 0.0
      %10149 = vmatpush2.msra.mxu0 0.0
      %10150 = vmatprep.subr.mxu0 0.0
      %10151 = vmatpush2.msra.mxu0 0.0
      %10152 = vmatprep.subr.mxu0 0.0
      %10153 = vmatpush2.msra.mxu0 0.0
      %10154 = vmatprep.subr.mxu0 0.0
      %10155 = vmatpush2.msra.mxu0 0.0
      %10156 = vmatprep.subr.mxu0 0.0
      %10157 = vmatpush2.msra.mxu0 0.0
      %10158 = vmatprep.subr.mxu0 0.0
      %10159 = vmatpush2.msra.mxu0 0.0
      %10160 = vmatprep.subr.mxu0 0.0
      %10161 = vmatpush2.msra.mxu0 0.0
      %10162 = vmatprep.subr.mxu0 0.0
      %10163 = vmatpush2.msra.mxu0 0.0
      %10164 = vmatprep.subr.mxu0 0.0
      %10165 = vmatpush2.msra.mxu0 0.0
      %10166 = vmatprep.subr.mxu0 0.0
      %10167 = vmatpush2.msra.mxu0 0.0
      %10168 = vmatprep.subr.mxu0 0.0
      %10169 = vmatpush2.msra.mxu0 0.0
      %10170 = vmatprep.subr.mxu0 0.0
      %10171 = vmatpush2.msra.mxu0 0.0
      %10172 = vmatprep.mubr.f32.mxu0 0.0
      %10173 = vmatmul.mubr.f32.gmra.mxu0 %v9934
      %v10174 = vpop.f32.mrf.mxu0
      %v10175 = vadd.f32 %v9930, %v10174
      %v10176 = vpop.f32.mrf.mxu0
      %v10177 = vadd.f32 %v9930, %v10176
      %10178 = vdwg.mxu0
      %10179 = vmatprep.subr.mxu0 0.0
      %10180 = vmatpush1.msra.mxu0 0.0
      %10181 = vmatprep.subr.mxu0 0.0
      %10182 = vmatpush1.msra.mxu0 0.0
      %10183 = vmatprep.subr.mxu0 0.0
      %10184 = vmatpush1.msra.mxu0 0.0
      %10185 = vmatprep.subr.mxu0 0.0
      %10186 = vmatpush1.msra.mxu0 0.0
      %10187 = vmatprep.subr.mxu0 0.0
      %10188 = vmatpush1.msra.mxu0 0.0
      %10189 = vmatprep.subr.mxu0 0.0
      %10190 = vmatpush1.msra.mxu0 0.0
      %10191 = vmatprep.subr.mxu0 0.0
      %10192 = vmatpush1.msra.mxu0 0.0
      %10193 = vmatprep.subr.mxu0 0.0
      %10194 = vmatpush1.msra.mxu0 0.0
      %10195 = vmatprep.subr.mxu0 0.0
      %10196 = vmatpush1.msra.mxu0 0.0
      %10197 = vmatprep.subr.mxu0 0.0
      %10198 = vmatpush1.msra.mxu0 0.0
      %10199 = vmatprep.subr.mxu0 0.0
      %10200 = vmatpush1.msra.mxu0 0.0
      %10201 = vmatprep.subr.mxu0 0.0
      %10202 = vmatpush1.msra.mxu0 0.0
      %10203 = vmatprep.subr.mxu0 0.0
      %10204 = vmatpush1.msra.mxu0 0.0
      %10205 = vmatprep.subr.mxu0 0.0
      %10206 = vmatpush1.msra.mxu0 0.0
      %10207 = vmatprep.subr.mxu0 0.0
      %10208 = vmatpush1.msra.mxu0 0.0
      %10209 = vmatprep.subr.mxu0 %v9958
      %10210 = vmatpush1.msra.mxu0 %v9955
      %10211 = vmatprep.subr.mxu0 0.0
      %10212 = vmatpush2.msra.mxu0 0.0
      %10213 = vmatprep.subr.mxu0 0.0
      %10214 = vmatpush2.msra.mxu0 0.0
      %10215 = vmatprep.subr.mxu0 0.0
      %10216 = vmatpush2.msra.mxu0 0.0
      %10217 = vmatprep.subr.mxu0 0.0
      %10218 = vmatpush2.msra.mxu0 0.0
      %10219 = vmatprep.subr.mxu0 0.0
      %10220 = vmatpush2.msra.mxu0 0.0
      %10221 = vmatprep.subr.mxu0 0.0
      %10222 = vmatpush2.msra.mxu0 0.0
      %10223 = vmatprep.subr.mxu0 0.0
      %10224 = vmatpush2.msra.mxu0 0.0
      %10225 = vmatprep.subr.mxu0 0.0
      %10226 = vmatpush2.msra.mxu0 0.0
      %10227 = vmatprep.subr.mxu0 0.0
      %10228 = vmatpush2.msra.mxu0 0.0
      %10229 = vmatprep.subr.mxu0 0.0
      %10230 = vmatpush2.msra.mxu0 0.0
      %10231 = vmatprep.subr.mxu0 0.0
      %10232 = vmatpush2.msra.mxu0 0.0
      %10233 = vmatprep.subr.mxu0 0.0
      %10234 = vmatpush2.msra.mxu0 0.0
      %10235 = vmatprep.subr.mxu0 0.0
      %10236 = vmatpush2.msra.mxu0 0.0
      %10237 = vmatprep.subr.mxu0 0.0
      %10238 = vmatpush2.msra.mxu0 0.0
      %10239 = vmatprep.subr.mxu0 0.0
      %10240 = vmatpush2.msra.mxu0 0.0
      %10241 = vmatprep.subr.mxu0 0.0
      %10242 = vmatpush2.msra.mxu0 0.0
      %10243 = vmatprep.mubr.f32.mxu0 0.0
      %10244 = vmatmul.mubr.f32.gmra.mxu0 %v9934
      %v10245 = vpop.f32.mrf.mxu0
      %v10246 = vadd.f32 %v9930, %v10245
      %v10247 = vpop.f32.mrf.mxu0
      %v10248 = vadd.f32 %v9930, %v10247
      %10249 = vdwg.mxu0
      %10250 = vmatprep.subr.mxu0 0.0
      %10251 = vmatpush1.msra.mxu0 0.0
      %10252 = vmatprep.subr.mxu0 0.0
      %10253 = vmatpush1.msra.mxu0 0.0
      %10254 = vmatprep.subr.mxu0 0.0
      %10255 = vmatpush1.msra.mxu0 0.0
      %10256 = vmatprep.subr.mxu0 0.0
      %10257 = vmatpush1.msra.mxu0 0.0
      %10258 = vmatprep.subr.mxu0 0.0
      %10259 = vmatpush1.msra.mxu0 0.0
      %10260 = vmatprep.subr.mxu0 0.0
      %10261 = vmatpush1.msra.mxu0 0.0
      %10262 = vmatprep.subr.mxu0 0.0
      %10263 = vmatpush1.msra.mxu0 0.0
      %10264 = vmatprep.subr.mxu0 0.0
      %10265 = vmatpush1.msra.mxu0 0.0
      %10266 = vmatprep.subr.mxu0 0.0
      %10267 = vmatpush1.msra.mxu0 0.0
      %10268 = vmatprep.subr.mxu0 0.0
      %10269 = vmatpush1.msra.mxu0 0.0
      %10270 = vmatprep.subr.mxu0 0.0
      %10271 = vmatpush1.msra.mxu0 0.0
      %10272 = vmatprep.subr.mxu0 0.0
      %10273 = vmatpush1.msra.mxu0 0.0
      %10274 = vmatprep.subr.mxu0 0.0
      %10275 = vmatpush1.msra.mxu0 0.0
      %10276 = vmatprep.subr.mxu0 0.0
      %10277 = vmatpush1.msra.mxu0 0.0
      %10278 = vmatprep.subr.mxu0 0.0
      %10279 = vmatpush1.msra.mxu0 0.0
      %10280 = vmatprep.subr.mxu0 %v9964
      %10281 = vmatpush1.msra.mxu0 %v9961
      %10282 = vmatprep.subr.mxu0 0.0
      %10283 = vmatpush2.msra.mxu0 0.0
      %10284 = vmatprep.subr.mxu0 0.0
      %10285 = vmatpush2.msra.mxu0 0.0
      %10286 = vmatprep.subr.mxu0 0.0
      %10287 = vmatpush2.msra.mxu0 0.0
      %10288 = vmatprep.subr.mxu0 0.0
      %10289 = vmatpush2.msra.mxu0 0.0
      %10290 = vmatprep.subr.mxu0 0.0
      %10291 = vmatpush2.msra.mxu0 0.0
      %10292 = vmatprep.subr.mxu0 0.0
      %10293 = vmatpush2.msra.mxu0 0.0
      %10294 = vmatprep.subr.mxu0 0.0
      %10295 = vmatpush2.msra.mxu0 0.0
      %10296 = vmatprep.subr.mxu0 0.0
      %10297 = vmatpush2.msra.mxu0 0.0
      %10298 = vmatprep.subr.mxu0 0.0
      %10299 = vmatpush2.msra.mxu0 0.0
      %10300 = vmatprep.subr.mxu0 0.0
      %10301 = vmatpush2.msra.mxu0 0.0
      %10302 = vmatprep.subr.mxu0 0.0
      %10303 = vmatpush2.msra.mxu0 0.0
      %10304 = vmatprep.subr.mxu0 0.0
      %10305 = vmatpush2.msra.mxu0 0.0
      %10306 = vmatprep.subr.mxu0 0.0
      %10307 = vmatpush2.msra.mxu0 0.0
      %10308 = vmatprep.subr.mxu0 0.0
      %10309 = vmatpush2.msra.mxu0 0.0
      %10310 = vmatprep.subr.mxu0 0.0
      %10311 = vmatpush2.msra.mxu0 0.0
      %10312 = vmatprep.subr.mxu0 0.0
      %10313 = vmatpush2.msra.mxu0 0.0
      %10314 = vmatprep.mubr.f32.mxu0 0.0
      %10315 = vmatmul.mubr.f32.gmra.mxu0 %v9934
      %v10316 = vpop.f32.mrf.mxu0
      %v10317 = vadd.f32 %v9930, %v10316
      %v10318 = vpop.f32.mrf.mxu0
      %v10319 = vadd.f32 %v9930, %v10318
      %10320 = vdwg.mxu0
      %v10331 = vcombine.low %v10033, %v10035
      %v10332 = vcombine.low %v10104, %v10106
      %v10333 = vcombine.low %v10175, %v10177
      %v10334 = vcombine.low %v10246, %v10248
      %v10336 = vunpack.c.l.s4 1966171168
      %v10337 = vunpack.c.0.s8 %v10336
      %v10338 = vlaneseq
      %v10339 = vshrl.u32 %v10338, 7
      %v10340 = vsub.s32 %v10337, %v10339
      %v10341 = vrot.slane %v10331, %v10340
      %v10343 = vunpack.c.l.s4 1966171168
      %v10344 = vunpack.c.0.s8 %v10343
      %v10345 = vlaneseq
      %v10346 = vshrl.u32 %v10345, 7
      %v10347 = vsub.s32 %v10344, %v10346
      %v10348 = vrot.slane %v10332, %v10347
      %v10350 = vunpack.c.l.s4 1966171168
      %v10351 = vunpack.c.0.s8 %v10350
      %v10352 = vlaneseq
      %v10353 = vshrl.u32 %v10352, 7
      %v10354 = vsub.s32 %v10351, %v10353
      %v10355 = vrot.slane %v10333, %v10354
      %v10357 = vunpack.c.l.s4 1966171168
      %v10358 = vunpack.c.0.s8 %v10357
      %v10359 = vlaneseq
      %v10360 = vshrl.u32 %v10359, 7
      %v10361 = vsub.s32 %v10358, %v10360
      %v10362 = vrot.slane %v10334, %v10361
      %v10363 = vcombine.low %v10341, %v10348
      %v10364 = vcombine.low %v10355, %v10362
      %v10366 = vunpack.c.l.s4 1966171168
      %v10367 = vunpack.c.0.s8 %v10366
      %v10368 = vlaneseq
      %v10369 = vshrl.u32 %v10368, 7
      %v10370 = vsub.s32 %v10367, %v10369
      %v10371 = vrot.slane %v10363, %v10370
      %v10373 = vunpack.c.l.s4 1966171168
      %v10374 = vunpack.c.0.s8 %v10373
      %v10375 = vlaneseq
      %v10376 = vshrl.u32 %v10375, 7
      %v10377 = vsub.s32 %v10374, %v10376
      %v10378 = vrot.slane %v10364, %v10377
      %v10379 = vcombine.low %v10371, %v10378
      %v10380 = vcombine.low %v10317, %v10319
      %v10382 = vunpack.c.l.s4 1966171168
      %v10383 = vunpack.c.0.s8 %v10382
      %v10384 = vlaneseq
      %v10385 = vshrl.u32 %v10384, 7
      %v10386 = vsub.s32 %v10383, %v10385
      %v10387 = vrot.slane %v10380, %v10386
      %v10389 = vunpack.c.l.s4 1966171168
      %v10390 = vunpack.c.0.s8 %v10389
      %v10391 = vlaneseq
      %v10392 = vshrl.u32 %v10391, 7
      %v10393 = vsub.s32 %v10390, %v10392
      %v10394 = vrot.slane %v10387, %v10393
      %10397 = vst [vmem:[%s249] sm:$0xff] %v10379
      %v10398 = vlaneseq
      %vm10399 = vcmp.ge.s32.totalorder %v10398, 0
      %vm10400 = vcmp.lt.s32.totalorder %v10398, 184
      %vm10401 = vmand %vm10399, %vm10400
      %10402 = vst.msk [vmem:[%s249 + $0x8] sm:$0x3] %vm10401, %v10394
      %p10403 = scmp.lt.s32.totalorder %s17, 3
      %s10404 = scalar_select %p10403, %s17, 3
      %s10405 = smul.addr %s10404, 10
      %s10406 = scalar_lea.vmem %s6, %s10405
      // Predicated region
      $region45: #{_decode_batch.1} parent=43 // pred_check
        %p10407 = pneg %p166
      $region46: #{_decode_batch.1} parent=43 // pred_check_branch
        %10409 = sbr.rel (%p10407) target = $region48
      $region47: #{_decode_batch.1} parent=43 // pred_region
        _
      $region48: #{_decode_batch.1} parent=43 // pred_fallthru
        _
    $region44: #{_decode_batch.1} parent=5 // pred_fallthru
      _
    %p10410 = scmp.le.s32.totalorder 2, %s12
    // Predicated region
    $region49: #{_decode_batch.1} parent=5 // pred_check
      %p10411 = pneg %p10410
    $region50: #{_decode_batch.1} parent=5 // pred_check_branch
      %10413 = sbr.rel (%p10411) target = $region52
    $region51: #{_decode_batch.1} parent=5 // pred_region
      %s10414 = ssub.s32 %s12, 2
      // Predicated region
      $region53: #{_decode_batch.1} parent=51 // pred_check
        %p10415 = pneg %p172
      $region54: #{_decode_batch.1} parent=51 // pred_check_branch
        %10417 = sbr.rel (%p10415) target = $region56
      $region55: #{_decode_batch.1} parent=51 // pred_region
        %p10418 = scmp.lt.s32.totalorder %s18, 3
        %s10419 = scalar_select %p10418, %s18, 3
        %s10420 = smul.addr %s10419, 10
        %s10421 = scalar_lea.vmem %s6, %s10420
      $region56: #{_decode_batch.1} parent=51 // pred_fallthru
        _
    $region52: #{_decode_batch.1} parent=5 // pred_fallthru
      _
  $region6: #{_decode_batch.1} parent=0 // loop_footer
    %s16 = sadd.s32 1, %s12
  $region7: #{_decode_batch.1} parent=0 // loop_footer_branch
    %11 = sbr.rel target = $region3
  $region8: #{_decode_batch.1} parent=0 // loop_exit
    _

</llo_original>
